<compile_context>
chip_gen: v5e
topology: v5e:2x2
jax: 0.10.0
libtpu: 0.0.40
codegen_flags: <defaults>
</compile_context>

<pallas_src>
import math
import functools

import numpy as np
import jax
import jax.numpy as jnp
from jax.experimental import pallas as pl
from jax.experimental.pallas import tpu as pltpu

# ----------------------------- config (small shapes) -----------------------------
VOCAB = 128
MAX_LEN = 16
NUM_LAYERS = 2
HIDDEN = 32
NUM_HEADS = 4
HEAD_DIM = HIDDEN // NUM_HEADS
INNER = 64
BATCH = 2
SEQ = 8            # used for both source and target length
EPS = 1e-5
DTYPE = jnp.float32
NEG_INF = -1e30

# Ordered list of kernel inputs (wrapper and kernel both use this).
_INPUT_KEYS = (
    "src_ids", "tgt_ids", "embed", "pe_src", "pe_tgt", "attn_bias",
    "enc_wq", "enc_wk", "enc_wv", "enc_wo", "enc_bo",
    "enc_w1", "enc_b1", "enc_w2", "enc_b2",
    "dsa_wq", "dsa_wk", "dsa_wv", "dsa_wo", "dsa_bo",
    "dca_wq", "dca_wk", "dca_wv", "dca_wo", "dca_bo",
    "dff_w1", "dff_b1", "dff_w2", "dff_b2",
    "wp", "bp",
)


# ----------------------------- in-kernel building blocks -----------------------------
def _unitnorm(x):
    # ScaleNorm with the learnable g folded into the downstream weights:
    # x / max(||x||_2, eps)
    norm = jnp.sqrt(jnp.sum(x * x, axis=-1, keepdims=True))
    return x / jnp.maximum(norm, EPS)


def _attention(kv_n, q_n, wq, wk, wv, wo, bo, bias, residual):
    """Multi-head attention (pre-normalized inputs) + output projection + residual.

    kv_n: (Nk, H) normalized K/V source rows; q_n: (Nq, H) normalized query rows.
    wq/wk/wv: (nh, H, hd) per-head projections (ScaleNorm g and 1/sqrt(hd) pre-folded).
    wo: (nh, hd, H); bo: (1, H); bias: (nh*Nq, nh*Nk) block-diagonal additive mask.
    Returns attn @ Wo + bo + residual, shape (Nq, H).
    """
    nq = q_n.shape[0]

    def head_rows(src, w):
        # Per-head matmuls land at lane 0; concatenate along rows (sublane-aligned).
        return jnp.concatenate(
            [jnp.dot(src, w[h], preferred_element_type=jnp.float32)
             for h in range(NUM_HEADS)], axis=0)

    q_r = head_rows(q_n, wq)                    # (nh*Nq, hd)
    k_r = head_rows(kv_n, wk)                   # (nh*Nk, hd)
    v_r = head_rows(kv_n, wv)                   # (nh*Nk, hd)

    # One score matmul for all (head, batch) blocks; cross-block entries masked to -1e30.
    s = jnp.einsum('td,sd->ts', q_r, k_r, preferred_element_type=jnp.float32) + bias
    s = s - jnp.max(s, axis=-1, keepdims=True)
    p = jnp.exp(s)
    p = p * pl.reciprocal(jnp.sum(p, axis=-1, keepdims=True), approx=True)
    o_r = jnp.dot(p, v_r, preferred_element_type=jnp.float32)        # (nh*Nq, hd)

    # Head merge folded into the output projection: sum_h o_h @ Wo_h.
    out = jnp.dot(o_r[0:nq, :], wo[0], preferred_element_type=jnp.float32)
    for h in range(1, NUM_HEADS):
        out = out + jnp.dot(o_r[h * nq:(h + 1) * nq, :], wo[h],
                            preferred_element_type=jnp.float32)
    return out + bo + residual


def _ffn(x, w1, b1, w2, b2):
    """Pre-ScaleNorm positionwise FFN + residual (g folded into w1)."""
    xn = _unitnorm(x)
    h = jnp.maximum(jnp.dot(xn, w1, preferred_element_type=jnp.float32) + b1, 0.0)
    return jnp.dot(h, w2, preferred_element_type=jnp.float32) + b2 + x


# ----------------------------- fused kernel -----------------------------
def transformer_fused_kernel(*refs):
    ins = dict(zip(_INPUT_KEYS, refs))
    out_ref = refs[-1]

    attn_bias = ins["attn_bias"][...]           # (nh*B*T, nh*B*S)
    embed = ins["embed"][...]                   # (V, H), pre-scaled by sqrt(H)

    def embed_lookup(ids_ref, pe_ref):
        ids = ids_ref[...]                      # (N, 1) int32
        n = ids.shape[0]
        vocab_iota = jax.lax.broadcasted_iota(jnp.int32, (n, VOCAB), 1)
        onehot = (vocab_iota == ids).astype(jnp.float32)         # (N, V)
        return jnp.dot(onehot, embed, preferred_element_type=jnp.float32) + pe_ref[...]

    # ---- embedding + positional encoding (fused gather via one-hot matmul) ----
    x = embed_lookup(ins["src_ids"], ins["pe_src"])               # (B*S, H)
    t = embed_lookup(ins["tgt_ids"], ins["pe_tgt"])               # (B*T, H)

    # ---- encoder ----
    for l in range(NUM_LAYERS):
        xn = _unitnorm(x)
        x = _attention(xn, xn,
                       ins["enc_wq"][l], ins["enc_wk"][l], ins["enc_wv"][l],
                       ins["enc_wo"][l], ins["enc_bo"][l], attn_bias, x)
        x = _ffn(x, ins["enc_w1"][l], ins["enc_b1"][l],
                 ins["enc_w2"][l], ins["enc_b2"][l])

    # Cross-attention ScaleNorm of the encoder output is layer-independent (g folded
    # into each layer's Wk/Wv), so compute it once.
    encoded_n = _unitnorm(x)

    # ---- decoder ----
    for l in range(NUM_LAYERS):
        tn = _unitnorm(t)
        t = _attention(tn, tn,
                       ins["dsa_wq"][l], ins["dsa_wk"][l], ins["dsa_wv"][l],
                       ins["dsa_wo"][l], ins["dsa_bo"][l], attn_bias, t)
        tn = _unitnorm(t)
        t = _attention(encoded_n, tn,
                       ins["dca_wq"][l], ins["dca_wk"][l], ins["dca_wv"][l],
                       ins["dca_wo"][l], ins["dca_bo"][l], attn_bias, t)
        t = _ffn(t, ins["dff_w1"][l], ins["dff_b1"][l],
                 ins["dff_w2"][l], ins["dff_b2"][l])

    # ---- final projection (dropout = identity in eval mode) ----
    logits = jnp.dot(t, ins["wp"][...], preferred_element_type=jnp.float32) + ins["bp"][...]
    out_ref[...] = logits.astype(out_ref.dtype)


# ----------------------------- pallas_call wrapper -----------------------------
def transformer_forward(packed, source_ids, target_ids):
    B, S = source_ids.shape
    T = target_ids.shape[1]
    args = dict(packed)
    args["src_ids"] = source_ids.reshape(B * S, 1).astype(jnp.int32)
    args["tgt_ids"] = target_ids.reshape(B * T, 1).astype(jnp.int32)
    flat = [args[k] for k in _INPUT_KEYS]

    vmem = pl.BlockSpec(memory_space=pltpu.MemorySpace.VMEM)
    out_flat = pl.pallas_call(
        transformer_fused_kernel,
        out_shape=jax.ShapeDtypeStruct((B * T, VOCAB), DTYPE),
        in_specs=[vmem for _ in flat],
        out_specs=vmem,
    )(*flat)
    return out_flat.reshape(B, T, VOCAB)


# ----------------------------- parameter init (deterministic) -----------------------------
GAIN = (2.5 * HIDDEN) ** (-0.5)   # as in reset_parameters(..., gain=(2.5*hidden)**-0.5)


def _xavier(key, shape, fan_shape=None):
    fi, fo = (fan_shape if fan_shape is not None else shape[-2:])
    std = GAIN * math.sqrt(2.0 / (fi + fo))
    return (std * jax.random.normal(key, shape)).astype(DTYPE)


def init_params(key):
    """Raw parameters mirroring the PyTorch module (weights pre-transposed to (in, out))."""
    L, H, I, V = NUM_LAYERS, HIDDEN, INNER, VOCAB
    keys = iter(jax.random.split(key, 32))
    p = {"embed": _xavier(next(keys), (V, H))}
    for pre in ("enc", "dsa", "dca"):
        p[f"{pre}_wq"] = _xavier(next(keys), (L, H, H), fan_shape=(H, H))
        p[f"{pre}_wk"] = _xavier(next(keys), (L, H, H), fan_shape=(H, H))
        p[f"{pre}_wv"] = _xavier(next(keys), (L, H, H), fan_shape=(H, H))
        p[f"{pre}_wo"] = _xavier(next(keys), (L, H, H), fan_shape=(H, H))
        p[f"{pre}_bo"] = jnp.zeros((L, H), DTYPE)
    for pre in ("enc", "dff"):
        p[f"{pre}_w1"] = _xavier(next(keys), (L, H, I), fan_shape=(H, I))
        p[f"{pre}_b1"] = jnp.zeros((L, I), DTYPE)
        p[f"{pre}_w2"] = _xavier(next(keys), (L, I, H), fan_shape=(I, H))
        p[f"{pre}_b2"] = jnp.zeros((L, H), DTYPE)
    p["wp"] = _xavier(next(keys), (H, V))
    p["bp"] = jnp.zeros((V,), DTYPE)
    # ScaleNorm scales, init = sqrt(hidden) (0-dim params not touched by reset_parameters)
    for name in ("g_enc_attn", "g_enc_ffn", "g_dec_self",
                 "g_dec_cross_x", "g_dec_cross_y", "g_dec_ffn"):
        p[name] = jnp.full((L,), math.sqrt(H), DTYPE)
    return p


def positional_encoding(max_len, d):
    pos = np.arange(max_len, dtype=np.float32)[:, None]
    div = np.exp(np.arange(0, d, 2, dtype=np.float32) * (-math.log(10000.0) / d))
    pe = np.zeros((max_len, d), dtype=np.float32)
    pe[:, 0::2] = np.sin(pos * div)
    pe[:, 1::2] = np.cos(pos * div)
    return jnp.asarray(pe, DTYPE)


def make_attn_bias(B, nh, T, S):
    """Block-diagonal additive mask: 0 where (head, batch) match, -1e30 elsewhere."""
    row_h = np.repeat(np.arange(nh), B * T)
    row_b = np.tile(np.repeat(np.arange(B), T), nh)
    col_h = np.repeat(np.arange(nh), B * S)
    col_b = np.tile(np.repeat(np.arange(B), S), nh)
    allow = (row_h[:, None] == col_h[None, :]) & (row_b[:, None] == col_b[None, :])
    return jnp.asarray(np.where(allow, 0.0, NEG_INF).astype(np.float32))


def pack_params(p):
    """One-time host-side packing: per-head weight slabs, ScaleNorm g and 1/sqrt(hd)
    folded into the projection weights, sqrt(H) folded into the embedding table,
    PE tables tiled over the folded batch, and the block-diagonal attention bias."""
    L, H, I, V = NUM_LAYERS, HIDDEN, INNER, VOCAB
    nh, hd = NUM_HEADS, HEAD_DIM
    B, S, T = BATCH, SEQ, SEQ
    inv_sqrt_hd = 1.0 / math.sqrt(hd)

    def per_head_in(w, scale):      # (L,H,H) -> (L,nh,H,hd), columns of head h
        w = w * scale[:, None, None]
        return jnp.transpose(w.reshape(L, H, nh, hd), (0, 2, 1, 3))

    def per_head_out(w):            # (L,H,H) -> (L,nh,hd,H), rows of head h
        return w.reshape(L, nh, hd, H)

    packed = {}
    # encoder self-attention (K/V and Q both normalized with g_enc_attn)
    packed["enc_wq"] = per_head_in(p["enc_wq"], p["g_enc_attn"] * inv_sqrt_hd)
    packed["enc_wk"] = per_head_in(p["enc_wk"], p["g_enc_attn"])
    packed["enc_wv"] = per_head_in(p["enc_wv"], p["g_enc_attn"])
    packed["enc_wo"] = per_head_out(p["enc_wo"])
    packed["enc_bo"] = p["enc_bo"].reshape(L, 1, H)
    packed["enc_w1"] = p["enc_w1"] * p["g_enc_ffn"][:, None, None]
    packed["enc_b1"] = p["enc_b1"].reshape(L, 1, I)
    packed["enc_w2"] = p["enc_w2"]
    packed["enc_b2"] = p["enc_b2"].reshape(L, 1, H)
    # decoder self-attention
    packed["dsa_wq"] = per_head_in(p["dsa_wq"], p["g_dec_self"] * inv_sqrt_hd)
    packed["dsa_wk"] = per_head_in(p["dsa_wk"], p["g_dec_self"])
    packed["dsa_wv"] = per_head_in(p["dsa_wv"], p["g_dec_self"])
    packed["dsa_wo"] = per_head_out(p["dsa_wo"])
    packed["dsa_bo"] = p["dsa_bo"].reshape(L, 1, H)
    # decoder cross-attention: Q from target (g_dec_cross_y), K/V from encoder (g_dec_cross_x)
    packed["dca_wq"] = per_head_in(p["dca_wq"], p["g_dec_cross_y"] * inv_sqrt_hd)
    packed["dca_wk"] = per_head_in(p["dca_wk"], p["g_dec_cross_x"])
    packed["dca_wv"] = per_head_in(p["dca_wv"], p["g_dec_cross_x"])
    packed["dca_wo"] = per_head_out(p["dca_wo"])
    packed["dca_bo"] = p["dca_bo"].reshape(L, 1, H)
    # decoder FFN
    packed["dff_w1"] = p["dff_w1"] * p["g_dec_ffn"][:, None, None]
    packed["dff_b1"] = p["dff_b1"].reshape(L, 1, I)
    packed["dff_w2"] = p["dff_w2"]
    packed["dff_b2"] = p["dff_b2"].reshape(L, 1, H)
    # final projection
    packed["wp"] = p["wp"]
    packed["bp"] = p["bp"].reshape(1, V)
    # embedding (Embed scale sqrt(H) folded in) and positional encoding (tiled over batch)
    packed["embed"] = p["embed"] * math.sqrt(H)
    pe = positional_encoding(MAX_LEN, H)
    packed["pe_src"] = jnp.tile(pe[:S], (B, 1))
    packed["pe_tgt"] = jnp.tile(pe[:T], (B, 1))
    # block-diagonal (head, batch) attention bias
    packed["attn_bias"] = make_attn_bias(B, nh, T, S)
    return {k: jnp.asarray(v, DTYPE) for k, v in packed.items()}


# ----------------------------- main -----------------------------
if __name__ == "__main__":
    key = jax.random.PRNGKey(0)
    pkey, skey, tkey = jax.random.split(key, 3)

    params = init_params(pkey)
    packed = pack_params(params)   # one-time host-side weight preprocessing

    source_ids = jax.random.randint(skey, (BATCH, SEQ), 0, VOCAB, dtype=jnp.int32)
    target_ids = jax.random.randint(tkey, (BATCH, SEQ), 0, VOCAB, dtype=jnp.int32)

    fwd = jax.jit(transformer_forward)
    out = jax.block_until_ready(fwd(packed, source_ids, target_ids))

    assert out.shape == (BATCH, SEQ, VOCAB), out.shape
    assert bool(jnp.all(jnp.isfinite(out)))
    print("KERNEL_OK")
</pallas_src>

<mosaic_0001>
module attributes {stable_mosaic.version = 11 : i64} {
  func.func @transformer_fused_kernel(%arg0: memref<16x1xi32, #tpu.memory_space<vmem>>, %arg1: memref<16x1xi32, #tpu.memory_space<vmem>>, %arg2: memref<128x32xf32, #tpu.memory_space<vmem>>, %arg3: memref<16x32xf32, #tpu.memory_space<vmem>>, %arg4: memref<16x32xf32, #tpu.memory_space<vmem>>, %arg5: memref<64x64xf32, #tpu.memory_space<vmem>>, %arg6: memref<2x4x32x8xf32, #tpu.memory_space<vmem>>, %arg7: memref<2x4x32x8xf32, #tpu.memory_space<vmem>>, %arg8: memref<2x4x32x8xf32, #tpu.memory_space<vmem>>, %arg9: memref<2x4x8x32xf32, #tpu.memory_space<vmem>>, %arg10: memref<2x1x32xf32, #tpu.memory_space<vmem>>, %arg11: memref<2x32x64xf32, #tpu.memory_space<vmem>>, %arg12: memref<2x1x64xf32, #tpu.memory_space<vmem>>, %arg13: memref<2x64x32xf32, #tpu.memory_space<vmem>>, %arg14: memref<2x1x32xf32, #tpu.memory_space<vmem>>, %arg15: memref<2x4x32x8xf32, #tpu.memory_space<vmem>>, %arg16: memref<2x4x32x8xf32, #tpu.memory_space<vmem>>, %arg17: memref<2x4x32x8xf32, #tpu.memory_space<vmem>>, %arg18: memref<2x4x8x32xf32, #tpu.memory_space<vmem>>, %arg19: memref<2x1x32xf32, #tpu.memory_space<vmem>>, %arg20: memref<2x4x32x8xf32, #tpu.memory_space<vmem>>, %arg21: memref<2x4x32x8xf32, #tpu.memory_space<vmem>>, %arg22: memref<2x4x32x8xf32, #tpu.memory_space<vmem>>, %arg23: memref<2x4x8x32xf32, #tpu.memory_space<vmem>>, %arg24: memref<2x1x32xf32, #tpu.memory_space<vmem>>, %arg25: memref<2x32x64xf32, #tpu.memory_space<vmem>>, %arg26: memref<2x1x64xf32, #tpu.memory_space<vmem>>, %arg27: memref<2x64x32xf32, #tpu.memory_space<vmem>>, %arg28: memref<2x1x32xf32, #tpu.memory_space<vmem>>, %arg29: memref<32x128xf32, #tpu.memory_space<vmem>>, %arg30: memref<1x128xf32, #tpu.memory_space<vmem>>, %arg31: memref<16x128xf32, #tpu.memory_space<vmem>>) attributes {dimension_semantics = [], scalar_prefetch = 0 : i64, scratch_operands = 0 : i64, tpu.core_type = #tpu.core_type<tc>} {
    %c0 = arith.constant 0 : index
    %c0_0 = arith.constant 0 : index
    %0 = vector.load %arg5[%c0, %c0_0] : memref<64x64xf32, #tpu.memory_space<vmem>>, vector<64x64xf32>
    %c0_1 = arith.constant 0 : index
    %c0_2 = arith.constant 0 : index
    %1 = vector.load %arg2[%c0_1, %c0_2] : memref<128x32xf32, #tpu.memory_space<vmem>>, vector<128x32xf32>
    %c0_3 = arith.constant 0 : index
    %c0_4 = arith.constant 0 : index
    %2 = vector.load %arg0[%c0_3, %c0_4] : memref<16x1xi32, #tpu.memory_space<vmem>>, vector<16x1xi32>
    %3 = tpu.iota {dimensions = array<i32: 1>} : vector<16x128xi32>
    %4 = vector.broadcast %2 : vector<16x1xi32> to vector<16x128xi32>
    %5 = arith.cmpi eq, %3, %4 : vector<16x128xi32>
    %6 = arith.extui %5 : vector<16x128xi1> to vector<16x128xi32>
    %7 = arith.sitofp %6 : vector<16x128xi32> to vector<16x128xf32>
    %cst = arith.constant dense<0.000000e+00> : vector<16x32xf32>
    %8 = tpu.matmul %7, %1, %cst {dimension_numbers = #tpu.dot_dimension_numbers<[1], [0], [0], [1], [0, 0, 1, 1], [], []>} : vector<16x128xf32>, vector<128x32xf32>, vector<16x32xf32> -> vector<16x32xf32>
    %c0_5 = arith.constant 0 : index
    %c0_6 = arith.constant 0 : index
    %9 = vector.load %arg3[%c0_5, %c0_6] : memref<16x32xf32, #tpu.memory_space<vmem>>, vector<16x32xf32>
    %10 = arith.addf %8, %9 : vector<16x32xf32>
    %c0_7 = arith.constant 0 : index
    %c0_8 = arith.constant 0 : index
    %11 = vector.load %arg1[%c0_7, %c0_8] : memref<16x1xi32, #tpu.memory_space<vmem>>, vector<16x1xi32>
    %12 = tpu.iota {dimensions = array<i32: 1>} : vector<16x128xi32>
    %13 = vector.broadcast %11 : vector<16x1xi32> to vector<16x128xi32>
    %14 = arith.cmpi eq, %12, %13 : vector<16x128xi32>
    %15 = arith.extui %14 : vector<16x128xi1> to vector<16x128xi32>
    %16 = arith.sitofp %15 : vector<16x128xi32> to vector<16x128xf32>
    %cst_9 = arith.constant dense<0.000000e+00> : vector<16x32xf32>
    %17 = tpu.matmul %16, %1, %cst_9 {dimension_numbers = #tpu.dot_dimension_numbers<[1], [0], [0], [1], [0, 0, 1, 1], [], []>} : vector<16x128xf32>, vector<128x32xf32>, vector<16x32xf32> -> vector<16x32xf32>
    %c0_10 = arith.constant 0 : index
    %c0_11 = arith.constant 0 : index
    %18 = vector.load %arg4[%c0_10, %c0_11] : memref<16x32xf32, #tpu.memory_space<vmem>>, vector<16x32xf32>
    %19 = arith.addf %17, %18 : vector<16x32xf32>
    %20 = arith.mulf %10, %10 : vector<16x32xf32>
    %cst_12 = arith.constant dense<0.000000e+00> : vector<16xf32>
    %21 = vector.multi_reduction <add>, %20, %cst_12 [1] : vector<16x32xf32> to vector<16xf32>
    %22 = vector.shape_cast %21 : vector<16xf32> to vector<16x1xf32>
    %23 = math.sqrt %22 : vector<16x1xf32>
    %cst_13 = arith.constant 9.99999974E-6 : f32
    %24 = vector.broadcast %cst_13 : f32 to vector<16x1xf32>
    %25 = arith.maximumf %23, %24 : vector<16x1xf32>
    %26 = vector.broadcast %25 : vector<16x1xf32> to vector<16x32xf32>
    %27 = arith.divf %10, %26 : vector<16x32xf32>
    %c0_14 = arith.constant 0 : index
    %c0_15 = arith.constant 0 : index
    %c0_16 = arith.constant 0 : index
    %c0_17 = arith.constant 0 : index
    %28 = vector.load %arg6[%c0_14, %c0_15, %c0_16, %c0_17] : memref<2x4x32x8xf32, #tpu.memory_space<vmem>>, vector<1x4x32x8xf32>
    %29 = vector.shape_cast %28 : vector<1x4x32x8xf32> to vector<4x32x8xf32>
    %c0_18 = arith.constant 0 : index
    %c0_19 = arith.constant 0 : index
    %c0_20 = arith.constant 0 : index
    %c0_21 = arith.constant 0 : index
    %30 = vector.load %arg7[%c0_18, %c0_19, %c0_20, %c0_21] : memref<2x4x32x8xf32, #tpu.memory_space<vmem>>, vector<1x4x32x8xf32>
    %31 = vector.shape_cast %30 : vector<1x4x32x8xf32> to vector<4x32x8xf32>
    %c0_22 = arith.constant 0 : index
    %c0_23 = arith.constant 0 : index
    %c0_24 = arith.constant 0 : index
    %c0_25 = arith.constant 0 : index
    %32 = vector.load %arg8[%c0_22, %c0_23, %c0_24, %c0_25] : memref<2x4x32x8xf32, #tpu.memory_space<vmem>>, vector<1x4x32x8xf32>
    %33 = vector.shape_cast %32 : vector<1x4x32x8xf32> to vector<4x32x8xf32>
    %c0_26 = arith.constant 0 : index
    %c0_27 = arith.constant 0 : index
    %c0_28 = arith.constant 0 : index
    %c0_29 = arith.constant 0 : index
    %34 = vector.load %arg9[%c0_26, %c0_27, %c0_28, %c0_29] : memref<2x4x8x32xf32, #tpu.memory_space<vmem>>, vector<1x4x8x32xf32>
    %35 = vector.shape_cast %34 : vector<1x4x8x32xf32> to vector<4x8x32xf32>
    %c0_30 = arith.constant 0 : index
    %c0_31 = arith.constant 0 : index
    %c0_32 = arith.constant 0 : index
    %36 = vector.load %arg10[%c0_30, %c0_31, %c0_32] : memref<2x1x32xf32, #tpu.memory_space<vmem>>, vector<1x1x32xf32>
    %37 = vector.shape_cast %36 : vector<1x1x32xf32> to vector<1x32xf32>
    %38 = vector.extract_strided_slice %29 {offsets = [0, 0, 0], sizes = [1, 32, 8], strides = [1, 1, 1]} : vector<4x32x8xf32> to vector<1x32x8xf32>
    %39 = vector.shape_cast %38 : vector<1x32x8xf32> to vector<32x8xf32>
    %cst_33 = arith.constant dense<0.000000e+00> : vector<16x8xf32>
    %40 = tpu.matmul %27, %39, %cst_33 {dimension_numbers = #tpu.dot_dimension_numbers<[1], [0], [0], [1], [0, 0, 1, 1], [], []>} : vector<16x32xf32>, vector<32x8xf32>, vector<16x8xf32> -> vector<16x8xf32>
    %41 = vector.extract_strided_slice %29 {offsets = [1, 0, 0], sizes = [1, 32, 8], strides = [1, 1, 1]} : vector<4x32x8xf32> to vector<1x32x8xf32>
    %42 = vector.shape_cast %41 : vector<1x32x8xf32> to vector<32x8xf32>
    %cst_34 = arith.constant dense<0.000000e+00> : vector<16x8xf32>
    %43 = tpu.matmul %27, %42, %cst_34 {dimension_numbers = #tpu.dot_dimension_numbers<[1], [0], [0], [1], [0, 0, 1, 1], [], []>} : vector<16x32xf32>, vector<32x8xf32>, vector<16x8xf32> -> vector<16x8xf32>
    %44 = vector.extract_strided_slice %29 {offsets = [2, 0, 0], sizes = [1, 32, 8], strides = [1, 1, 1]} : vector<4x32x8xf32> to vector<1x32x8xf32>
    %45 = vector.shape_cast %44 : vector<1x32x8xf32> to vector<32x8xf32>
    %cst_35 = arith.constant dense<0.000000e+00> : vector<16x8xf32>
    %46 = tpu.matmul %27, %45, %cst_35 {dimension_numbers = #tpu.dot_dimension_numbers<[1], [0], [0], [1], [0, 0, 1, 1], [], []>} : vector<16x32xf32>, vector<32x8xf32>, vector<16x8xf32> -> vector<16x8xf32>
    %47 = vector.extract_strided_slice %29 {offsets = [3, 0, 0], sizes = [1, 32, 8], strides = [1, 1, 1]} : vector<4x32x8xf32> to vector<1x32x8xf32>
    %48 = vector.shape_cast %47 : vector<1x32x8xf32> to vector<32x8xf32>
    %cst_36 = arith.constant dense<0.000000e+00> : vector<16x8xf32>
    %49 = tpu.matmul %27, %48, %cst_36 {dimension_numbers = #tpu.dot_dimension_numbers<[1], [0], [0], [1], [0, 0, 1, 1], [], []>} : vector<16x32xf32>, vector<32x8xf32>, vector<16x8xf32> -> vector<16x8xf32>
    %50 = tpu.concatenate %40, %43, %46, %49 in 0 : vector<16x8xf32>, vector<16x8xf32>, vector<16x8xf32>, vector<16x8xf32> -> vector<64x8xf32>
    %51 = vector.extract_strided_slice %31 {offsets = [0, 0, 0], sizes = [1, 32, 8], strides = [1, 1, 1]} : vector<4x32x8xf32> to vector<1x32x8xf32>
    %52 = vector.shape_cast %51 : vector<1x32x8xf32> to vector<32x8xf32>
    %cst_37 = arith.constant dense<0.000000e+00> : vector<16x8xf32>
    %53 = tpu.matmul %27, %52, %cst_37 {dimension_numbers = #tpu.dot_dimension_numbers<[1], [0], [0], [1], [0, 0, 1, 1], [], []>} : vector<16x32xf32>, vector<32x8xf32>, vector<16x8xf32> -> vector<16x8xf32>
    %54 = vector.extract_strided_slice %31 {offsets = [1, 0, 0], sizes = [1, 32, 8], strides = [1, 1, 1]} : vector<4x32x8xf32> to vector<1x32x8xf32>
    %55 = vector.shape_cast %54 : vector<1x32x8xf32> to vector<32x8xf32>
    %cst_38 = arith.constant dense<0.000000e+00> : vector<16x8xf32>
    %56 = tpu.matmul %27, %55, %cst_38 {dimension_numbers = #tpu.dot_dimension_numbers<[1], [0], [0], [1], [0, 0, 1, 1], [], []>} : vector<16x32xf32>, vector<32x8xf32>, vector<16x8xf32> -> vector<16x8xf32>
    %57 = vector.extract_strided_slice %31 {offsets = [2, 0, 0], sizes = [1, 32, 8], strides = [1, 1, 1]} : vector<4x32x8xf32> to vector<1x32x8xf32>
    %58 = vector.shape_cast %57 : vector<1x32x8xf32> to vector<32x8xf32>
    %cst_39 = arith.constant dense<0.000000e+00> : vector<16x8xf32>
    %59 = tpu.matmul %27, %58, %cst_39 {dimension_numbers = #tpu.dot_dimension_numbers<[1], [0], [0], [1], [0, 0, 1, 1], [], []>} : vector<16x32xf32>, vector<32x8xf32>, vector<16x8xf32> -> vector<16x8xf32>
    %60 = vector.extract_strided_slice %31 {offsets = [3, 0, 0], sizes = [1, 32, 8], strides = [1, 1, 1]} : vector<4x32x8xf32> to vector<1x32x8xf32>
    %61 = vector.shape_cast %60 : vector<1x32x8xf32> to vector<32x8xf32>
    %cst_40 = arith.constant dense<0.000000e+00> : vector<16x8xf32>
    %62 = tpu.matmul %27, %61, %cst_40 {dimension_numbers = #tpu.dot_dimension_numbers<[1], [0], [0], [1], [0, 0, 1, 1], [], []>} : vector<16x32xf32>, vector<32x8xf32>, vector<16x8xf32> -> vector<16x8xf32>
    %63 = tpu.concatenate %53, %56, %59, %62 in 0 : vector<16x8xf32>, vector<16x8xf32>, vector<16x8xf32>, vector<16x8xf32> -> vector<64x8xf32>
    %64 = vector.extract_strided_slice %33 {offsets = [0, 0, 0], sizes = [1, 32, 8], strides = [1, 1, 1]} : vector<4x32x8xf32> to vector<1x32x8xf32>
    %65 = vector.shape_cast %64 : vector<1x32x8xf32> to vector<32x8xf32>
    %cst_41 = arith.constant dense<0.000000e+00> : vector<16x8xf32>
    %66 = tpu.matmul %27, %65, %cst_41 {dimension_numbers = #tpu.dot_dimension_numbers<[1], [0], [0], [1], [0, 0, 1, 1], [], []>} : vector<16x32xf32>, vector<32x8xf32>, vector<16x8xf32> -> vector<16x8xf32>
    %67 = vector.extract_strided_slice %33 {offsets = [1, 0, 0], sizes = [1, 32, 8], strides = [1, 1, 1]} : vector<4x32x8xf32> to vector<1x32x8xf32>
    %68 = vector.shape_cast %67 : vector<1x32x8xf32> to vector<32x8xf32>
    %cst_42 = arith.constant dense<0.000000e+00> : vector<16x8xf32>
    %69 = tpu.matmul %27, %68, %cst_42 {dimension_numbers = #tpu.dot_dimension_numbers<[1], [0], [0], [1], [0, 0, 1, 1], [], []>} : vector<16x32xf32>, vector<32x8xf32>, vector<16x8xf32> -> vector<16x8xf32>
    %70 = vector.extract_strided_slice %33 {offsets = [2, 0, 0], sizes = [1, 32, 8], strides = [1, 1, 1]} : vector<4x32x8xf32> to vector<1x32x8xf32>
    %71 = vector.shape_cast %70 : vector<1x32x8xf32> to vector<32x8xf32>
    %cst_43 = arith.constant dense<0.000000e+00> : vector<16x8xf32>
    %72 = tpu.matmul %27, %71, %cst_43 {dimension_numbers = #tpu.dot_dimension_numbers<[1], [0], [0], [1], [0, 0, 1, 1], [], []>} : vector<16x32xf32>, vector<32x8xf32>, vector<16x8xf32> -> vector<16x8xf32>
    %73 = vector.extract_strided_slice %33 {offsets = [3, 0, 0], sizes = [1, 32, 8], strides = [1, 1, 1]} : vector<4x32x8xf32> to vector<1x32x8xf32>
    %74 = vector.shape_cast %73 : vector<1x32x8xf32> to vector<32x8xf32>
    %cst_44 = arith.constant dense<0.000000e+00> : vector<16x8xf32>
    %75 = tpu.matmul %27, %74, %cst_44 {dimension_numbers = #tpu.dot_dimension_numbers<[1], [0], [0], [1], [0, 0, 1, 1], [], []>} : vector<16x32xf32>, vector<32x8xf32>, vector<16x8xf32> -> vector<16x8xf32>
    %76 = tpu.concatenate %66, %69, %72, %75 in 0 : vector<16x8xf32>, vector<16x8xf32>, vector<16x8xf32>, vector<16x8xf32> -> vector<64x8xf32>
    "tpu.trace_start"() <{level = 10 : i32, message = "td,sd->ts"}> : () -> ()
    %cst_45 = arith.constant dense<0.000000e+00> : vector<64x64xf32>
    %77 = tpu.matmul %50, %63, %cst_45 {dimension_numbers = #tpu.dot_dimension_numbers<[1], [1], [0], [0], [0, 0, 1, 0], [], []>} : vector<64x8xf32>, vector<64x8xf32>, vector<64x64xf32> -> vector<64x64xf32>
    "tpu.trace_stop"() : () -> ()
    %78 = arith.addf %77, %0 : vector<64x64xf32>
    %cst_46 = arith.constant dense<0xFF800000> : vector<64xf32>
    %79 = vector.multi_reduction <maximumf>, %78, %cst_46 [1] : vector<64x64xf32> to vector<64xf32>
    %80 = vector.shape_cast %79 : vector<64xf32> to vector<64x1xf32>
    %81 = vector.broadcast %80 : vector<64x1xf32> to vector<64x64xf32>
    %82 = arith.subf %78, %81 : vector<64x64xf32>
    %83 = math.exp %82 : vector<64x64xf32>
    %cst_47 = arith.constant dense<0.000000e+00> : vector<64xf32>
    %84 = vector.multi_reduction <add>, %83, %cst_47 [1] : vector<64x64xf32> to vector<64xf32>
    %85 = vector.shape_cast %84 : vector<64xf32> to vector<64x1xf32>
    %86 = tpu.reciprocal %85 {approx = true} : vector<64x1xf32> -> vector<64x1xf32>
    %87 = vector.broadcast %86 : vector<64x1xf32> to vector<64x64xf32>
    %88 = arith.mulf %83, %87 : vector<64x64xf32>
    %cst_48 = arith.constant dense<0.000000e+00> : vector<64x8xf32>
    %89 = tpu.matmul %88, %76, %cst_48 {dimension_numbers = #tpu.dot_dimension_numbers<[1], [0], [0], [1], [0, 0, 1, 1], [], []>} : vector<64x64xf32>, vector<64x8xf32>, vector<64x8xf32> -> vector<64x8xf32>
    %90 = vector.extract_strided_slice %89 {offsets = [0, 0], sizes = [16, 8], strides = [1, 1]} : vector<64x8xf32> to vector<16x8xf32>
    %91 = vector.extract_strided_slice %35 {offsets = [0, 0, 0], sizes = [1, 8, 32], strides = [1, 1, 1]} : vector<4x8x32xf32> to vector<1x8x32xf32>
    %92 = vector.shape_cast %91 : vector<1x8x32xf32> to vector<8x32xf32>
    %cst_49 = arith.constant dense<0.000000e+00> : vector<16x32xf32>
    %93 = tpu.matmul %90, %92, %cst_49 {dimension_numbers = #tpu.dot_dimension_numbers<[1], [0], [0], [1], [0, 0, 1, 1], [], []>} : vector<16x8xf32>, vector<8x32xf32>, vector<16x32xf32> -> vector<16x32xf32>
    %94 = vector.extract_strided_slice %89 {offsets = [16, 0], sizes = [16, 8], strides = [1, 1]} : vector<64x8xf32> to vector<16x8xf32>
    %95 = vector.extract_strided_slice %35 {offsets = [1, 0, 0], sizes = [1, 8, 32], strides = [1, 1, 1]} : vector<4x8x32xf32> to vector<1x8x32xf32>
    %96 = vector.shape_cast %95 : vector<1x8x32xf32> to vector<8x32xf32>
    %cst_50 = arith.constant dense<0.000000e+00> : vector<16x32xf32>
    %97 = tpu.matmul %94, %96, %cst_50 {dimension_numbers = #tpu.dot_dimension_numbers<[1], [0], [0], [1], [0, 0, 1, 1], [], []>} : vector<16x8xf32>, vector<8x32xf32>, vector<16x32xf32> -> vector<16x32xf32>
    %98 = arith.addf %93, %97 : vector<16x32xf32>
    %99 = vector.extract_strided_slice %89 {offsets = [32, 0], sizes = [16, 8], strides = [1, 1]} : vector<64x8xf32> to vector<16x8xf32>
    %100 = vector.extract_strided_slice %35 {offsets = [2, 0, 0], sizes = [1, 8, 32], strides = [1, 1, 1]} : vector<4x8x32xf32> to vector<1x8x32xf32>
    %101 = vector.shape_cast %100 : vector<1x8x32xf32> to vector<8x32xf32>
    %cst_51 = arith.constant dense<0.000000e+00> : vector<16x32xf32>
    %102 = tpu.matmul %99, %101, %cst_51 {dimension_numbers = #tpu.dot_dimension_numbers<[1], [0], [0], [1], [0, 0, 1, 1], [], []>} : vector<16x8xf32>, vector<8x32xf32>, vector<16x32xf32> -> vector<16x32xf32>
    %103 = arith.addf %98, %102 : vector<16x32xf32>
    %104 = vector.extract_strided_slice %89 {offsets = [48, 0], sizes = [16, 8], strides = [1, 1]} : vector<64x8xf32> to vector<16x8xf32>
    %105 = vector.extract_strided_slice %35 {offsets = [3, 0, 0], sizes = [1, 8, 32], strides = [1, 1, 1]} : vector<4x8x32xf32> to vector<1x8x32xf32>
    %106 = vector.shape_cast %105 : vector<1x8x32xf32> to vector<8x32xf32>
    %cst_52 = arith.constant dense<0.000000e+00> : vector<16x32xf32>
    %107 = tpu.matmul %104, %106, %cst_52 {dimension_numbers = #tpu.dot_dimension_numbers<[1], [0], [0], [1], [0, 0, 1, 1], [], []>} : vector<16x8xf32>, vector<8x32xf32>, vector<16x32xf32> -> vector<16x32xf32>
    %108 = arith.addf %103, %107 : vector<16x32xf32>
    %109 = vector.broadcast %37 : vector<1x32xf32> to vector<16x32xf32>
    %110 = arith.addf %108, %109 : vector<16x32xf32>
    %111 = arith.addf %110, %10 : vector<16x32xf32>
    %c0_53 = arith.constant 0 : index
    %c0_54 = arith.constant 0 : index
    %c0_55 = arith.constant 0 : index
    %112 = vector.load %arg11[%c0_53, %c0_54, %c0_55] : memref<2x32x64xf32, #tpu.memory_space<vmem>>, vector<1x32x64xf32>
    %113 = vector.shape_cast %112 : vector<1x32x64xf32> to vector<32x64xf32>
    %c0_56 = arith.constant 0 : index
    %c0_57 = arith.constant 0 : index
    %c0_58 = arith.constant 0 : index
    %114 = vector.load %arg12[%c0_56, %c0_57, %c0_58] : memref<2x1x64xf32, #tpu.memory_space<vmem>>, vector<1x1x64xf32>
    %115 = vector.shape_cast %114 : vector<1x1x64xf32> to vector<1x64xf32>
    %c0_59 = arith.constant 0 : index
    %c0_60 = arith.constant 0 : index
    %c0_61 = arith.constant 0 : index
    %116 = vector.load %arg13[%c0_59, %c0_60, %c0_61] : memref<2x64x32xf32, #tpu.memory_space<vmem>>, vector<1x64x32xf32>
    %117 = vector.shape_cast %116 : vector<1x64x32xf32> to vector<64x32xf32>
    %c0_62 = arith.constant 0 : index
    %c0_63 = arith.constant 0 : index
    %c0_64 = arith.constant 0 : index
    %118 = vector.load %arg14[%c0_62, %c0_63, %c0_64] : memref<2x1x32xf32, #tpu.memory_space<vmem>>, vector<1x1x32xf32>
    %119 = vector.shape_cast %118 : vector<1x1x32xf32> to vector<1x32xf32>
    %120 = arith.mulf %111, %111 : vector<16x32xf32>
    %cst_65 = arith.constant dense<0.000000e+00> : vector<16xf32>
    %121 = vector.multi_reduction <add>, %120, %cst_65 [1] : vector<16x32xf32> to vector<16xf32>
    %122 = vector.shape_cast %121 : vector<16xf32> to vector<16x1xf32>
    %123 = math.sqrt %122 : vector<16x1xf32>
    %cst_66 = arith.constant 9.99999974E-6 : f32
    %124 = vector.broadcast %cst_66 : f32 to vector<16x1xf32>
    %125 = arith.maximumf %123, %124 : vector<16x1xf32>
    %126 = vector.broadcast %125 : vector<16x1xf32> to vector<16x32xf32>
    %127 = arith.divf %111, %126 : vector<16x32xf32>
    %cst_67 = arith.constant dense<0.000000e+00> : vector<16x64xf32>
    %128 = tpu.matmul %127, %113, %cst_67 {dimension_numbers = #tpu.dot_dimension_numbers<[1], [0], [0], [1], [0, 0, 1, 1], [], []>} : vector<16x32xf32>, vector<32x64xf32>, vector<16x64xf32> -> vector<16x64xf32>
    %129 = vector.broadcast %115 : vector<1x64xf32> to vector<16x64xf32>
    %130 = arith.addf %128, %129 : vector<16x64xf32>
    %cst_68 = arith.constant 0.000000e+00 : f32
    %131 = vector.broadcast %cst_68 : f32 to vector<16x64xf32>
    %132 = arith.maximumf %130, %131 : vector<16x64xf32>
    %cst_69 = arith.constant dense<0.000000e+00> : vector<16x32xf32>
    %133 = tpu.matmul %132, %117, %cst_69 {dimension_numbers = #tpu.dot_dimension_numbers<[1], [0], [0], [1], [0, 0, 1, 1], [], []>} : vector<16x64xf32>, vector<64x32xf32>, vector<16x32xf32> -> vector<16x32xf32>
    %134 = vector.broadcast %119 : vector<1x32xf32> to vector<16x32xf32>
    %135 = arith.addf %133, %134 : vector<16x32xf32>
    %136 = arith.addf %135, %111 : vector<16x32xf32>
    %137 = arith.mulf %136, %136 : vector<16x32xf32>
    %cst_70 = arith.constant dense<0.000000e+00> : vector<16xf32>
    %138 = vector.multi_reduction <add>, %137, %cst_70 [1] : vector<16x32xf32> to vector<16xf32>
    %139 = vector.shape_cast %138 : vector<16xf32> to vector<16x1xf32>
    %140 = math.sqrt %139 : vector<16x1xf32>
    %cst_71 = arith.constant 9.99999974E-6 : f32
    %141 = vector.broadcast %cst_71 : f32 to vector<16x1xf32>
    %142 = arith.maximumf %140, %141 : vector<16x1xf32>
    %143 = vector.broadcast %142 : vector<16x1xf32> to vector<16x32xf32>
    %144 = arith.divf %136, %143 : vector<16x32xf32>
    %c1 = arith.constant 1 : index
    %c0_72 = arith.constant 0 : index
    %c0_73 = arith.constant 0 : index
    %c0_74 = arith.constant 0 : index
    %145 = vector.load %arg6[%c1, %c0_72, %c0_73, %c0_74] : memref<2x4x32x8xf32, #tpu.memory_space<vmem>>, vector<1x4x32x8xf32>
    %146 = vector.shape_cast %145 : vector<1x4x32x8xf32> to vector<4x32x8xf32>
    %c1_75 = arith.constant 1 : index
    %c0_76 = arith.constant 0 : index
    %c0_77 = arith.constant 0 : index
    %c0_78 = arith.constant 0 : index
    %147 = vector.load %arg7[%c1_75, %c0_76, %c0_77, %c0_78] : memref<2x4x32x8xf32, #tpu.memory_space<vmem>>, vector<1x4x32x8xf32>
    %148 = vector.shape_cast %147 : vector<1x4x32x8xf32> to vector<4x32x8xf32>
    %c1_79 = arith.constant 1 : index
    %c0_80 = arith.constant 0 : index
    %c0_81 = arith.constant 0 : index
    %c0_82 = arith.constant 0 : index
    %149 = vector.load %arg8[%c1_79, %c0_80, %c0_81, %c0_82] : memref<2x4x32x8xf32, #tpu.memory_space<vmem>>, vector<1x4x32x8xf32>
    %150 = vector.shape_cast %149 : vector<1x4x32x8xf32> to vector<4x32x8xf32>
    %c1_83 = arith.constant 1 : index
    %c0_84 = arith.constant 0 : index
    %c0_85 = arith.constant 0 : index
    %c0_86 = arith.constant 0 : index
    %151 = vector.load %arg9[%c1_83, %c0_84, %c0_85, %c0_86] : memref<2x4x8x32xf32, #tpu.memory_space<vmem>>, vector<1x4x8x32xf32>
    %152 = vector.shape_cast %151 : vector<1x4x8x32xf32> to vector<4x8x32xf32>
    %c1_87 = arith.constant 1 : index
    %c0_88 = arith.constant 0 : index
    %c0_89 = arith.constant 0 : index
    %153 = vector.load %arg10[%c1_87, %c0_88, %c0_89] : memref<2x1x32xf32, #tpu.memory_space<vmem>>, vector<1x1x32xf32>
    %154 = vector.shape_cast %153 : vector<1x1x32xf32> to vector<1x32xf32>
    %155 = vector.extract_strided_slice %146 {offsets = [0, 0, 0], sizes = [1, 32, 8], strides = [1, 1, 1]} : vector<4x32x8xf32> to vector<1x32x8xf32>
    %156 = vector.shape_cast %155 : vector<1x32x8xf32> to vector<32x8xf32>
    %cst_90 = arith.constant dense<0.000000e+00> : vector<16x8xf32>
    %157 = tpu.matmul %144, %156, %cst_90 {dimension_numbers = #tpu.dot_dimension_numbers<[1], [0], [0], [1], [0, 0, 1, 1], [], []>} : vector<16x32xf32>, vector<32x8xf32>, vector<16x8xf32> -> vector<16x8xf32>
    %158 = vector.extract_strided_slice %146 {offsets = [1, 0, 0], sizes = [1, 32, 8], strides = [1, 1, 1]} : vector<4x32x8xf32> to vector<1x32x8xf32>
    %159 = vector.shape_cast %158 : vector<1x32x8xf32> to vector<32x8xf32>
    %cst_91 = arith.constant dense<0.000000e+00> : vector<16x8xf32>
    %160 = tpu.matmul %144, %159, %cst_91 {dimension_numbers = #tpu.dot_dimension_numbers<[1], [0], [0], [1], [0, 0, 1, 1], [], []>} : vector<16x32xf32>, vector<32x8xf32>, vector<16x8xf32> -> vector<16x8xf32>
    %161 = vector.extract_strided_slice %146 {offsets = [2, 0, 0], sizes = [1, 32, 8], strides = [1, 1, 1]} : vector<4x32x8xf32> to vector<1x32x8xf32>
    %162 = vector.shape_cast %161 : vector<1x32x8xf32> to vector<32x8xf32>
    %cst_92 = arith.constant dense<0.000000e+00> : vector<16x8xf32>
    %163 = tpu.matmul %144, %162, %cst_92 {dimension_numbers = #tpu.dot_dimension_numbers<[1], [0], [0], [1], [0, 0, 1, 1], [], []>} : vector<16x32xf32>, vector<32x8xf32>, vector<16x8xf32> -> vector<16x8xf32>
    %164 = vector.extract_strided_slice %146 {offsets = [3, 0, 0], sizes = [1, 32, 8], strides = [1, 1, 1]} : vector<4x32x8xf32> to vector<1x32x8xf32>
    %165 = vector.shape_cast %164 : vector<1x32x8xf32> to vector<32x8xf32>
    %cst_93 = arith.constant dense<0.000000e+00> : vector<16x8xf32>
    %166 = tpu.matmul %144, %165, %cst_93 {dimension_numbers = #tpu.dot_dimension_numbers<[1], [0], [0], [1], [0, 0, 1, 1], [], []>} : vector<16x32xf32>, vector<32x8xf32>, vector<16x8xf32> -> vector<16x8xf32>
    %167 = tpu.concatenate %157, %160, %163, %166 in 0 : vector<16x8xf32>, vector<16x8xf32>, vector<16x8xf32>, vector<16x8xf32> -> vector<64x8xf32>
    %168 = vector.extract_strided_slice %148 {offsets = [0, 0, 0], sizes = [1, 32, 8], strides = [1, 1, 1]} : vector<4x32x8xf32> to vector<1x32x8xf32>
    %169 = vector.shape_cast %168 : vector<1x32x8xf32> to vector<32x8xf32>
    %cst_94 = arith.constant dense<0.000000e+00> : vector<16x8xf32>
    %170 = tpu.matmul %144, %169, %cst_94 {dimension_numbers = #tpu.dot_dimension_numbers<[1], [0], [0], [1], [0, 0, 1, 1], [], []>} : vector<16x32xf32>, vector<32x8xf32>, vector<16x8xf32> -> vector<16x8xf32>
    %171 = vector.extract_strided_slice %148 {offsets = [1, 0, 0], sizes = [1, 32, 8], strides = [1, 1, 1]} : vector<4x32x8xf32> to vector<1x32x8xf32>
    %172 = vector.shape_cast %171 : vector<1x32x8xf32> to vector<32x8xf32>
    %cst_95 = arith.constant dense<0.000000e+00> : vector<16x8xf32>
    %173 = tpu.matmul %144, %172, %cst_95 {dimension_numbers = #tpu.dot_dimension_numbers<[1], [0], [0], [1], [0, 0, 1, 1], [], []>} : vector<16x32xf32>, vector<32x8xf32>, vector<16x8xf32> -> vector<16x8xf32>
    %174 = vector.extract_strided_slice %148 {offsets = [2, 0, 0], sizes = [1, 32, 8], strides = [1, 1, 1]} : vector<4x32x8xf32> to vector<1x32x8xf32>
    %175 = vector.shape_cast %174 : vector<1x32x8xf32> to vector<32x8xf32>
    %cst_96 = arith.constant dense<0.000000e+00> : vector<16x8xf32>
    %176 = tpu.matmul %144, %175, %cst_96 {dimension_numbers = #tpu.dot_dimension_numbers<[1], [0], [0], [1], [0, 0, 1, 1], [], []>} : vector<16x32xf32>, vector<32x8xf32>, vector<16x8xf32> -> vector<16x8xf32>
    %177 = vector.extract_strided_slice %148 {offsets = [3, 0, 0], sizes = [1, 32, 8], strides = [1, 1, 1]} : vector<4x32x8xf32> to vector<1x32x8xf32>
    %178 = vector.shape_cast %177 : vector<1x32x8xf32> to vector<32x8xf32>
    %cst_97 = arith.constant dense<0.000000e+00> : vector<16x8xf32>
    %179 = tpu.matmul %144, %178, %cst_97 {dimension_numbers = #tpu.dot_dimension_numbers<[1], [0], [0], [1], [0, 0, 1, 1], [], []>} : vector<16x32xf32>, vector<32x8xf32>, vector<16x8xf32> -> vector<16x8xf32>
    %180 = tpu.concatenate %170, %173, %176, %179 in 0 : vector<16x8xf32>, vector<16x8xf32>, vector<16x8xf32>, vector<16x8xf32> -> vector<64x8xf32>
    %181 = vector.extract_strided_slice %150 {offsets = [0, 0, 0], sizes = [1, 32, 8], strides = [1, 1, 1]} : vector<4x32x8xf32> to vector<1x32x8xf32>
    %182 = vector.shape_cast %181 : vector<1x32x8xf32> to vector<32x8xf32>
    %cst_98 = arith.constant dense<0.000000e+00> : vector<16x8xf32>
    %183 = tpu.matmul %144, %182, %cst_98 {dimension_numbers = #tpu.dot_dimension_numbers<[1], [0], [0], [1], [0, 0, 1, 1], [], []>} : vector<16x32xf32>, vector<32x8xf32>, vector<16x8xf32> -> vector<16x8xf32>
    %184 = vector.extract_strided_slice %150 {offsets = [1, 0, 0], sizes = [1, 32, 8], strides = [1, 1, 1]} : vector<4x32x8xf32> to vector<1x32x8xf32>
    %185 = vector.shape_cast %184 : vector<1x32x8xf32> to vector<32x8xf32>
    %cst_99 = arith.constant dense<0.000000e+00> : vector<16x8xf32>
    %186 = tpu.matmul %144, %185, %cst_99 {dimension_numbers = #tpu.dot_dimension_numbers<[1], [0], [0], [1], [0, 0, 1, 1], [], []>} : vector<16x32xf32>, vector<32x8xf32>, vector<16x8xf32> -> vector<16x8xf32>
    %187 = vector.extract_strided_slice %150 {offsets = [2, 0, 0], sizes = [1, 32, 8], strides = [1, 1, 1]} : vector<4x32x8xf32> to vector<1x32x8xf32>
    %188 = vector.shape_cast %187 : vector<1x32x8xf32> to vector<32x8xf32>
    %cst_100 = arith.constant dense<0.000000e+00> : vector<16x8xf32>
    %189 = tpu.matmul %144, %188, %cst_100 {dimension_numbers = #tpu.dot_dimension_numbers<[1], [0], [0], [1], [0, 0, 1, 1], [], []>} : vector<16x32xf32>, vector<32x8xf32>, vector<16x8xf32> -> vector<16x8xf32>
    %190 = vector.extract_strided_slice %150 {offsets = [3, 0, 0], sizes = [1, 32, 8], strides = [1, 1, 1]} : vector<4x32x8xf32> to vector<1x32x8xf32>
    %191 = vector.shape_cast %190 : vector<1x32x8xf32> to vector<32x8xf32>
    %cst_101 = arith.constant dense<0.000000e+00> : vector<16x8xf32>
    %192 = tpu.matmul %144, %191, %cst_101 {dimension_numbers = #tpu.dot_dimension_numbers<[1], [0], [0], [1], [0, 0, 1, 1], [], []>} : vector<16x32xf32>, vector<32x8xf32>, vector<16x8xf32> -> vector<16x8xf32>
    %193 = tpu.concatenate %183, %186, %189, %192 in 0 : vector<16x8xf32>, vector<16x8xf32>, vector<16x8xf32>, vector<16x8xf32> -> vector<64x8xf32>
    "tpu.trace_start"() <{level = 10 : i32, message = "td,sd->ts"}> : () -> ()
    %cst_102 = arith.constant dense<0.000000e+00> : vector<64x64xf32>
    %194 = tpu.matmul %167, %180, %cst_102 {dimension_numbers = #tpu.dot_dimension_numbers<[1], [1], [0], [0], [0, 0, 1, 0], [], []>} : vector<64x8xf32>, vector<64x8xf32>, vector<64x64xf32> -> vector<64x64xf32>
    "tpu.trace_stop"() : () -> ()
    %195 = arith.addf %194, %0 : vector<64x64xf32>
    %cst_103 = arith.constant dense<0xFF800000> : vector<64xf32>
    %196 = vector.multi_reduction <maximumf>, %195, %cst_103 [1] : vector<64x64xf32> to vector<64xf32>
    %197 = vector.shape_cast %196 : vector<64xf32> to vector<64x1xf32>
    %198 = vector.broadcast %197 : vector<64x1xf32> to vector<64x64xf32>
    %199 = arith.subf %195, %198 : vector<64x64xf32>
    %200 = math.exp %199 : vector<64x64xf32>
    %cst_104 = arith.constant dense<0.000000e+00> : vector<64xf32>
    %201 = vector.multi_reduction <add>, %200, %cst_104 [1] : vector<64x64xf32> to vector<64xf32>
    %202 = vector.shape_cast %201 : vector<64xf32> to vector<64x1xf32>
    %203 = tpu.reciprocal %202 {approx = true} : vector<64x1xf32> -> vector<64x1xf32>
    %204 = vector.broadcast %203 : vector<64x1xf32> to vector<64x64xf32>
    %205 = arith.mulf %200, %204 : vector<64x64xf32>
    %cst_105 = arith.constant dense<0.000000e+00> : vector<64x8xf32>
    %206 = tpu.matmul %205, %193, %cst_105 {dimension_numbers = #tpu.dot_dimension_numbers<[1], [0], [0], [1], [0, 0, 1, 1], [], []>} : vector<64x64xf32>, vector<64x8xf32>, vector<64x8xf32> -> vector<64x8xf32>
    %207 = vector.extract_strided_slice %206 {offsets = [0, 0], sizes = [16, 8], strides = [1, 1]} : vector<64x8xf32> to vector<16x8xf32>
    %208 = vector.extract_strided_slice %152 {offsets = [0, 0, 0], sizes = [1, 8, 32], strides = [1, 1, 1]} : vector<4x8x32xf32> to vector<1x8x32xf32>
    %209 = vector.shape_cast %208 : vector<1x8x32xf32> to vector<8x32xf32>
    %cst_106 = arith.constant dense<0.000000e+00> : vector<16x32xf32>
    %210 = tpu.matmul %207, %209, %cst_106 {dimension_numbers = #tpu.dot_dimension_numbers<[1], [0], [0], [1], [0, 0, 1, 1], [], []>} : vector<16x8xf32>, vector<8x32xf32>, vector<16x32xf32> -> vector<16x32xf32>
    %211 = vector.extract_strided_slice %206 {offsets = [16, 0], sizes = [16, 8], strides = [1, 1]} : vector<64x8xf32> to vector<16x8xf32>
    %212 = vector.extract_strided_slice %152 {offsets = [1, 0, 0], sizes = [1, 8, 32], strides = [1, 1, 1]} : vector<4x8x32xf32> to vector<1x8x32xf32>
    %213 = vector.shape_cast %212 : vector<1x8x32xf32> to vector<8x32xf32>
    %cst_107 = arith.constant dense<0.000000e+00> : vector<16x32xf32>
    %214 = tpu.matmul %211, %213, %cst_107 {dimension_numbers = #tpu.dot_dimension_numbers<[1], [0], [0], [1], [0, 0, 1, 1], [], []>} : vector<16x8xf32>, vector<8x32xf32>, vector<16x32xf32> -> vector<16x32xf32>
    %215 = arith.addf %210, %214 : vector<16x32xf32>
    %216 = vector.extract_strided_slice %206 {offsets = [32, 0], sizes = [16, 8], strides = [1, 1]} : vector<64x8xf32> to vector<16x8xf32>
    %217 = vector.extract_strided_slice %152 {offsets = [2, 0, 0], sizes = [1, 8, 32], strides = [1, 1, 1]} : vector<4x8x32xf32> to vector<1x8x32xf32>
    %218 = vector.shape_cast %217 : vector<1x8x32xf32> to vector<8x32xf32>
    %cst_108 = arith.constant dense<0.000000e+00> : vector<16x32xf32>
    %219 = tpu.matmul %216, %218, %cst_108 {dimension_numbers = #tpu.dot_dimension_numbers<[1], [0], [0], [1], [0, 0, 1, 1], [], []>} : vector<16x8xf32>, vector<8x32xf32>, vector<16x32xf32> -> vector<16x32xf32>
    %220 = arith.addf %215, %219 : vector<16x32xf32>
    %221 = vector.extract_strided_slice %206 {offsets = [48, 0], sizes = [16, 8], strides = [1, 1]} : vector<64x8xf32> to vector<16x8xf32>
    %222 = vector.extract_strided_slice %152 {offsets = [3, 0, 0], sizes = [1, 8, 32], strides = [1, 1, 1]} : vector<4x8x32xf32> to vector<1x8x32xf32>
    %223 = vector.shape_cast %222 : vector<1x8x32xf32> to vector<8x32xf32>
    %cst_109 = arith.constant dense<0.000000e+00> : vector<16x32xf32>
    %224 = tpu.matmul %221, %223, %cst_109 {dimension_numbers = #tpu.dot_dimension_numbers<[1], [0], [0], [1], [0, 0, 1, 1], [], []>} : vector<16x8xf32>, vector<8x32xf32>, vector<16x32xf32> -> vector<16x32xf32>
    %225 = arith.addf %220, %224 : vector<16x32xf32>
    %226 = vector.broadcast %154 : vector<1x32xf32> to vector<16x32xf32>
    %227 = arith.addf %225, %226 : vector<16x32xf32>
    %228 = arith.addf %227, %136 : vector<16x32xf32>
    %c1_110 = arith.constant 1 : index
    %c0_111 = arith.constant 0 : index
    %c0_112 = arith.constant 0 : index
    %229 = vector.load %arg11[%c1_110, %c0_111, %c0_112] : memref<2x32x64xf32, #tpu.memory_space<vmem>>, vector<1x32x64xf32>
    %230 = vector.shape_cast %229 : vector<1x32x64xf32> to vector<32x64xf32>
    %c1_113 = arith.constant 1 : index
    %c0_114 = arith.constant 0 : index
    %c0_115 = arith.constant 0 : index
    %231 = vector.load %arg12[%c1_113, %c0_114, %c0_115] : memref<2x1x64xf32, #tpu.memory_space<vmem>>, vector<1x1x64xf32>
    %232 = vector.shape_cast %231 : vector<1x1x64xf32> to vector<1x64xf32>
    %c1_116 = arith.constant 1 : index
    %c0_117 = arith.constant 0 : index
    %c0_118 = arith.constant 0 : index
    %233 = vector.load %arg13[%c1_116, %c0_117, %c0_118] : memref<2x64x32xf32, #tpu.memory_space<vmem>>, vector<1x64x32xf32>
    %234 = vector.shape_cast %233 : vector<1x64x32xf32> to vector<64x32xf32>
    %c1_119 = arith.constant 1 : index
    %c0_120 = arith.constant 0 : index
    %c0_121 = arith.constant 0 : index
    %235 = vector.load %arg14[%c1_119, %c0_120, %c0_121] : memref<2x1x32xf32, #tpu.memory_space<vmem>>, vector<1x1x32xf32>
    %236 = vector.shape_cast %235 : vector<1x1x32xf32> to vector<1x32xf32>
    %237 = arith.mulf %228, %228 : vector<16x32xf32>
    %cst_122 = arith.constant dense<0.000000e+00> : vector<16xf32>
    %238 = vector.multi_reduction <add>, %237, %cst_122 [1] : vector<16x32xf32> to vector<16xf32>
    %239 = vector.shape_cast %238 : vector<16xf32> to vector<16x1xf32>
    %240 = math.sqrt %239 : vector<16x1xf32>
    %cst_123 = arith.constant 9.99999974E-6 : f32
    %241 = vector.broadcast %cst_123 : f32 to vector<16x1xf32>
    %242 = arith.maximumf %240, %241 : vector<16x1xf32>
    %243 = vector.broadcast %242 : vector<16x1xf32> to vector<16x32xf32>
    %244 = arith.divf %228, %243 : vector<16x32xf32>
    %cst_124 = arith.constant dense<0.000000e+00> : vector<16x64xf32>
    %245 = tpu.matmul %244, %230, %cst_124 {dimension_numbers = #tpu.dot_dimension_numbers<[1], [0], [0], [1], [0, 0, 1, 1], [], []>} : vector<16x32xf32>, vector<32x64xf32>, vector<16x64xf32> -> vector<16x64xf32>
    %246 = vector.broadcast %232 : vector<1x64xf32> to vector<16x64xf32>
    %247 = arith.addf %245, %246 : vector<16x64xf32>
    %cst_125 = arith.constant 0.000000e+00 : f32
    %248 = vector.broadcast %cst_125 : f32 to vector<16x64xf32>
    %249 = arith.maximumf %247, %248 : vector<16x64xf32>
    %cst_126 = arith.constant dense<0.000000e+00> : vector<16x32xf32>
    %250 = tpu.matmul %249, %234, %cst_126 {dimension_numbers = #tpu.dot_dimension_numbers<[1], [0], [0], [1], [0, 0, 1, 1], [], []>} : vector<16x64xf32>, vector<64x32xf32>, vector<16x32xf32> -> vector<16x32xf32>
    %251 = vector.broadcast %236 : vector<1x32xf32> to vector<16x32xf32>
    %252 = arith.addf %250, %251 : vector<16x32xf32>
    %253 = arith.addf %252, %228 : vector<16x32xf32>
    %254 = arith.mulf %253, %253 : vector<16x32xf32>
    %cst_127 = arith.constant dense<0.000000e+00> : vector<16xf32>
    %255 = vector.multi_reduction <add>, %254, %cst_127 [1] : vector<16x32xf32> to vector<16xf32>
    %256 = vector.shape_cast %255 : vector<16xf32> to vector<16x1xf32>
    %257 = math.sqrt %256 : vector<16x1xf32>
    %cst_128 = arith.constant 9.99999974E-6 : f32
    %258 = vector.broadcast %cst_128 : f32 to vector<16x1xf32>
    %259 = arith.maximumf %257, %258 : vector<16x1xf32>
    %260 = vector.broadcast %259 : vector<16x1xf32> to vector<16x32xf32>
    %261 = arith.divf %253, %260 : vector<16x32xf32>
    %262 = arith.mulf %19, %19 : vector<16x32xf32>
    %cst_129 = arith.constant dense<0.000000e+00> : vector<16xf32>
    %263 = vector.multi_reduction <add>, %262, %cst_129 [1] : vector<16x32xf32> to vector<16xf32>
    %264 = vector.shape_cast %263 : vector<16xf32> to vector<16x1xf32>
    %265 = math.sqrt %264 : vector<16x1xf32>
    %cst_130 = arith.constant 9.99999974E-6 : f32
    %266 = vector.broadcast %cst_130 : f32 to vector<16x1xf32>
    %267 = arith.maximumf %265, %266 : vector<16x1xf32>
    %268 = vector.broadcast %267 : vector<16x1xf32> to vector<16x32xf32>
    %269 = arith.divf %19, %268 : vector<16x32xf32>
    %c0_131 = arith.constant 0 : index
    %c0_132 = arith.constant 0 : index
    %c0_133 = arith.constant 0 : index
    %c0_134 = arith.constant 0 : index
    %270 = vector.load %arg15[%c0_131, %c0_132, %c0_133, %c0_134] : memref<2x4x32x8xf32, #tpu.memory_space<vmem>>, vector<1x4x32x8xf32>
    %271 = vector.shape_cast %270 : vector<1x4x32x8xf32> to vector<4x32x8xf32>
    %c0_135 = arith.constant 0 : index
    %c0_136 = arith.constant 0 : index
    %c0_137 = arith.constant 0 : index
    %c0_138 = arith.constant 0 : index
    %272 = vector.load %arg16[%c0_135, %c0_136, %c0_137, %c0_138] : memref<2x4x32x8xf32, #tpu.memory_space<vmem>>, vector<1x4x32x8xf32>
    %273 = vector.shape_cast %272 : vector<1x4x32x8xf32> to vector<4x32x8xf32>
    %c0_139 = arith.constant 0 : index
    %c0_140 = arith.constant 0 : index
    %c0_141 = arith.constant 0 : index
    %c0_142 = arith.constant 0 : index
    %274 = vector.load %arg17[%c0_139, %c0_140, %c0_141, %c0_142] : memref<2x4x32x8xf32, #tpu.memory_space<vmem>>, vector<1x4x32x8xf32>
    %275 = vector.shape_cast %274 : vector<1x4x32x8xf32> to vector<4x32x8xf32>
    %c0_143 = arith.constant 0 : index
    %c0_144 = arith.constant 0 : index
    %c0_145 = arith.constant 0 : index
    %c0_146 = arith.constant 0 : index
    %276 = vector.load %arg18[%c0_143, %c0_144, %c0_145, %c0_146] : memref<2x4x8x32xf32, #tpu.memory_space<vmem>>, vector<1x4x8x32xf32>
    %277 = vector.shape_cast %276 : vector<1x4x8x32xf32> to vector<4x8x32xf32>
    %c0_147 = arith.constant 0 : index
    %c0_148 = arith.constant 0 : index
    %c0_149 = arith.constant 0 : index
    %278 = vector.load %arg19[%c0_147, %c0_148, %c0_149] : memref<2x1x32xf32, #tpu.memory_space<vmem>>, vector<1x1x32xf32>
    %279 = vector.shape_cast %278 : vector<1x1x32xf32> to vector<1x32xf32>
    %280 = vector.extract_strided_slice %271 {offsets = [0, 0, 0], sizes = [1, 32, 8], strides = [1, 1, 1]} : vector<4x32x8xf32> to vector<1x32x8xf32>
    %281 = vector.shape_cast %280 : vector<1x32x8xf32> to vector<32x8xf32>
    %cst_150 = arith.constant dense<0.000000e+00> : vector<16x8xf32>
    %282 = tpu.matmul %269, %281, %cst_150 {dimension_numbers = #tpu.dot_dimension_numbers<[1], [0], [0], [1], [0, 0, 1, 1], [], []>} : vector<16x32xf32>, vector<32x8xf32>, vector<16x8xf32> -> vector<16x8xf32>
    %283 = vector.extract_strided_slice %271 {offsets = [1, 0, 0], sizes = [1, 32, 8], strides = [1, 1, 1]} : vector<4x32x8xf32> to vector<1x32x8xf32>
    %284 = vector.shape_cast %283 : vector<1x32x8xf32> to vector<32x8xf32>
    %cst_151 = arith.constant dense<0.000000e+00> : vector<16x8xf32>
    %285 = tpu.matmul %269, %284, %cst_151 {dimension_numbers = #tpu.dot_dimension_numbers<[1], [0], [0], [1], [0, 0, 1, 1], [], []>} : vector<16x32xf32>, vector<32x8xf32>, vector<16x8xf32> -> vector<16x8xf32>
    %286 = vector.extract_strided_slice %271 {offsets = [2, 0, 0], sizes = [1, 32, 8], strides = [1, 1, 1]} : vector<4x32x8xf32> to vector<1x32x8xf32>
    %287 = vector.shape_cast %286 : vector<1x32x8xf32> to vector<32x8xf32>
    %cst_152 = arith.constant dense<0.000000e+00> : vector<16x8xf32>
    %288 = tpu.matmul %269, %287, %cst_152 {dimension_numbers = #tpu.dot_dimension_numbers<[1], [0], [0], [1], [0, 0, 1, 1], [], []>} : vector<16x32xf32>, vector<32x8xf32>, vector<16x8xf32> -> vector<16x8xf32>
    %289 = vector.extract_strided_slice %271 {offsets = [3, 0, 0], sizes = [1, 32, 8], strides = [1, 1, 1]} : vector<4x32x8xf32> to vector<1x32x8xf32>
    %290 = vector.shape_cast %289 : vector<1x32x8xf32> to vector<32x8xf32>
    %cst_153 = arith.constant dense<0.000000e+00> : vector<16x8xf32>
    %291 = tpu.matmul %269, %290, %cst_153 {dimension_numbers = #tpu.dot_dimension_numbers<[1], [0], [0], [1], [0, 0, 1, 1], [], []>} : vector<16x32xf32>, vector<32x8xf32>, vector<16x8xf32> -> vector<16x8xf32>
    %292 = tpu.concatenate %282, %285, %288, %291 in 0 : vector<16x8xf32>, vector<16x8xf32>, vector<16x8xf32>, vector<16x8xf32> -> vector<64x8xf32>
    %293 = vector.extract_strided_slice %273 {offsets = [0, 0, 0], sizes = [1, 32, 8], strides = [1, 1, 1]} : vector<4x32x8xf32> to vector<1x32x8xf32>
    %294 = vector.shape_cast %293 : vector<1x32x8xf32> to vector<32x8xf32>
    %cst_154 = arith.constant dense<0.000000e+00> : vector<16x8xf32>
    %295 = tpu.matmul %269, %294, %cst_154 {dimension_numbers = #tpu.dot_dimension_numbers<[1], [0], [0], [1], [0, 0, 1, 1], [], []>} : vector<16x32xf32>, vector<32x8xf32>, vector<16x8xf32> -> vector<16x8xf32>
    %296 = vector.extract_strided_slice %273 {offsets = [1, 0, 0], sizes = [1, 32, 8], strides = [1, 1, 1]} : vector<4x32x8xf32> to vector<1x32x8xf32>
    %297 = vector.shape_cast %296 : vector<1x32x8xf32> to vector<32x8xf32>
    %cst_155 = arith.constant dense<0.000000e+00> : vector<16x8xf32>
    %298 = tpu.matmul %269, %297, %cst_155 {dimension_numbers = #tpu.dot_dimension_numbers<[1], [0], [0], [1], [0, 0, 1, 1], [], []>} : vector<16x32xf32>, vector<32x8xf32>, vector<16x8xf32> -> vector<16x8xf32>
    %299 = vector.extract_strided_slice %273 {offsets = [2, 0, 0], sizes = [1, 32, 8], strides = [1, 1, 1]} : vector<4x32x8xf32> to vector<1x32x8xf32>
    %300 = vector.shape_cast %299 : vector<1x32x8xf32> to vector<32x8xf32>
    %cst_156 = arith.constant dense<0.000000e+00> : vector<16x8xf32>
    %301 = tpu.matmul %269, %300, %cst_156 {dimension_numbers = #tpu.dot_dimension_numbers<[1], [0], [0], [1], [0, 0, 1, 1], [], []>} : vector<16x32xf32>, vector<32x8xf32>, vector<16x8xf32> -> vector<16x8xf32>
    %302 = vector.extract_strided_slice %273 {offsets = [3, 0, 0], sizes = [1, 32, 8], strides = [1, 1, 1]} : vector<4x32x8xf32> to vector<1x32x8xf32>
    %303 = vector.shape_cast %302 : vector<1x32x8xf32> to vector<32x8xf32>
    %cst_157 = arith.constant dense<0.000000e+00> : vector<16x8xf32>
    %304 = tpu.matmul %269, %303, %cst_157 {dimension_numbers = #tpu.dot_dimension_numbers<[1], [0], [0], [1], [0, 0, 1, 1], [], []>} : vector<16x32xf32>, vector<32x8xf32>, vector<16x8xf32> -> vector<16x8xf32>
    %305 = tpu.concatenate %295, %298, %301, %304 in 0 : vector<16x8xf32>, vector<16x8xf32>, vector<16x8xf32>, vector<16x8xf32> -> vector<64x8xf32>
    %306 = vector.extract_strided_slice %275 {offsets = [0, 0, 0], sizes = [1, 32, 8], strides = [1, 1, 1]} : vector<4x32x8xf32> to vector<1x32x8xf32>
    %307 = vector.shape_cast %306 : vector<1x32x8xf32> to vector<32x8xf32>
    %cst_158 = arith.constant dense<0.000000e+00> : vector<16x8xf32>
    %308 = tpu.matmul %269, %307, %cst_158 {dimension_numbers = #tpu.dot_dimension_numbers<[1], [0], [0], [1], [0, 0, 1, 1], [], []>} : vector<16x32xf32>, vector<32x8xf32>, vector<16x8xf32> -> vector<16x8xf32>
    %309 = vector.extract_strided_slice %275 {offsets = [1, 0, 0], sizes = [1, 32, 8], strides = [1, 1, 1]} : vector<4x32x8xf32> to vector<1x32x8xf32>
    %310 = vector.shape_cast %309 : vector<1x32x8xf32> to vector<32x8xf32>
    %cst_159 = arith.constant dense<0.000000e+00> : vector<16x8xf32>
    %311 = tpu.matmul %269, %310, %cst_159 {dimension_numbers = #tpu.dot_dimension_numbers<[1], [0], [0], [1], [0, 0, 1, 1], [], []>} : vector<16x32xf32>, vector<32x8xf32>, vector<16x8xf32> -> vector<16x8xf32>
    %312 = vector.extract_strided_slice %275 {offsets = [2, 0, 0], sizes = [1, 32, 8], strides = [1, 1, 1]} : vector<4x32x8xf32> to vector<1x32x8xf32>
    %313 = vector.shape_cast %312 : vector<1x32x8xf32> to vector<32x8xf32>
    %cst_160 = arith.constant dense<0.000000e+00> : vector<16x8xf32>
    %314 = tpu.matmul %269, %313, %cst_160 {dimension_numbers = #tpu.dot_dimension_numbers<[1], [0], [0], [1], [0, 0, 1, 1], [], []>} : vector<16x32xf32>, vector<32x8xf32>, vector<16x8xf32> -> vector<16x8xf32>
    %315 = vector.extract_strided_slice %275 {offsets = [3, 0, 0], sizes = [1, 32, 8], strides = [1, 1, 1]} : vector<4x32x8xf32> to vector<1x32x8xf32>
    %316 = vector.shape_cast %315 : vector<1x32x8xf32> to vector<32x8xf32>
    %cst_161 = arith.constant dense<0.000000e+00> : vector<16x8xf32>
    %317 = tpu.matmul %269, %316, %cst_161 {dimension_numbers = #tpu.dot_dimension_numbers<[1], [0], [0], [1], [0, 0, 1, 1], [], []>} : vector<16x32xf32>, vector<32x8xf32>, vector<16x8xf32> -> vector<16x8xf32>
    %318 = tpu.concatenate %308, %311, %314, %317 in 0 : vector<16x8xf32>, vector<16x8xf32>, vector<16x8xf32>, vector<16x8xf32> -> vector<64x8xf32>
    "tpu.trace_start"() <{level = 10 : i32, message = "td,sd->ts"}> : () -> ()
    %cst_162 = arith.constant dense<0.000000e+00> : vector<64x64xf32>
    %319 = tpu.matmul %292, %305, %cst_162 {dimension_numbers = #tpu.dot_dimension_numbers<[1], [1], [0], [0], [0, 0, 1, 0], [], []>} : vector<64x8xf32>, vector<64x8xf32>, vector<64x64xf32> -> vector<64x64xf32>
    "tpu.trace_stop"() : () -> ()
    %320 = arith.addf %319, %0 : vector<64x64xf32>
    %cst_163 = arith.constant dense<0xFF800000> : vector<64xf32>
    %321 = vector.multi_reduction <maximumf>, %320, %cst_163 [1] : vector<64x64xf32> to vector<64xf32>
    %322 = vector.shape_cast %321 : vector<64xf32> to vector<64x1xf32>
    %323 = vector.broadcast %322 : vector<64x1xf32> to vector<64x64xf32>
    %324 = arith.subf %320, %323 : vector<64x64xf32>
    %325 = math.exp %324 : vector<64x64xf32>
    %cst_164 = arith.constant dense<0.000000e+00> : vector<64xf32>
    %326 = vector.multi_reduction <add>, %325, %cst_164 [1] : vector<64x64xf32> to vector<64xf32>
    %327 = vector.shape_cast %326 : vector<64xf32> to vector<64x1xf32>
    %328 = tpu.reciprocal %327 {approx = true} : vector<64x1xf32> -> vector<64x1xf32>
    %329 = vector.broadcast %328 : vector<64x1xf32> to vector<64x64xf32>
    %330 = arith.mulf %325, %329 : vector<64x64xf32>
    %cst_165 = arith.constant dense<0.000000e+00> : vector<64x8xf32>
    %331 = tpu.matmul %330, %318, %cst_165 {dimension_numbers = #tpu.dot_dimension_numbers<[1], [0], [0], [1], [0, 0, 1, 1], [], []>} : vector<64x64xf32>, vector<64x8xf32>, vector<64x8xf32> -> vector<64x8xf32>
    %332 = vector.extract_strided_slice %331 {offsets = [0, 0], sizes = [16, 8], strides = [1, 1]} : vector<64x8xf32> to vector<16x8xf32>
    %333 = vector.extract_strided_slice %277 {offsets = [0, 0, 0], sizes = [1, 8, 32], strides = [1, 1, 1]} : vector<4x8x32xf32> to vector<1x8x32xf32>
    %334 = vector.shape_cast %333 : vector<1x8x32xf32> to vector<8x32xf32>
    %cst_166 = arith.constant dense<0.000000e+00> : vector<16x32xf32>
    %335 = tpu.matmul %332, %334, %cst_166 {dimension_numbers = #tpu.dot_dimension_numbers<[1], [0], [0], [1], [0, 0, 1, 1], [], []>} : vector<16x8xf32>, vector<8x32xf32>, vector<16x32xf32> -> vector<16x32xf32>
    %336 = vector.extract_strided_slice %331 {offsets = [16, 0], sizes = [16, 8], strides = [1, 1]} : vector<64x8xf32> to vector<16x8xf32>
    %337 = vector.extract_strided_slice %277 {offsets = [1, 0, 0], sizes = [1, 8, 32], strides = [1, 1, 1]} : vector<4x8x32xf32> to vector<1x8x32xf32>
    %338 = vector.shape_cast %337 : vector<1x8x32xf32> to vector<8x32xf32>
    %cst_167 = arith.constant dense<0.000000e+00> : vector<16x32xf32>
    %339 = tpu.matmul %336, %338, %cst_167 {dimension_numbers = #tpu.dot_dimension_numbers<[1], [0], [0], [1], [0, 0, 1, 1], [], []>} : vector<16x8xf32>, vector<8x32xf32>, vector<16x32xf32> -> vector<16x32xf32>
    %340 = arith.addf %335, %339 : vector<16x32xf32>
    %341 = vector.extract_strided_slice %331 {offsets = [32, 0], sizes = [16, 8], strides = [1, 1]} : vector<64x8xf32> to vector<16x8xf32>
    %342 = vector.extract_strided_slice %277 {offsets = [2, 0, 0], sizes = [1, 8, 32], strides = [1, 1, 1]} : vector<4x8x32xf32> to vector<1x8x32xf32>
    %343 = vector.shape_cast %342 : vector<1x8x32xf32> to vector<8x32xf32>
    %cst_168 = arith.constant dense<0.000000e+00> : vector<16x32xf32>
    %344 = tpu.matmul %341, %343, %cst_168 {dimension_numbers = #tpu.dot_dimension_numbers<[1], [0], [0], [1], [0, 0, 1, 1], [], []>} : vector<16x8xf32>, vector<8x32xf32>, vector<16x32xf32> -> vector<16x32xf32>
    %345 = arith.addf %340, %344 : vector<16x32xf32>
    %346 = vector.extract_strided_slice %331 {offsets = [48, 0], sizes = [16, 8], strides = [1, 1]} : vector<64x8xf32> to vector<16x8xf32>
    %347 = vector.extract_strided_slice %277 {offsets = [3, 0, 0], sizes = [1, 8, 32], strides = [1, 1, 1]} : vector<4x8x32xf32> to vector<1x8x32xf32>
    %348 = vector.shape_cast %347 : vector<1x8x32xf32> to vector<8x32xf32>
    %cst_169 = arith.constant dense<0.000000e+00> : vector<16x32xf32>
    %349 = tpu.matmul %346, %348, %cst_169 {dimension_numbers = #tpu.dot_dimension_numbers<[1], [0], [0], [1], [0, 0, 1, 1], [], []>} : vector<16x8xf32>, vector<8x32xf32>, vector<16x32xf32> -> vector<16x32xf32>
    %350 = arith.addf %345, %349 : vector<16x32xf32>
    %351 = vector.broadcast %279 : vector<1x32xf32> to vector<16x32xf32>
    %352 = arith.addf %350, %351 : vector<16x32xf32>
    %353 = arith.addf %352, %19 : vector<16x32xf32>
    %354 = arith.mulf %353, %353 : vector<16x32xf32>
    %cst_170 = arith.constant dense<0.000000e+00> : vector<16xf32>
    %355 = vector.multi_reduction <add>, %354, %cst_170 [1] : vector<16x32xf32> to vector<16xf32>
    %356 = vector.shape_cast %355 : vector<16xf32> to vector<16x1xf32>
    %357 = math.sqrt %356 : vector<16x1xf32>
    %cst_171 = arith.constant 9.99999974E-6 : f32
    %358 = vector.broadcast %cst_171 : f32 to vector<16x1xf32>
    %359 = arith.maximumf %357, %358 : vector<16x1xf32>
    %360 = vector.broadcast %359 : vector<16x1xf32> to vector<16x32xf32>
    %361 = arith.divf %353, %360 : vector<16x32xf32>
    %c0_172 = arith.constant 0 : index
    %c0_173 = arith.constant 0 : index
    %c0_174 = arith.constant 0 : index
    %c0_175 = arith.constant 0 : index
    %362 = vector.load %arg20[%c0_172, %c0_173, %c0_174, %c0_175] : memref<2x4x32x8xf32, #tpu.memory_space<vmem>>, vector<1x4x32x8xf32>
    %363 = vector.shape_cast %362 : vector<1x4x32x8xf32> to vector<4x32x8xf32>
    %c0_176 = arith.constant 0 : index
    %c0_177 = arith.constant 0 : index
    %c0_178 = arith.constant 0 : index
    %c0_179 = arith.constant 0 : index
    %364 = vector.load %arg21[%c0_176, %c0_177, %c0_178, %c0_179] : memref<2x4x32x8xf32, #tpu.memory_space<vmem>>, vector<1x4x32x8xf32>
    %365 = vector.shape_cast %364 : vector<1x4x32x8xf32> to vector<4x32x8xf32>
    %c0_180 = arith.constant 0 : index
    %c0_181 = arith.constant 0 : index
    %c0_182 = arith.constant 0 : index
    %c0_183 = arith.constant 0 : index
    %366 = vector.load %arg22[%c0_180, %c0_181, %c0_182, %c0_183] : memref<2x4x32x8xf32, #tpu.memory_space<vmem>>, vector<1x4x32x8xf32>
    %367 = vector.shape_cast %366 : vector<1x4x32x8xf32> to vector<4x32x8xf32>
    %c0_184 = arith.constant 0 : index
    %c0_185 = arith.constant 0 : index
    %c0_186 = arith.constant 0 : index
    %c0_187 = arith.constant 0 : index
    %368 = vector.load %arg23[%c0_184, %c0_185, %c0_186, %c0_187] : memref<2x4x8x32xf32, #tpu.memory_space<vmem>>, vector<1x4x8x32xf32>
    %369 = vector.shape_cast %368 : vector<1x4x8x32xf32> to vector<4x8x32xf32>
    %c0_188 = arith.constant 0 : index
    %c0_189 = arith.constant 0 : index
    %c0_190 = arith.constant 0 : index
    %370 = vector.load %arg24[%c0_188, %c0_189, %c0_190] : memref<2x1x32xf32, #tpu.memory_space<vmem>>, vector<1x1x32xf32>
    %371 = vector.shape_cast %370 : vector<1x1x32xf32> to vector<1x32xf32>
    %372 = vector.extract_strided_slice %363 {offsets = [0, 0, 0], sizes = [1, 32, 8], strides = [1, 1, 1]} : vector<4x32x8xf32> to vector<1x32x8xf32>
    %373 = vector.shape_cast %372 : vector<1x32x8xf32> to vector<32x8xf32>
    %cst_191 = arith.constant dense<0.000000e+00> : vector<16x8xf32>
    %374 = tpu.matmul %361, %373, %cst_191 {dimension_numbers = #tpu.dot_dimension_numbers<[1], [0], [0], [1], [0, 0, 1, 1], [], []>} : vector<16x32xf32>, vector<32x8xf32>, vector<16x8xf32> -> vector<16x8xf32>
    %375 = vector.extract_strided_slice %363 {offsets = [1, 0, 0], sizes = [1, 32, 8], strides = [1, 1, 1]} : vector<4x32x8xf32> to vector<1x32x8xf32>
    %376 = vector.shape_cast %375 : vector<1x32x8xf32> to vector<32x8xf32>
    %cst_192 = arith.constant dense<0.000000e+00> : vector<16x8xf32>
    %377 = tpu.matmul %361, %376, %cst_192 {dimension_numbers = #tpu.dot_dimension_numbers<[1], [0], [0], [1], [0, 0, 1, 1], [], []>} : vector<16x32xf32>, vector<32x8xf32>, vector<16x8xf32> -> vector<16x8xf32>
    %378 = vector.extract_strided_slice %363 {offsets = [2, 0, 0], sizes = [1, 32, 8], strides = [1, 1, 1]} : vector<4x32x8xf32> to vector<1x32x8xf32>
    %379 = vector.shape_cast %378 : vector<1x32x8xf32> to vector<32x8xf32>
    %cst_193 = arith.constant dense<0.000000e+00> : vector<16x8xf32>
    %380 = tpu.matmul %361, %379, %cst_193 {dimension_numbers = #tpu.dot_dimension_numbers<[1], [0], [0], [1], [0, 0, 1, 1], [], []>} : vector<16x32xf32>, vector<32x8xf32>, vector<16x8xf32> -> vector<16x8xf32>
    %381 = vector.extract_strided_slice %363 {offsets = [3, 0, 0], sizes = [1, 32, 8], strides = [1, 1, 1]} : vector<4x32x8xf32> to vector<1x32x8xf32>
    %382 = vector.shape_cast %381 : vector<1x32x8xf32> to vector<32x8xf32>
    %cst_194 = arith.constant dense<0.000000e+00> : vector<16x8xf32>
    %383 = tpu.matmul %361, %382, %cst_194 {dimension_numbers = #tpu.dot_dimension_numbers<[1], [0], [0], [1], [0, 0, 1, 1], [], []>} : vector<16x32xf32>, vector<32x8xf32>, vector<16x8xf32> -> vector<16x8xf32>
    %384 = tpu.concatenate %374, %377, %380, %383 in 0 : vector<16x8xf32>, vector<16x8xf32>, vector<16x8xf32>, vector<16x8xf32> -> vector<64x8xf32>
    %385 = vector.extract_strided_slice %365 {offsets = [0, 0, 0], sizes = [1, 32, 8], strides = [1, 1, 1]} : vector<4x32x8xf32> to vector<1x32x8xf32>
    %386 = vector.shape_cast %385 : vector<1x32x8xf32> to vector<32x8xf32>
    %cst_195 = arith.constant dense<0.000000e+00> : vector<16x8xf32>
    %387 = tpu.matmul %261, %386, %cst_195 {dimension_numbers = #tpu.dot_dimension_numbers<[1], [0], [0], [1], [0, 0, 1, 1], [], []>} : vector<16x32xf32>, vector<32x8xf32>, vector<16x8xf32> -> vector<16x8xf32>
    %388 = vector.extract_strided_slice %365 {offsets = [1, 0, 0], sizes = [1, 32, 8], strides = [1, 1, 1]} : vector<4x32x8xf32> to vector<1x32x8xf32>
    %389 = vector.shape_cast %388 : vector<1x32x8xf32> to vector<32x8xf32>
    %cst_196 = arith.constant dense<0.000000e+00> : vector<16x8xf32>
    %390 = tpu.matmul %261, %389, %cst_196 {dimension_numbers = #tpu.dot_dimension_numbers<[1], [0], [0], [1], [0, 0, 1, 1], [], []>} : vector<16x32xf32>, vector<32x8xf32>, vector<16x8xf32> -> vector<16x8xf32>
    %391 = vector.extract_strided_slice %365 {offsets = [2, 0, 0], sizes = [1, 32, 8], strides = [1, 1, 1]} : vector<4x32x8xf32> to vector<1x32x8xf32>
    %392 = vector.shape_cast %391 : vector<1x32x8xf32> to vector<32x8xf32>
    %cst_197 = arith.constant dense<0.000000e+00> : vector<16x8xf32>
    %393 = tpu.matmul %261, %392, %cst_197 {dimension_numbers = #tpu.dot_dimension_numbers<[1], [0], [0], [1], [0, 0, 1, 1], [], []>} : vector<16x32xf32>, vector<32x8xf32>, vector<16x8xf32> -> vector<16x8xf32>
    %394 = vector.extract_strided_slice %365 {offsets = [3, 0, 0], sizes = [1, 32, 8], strides = [1, 1, 1]} : vector<4x32x8xf32> to vector<1x32x8xf32>
    %395 = vector.shape_cast %394 : vector<1x32x8xf32> to vector<32x8xf32>
    %cst_198 = arith.constant dense<0.000000e+00> : vector<16x8xf32>
    %396 = tpu.matmul %261, %395, %cst_198 {dimension_numbers = #tpu.dot_dimension_numbers<[1], [0], [0], [1], [0, 0, 1, 1], [], []>} : vector<16x32xf32>, vector<32x8xf32>, vector<16x8xf32> -> vector<16x8xf32>
    %397 = tpu.concatenate %387, %390, %393, %396 in 0 : vector<16x8xf32>, vector<16x8xf32>, vector<16x8xf32>, vector<16x8xf32> -> vector<64x8xf32>
    %398 = vector.extract_strided_slice %367 {offsets = [0, 0, 0], sizes = [1, 32, 8], strides = [1, 1, 1]} : vector<4x32x8xf32> to vector<1x32x8xf32>
    %399 = vector.shape_cast %398 : vector<1x32x8xf32> to vector<32x8xf32>
    %cst_199 = arith.constant dense<0.000000e+00> : vector<16x8xf32>
    %400 = tpu.matmul %261, %399, %cst_199 {dimension_numbers = #tpu.dot_dimension_numbers<[1], [0], [0], [1], [0, 0, 1, 1], [], []>} : vector<16x32xf32>, vector<32x8xf32>, vector<16x8xf32> -> vector<16x8xf32>
    %401 = vector.extract_strided_slice %367 {offsets = [1, 0, 0], sizes = [1, 32, 8], strides = [1, 1, 1]} : vector<4x32x8xf32> to vector<1x32x8xf32>
    %402 = vector.shape_cast %401 : vector<1x32x8xf32> to vector<32x8xf32>
    %cst_200 = arith.constant dense<0.000000e+00> : vector<16x8xf32>
    %403 = tpu.matmul %261, %402, %cst_200 {dimension_numbers = #tpu.dot_dimension_numbers<[1], [0], [0], [1], [0, 0, 1, 1], [], []>} : vector<16x32xf32>, vector<32x8xf32>, vector<16x8xf32> -> vector<16x8xf32>
    %404 = vector.extract_strided_slice %367 {offsets = [2, 0, 0], sizes = [1, 32, 8], strides = [1, 1, 1]} : vector<4x32x8xf32> to vector<1x32x8xf32>
    %405 = vector.shape_cast %404 : vector<1x32x8xf32> to vector<32x8xf32>
    %cst_201 = arith.constant dense<0.000000e+00> : vector<16x8xf32>
    %406 = tpu.matmul %261, %405, %cst_201 {dimension_numbers = #tpu.dot_dimension_numbers<[1], [0], [0], [1], [0, 0, 1, 1], [], []>} : vector<16x32xf32>, vector<32x8xf32>, vector<16x8xf32> -> vector<16x8xf32>
    %407 = vector.extract_strided_slice %367 {offsets = [3, 0, 0], sizes = [1, 32, 8], strides = [1, 1, 1]} : vector<4x32x8xf32> to vector<1x32x8xf32>
    %408 = vector.shape_cast %407 : vector<1x32x8xf32> to vector<32x8xf32>
    %cst_202 = arith.constant dense<0.000000e+00> : vector<16x8xf32>
    %409 = tpu.matmul %261, %408, %cst_202 {dimension_numbers = #tpu.dot_dimension_numbers<[1], [0], [0], [1], [0, 0, 1, 1], [], []>} : vector<16x32xf32>, vector<32x8xf32>, vector<16x8xf32> -> vector<16x8xf32>
    %410 = tpu.concatenate %400, %403, %406, %409 in 0 : vector<16x8xf32>, vector<16x8xf32>, vector<16x8xf32>, vector<16x8xf32> -> vector<64x8xf32>
    "tpu.trace_start"() <{level = 10 : i32, message = "td,sd->ts"}> : () -> ()
    %cst_203 = arith.constant dense<0.000000e+00> : vector<64x64xf32>
    %411 = tpu.matmul %384, %397, %cst_203 {dimension_numbers = #tpu.dot_dimension_numbers<[1], [1], [0], [0], [0, 0, 1, 0], [], []>} : vector<64x8xf32>, vector<64x8xf32>, vector<64x64xf32> -> vector<64x64xf32>
    "tpu.trace_stop"() : () -> ()
    %412 = arith.addf %411, %0 : vector<64x64xf32>
    %cst_204 = arith.constant dense<0xFF800000> : vector<64xf32>
    %413 = vector.multi_reduction <maximumf>, %412, %cst_204 [1] : vector<64x64xf32> to vector<64xf32>
    %414 = vector.shape_cast %413 : vector<64xf32> to vector<64x1xf32>
    %415 = vector.broadcast %414 : vector<64x1xf32> to vector<64x64xf32>
    %416 = arith.subf %412, %415 : vector<64x64xf32>
    %417 = math.exp %416 : vector<64x64xf32>
    %cst_205 = arith.constant dense<0.000000e+00> : vector<64xf32>
    %418 = vector.multi_reduction <add>, %417, %cst_205 [1] : vector<64x64xf32> to vector<64xf32>
    %419 = vector.shape_cast %418 : vector<64xf32> to vector<64x1xf32>
    %420 = tpu.reciprocal %419 {approx = true} : vector<64x1xf32> -> vector<64x1xf32>
    %421 = vector.broadcast %420 : vector<64x1xf32> to vector<64x64xf32>
    %422 = arith.mulf %417, %421 : vector<64x64xf32>
    %cst_206 = arith.constant dense<0.000000e+00> : vector<64x8xf32>
    %423 = tpu.matmul %422, %410, %cst_206 {dimension_numbers = #tpu.dot_dimension_numbers<[1], [0], [0], [1], [0, 0, 1, 1], [], []>} : vector<64x64xf32>, vector<64x8xf32>, vector<64x8xf32> -> vector<64x8xf32>
    %424 = vector.extract_strided_slice %423 {offsets = [0, 0], sizes = [16, 8], strides = [1, 1]} : vector<64x8xf32> to vector<16x8xf32>
    %425 = vector.extract_strided_slice %369 {offsets = [0, 0, 0], sizes = [1, 8, 32], strides = [1, 1, 1]} : vector<4x8x32xf32> to vector<1x8x32xf32>
    %426 = vector.shape_cast %425 : vector<1x8x32xf32> to vector<8x32xf32>
    %cst_207 = arith.constant dense<0.000000e+00> : vector<16x32xf32>
    %427 = tpu.matmul %424, %426, %cst_207 {dimension_numbers = #tpu.dot_dimension_numbers<[1], [0], [0], [1], [0, 0, 1, 1], [], []>} : vector<16x8xf32>, vector<8x32xf32>, vector<16x32xf32> -> vector<16x32xf32>
    %428 = vector.extract_strided_slice %423 {offsets = [16, 0], sizes = [16, 8], strides = [1, 1]} : vector<64x8xf32> to vector<16x8xf32>
    %429 = vector.extract_strided_slice %369 {offsets = [1, 0, 0], sizes = [1, 8, 32], strides = [1, 1, 1]} : vector<4x8x32xf32> to vector<1x8x32xf32>
    %430 = vector.shape_cast %429 : vector<1x8x32xf32> to vector<8x32xf32>
    %cst_208 = arith.constant dense<0.000000e+00> : vector<16x32xf32>
    %431 = tpu.matmul %428, %430, %cst_208 {dimension_numbers = #tpu.dot_dimension_numbers<[1], [0], [0], [1], [0, 0, 1, 1], [], []>} : vector<16x8xf32>, vector<8x32xf32>, vector<16x32xf32> -> vector<16x32xf32>
    %432 = arith.addf %427, %431 : vector<16x32xf32>
    %433 = vector.extract_strided_slice %423 {offsets = [32, 0], sizes = [16, 8], strides = [1, 1]} : vector<64x8xf32> to vector<16x8xf32>
    %434 = vector.extract_strided_slice %369 {offsets = [2, 0, 0], sizes = [1, 8, 32], strides = [1, 1, 1]} : vector<4x8x32xf32> to vector<1x8x32xf32>
    %435 = vector.shape_cast %434 : vector<1x8x32xf32> to vector<8x32xf32>
    %cst_209 = arith.constant dense<0.000000e+00> : vector<16x32xf32>
    %436 = tpu.matmul %433, %435, %cst_209 {dimension_numbers = #tpu.dot_dimension_numbers<[1], [0], [0], [1], [0, 0, 1, 1], [], []>} : vector<16x8xf32>, vector<8x32xf32>, vector<16x32xf32> -> vector<16x32xf32>
    %437 = arith.addf %432, %436 : vector<16x32xf32>
    %438 = vector.extract_strided_slice %423 {offsets = [48, 0], sizes = [16, 8], strides = [1, 1]} : vector<64x8xf32> to vector<16x8xf32>
    %439 = vector.extract_strided_slice %369 {offsets = [3, 0, 0], sizes = [1, 8, 32], strides = [1, 1, 1]} : vector<4x8x32xf32> to vector<1x8x32xf32>
    %440 = vector.shape_cast %439 : vector<1x8x32xf32> to vector<8x32xf32>
    %cst_210 = arith.constant dense<0.000000e+00> : vector<16x32xf32>
    %441 = tpu.matmul %438, %440, %cst_210 {dimension_numbers = #tpu.dot_dimension_numbers<[1], [0], [0], [1], [0, 0, 1, 1], [], []>} : vector<16x8xf32>, vector<8x32xf32>, vector<16x32xf32> -> vector<16x32xf32>
    %442 = arith.addf %437, %441 : vector<16x32xf32>
    %443 = vector.broadcast %371 : vector<1x32xf32> to vector<16x32xf32>
    %444 = arith.addf %442, %443 : vector<16x32xf32>
    %445 = arith.addf %444, %353 : vector<16x32xf32>
    %c0_211 = arith.constant 0 : index
    %c0_212 = arith.constant 0 : index
    %c0_213 = arith.constant 0 : index
    %446 = vector.load %arg25[%c0_211, %c0_212, %c0_213] : memref<2x32x64xf32, #tpu.memory_space<vmem>>, vector<1x32x64xf32>
    %447 = vector.shape_cast %446 : vector<1x32x64xf32> to vector<32x64xf32>
    %c0_214 = arith.constant 0 : index
    %c0_215 = arith.constant 0 : index
    %c0_216 = arith.constant 0 : index
    %448 = vector.load %arg26[%c0_214, %c0_215, %c0_216] : memref<2x1x64xf32, #tpu.memory_space<vmem>>, vector<1x1x64xf32>
    %449 = vector.shape_cast %448 : vector<1x1x64xf32> to vector<1x64xf32>
    %c0_217 = arith.constant 0 : index
    %c0_218 = arith.constant 0 : index
    %c0_219 = arith.constant 0 : index
    %450 = vector.load %arg27[%c0_217, %c0_218, %c0_219] : memref<2x64x32xf32, #tpu.memory_space<vmem>>, vector<1x64x32xf32>
    %451 = vector.shape_cast %450 : vector<1x64x32xf32> to vector<64x32xf32>
    %c0_220 = arith.constant 0 : index
    %c0_221 = arith.constant 0 : index
    %c0_222 = arith.constant 0 : index
    %452 = vector.load %arg28[%c0_220, %c0_221, %c0_222] : memref<2x1x32xf32, #tpu.memory_space<vmem>>, vector<1x1x32xf32>
    %453 = vector.shape_cast %452 : vector<1x1x32xf32> to vector<1x32xf32>
    %454 = arith.mulf %445, %445 : vector<16x32xf32>
    %cst_223 = arith.constant dense<0.000000e+00> : vector<16xf32>
    %455 = vector.multi_reduction <add>, %454, %cst_223 [1] : vector<16x32xf32> to vector<16xf32>
    %456 = vector.shape_cast %455 : vector<16xf32> to vector<16x1xf32>
    %457 = math.sqrt %456 : vector<16x1xf32>
    %cst_224 = arith.constant 9.99999974E-6 : f32
    %458 = vector.broadcast %cst_224 : f32 to vector<16x1xf32>
    %459 = arith.maximumf %457, %458 : vector<16x1xf32>
    %460 = vector.broadcast %459 : vector<16x1xf32> to vector<16x32xf32>
    %461 = arith.divf %445, %460 : vector<16x32xf32>
    %cst_225 = arith.constant dense<0.000000e+00> : vector<16x64xf32>
    %462 = tpu.matmul %461, %447, %cst_225 {dimension_numbers = #tpu.dot_dimension_numbers<[1], [0], [0], [1], [0, 0, 1, 1], [], []>} : vector<16x32xf32>, vector<32x64xf32>, vector<16x64xf32> -> vector<16x64xf32>
    %463 = vector.broadcast %449 : vector<1x64xf32> to vector<16x64xf32>
    %464 = arith.addf %462, %463 : vector<16x64xf32>
    %cst_226 = arith.constant 0.000000e+00 : f32
    %465 = vector.broadcast %cst_226 : f32 to vector<16x64xf32>
    %466 = arith.maximumf %464, %465 : vector<16x64xf32>
    %cst_227 = arith.constant dense<0.000000e+00> : vector<16x32xf32>
    %467 = tpu.matmul %466, %451, %cst_227 {dimension_numbers = #tpu.dot_dimension_numbers<[1], [0], [0], [1], [0, 0, 1, 1], [], []>} : vector<16x64xf32>, vector<64x32xf32>, vector<16x32xf32> -> vector<16x32xf32>
    %468 = vector.broadcast %453 : vector<1x32xf32> to vector<16x32xf32>
    %469 = arith.addf %467, %468 : vector<16x32xf32>
    %470 = arith.addf %469, %445 : vector<16x32xf32>
    %471 = arith.mulf %470, %470 : vector<16x32xf32>
    %cst_228 = arith.constant dense<0.000000e+00> : vector<16xf32>
    %472 = vector.multi_reduction <add>, %471, %cst_228 [1] : vector<16x32xf32> to vector<16xf32>
    %473 = vector.shape_cast %472 : vector<16xf32> to vector<16x1xf32>
    %474 = math.sqrt %473 : vector<16x1xf32>
    %cst_229 = arith.constant 9.99999974E-6 : f32
    %475 = vector.broadcast %cst_229 : f32 to vector<16x1xf32>
    %476 = arith.maximumf %474, %475 : vector<16x1xf32>
    %477 = vector.broadcast %476 : vector<16x1xf32> to vector<16x32xf32>
    %478 = arith.divf %470, %477 : vector<16x32xf32>
    %c1_230 = arith.constant 1 : index
    %c0_231 = arith.constant 0 : index
    %c0_232 = arith.constant 0 : index
    %c0_233 = arith.constant 0 : index
    %479 = vector.load %arg15[%c1_230, %c0_231, %c0_232, %c0_233] : memref<2x4x32x8xf32, #tpu.memory_space<vmem>>, vector<1x4x32x8xf32>
    %480 = vector.shape_cast %479 : vector<1x4x32x8xf32> to vector<4x32x8xf32>
    %c1_234 = arith.constant 1 : index
    %c0_235 = arith.constant 0 : index
    %c0_236 = arith.constant 0 : index
    %c0_237 = arith.constant 0 : index
    %481 = vector.load %arg16[%c1_234, %c0_235, %c0_236, %c0_237] : memref<2x4x32x8xf32, #tpu.memory_space<vmem>>, vector<1x4x32x8xf32>
    %482 = vector.shape_cast %481 : vector<1x4x32x8xf32> to vector<4x32x8xf32>
    %c1_238 = arith.constant 1 : index
    %c0_239 = arith.constant 0 : index
    %c0_240 = arith.constant 0 : index
    %c0_241 = arith.constant 0 : index
    %483 = vector.load %arg17[%c1_238, %c0_239, %c0_240, %c0_241] : memref<2x4x32x8xf32, #tpu.memory_space<vmem>>, vector<1x4x32x8xf32>
    %484 = vector.shape_cast %483 : vector<1x4x32x8xf32> to vector<4x32x8xf32>
    %c1_242 = arith.constant 1 : index
    %c0_243 = arith.constant 0 : index
    %c0_244 = arith.constant 0 : index
    %c0_245 = arith.constant 0 : index
    %485 = vector.load %arg18[%c1_242, %c0_243, %c0_244, %c0_245] : memref<2x4x8x32xf32, #tpu.memory_space<vmem>>, vector<1x4x8x32xf32>
    %486 = vector.shape_cast %485 : vector<1x4x8x32xf32> to vector<4x8x32xf32>
    %c1_246 = arith.constant 1 : index
    %c0_247 = arith.constant 0 : index
    %c0_248 = arith.constant 0 : index
    %487 = vector.load %arg19[%c1_246, %c0_247, %c0_248] : memref<2x1x32xf32, #tpu.memory_space<vmem>>, vector<1x1x32xf32>
    %488 = vector.shape_cast %487 : vector<1x1x32xf32> to vector<1x32xf32>
    %489 = vector.extract_strided_slice %480 {offsets = [0, 0, 0], sizes = [1, 32, 8], strides = [1, 1, 1]} : vector<4x32x8xf32> to vector<1x32x8xf32>
    %490 = vector.shape_cast %489 : vector<1x32x8xf32> to vector<32x8xf32>
    %cst_249 = arith.constant dense<0.000000e+00> : vector<16x8xf32>
    %491 = tpu.matmul %478, %490, %cst_249 {dimension_numbers = #tpu.dot_dimension_numbers<[1], [0], [0], [1], [0, 0, 1, 1], [], []>} : vector<16x32xf32>, vector<32x8xf32>, vector<16x8xf32> -> vector<16x8xf32>
    %492 = vector.extract_strided_slice %480 {offsets = [1, 0, 0], sizes = [1, 32, 8], strides = [1, 1, 1]} : vector<4x32x8xf32> to vector<1x32x8xf32>
    %493 = vector.shape_cast %492 : vector<1x32x8xf32> to vector<32x8xf32>
    %cst_250 = arith.constant dense<0.000000e+00> : vector<16x8xf32>
    %494 = tpu.matmul %478, %493, %cst_250 {dimension_numbers = #tpu.dot_dimension_numbers<[1], [0], [0], [1], [0, 0, 1, 1], [], []>} : vector<16x32xf32>, vector<32x8xf32>, vector<16x8xf32> -> vector<16x8xf32>
    %495 = vector.extract_strided_slice %480 {offsets = [2, 0, 0], sizes = [1, 32, 8], strides = [1, 1, 1]} : vector<4x32x8xf32> to vector<1x32x8xf32>
    %496 = vector.shape_cast %495 : vector<1x32x8xf32> to vector<32x8xf32>
    %cst_251 = arith.constant dense<0.000000e+00> : vector<16x8xf32>
    %497 = tpu.matmul %478, %496, %cst_251 {dimension_numbers = #tpu.dot_dimension_numbers<[1], [0], [0], [1], [0, 0, 1, 1], [], []>} : vector<16x32xf32>, vector<32x8xf32>, vector<16x8xf32> -> vector<16x8xf32>
    %498 = vector.extract_strided_slice %480 {offsets = [3, 0, 0], sizes = [1, 32, 8], strides = [1, 1, 1]} : vector<4x32x8xf32> to vector<1x32x8xf32>
    %499 = vector.shape_cast %498 : vector<1x32x8xf32> to vector<32x8xf32>
    %cst_252 = arith.constant dense<0.000000e+00> : vector<16x8xf32>
    %500 = tpu.matmul %478, %499, %cst_252 {dimension_numbers = #tpu.dot_dimension_numbers<[1], [0], [0], [1], [0, 0, 1, 1], [], []>} : vector<16x32xf32>, vector<32x8xf32>, vector<16x8xf32> -> vector<16x8xf32>
    %501 = tpu.concatenate %491, %494, %497, %500 in 0 : vector<16x8xf32>, vector<16x8xf32>, vector<16x8xf32>, vector<16x8xf32> -> vector<64x8xf32>
    %502 = vector.extract_strided_slice %482 {offsets = [0, 0, 0], sizes = [1, 32, 8], strides = [1, 1, 1]} : vector<4x32x8xf32> to vector<1x32x8xf32>
    %503 = vector.shape_cast %502 : vector<1x32x8xf32> to vector<32x8xf32>
    %cst_253 = arith.constant dense<0.000000e+00> : vector<16x8xf32>
    %504 = tpu.matmul %478, %503, %cst_253 {dimension_numbers = #tpu.dot_dimension_numbers<[1], [0], [0], [1], [0, 0, 1, 1], [], []>} : vector<16x32xf32>, vector<32x8xf32>, vector<16x8xf32> -> vector<16x8xf32>
    %505 = vector.extract_strided_slice %482 {offsets = [1, 0, 0], sizes = [1, 32, 8], strides = [1, 1, 1]} : vector<4x32x8xf32> to vector<1x32x8xf32>
    %506 = vector.shape_cast %505 : vector<1x32x8xf32> to vector<32x8xf32>
    %cst_254 = arith.constant dense<0.000000e+00> : vector<16x8xf32>
    %507 = tpu.matmul %478, %506, %cst_254 {dimension_numbers = #tpu.dot_dimension_numbers<[1], [0], [0], [1], [0, 0, 1, 1], [], []>} : vector<16x32xf32>, vector<32x8xf32>, vector<16x8xf32> -> vector<16x8xf32>
    %508 = vector.extract_strided_slice %482 {offsets = [2, 0, 0], sizes = [1, 32, 8], strides = [1, 1, 1]} : vector<4x32x8xf32> to vector<1x32x8xf32>
    %509 = vector.shape_cast %508 : vector<1x32x8xf32> to vector<32x8xf32>
    %cst_255 = arith.constant dense<0.000000e+00> : vector<16x8xf32>
    %510 = tpu.matmul %478, %509, %cst_255 {dimension_numbers = #tpu.dot_dimension_numbers<[1], [0], [0], [1], [0, 0, 1, 1], [], []>} : vector<16x32xf32>, vector<32x8xf32>, vector<16x8xf32> -> vector<16x8xf32>
    %511 = vector.extract_strided_slice %482 {offsets = [3, 0, 0], sizes = [1, 32, 8], strides = [1, 1, 1]} : vector<4x32x8xf32> to vector<1x32x8xf32>
    %512 = vector.shape_cast %511 : vector<1x32x8xf32> to vector<32x8xf32>
    %cst_256 = arith.constant dense<0.000000e+00> : vector<16x8xf32>
    %513 = tpu.matmul %478, %512, %cst_256 {dimension_numbers = #tpu.dot_dimension_numbers<[1], [0], [0], [1], [0, 0, 1, 1], [], []>} : vector<16x32xf32>, vector<32x8xf32>, vector<16x8xf32> -> vector<16x8xf32>
    %514 = tpu.concatenate %504, %507, %510, %513 in 0 : vector<16x8xf32>, vector<16x8xf32>, vector<16x8xf32>, vector<16x8xf32> -> vector<64x8xf32>
    %515 = vector.extract_strided_slice %484 {offsets = [0, 0, 0], sizes = [1, 32, 8], strides = [1, 1, 1]} : vector<4x32x8xf32> to vector<1x32x8xf32>
    %516 = vector.shape_cast %515 : vector<1x32x8xf32> to vector<32x8xf32>
    %cst_257 = arith.constant dense<0.000000e+00> : vector<16x8xf32>
    %517 = tpu.matmul %478, %516, %cst_257 {dimension_numbers = #tpu.dot_dimension_numbers<[1], [0], [0], [1], [0, 0, 1, 1], [], []>} : vector<16x32xf32>, vector<32x8xf32>, vector<16x8xf32> -> vector<16x8xf32>
    %518 = vector.extract_strided_slice %484 {offsets = [1, 0, 0], sizes = [1, 32, 8], strides = [1, 1, 1]} : vector<4x32x8xf32> to vector<1x32x8xf32>
    %519 = vector.shape_cast %518 : vector<1x32x8xf32> to vector<32x8xf32>
    %cst_258 = arith.constant dense<0.000000e+00> : vector<16x8xf32>
    %520 = tpu.matmul %478, %519, %cst_258 {dimension_numbers = #tpu.dot_dimension_numbers<[1], [0], [0], [1], [0, 0, 1, 1], [], []>} : vector<16x32xf32>, vector<32x8xf32>, vector<16x8xf32> -> vector<16x8xf32>
    %521 = vector.extract_strided_slice %484 {offsets = [2, 0, 0], sizes = [1, 32, 8], strides = [1, 1, 1]} : vector<4x32x8xf32> to vector<1x32x8xf32>
    %522 = vector.shape_cast %521 : vector<1x32x8xf32> to vector<32x8xf32>
    %cst_259 = arith.constant dense<0.000000e+00> : vector<16x8xf32>
    %523 = tpu.matmul %478, %522, %cst_259 {dimension_numbers = #tpu.dot_dimension_numbers<[1], [0], [0], [1], [0, 0, 1, 1], [], []>} : vector<16x32xf32>, vector<32x8xf32>, vector<16x8xf32> -> vector<16x8xf32>
    %524 = vector.extract_strided_slice %484 {offsets = [3, 0, 0], sizes = [1, 32, 8], strides = [1, 1, 1]} : vector<4x32x8xf32> to vector<1x32x8xf32>
    %525 = vector.shape_cast %524 : vector<1x32x8xf32> to vector<32x8xf32>
    %cst_260 = arith.constant dense<0.000000e+00> : vector<16x8xf32>
    %526 = tpu.matmul %478, %525, %cst_260 {dimension_numbers = #tpu.dot_dimension_numbers<[1], [0], [0], [1], [0, 0, 1, 1], [], []>} : vector<16x32xf32>, vector<32x8xf32>, vector<16x8xf32> -> vector<16x8xf32>
    %527 = tpu.concatenate %517, %520, %523, %526 in 0 : vector<16x8xf32>, vector<16x8xf32>, vector<16x8xf32>, vector<16x8xf32> -> vector<64x8xf32>
    "tpu.trace_start"() <{level = 10 : i32, message = "td,sd->ts"}> : () -> ()
    %cst_261 = arith.constant dense<0.000000e+00> : vector<64x64xf32>
    %528 = tpu.matmul %501, %514, %cst_261 {dimension_numbers = #tpu.dot_dimension_numbers<[1], [1], [0], [0], [0, 0, 1, 0], [], []>} : vector<64x8xf32>, vector<64x8xf32>, vector<64x64xf32> -> vector<64x64xf32>
    "tpu.trace_stop"() : () -> ()
    %529 = arith.addf %528, %0 : vector<64x64xf32>
    %cst_262 = arith.constant dense<0xFF800000> : vector<64xf32>
    %530 = vector.multi_reduction <maximumf>, %529, %cst_262 [1] : vector<64x64xf32> to vector<64xf32>
    %531 = vector.shape_cast %530 : vector<64xf32> to vector<64x1xf32>
    %532 = vector.broadcast %531 : vector<64x1xf32> to vector<64x64xf32>
    %533 = arith.subf %529, %532 : vector<64x64xf32>
    %534 = math.exp %533 : vector<64x64xf32>
    %cst_263 = arith.constant dense<0.000000e+00> : vector<64xf32>
    %535 = vector.multi_reduction <add>, %534, %cst_263 [1] : vector<64x64xf32> to vector<64xf32>
    %536 = vector.shape_cast %535 : vector<64xf32> to vector<64x1xf32>
    %537 = tpu.reciprocal %536 {approx = true} : vector<64x1xf32> -> vector<64x1xf32>
    %538 = vector.broadcast %537 : vector<64x1xf32> to vector<64x64xf32>
    %539 = arith.mulf %534, %538 : vector<64x64xf32>
    %cst_264 = arith.constant dense<0.000000e+00> : vector<64x8xf32>
    %540 = tpu.matmul %539, %527, %cst_264 {dimension_numbers = #tpu.dot_dimension_numbers<[1], [0], [0], [1], [0, 0, 1, 1], [], []>} : vector<64x64xf32>, vector<64x8xf32>, vector<64x8xf32> -> vector<64x8xf32>
    %541 = vector.extract_strided_slice %540 {offsets = [0, 0], sizes = [16, 8], strides = [1, 1]} : vector<64x8xf32> to vector<16x8xf32>
    %542 = vector.extract_strided_slice %486 {offsets = [0, 0, 0], sizes = [1, 8, 32], strides = [1, 1, 1]} : vector<4x8x32xf32> to vector<1x8x32xf32>
    %543 = vector.shape_cast %542 : vector<1x8x32xf32> to vector<8x32xf32>
    %cst_265 = arith.constant dense<0.000000e+00> : vector<16x32xf32>
    %544 = tpu.matmul %541, %543, %cst_265 {dimension_numbers = #tpu.dot_dimension_numbers<[1], [0], [0], [1], [0, 0, 1, 1], [], []>} : vector<16x8xf32>, vector<8x32xf32>, vector<16x32xf32> -> vector<16x32xf32>
    %545 = vector.extract_strided_slice %540 {offsets = [16, 0], sizes = [16, 8], strides = [1, 1]} : vector<64x8xf32> to vector<16x8xf32>
    %546 = vector.extract_strided_slice %486 {offsets = [1, 0, 0], sizes = [1, 8, 32], strides = [1, 1, 1]} : vector<4x8x32xf32> to vector<1x8x32xf32>
    %547 = vector.shape_cast %546 : vector<1x8x32xf32> to vector<8x32xf32>
    %cst_266 = arith.constant dense<0.000000e+00> : vector<16x32xf32>
    %548 = tpu.matmul %545, %547, %cst_266 {dimension_numbers = #tpu.dot_dimension_numbers<[1], [0], [0], [1], [0, 0, 1, 1], [], []>} : vector<16x8xf32>, vector<8x32xf32>, vector<16x32xf32> -> vector<16x32xf32>
    %549 = arith.addf %544, %548 : vector<16x32xf32>
    %550 = vector.extract_strided_slice %540 {offsets = [32, 0], sizes = [16, 8], strides = [1, 1]} : vector<64x8xf32> to vector<16x8xf32>
    %551 = vector.extract_strided_slice %486 {offsets = [2, 0, 0], sizes = [1, 8, 32], strides = [1, 1, 1]} : vector<4x8x32xf32> to vector<1x8x32xf32>
    %552 = vector.shape_cast %551 : vector<1x8x32xf32> to vector<8x32xf32>
    %cst_267 = arith.constant dense<0.000000e+00> : vector<16x32xf32>
    %553 = tpu.matmul %550, %552, %cst_267 {dimension_numbers = #tpu.dot_dimension_numbers<[1], [0], [0], [1], [0, 0, 1, 1], [], []>} : vector<16x8xf32>, vector<8x32xf32>, vector<16x32xf32> -> vector<16x32xf32>
    %554 = arith.addf %549, %553 : vector<16x32xf32>
    %555 = vector.extract_strided_slice %540 {offsets = [48, 0], sizes = [16, 8], strides = [1, 1]} : vector<64x8xf32> to vector<16x8xf32>
    %556 = vector.extract_strided_slice %486 {offsets = [3, 0, 0], sizes = [1, 8, 32], strides = [1, 1, 1]} : vector<4x8x32xf32> to vector<1x8x32xf32>
    %557 = vector.shape_cast %556 : vector<1x8x32xf32> to vector<8x32xf32>
    %cst_268 = arith.constant dense<0.000000e+00> : vector<16x32xf32>
    %558 = tpu.matmul %555, %557, %cst_268 {dimension_numbers = #tpu.dot_dimension_numbers<[1], [0], [0], [1], [0, 0, 1, 1], [], []>} : vector<16x8xf32>, vector<8x32xf32>, vector<16x32xf32> -> vector<16x32xf32>
    %559 = arith.addf %554, %558 : vector<16x32xf32>
    %560 = vector.broadcast %488 : vector<1x32xf32> to vector<16x32xf32>
    %561 = arith.addf %559, %560 : vector<16x32xf32>
    %562 = arith.addf %561, %470 : vector<16x32xf32>
    %563 = arith.mulf %562, %562 : vector<16x32xf32>
    %cst_269 = arith.constant dense<0.000000e+00> : vector<16xf32>
    %564 = vector.multi_reduction <add>, %563, %cst_269 [1] : vector<16x32xf32> to vector<16xf32>
    %565 = vector.shape_cast %564 : vector<16xf32> to vector<16x1xf32>
    %566 = math.sqrt %565 : vector<16x1xf32>
    %cst_270 = arith.constant 9.99999974E-6 : f32
    %567 = vector.broadcast %cst_270 : f32 to vector<16x1xf32>
    %568 = arith.maximumf %566, %567 : vector<16x1xf32>
    %569 = vector.broadcast %568 : vector<16x1xf32> to vector<16x32xf32>
    %570 = arith.divf %562, %569 : vector<16x32xf32>
    %c1_271 = arith.constant 1 : index
    %c0_272 = arith.constant 0 : index
    %c0_273 = arith.constant 0 : index
    %c0_274 = arith.constant 0 : index
    %571 = vector.load %arg20[%c1_271, %c0_272, %c0_273, %c0_274] : memref<2x4x32x8xf32, #tpu.memory_space<vmem>>, vector<1x4x32x8xf32>
    %572 = vector.shape_cast %571 : vector<1x4x32x8xf32> to vector<4x32x8xf32>
    %c1_275 = arith.constant 1 : index
    %c0_276 = arith.constant 0 : index
    %c0_277 = arith.constant 0 : index
    %c0_278 = arith.constant 0 : index
    %573 = vector.load %arg21[%c1_275, %c0_276, %c0_277, %c0_278] : memref<2x4x32x8xf32, #tpu.memory_space<vmem>>, vector<1x4x32x8xf32>
    %574 = vector.shape_cast %573 : vector<1x4x32x8xf32> to vector<4x32x8xf32>
    %c1_279 = arith.constant 1 : index
    %c0_280 = arith.constant 0 : index
    %c0_281 = arith.constant 0 : index
    %c0_282 = arith.constant 0 : index
    %575 = vector.load %arg22[%c1_279, %c0_280, %c0_281, %c0_282] : memref<2x4x32x8xf32, #tpu.memory_space<vmem>>, vector<1x4x32x8xf32>
    %576 = vector.shape_cast %575 : vector<1x4x32x8xf32> to vector<4x32x8xf32>
    %c1_283 = arith.constant 1 : index
    %c0_284 = arith.constant 0 : index
    %c0_285 = arith.constant 0 : index
    %c0_286 = arith.constant 0 : index
    %577 = vector.load %arg23[%c1_283, %c0_284, %c0_285, %c0_286] : memref<2x4x8x32xf32, #tpu.memory_space<vmem>>, vector<1x4x8x32xf32>
    %578 = vector.shape_cast %577 : vector<1x4x8x32xf32> to vector<4x8x32xf32>
    %c1_287 = arith.constant 1 : index
    %c0_288 = arith.constant 0 : index
    %c0_289 = arith.constant 0 : index
    %579 = vector.load %arg24[%c1_287, %c0_288, %c0_289] : memref<2x1x32xf32, #tpu.memory_space<vmem>>, vector<1x1x32xf32>
    %580 = vector.shape_cast %579 : vector<1x1x32xf32> to vector<1x32xf32>
    %581 = vector.extract_strided_slice %572 {offsets = [0, 0, 0], sizes = [1, 32, 8], strides = [1, 1, 1]} : vector<4x32x8xf32> to vector<1x32x8xf32>
    %582 = vector.shape_cast %581 : vector<1x32x8xf32> to vector<32x8xf32>
    %cst_290 = arith.constant dense<0.000000e+00> : vector<16x8xf32>
    %583 = tpu.matmul %570, %582, %cst_290 {dimension_numbers = #tpu.dot_dimension_numbers<[1], [0], [0], [1], [0, 0, 1, 1], [], []>} : vector<16x32xf32>, vector<32x8xf32>, vector<16x8xf32> -> vector<16x8xf32>
    %584 = vector.extract_strided_slice %572 {offsets = [1, 0, 0], sizes = [1, 32, 8], strides = [1, 1, 1]} : vector<4x32x8xf32> to vector<1x32x8xf32>
    %585 = vector.shape_cast %584 : vector<1x32x8xf32> to vector<32x8xf32>
    %cst_291 = arith.constant dense<0.000000e+00> : vector<16x8xf32>
    %586 = tpu.matmul %570, %585, %cst_291 {dimension_numbers = #tpu.dot_dimension_numbers<[1], [0], [0], [1], [0, 0, 1, 1], [], []>} : vector<16x32xf32>, vector<32x8xf32>, vector<16x8xf32> -> vector<16x8xf32>
    %587 = vector.extract_strided_slice %572 {offsets = [2, 0, 0], sizes = [1, 32, 8], strides = [1, 1, 1]} : vector<4x32x8xf32> to vector<1x32x8xf32>
    %588 = vector.shape_cast %587 : vector<1x32x8xf32> to vector<32x8xf32>
    %cst_292 = arith.constant dense<0.000000e+00> : vector<16x8xf32>
    %589 = tpu.matmul %570, %588, %cst_292 {dimension_numbers = #tpu.dot_dimension_numbers<[1], [0], [0], [1], [0, 0, 1, 1], [], []>} : vector<16x32xf32>, vector<32x8xf32>, vector<16x8xf32> -> vector<16x8xf32>
    %590 = vector.extract_strided_slice %572 {offsets = [3, 0, 0], sizes = [1, 32, 8], strides = [1, 1, 1]} : vector<4x32x8xf32> to vector<1x32x8xf32>
    %591 = vector.shape_cast %590 : vector<1x32x8xf32> to vector<32x8xf32>
    %cst_293 = arith.constant dense<0.000000e+00> : vector<16x8xf32>
    %592 = tpu.matmul %570, %591, %cst_293 {dimension_numbers = #tpu.dot_dimension_numbers<[1], [0], [0], [1], [0, 0, 1, 1], [], []>} : vector<16x32xf32>, vector<32x8xf32>, vector<16x8xf32> -> vector<16x8xf32>
    %593 = tpu.concatenate %583, %586, %589, %592 in 0 : vector<16x8xf32>, vector<16x8xf32>, vector<16x8xf32>, vector<16x8xf32> -> vector<64x8xf32>
    %594 = vector.extract_strided_slice %574 {offsets = [0, 0, 0], sizes = [1, 32, 8], strides = [1, 1, 1]} : vector<4x32x8xf32> to vector<1x32x8xf32>
    %595 = vector.shape_cast %594 : vector<1x32x8xf32> to vector<32x8xf32>
    %cst_294 = arith.constant dense<0.000000e+00> : vector<16x8xf32>
    %596 = tpu.matmul %261, %595, %cst_294 {dimension_numbers = #tpu.dot_dimension_numbers<[1], [0], [0], [1], [0, 0, 1, 1], [], []>} : vector<16x32xf32>, vector<32x8xf32>, vector<16x8xf32> -> vector<16x8xf32>
    %597 = vector.extract_strided_slice %574 {offsets = [1, 0, 0], sizes = [1, 32, 8], strides = [1, 1, 1]} : vector<4x32x8xf32> to vector<1x32x8xf32>
    %598 = vector.shape_cast %597 : vector<1x32x8xf32> to vector<32x8xf32>
    %cst_295 = arith.constant dense<0.000000e+00> : vector<16x8xf32>
    %599 = tpu.matmul %261, %598, %cst_295 {dimension_numbers = #tpu.dot_dimension_numbers<[1], [0], [0], [1], [0, 0, 1, 1], [], []>} : vector<16x32xf32>, vector<32x8xf32>, vector<16x8xf32> -> vector<16x8xf32>
    %600 = vector.extract_strided_slice %574 {offsets = [2, 0, 0], sizes = [1, 32, 8], strides = [1, 1, 1]} : vector<4x32x8xf32> to vector<1x32x8xf32>
    %601 = vector.shape_cast %600 : vector<1x32x8xf32> to vector<32x8xf32>
    %cst_296 = arith.constant dense<0.000000e+00> : vector<16x8xf32>
    %602 = tpu.matmul %261, %601, %cst_296 {dimension_numbers = #tpu.dot_dimension_numbers<[1], [0], [0], [1], [0, 0, 1, 1], [], []>} : vector<16x32xf32>, vector<32x8xf32>, vector<16x8xf32> -> vector<16x8xf32>
    %603 = vector.extract_strided_slice %574 {offsets = [3, 0, 0], sizes = [1, 32, 8], strides = [1, 1, 1]} : vector<4x32x8xf32> to vector<1x32x8xf32>
    %604 = vector.shape_cast %603 : vector<1x32x8xf32> to vector<32x8xf32>
    %cst_297 = arith.constant dense<0.000000e+00> : vector<16x8xf32>
    %605 = tpu.matmul %261, %604, %cst_297 {dimension_numbers = #tpu.dot_dimension_numbers<[1], [0], [0], [1], [0, 0, 1, 1], [], []>} : vector<16x32xf32>, vector<32x8xf32>, vector<16x8xf32> -> vector<16x8xf32>
    %606 = tpu.concatenate %596, %599, %602, %605 in 0 : vector<16x8xf32>, vector<16x8xf32>, vector<16x8xf32>, vector<16x8xf32> -> vector<64x8xf32>
    %607 = vector.extract_strided_slice %576 {offsets = [0, 0, 0], sizes = [1, 32, 8], strides = [1, 1, 1]} : vector<4x32x8xf32> to vector<1x32x8xf32>
    %608 = vector.shape_cast %607 : vector<1x32x8xf32> to vector<32x8xf32>
    %cst_298 = arith.constant dense<0.000000e+00> : vector<16x8xf32>
    %609 = tpu.matmul %261, %608, %cst_298 {dimension_numbers = #tpu.dot_dimension_numbers<[1], [0], [0], [1], [0, 0, 1, 1], [], []>} : vector<16x32xf32>, vector<32x8xf32>, vector<16x8xf32> -> vector<16x8xf32>
    %610 = vector.extract_strided_slice %576 {offsets = [1, 0, 0], sizes = [1, 32, 8], strides = [1, 1, 1]} : vector<4x32x8xf32> to vector<1x32x8xf32>
    %611 = vector.shape_cast %610 : vector<1x32x8xf32> to vector<32x8xf32>
    %cst_299 = arith.constant dense<0.000000e+00> : vector<16x8xf32>
    %612 = tpu.matmul %261, %611, %cst_299 {dimension_numbers = #tpu.dot_dimension_numbers<[1], [0], [0], [1], [0, 0, 1, 1], [], []>} : vector<16x32xf32>, vector<32x8xf32>, vector<16x8xf32> -> vector<16x8xf32>
    %613 = vector.extract_strided_slice %576 {offsets = [2, 0, 0], sizes = [1, 32, 8], strides = [1, 1, 1]} : vector<4x32x8xf32> to vector<1x32x8xf32>
    %614 = vector.shape_cast %613 : vector<1x32x8xf32> to vector<32x8xf32>
    %cst_300 = arith.constant dense<0.000000e+00> : vector<16x8xf32>
    %615 = tpu.matmul %261, %614, %cst_300 {dimension_numbers = #tpu.dot_dimension_numbers<[1], [0], [0], [1], [0, 0, 1, 1], [], []>} : vector<16x32xf32>, vector<32x8xf32>, vector<16x8xf32> -> vector<16x8xf32>
    %616 = vector.extract_strided_slice %576 {offsets = [3, 0, 0], sizes = [1, 32, 8], strides = [1, 1, 1]} : vector<4x32x8xf32> to vector<1x32x8xf32>
    %617 = vector.shape_cast %616 : vector<1x32x8xf32> to vector<32x8xf32>
    %cst_301 = arith.constant dense<0.000000e+00> : vector<16x8xf32>
    %618 = tpu.matmul %261, %617, %cst_301 {dimension_numbers = #tpu.dot_dimension_numbers<[1], [0], [0], [1], [0, 0, 1, 1], [], []>} : vector<16x32xf32>, vector<32x8xf32>, vector<16x8xf32> -> vector<16x8xf32>
    %619 = tpu.concatenate %609, %612, %615, %618 in 0 : vector<16x8xf32>, vector<16x8xf32>, vector<16x8xf32>, vector<16x8xf32> -> vector<64x8xf32>
    "tpu.trace_start"() <{level = 10 : i32, message = "td,sd->ts"}> : () -> ()
    %cst_302 = arith.constant dense<0.000000e+00> : vector<64x64xf32>
    %620 = tpu.matmul %593, %606, %cst_302 {dimension_numbers = #tpu.dot_dimension_numbers<[1], [1], [0], [0], [0, 0, 1, 0], [], []>} : vector<64x8xf32>, vector<64x8xf32>, vector<64x64xf32> -> vector<64x64xf32>
    "tpu.trace_stop"() : () -> ()
    %621 = arith.addf %620, %0 : vector<64x64xf32>
    %cst_303 = arith.constant dense<0xFF800000> : vector<64xf32>
    %622 = vector.multi_reduction <maximumf>, %621, %cst_303 [1] : vector<64x64xf32> to vector<64xf32>
    %623 = vector.shape_cast %622 : vector<64xf32> to vector<64x1xf32>
    %624 = vector.broadcast %623 : vector<64x1xf32> to vector<64x64xf32>
    %625 = arith.subf %621, %624 : vector<64x64xf32>
    %626 = math.exp %625 : vector<64x64xf32>
    %cst_304 = arith.constant dense<0.000000e+00> : vector<64xf32>
    %627 = vector.multi_reduction <add>, %626, %cst_304 [1] : vector<64x64xf32> to vector<64xf32>
    %628 = vector.shape_cast %627 : vector<64xf32> to vector<64x1xf32>
    %629 = tpu.reciprocal %628 {approx = true} : vector<64x1xf32> -> vector<64x1xf32>
    %630 = vector.broadcast %629 : vector<64x1xf32> to vector<64x64xf32>
    %631 = arith.mulf %626, %630 : vector<64x64xf32>
    %cst_305 = arith.constant dense<0.000000e+00> : vector<64x8xf32>
    %632 = tpu.matmul %631, %619, %cst_305 {dimension_numbers = #tpu.dot_dimension_numbers<[1], [0], [0], [1], [0, 0, 1, 1], [], []>} : vector<64x64xf32>, vector<64x8xf32>, vector<64x8xf32> -> vector<64x8xf32>
    %633 = vector.extract_strided_slice %632 {offsets = [0, 0], sizes = [16, 8], strides = [1, 1]} : vector<64x8xf32> to vector<16x8xf32>
    %634 = vector.extract_strided_slice %578 {offsets = [0, 0, 0], sizes = [1, 8, 32], strides = [1, 1, 1]} : vector<4x8x32xf32> to vector<1x8x32xf32>
    %635 = vector.shape_cast %634 : vector<1x8x32xf32> to vector<8x32xf32>
    %cst_306 = arith.constant dense<0.000000e+00> : vector<16x32xf32>
    %636 = tpu.matmul %633, %635, %cst_306 {dimension_numbers = #tpu.dot_dimension_numbers<[1], [0], [0], [1], [0, 0, 1, 1], [], []>} : vector<16x8xf32>, vector<8x32xf32>, vector<16x32xf32> -> vector<16x32xf32>
    %637 = vector.extract_strided_slice %632 {offsets = [16, 0], sizes = [16, 8], strides = [1, 1]} : vector<64x8xf32> to vector<16x8xf32>
    %638 = vector.extract_strided_slice %578 {offsets = [1, 0, 0], sizes = [1, 8, 32], strides = [1, 1, 1]} : vector<4x8x32xf32> to vector<1x8x32xf32>
    %639 = vector.shape_cast %638 : vector<1x8x32xf32> to vector<8x32xf32>
    %cst_307 = arith.constant dense<0.000000e+00> : vector<16x32xf32>
    %640 = tpu.matmul %637, %639, %cst_307 {dimension_numbers = #tpu.dot_dimension_numbers<[1], [0], [0], [1], [0, 0, 1, 1], [], []>} : vector<16x8xf32>, vector<8x32xf32>, vector<16x32xf32> -> vector<16x32xf32>
    %641 = arith.addf %636, %640 : vector<16x32xf32>
    %642 = vector.extract_strided_slice %632 {offsets = [32, 0], sizes = [16, 8], strides = [1, 1]} : vector<64x8xf32> to vector<16x8xf32>
    %643 = vector.extract_strided_slice %578 {offsets = [2, 0, 0], sizes = [1, 8, 32], strides = [1, 1, 1]} : vector<4x8x32xf32> to vector<1x8x32xf32>
    %644 = vector.shape_cast %643 : vector<1x8x32xf32> to vector<8x32xf32>
    %cst_308 = arith.constant dense<0.000000e+00> : vector<16x32xf32>
    %645 = tpu.matmul %642, %644, %cst_308 {dimension_numbers = #tpu.dot_dimension_numbers<[1], [0], [0], [1], [0, 0, 1, 1], [], []>} : vector<16x8xf32>, vector<8x32xf32>, vector<16x32xf32> -> vector<16x32xf32>
    %646 = arith.addf %641, %645 : vector<16x32xf32>
    %647 = vector.extract_strided_slice %632 {offsets = [48, 0], sizes = [16, 8], strides = [1, 1]} : vector<64x8xf32> to vector<16x8xf32>
    %648 = vector.extract_strided_slice %578 {offsets = [3, 0, 0], sizes = [1, 8, 32], strides = [1, 1, 1]} : vector<4x8x32xf32> to vector<1x8x32xf32>
    %649 = vector.shape_cast %648 : vector<1x8x32xf32> to vector<8x32xf32>
    %cst_309 = arith.constant dense<0.000000e+00> : vector<16x32xf32>
    %650 = tpu.matmul %647, %649, %cst_309 {dimension_numbers = #tpu.dot_dimension_numbers<[1], [0], [0], [1], [0, 0, 1, 1], [], []>} : vector<16x8xf32>, vector<8x32xf32>, vector<16x32xf32> -> vector<16x32xf32>
    %651 = arith.addf %646, %650 : vector<16x32xf32>
    %652 = vector.broadcast %580 : vector<1x32xf32> to vector<16x32xf32>
    %653 = arith.addf %651, %652 : vector<16x32xf32>
    %654 = arith.addf %653, %562 : vector<16x32xf32>
    %c1_310 = arith.constant 1 : index
    %c0_311 = arith.constant 0 : index
    %c0_312 = arith.constant 0 : index
    %655 = vector.load %arg25[%c1_310, %c0_311, %c0_312] : memref<2x32x64xf32, #tpu.memory_space<vmem>>, vector<1x32x64xf32>
    %656 = vector.shape_cast %655 : vector<1x32x64xf32> to vector<32x64xf32>
    %c1_313 = arith.constant 1 : index
    %c0_314 = arith.constant 0 : index
    %c0_315 = arith.constant 0 : index
    %657 = vector.load %arg26[%c1_313, %c0_314, %c0_315] : memref<2x1x64xf32, #tpu.memory_space<vmem>>, vector<1x1x64xf32>
    %658 = vector.shape_cast %657 : vector<1x1x64xf32> to vector<1x64xf32>
    %c1_316 = arith.constant 1 : index
    %c0_317 = arith.constant 0 : index
    %c0_318 = arith.constant 0 : index
    %659 = vector.load %arg27[%c1_316, %c0_317, %c0_318] : memref<2x64x32xf32, #tpu.memory_space<vmem>>, vector<1x64x32xf32>
    %660 = vector.shape_cast %659 : vector<1x64x32xf32> to vector<64x32xf32>
    %c1_319 = arith.constant 1 : index
    %c0_320 = arith.constant 0 : index
    %c0_321 = arith.constant 0 : index
    %661 = vector.load %arg28[%c1_319, %c0_320, %c0_321] : memref<2x1x32xf32, #tpu.memory_space<vmem>>, vector<1x1x32xf32>
    %662 = vector.shape_cast %661 : vector<1x1x32xf32> to vector<1x32xf32>
    %663 = arith.mulf %654, %654 : vector<16x32xf32>
    %cst_322 = arith.constant dense<0.000000e+00> : vector<16xf32>
    %664 = vector.multi_reduction <add>, %663, %cst_322 [1] : vector<16x32xf32> to vector<16xf32>
    %665 = vector.shape_cast %664 : vector<16xf32> to vector<16x1xf32>
    %666 = math.sqrt %665 : vector<16x1xf32>
    %cst_323 = arith.constant 9.99999974E-6 : f32
    %667 = vector.broadcast %cst_323 : f32 to vector<16x1xf32>
    %668 = arith.maximumf %666, %667 : vector<16x1xf32>
    %669 = vector.broadcast %668 : vector<16x1xf32> to vector<16x32xf32>
    %670 = arith.divf %654, %669 : vector<16x32xf32>
    %cst_324 = arith.constant dense<0.000000e+00> : vector<16x64xf32>
    %671 = tpu.matmul %670, %656, %cst_324 {dimension_numbers = #tpu.dot_dimension_numbers<[1], [0], [0], [1], [0, 0, 1, 1], [], []>} : vector<16x32xf32>, vector<32x64xf32>, vector<16x64xf32> -> vector<16x64xf32>
    %672 = vector.broadcast %658 : vector<1x64xf32> to vector<16x64xf32>
    %673 = arith.addf %671, %672 : vector<16x64xf32>
    %cst_325 = arith.constant 0.000000e+00 : f32
    %674 = vector.broadcast %cst_325 : f32 to vector<16x64xf32>
    %675 = arith.maximumf %673, %674 : vector<16x64xf32>
    %cst_326 = arith.constant dense<0.000000e+00> : vector<16x32xf32>
    %676 = tpu.matmul %675, %660, %cst_326 {dimension_numbers = #tpu.dot_dimension_numbers<[1], [0], [0], [1], [0, 0, 1, 1], [], []>} : vector<16x64xf32>, vector<64x32xf32>, vector<16x32xf32> -> vector<16x32xf32>
    %677 = vector.broadcast %662 : vector<1x32xf32> to vector<16x32xf32>
    %678 = arith.addf %676, %677 : vector<16x32xf32>
    %679 = arith.addf %678, %654 : vector<16x32xf32>
    %c0_327 = arith.constant 0 : index
    %c0_328 = arith.constant 0 : index
    %680 = vector.load %arg29[%c0_327, %c0_328] : memref<32x128xf32, #tpu.memory_space<vmem>>, vector<32x128xf32>
    %cst_329 = arith.constant dense<0.000000e+00> : vector<16x128xf32>
    %681 = tpu.matmul %679, %680, %cst_329 {dimension_numbers = #tpu.dot_dimension_numbers<[1], [0], [0], [1], [0, 0, 1, 1], [], []>} : vector<16x32xf32>, vector<32x128xf32>, vector<16x128xf32> -> vector<16x128xf32>
    %c0_330 = arith.constant 0 : index
    %c0_331 = arith.constant 0 : index
    %682 = vector.load %arg30[%c0_330, %c0_331] : memref<1x128xf32, #tpu.memory_space<vmem>>, vector<1x128xf32>
    %683 = vector.broadcast %682 : vector<1x128xf32> to vector<16x128xf32>
    %684 = arith.addf %681, %683 : vector<16x128xf32>
    %c0_332 = arith.constant 0 : index
    %c0_333 = arith.constant 0 : index
    %685 = vector.load %arg31[%c0_332, %c0_333] : memref<16x128xf32, #tpu.memory_space<vmem>>, vector<16x128xf32>
    tpu.vector_store %arg31[%c0_332, %c0_333], %684 {strides = array<i32>} : memref<16x128xf32, #tpu.memory_space<vmem>>, vector<16x128xf32>,
    return
  }
}

</mosaic_0001>

<llo_original>
// kernel: transformer_forward.1
$region0: #{transformer_forward.1}
  #allocation0 [shape = 'u32[]', space=smem, size = 0x4, offset = 0x4, fixed_abs, tag = 'smem constant byte address 0x4 - core index']
  #allocation1 [shape = 'u32[72,128]{1,0:T(1,128)}', space=vmem, size = 0x9000, scoped, tag = 'internal scratch']
  %s0 = inlined_call_operand.smem [shape: u32[32], index: -1, kind: input, shape index: {}]
  %s1 = sld [smem:[%s0]]
  %s2 = scalar_lea.smem %s0, 1
  %s3 = sld [smem:[%s2]]
  %s4 = scalar_lea.smem %s0, 2
  %s5 = sld [smem:[%s4]]
  %s6 = scalar_lea.smem %s0, 3
  %s7 = sld [smem:[%s6]]
  %s8 = scalar_lea.smem %s0, 4
  %s9 = sld [smem:[%s8]]
  %s10 = scalar_lea.smem %s0, 5
  %s11 = sld [smem:[%s10]]
  %s12 = scalar_lea.smem %s0, 6
  %s13 = sld [smem:[%s12]]
  %s14 = scalar_lea.smem %s0, 7
  %s15 = sld [smem:[%s14]]
  %s16 = scalar_lea.smem %s0, 8
  %s17 = sld [smem:[%s16]]
  %s18 = scalar_lea.smem %s0, 9
  %s19 = sld [smem:[%s18]]
  %s20 = scalar_lea.smem %s0, 10
  %s21 = sld [smem:[%s20]]
  %s22 = scalar_lea.smem %s0, 11
  %s23 = sld [smem:[%s22]]
  %s24 = scalar_lea.smem %s0, 12
  %s25 = sld [smem:[%s24]]
  %s26 = scalar_lea.smem %s0, 13
  %s27 = sld [smem:[%s26]]
  %s28 = scalar_lea.smem %s0, 14
  %s29 = sld [smem:[%s28]]
  %s30 = scalar_lea.smem %s0, 15
  %s31 = sld [smem:[%s30]]
  %s32 = scalar_lea.smem %s0, 16
  %s33 = sld [smem:[%s32]]
  %s34 = scalar_lea.smem %s0, 17
  %s35 = sld [smem:[%s34]]
  %s36 = scalar_lea.smem %s0, 18
  %s37 = sld [smem:[%s36]]
  %s38 = scalar_lea.smem %s0, 19
  %s39 = sld [smem:[%s38]]
  %s40 = scalar_lea.smem %s0, 20
  %s41 = sld [smem:[%s40]]
  %s42 = scalar_lea.smem %s0, 21
  %s43 = sld [smem:[%s42]]
  %s44 = scalar_lea.smem %s0, 22
  %s45 = sld [smem:[%s44]]
  %s46 = scalar_lea.smem %s0, 23
  %s47 = sld [smem:[%s46]]
  %s48 = scalar_lea.smem %s0, 24
  %s49 = sld [smem:[%s48]]
  %s50 = scalar_lea.smem %s0, 25
  %s51 = sld [smem:[%s50]]
  %s52 = scalar_lea.smem %s0, 26
  %s53 = sld [smem:[%s52]]
  %s54 = scalar_lea.smem %s0, 27
  %s55 = sld [smem:[%s54]]
  %s56 = scalar_lea.smem %s0, 28
  %s57 = sld [smem:[%s56]]
  %s58 = scalar_lea.smem %s0, 29
  %s59 = sld [smem:[%s58]]
  %s60 = scalar_lea.smem %s0, 30
  %s61 = sld [smem:[%s60]]
  %s62 = scalar_lea.smem %s0, 31
  %s63 = sld [smem:[%s62]]
  %s64 = sld [smem:[#allocation0]]
  $region134: #{transformer_forward.1} parent=0
    _
  %s66 = ssub.s32 1, %s64
  %s67 = scalar_select 0, %s66, %s64
  $region1: #{transformer_forward.1} parent=0
    #allocation2 [shape = 'u8[8192]{0}', space=vmem, size = 0x2000, scoped, tag = 'output window, operand 0, single buffered']
    #allocation3 [shape = 's32[1]{0}', space=sflag, size = 0x4, scoped, tag = 'scoped memory for transformer_forward.1']
    %68 = vsyncpa [#allocation3], 0
    // Predicated region
    $region2: #{transformer_forward.1} parent=1 // pred_check
      _
    $region3: #{transformer_forward.1} parent=1 // pred_check_branch
      %70 = sbr.rel (0) target = $region5
    $region4: #{transformer_forward.1} parent=1 // pred_region
      _
    $region5: #{transformer_forward.1} parent=1 // pred_fallthru
      _
    // Predicated region
    $region6: #{transformer_forward.1} parent=1 // pred_check
      _
    $region7: #{transformer_forward.1} parent=1 // pred_check_branch
      %72 = sbr.rel (0) target = $region9
    $region8: #{transformer_forward.1} parent=1 // pred_region
      _
    $region9: #{transformer_forward.1} parent=1 // pred_fallthru
      _
    // Predicated region
    $region10: #{transformer_forward.1} parent=1 // pred_check
      _
    $region11: #{transformer_forward.1} parent=1 // pred_check_branch
      %74 = sbr.rel (0) target = $region13
    $region12: #{transformer_forward.1} parent=1 // pred_region
      _
    $region13: #{transformer_forward.1} parent=1 // pred_fallthru
      _
    // Predicated region
    $region14: #{transformer_forward.1} parent=1 // pred_check
      _
    $region15: #{transformer_forward.1} parent=1 // pred_check_branch
      %76 = sbr.rel (0) target = $region17
    $region16: #{transformer_forward.1} parent=1 // pred_region
      _
    $region17: #{transformer_forward.1} parent=1 // pred_fallthru
      _
    // Predicated region
    $region18: #{transformer_forward.1} parent=1 // pred_check
      _
    $region19: #{transformer_forward.1} parent=1 // pred_check_branch
      %78 = sbr.rel (0) target = $region21
    $region20: #{transformer_forward.1} parent=1 // pred_region
      _
    $region21: #{transformer_forward.1} parent=1 // pred_fallthru
      _
    // Predicated region
    $region22: #{transformer_forward.1} parent=1 // pred_check
      _
    $region23: #{transformer_forward.1} parent=1 // pred_check_branch
      %80 = sbr.rel (0) target = $region25
    $region24: #{transformer_forward.1} parent=1 // pred_region
      _
    $region25: #{transformer_forward.1} parent=1 // pred_fallthru
      _
    // Predicated region
    $region26: #{transformer_forward.1} parent=1 // pred_check
      _
    $region27: #{transformer_forward.1} parent=1 // pred_check_branch
      %82 = sbr.rel (0) target = $region29
    $region28: #{transformer_forward.1} parent=1 // pred_region
      _
    $region29: #{transformer_forward.1} parent=1 // pred_fallthru
      _
    // Predicated region
    $region30: #{transformer_forward.1} parent=1 // pred_check
      _
    $region31: #{transformer_forward.1} parent=1 // pred_check_branch
      %84 = sbr.rel (0) target = $region33
    $region32: #{transformer_forward.1} parent=1 // pred_region
      _
    $region33: #{transformer_forward.1} parent=1 // pred_fallthru
      _
    // Predicated region
    $region34: #{transformer_forward.1} parent=1 // pred_check
      _
    $region35: #{transformer_forward.1} parent=1 // pred_check_branch
      %86 = sbr.rel (0) target = $region37
    $region36: #{transformer_forward.1} parent=1 // pred_region
      _
    $region37: #{transformer_forward.1} parent=1 // pred_fallthru
      _
    // Predicated region
    $region38: #{transformer_forward.1} parent=1 // pred_check
      _
    $region39: #{transformer_forward.1} parent=1 // pred_check_branch
      %88 = sbr.rel (0) target = $region41
    $region40: #{transformer_forward.1} parent=1 // pred_region
      _
    $region41: #{transformer_forward.1} parent=1 // pred_fallthru
      _
    // Predicated region
    $region42: #{transformer_forward.1} parent=1 // pred_check
      _
    $region43: #{transformer_forward.1} parent=1 // pred_check_branch
      %90 = sbr.rel (0) target = $region45
    $region44: #{transformer_forward.1} parent=1 // pred_region
      _
    $region45: #{transformer_forward.1} parent=1 // pred_fallthru
      _
    // Predicated region
    $region46: #{transformer_forward.1} parent=1 // pred_check
      _
    $region47: #{transformer_forward.1} parent=1 // pred_check_branch
      %92 = sbr.rel (0) target = $region49
    $region48: #{transformer_forward.1} parent=1 // pred_region
      _
    $region49: #{transformer_forward.1} parent=1 // pred_fallthru
      _
    // Predicated region
    $region50: #{transformer_forward.1} parent=1 // pred_check
      _
    $region51: #{transformer_forward.1} parent=1 // pred_check_branch
      %94 = sbr.rel (0) target = $region53
    $region52: #{transformer_forward.1} parent=1 // pred_region
      _
    $region53: #{transformer_forward.1} parent=1 // pred_fallthru
      _
    // Predicated region
    $region54: #{transformer_forward.1} parent=1 // pred_check
      _
    $region55: #{transformer_forward.1} parent=1 // pred_check_branch
      %96 = sbr.rel (0) target = $region57
    $region56: #{transformer_forward.1} parent=1 // pred_region
      _
    $region57: #{transformer_forward.1} parent=1 // pred_fallthru
      _
    // Predicated region
    $region58: #{transformer_forward.1} parent=1 // pred_check
      _
    $region59: #{transformer_forward.1} parent=1 // pred_check_branch
      %98 = sbr.rel (0) target = $region61
    $region60: #{transformer_forward.1} parent=1 // pred_region
      _
    $region61: #{transformer_forward.1} parent=1 // pred_fallthru
      _
    // Predicated region
    $region62: #{transformer_forward.1} parent=1 // pred_check
      _
    $region63: #{transformer_forward.1} parent=1 // pred_check_branch
      %100 = sbr.rel (0) target = $region65
    $region64: #{transformer_forward.1} parent=1 // pred_region
      _
    $region65: #{transformer_forward.1} parent=1 // pred_fallthru
      _
    // Predicated region
    $region66: #{transformer_forward.1} parent=1 // pred_check
      _
    $region67: #{transformer_forward.1} parent=1 // pred_check_branch
      %102 = sbr.rel (0) target = $region69
    $region68: #{transformer_forward.1} parent=1 // pred_region
      _
    $region69: #{transformer_forward.1} parent=1 // pred_fallthru
      _
    // Predicated region
    $region70: #{transformer_forward.1} parent=1 // pred_check
      _
    $region71: #{transformer_forward.1} parent=1 // pred_check_branch
      %104 = sbr.rel (0) target = $region73
    $region72: #{transformer_forward.1} parent=1 // pred_region
      _
    $region73: #{transformer_forward.1} parent=1 // pred_fallthru
      _
    // Predicated region
    $region74: #{transformer_forward.1} parent=1 // pred_check
      _
    $region75: #{transformer_forward.1} parent=1 // pred_check_branch
      %106 = sbr.rel (0) target = $region77
    $region76: #{transformer_forward.1} parent=1 // pred_region
      _
    $region77: #{transformer_forward.1} parent=1 // pred_fallthru
      _
    // Predicated region
    $region78: #{transformer_forward.1} parent=1 // pred_check
      _
    $region79: #{transformer_forward.1} parent=1 // pred_check_branch
      %108 = sbr.rel (0) target = $region81
    $region80: #{transformer_forward.1} parent=1 // pred_region
      _
    $region81: #{transformer_forward.1} parent=1 // pred_fallthru
      _
    // Predicated region
    $region82: #{transformer_forward.1} parent=1 // pred_check
      _
    $region83: #{transformer_forward.1} parent=1 // pred_check_branch
      %110 = sbr.rel (0) target = $region85
    $region84: #{transformer_forward.1} parent=1 // pred_region
      _
    $region85: #{transformer_forward.1} parent=1 // pred_fallthru
      _
    // Predicated region
    $region86: #{transformer_forward.1} parent=1 // pred_check
      _
    $region87: #{transformer_forward.1} parent=1 // pred_check_branch
      %112 = sbr.rel (0) target = $region89
    $region88: #{transformer_forward.1} parent=1 // pred_region
      _
    $region89: #{transformer_forward.1} parent=1 // pred_fallthru
      _
    // Predicated region
    $region90: #{transformer_forward.1} parent=1 // pred_check
      _
    $region91: #{transformer_forward.1} parent=1 // pred_check_branch
      %114 = sbr.rel (0) target = $region93
    $region92: #{transformer_forward.1} parent=1 // pred_region
      _
    $region93: #{transformer_forward.1} parent=1 // pred_fallthru
      _
    // Predicated region
    $region94: #{transformer_forward.1} parent=1 // pred_check
      _
    $region95: #{transformer_forward.1} parent=1 // pred_check_branch
      %116 = sbr.rel (0) target = $region97
    $region96: #{transformer_forward.1} parent=1 // pred_region
      _
    $region97: #{transformer_forward.1} parent=1 // pred_fallthru
      _
    // Predicated region
    $region98: #{transformer_forward.1} parent=1 // pred_check
      _
    $region99: #{transformer_forward.1} parent=1 // pred_check_branch
      %118 = sbr.rel (0) target = $region101
    $region100: #{transformer_forward.1} parent=1 // pred_region
      _
    $region101: #{transformer_forward.1} parent=1 // pred_fallthru
      _
    // Predicated region
    $region102: #{transformer_forward.1} parent=1 // pred_check
      _
    $region103: #{transformer_forward.1} parent=1 // pred_check_branch
      %120 = sbr.rel (0) target = $region105
    $region104: #{transformer_forward.1} parent=1 // pred_region
      _
    $region105: #{transformer_forward.1} parent=1 // pred_fallthru
      _
    // Predicated region
    $region106: #{transformer_forward.1} parent=1 // pred_check
      _
    $region107: #{transformer_forward.1} parent=1 // pred_check_branch
      %122 = sbr.rel (0) target = $region109
    $region108: #{transformer_forward.1} parent=1 // pred_region
      _
    $region109: #{transformer_forward.1} parent=1 // pred_fallthru
      _
    // Predicated region
    $region110: #{transformer_forward.1} parent=1 // pred_check
      _
    $region111: #{transformer_forward.1} parent=1 // pred_check_branch
      %124 = sbr.rel (0) target = $region113
    $region112: #{transformer_forward.1} parent=1 // pred_region
      _
    $region113: #{transformer_forward.1} parent=1 // pred_fallthru
      _
    // Predicated region
    $region114: #{transformer_forward.1} parent=1 // pred_check
      _
    $region115: #{transformer_forward.1} parent=1 // pred_check_branch
      %126 = sbr.rel (0) target = $region117
    $region116: #{transformer_forward.1} parent=1 // pred_region
      _
    $region117: #{transformer_forward.1} parent=1 // pred_fallthru
      _
    // Predicated region
    $region118: #{transformer_forward.1} parent=1 // pred_check
      _
    $region119: #{transformer_forward.1} parent=1 // pred_check_branch
      %128 = sbr.rel (0) target = $region121
    $region120: #{transformer_forward.1} parent=1 // pred_region
      _
    $region121: #{transformer_forward.1} parent=1 // pred_fallthru
      _
    // Predicated region
    $region122: #{transformer_forward.1} parent=1 // pred_check
      _
    $region123: #{transformer_forward.1} parent=1 // pred_check_branch
      %130 = sbr.rel (0) target = $region125
    $region124: #{transformer_forward.1} parent=1 // pred_region
      _
    $region125: #{transformer_forward.1} parent=1 // pred_fallthru
      _
    %v131 = vld [vmem:[%s11] sm:$0xff]
    %v132 = vld [vmem:[%s11 + $0x8] sm:$0xff]
    %v133 = vld [vmem:[%s11 + $0x10] sm:$0xff]
    %v134 = vld [vmem:[%s11 + $0x18] sm:$0xff]
    %v135 = vld [vmem:[%s11 + $0x20] sm:$0xff]
    %v136 = vld [vmem:[%s11 + $0x28] sm:$0xff]
    %v137 = vld [vmem:[%s11 + $0x30] sm:$0xff]
    %v138 = vld [vmem:[%s11 + $0x38] sm:$0xff]
    %v139 = vld [vmem:[%s5] sm:$0xff]
    %v140 = vld [vmem:[%s5 + $0x8] sm:$0xff]
    %v141 = vld [vmem:[%s5 + $0x10] sm:$0xff]
    %v142 = vld [vmem:[%s5 + $0x18] sm:$0xff]
    %v143 = vld [vmem:[%s5 + $0x20] sm:$0xff]
    %v144 = vld [vmem:[%s5 + $0x28] sm:$0xff]
    %v145 = vld [vmem:[%s5 + $0x30] sm:$0xff]
    %v146 = vld [vmem:[%s5 + $0x38] sm:$0xff]
    %v147 = vld [vmem:[%s5 + $0x40] sm:$0xff]
    %v148 = vld [vmem:[%s5 + $0x48] sm:$0xff]
    %v149 = vld [vmem:[%s5 + $0x50] sm:$0xff]
    %v150 = vld [vmem:[%s5 + $0x58] sm:$0xff]
    %v151 = vld [vmem:[%s5 + $0x60] sm:$0xff]
    %v152 = vld [vmem:[%s5 + $0x68] sm:$0xff]
    %v153 = vld [vmem:[%s5 + $0x70] sm:$0xff]
    %v154 = vld [vmem:[%s5 + $0x78] sm:$0xff]
    %v155 = vld [vmem:[%s1] sm:$0xff]
    %v156 = vld [vmem:[%s1 + $0x8] sm:$0xff]
    %v157 = vlaneseq
    %v158 = vand.u32 %v157, 127
    %159 = vset.pattern.permute.xlu0 0
    %160 = vperm.xlu0 %159, %v155
    %v161 = vpop.permute.xlu0 %160
    %162 = vset.pattern.permute.xlu0 0
    %163 = vperm.xlu0 %162, %v156
    %v164 = vpop.permute.xlu0 %163
    %vm165 = vcmp.eq.s32.totalorder %v158, %v161
    %vm166 = vcmp.eq.s32.totalorder %v158, %v164
    %v167 = vsel %vm165, 1, 0
    %v168 = vsel %vm166, 1, 0
    %v169 = vcvt.s32.f32 %v167
    %v170 = vcvt.s32.f32 %v168
    %v171 = vld [vmem:[%s7] sm:$0xff]
    %v172 = vld [vmem:[%s7 + $0x8] sm:$0xff]
    %173 = vmatpush.msra.mxu0 %v154
    %174 = vmatpush.msra.mxu0 %v153
    %175 = vmatpush.msra.mxu0 %v152
    %176 = vmatpush.msra.mxu0 %v151
    %177 = vmatpush.msra.mxu0 %v150
    %178 = vmatpush.msra.mxu0 %v149
    %179 = vmatpush.msra.mxu0 %v148
    %180 = vmatpush.msra.mxu0 %v147
    %181 = vmatpush.msra.mxu0 %v146
    %182 = vmatpush.msra.mxu0 %v145
    %183 = vmatpush.msra.mxu0 %v144
    %184 = vmatpush.msra.mxu0 %v143
    %185 = vmatpush.msra.mxu0 %v142
    %186 = vmatpush.msra.mxu0 %v141
    %187 = vmatpush.msra.mxu0 %v140
    %188 = vmatpush.msra.mxu0 %v139
    %189 = vmatmul.f32.gmra.mxu0 %v169
    %v190 = vpop.f32.mrf.mxu0
    %v191 = vadd.f32 %v171, %v190
    %192 = vmatmul.f32.gmra.mxu0 %v170
    %v193 = vpop.f32.mrf.mxu0
    %v194 = vadd.f32 %v172, %v193
    %195 = vdwg.mxu0
    %v196 = vld [vmem:[%s3] sm:$0xff]
    %v197 = vld [vmem:[%s3 + $0x8] sm:$0xff]
    %198 = vset.pattern.permute.xlu0 0
    %199 = vperm.xlu0 %198, %v196
    %v200 = vpop.permute.xlu0 %199
    %201 = vset.pattern.permute.xlu0 0
    %202 = vperm.xlu0 %201, %v197
    %v203 = vpop.permute.xlu0 %202
    %vm204 = vcmp.eq.s32.totalorder %v158, %v200
    %vm205 = vcmp.eq.s32.totalorder %v158, %v203
    %v206 = vsel %vm204, 1, 0
    %v207 = vsel %vm205, 1, 0
    %v208 = vcvt.s32.f32 %v206
    %v209 = vcvt.s32.f32 %v207
    %v210 = vld [vmem:[%s9] sm:$0xff]
    %v211 = vld [vmem:[%s9 + $0x8] sm:$0xff]
    %212 = vmatpush.msra.mxu0 %v154
    %213 = vmatpush.msra.mxu0 %v153
    %214 = vmatpush.msra.mxu0 %v152
    %215 = vmatpush.msra.mxu0 %v151
    %216 = vmatpush.msra.mxu0 %v150
    %217 = vmatpush.msra.mxu0 %v149
    %218 = vmatpush.msra.mxu0 %v148
    %219 = vmatpush.msra.mxu0 %v147
    %220 = vmatpush.msra.mxu0 %v146
    %221 = vmatpush.msra.mxu0 %v145
    %222 = vmatpush.msra.mxu0 %v144
    %223 = vmatpush.msra.mxu0 %v143
    %224 = vmatpush.msra.mxu0 %v142
    %225 = vmatpush.msra.mxu0 %v141
    %226 = vmatpush.msra.mxu0 %v140
    %227 = vmatpush.msra.mxu0 %v139
    %228 = vmatmul.f32.gmra.mxu0 %v208
    %v229 = vpop.f32.mrf.mxu0
    %v230 = vadd.f32 %v210, %v229
    %231 = vmatmul.f32.gmra.mxu0 %v209
    %v232 = vpop.f32.mrf.mxu0
    %v233 = vadd.f32 %v211, %v232
    %234 = vdwg.mxu0
    %v235 = vmul.f32 %v191, %v191
    %v236 = vmul.f32 %v194, %v194
    %vm237 = vcmask 261120
    %v238 = vsel %vm237, %v235, 0.0
    %239 = vadd.xlane.f32.xlu0 %v238
    %v240 = vpop.xlane.xlu0 %239
    %v241 = vsel %vm237, %v236, 0.0
    %242 = vadd.xlane.f32.xlu0 %v241
    %v243 = vpop.xlane.xlu0 %242
    %v244 = vrsqrt.pop %v240
    %v245 = vmul.f32 %v244, %v240
    %v246 = vmul.f32 %v245, %v244
    %v247 = vmul.f32 0.5, %v246
    %v248 = vsub.f32 1.5, %v247
    %v249 = vmul.f32 %v244, %v248
    %v250 = vmul.f32 %v240, %v249
    %vm251 = vcmp.eq.f32.partialorder %v240, inf
    %v252 = vsel %vm251, %v240, %v250
    %vm253 = vcmp.eq.f32.partialorder %v240, 0.0
    %v254 = vand.u32 %v240, 2147483648
    %v255 = vsel %vm253, %v254, %v252
    %v256 = vrsqrt.pop %v243
    %v257 = vmul.f32 %v256, %v243
    %v258 = vmul.f32 %v257, %v256
    %v259 = vmul.f32 0.5, %v258
    %v260 = vsub.f32 1.5, %v259
    %v261 = vmul.f32 %v256, %v260
    %v262 = vmul.f32 %v243, %v261
    %vm263 = vcmp.eq.f32.partialorder %v243, inf
    %v264 = vsel %vm263, %v243, %v262
    %vm265 = vcmp.eq.f32.partialorder %v243, 0.0
    %v266 = vand.u32 %v243, 2147483648
    %v267 = vsel %vm265, %v266, %v264
    %v268 = vmax.f32 %v255, 1e-05
    %v269 = vmax.f32 %v267, 1e-05
    %v270 = vrcp.pop %v268
    %v271 = vmul.f32 %v268, %v270
    %v272 = vsub.f32 1.0, %v271
    %v273 = vmul.f32 %v270, %v272
    %v274 = vadd.f32 %v270, %v273
    %vm275 = vweird.f32 %v268
    %vm276 = vweird.f32 %v270
    %vm277 = vmor %vm275, %vm276
    %v278 = vsel %vm277, %v270, %v274
    %v279 = vand.u32 2147483647, %v268
    %vm280 = vcmp.eq.f32.partialorder %v279, 8.507059e+37
    %v281 = vand.u32 %v268, 2147483648
    %v282 = vor.u32 1.1754944e-38, %v281
    %v283 = vsel %vm280, %v282, %v278
    %v284 = vmul.f32 %v191, %v283
    %v285 = vrcp.pop %v269
    %v286 = vmul.f32 %v269, %v285
    %v287 = vsub.f32 1.0, %v286
    %v288 = vmul.f32 %v285, %v287
    %v289 = vadd.f32 %v285, %v288
    %vm290 = vweird.f32 %v269
    %vm291 = vweird.f32 %v285
    %vm292 = vmor %vm290, %vm291
    %v293 = vsel %vm292, %v285, %v289
    %v294 = vand.u32 2147483647, %v269
    %vm295 = vcmp.eq.f32.partialorder %v294, 8.507059e+37
    %v296 = vand.u32 %v269, 2147483648
    %v297 = vor.u32 1.1754944e-38, %v296
    %v298 = vsel %vm295, %v297, %v293
    %v299 = vmul.f32 %v194, %v298
    %v300 = vld [vmem:[%s13] sm:$0xff]
    %v301 = vld [vmem:[%s13 + $0x8] sm:$0xff]
    %v302 = vld [vmem:[%s13 + $0x10] sm:$0xff]
    %v303 = vld [vmem:[%s13 + $0x18] sm:$0xff]
    %v304 = vld [vmem:[%s13 + $0x20] sm:$0xff]
    %v305 = vld [vmem:[%s13 + $0x28] sm:$0xff]
    %v306 = vld [vmem:[%s13 + $0x30] sm:$0xff]
    %v307 = vld [vmem:[%s13 + $0x38] sm:$0xff]
    %v308 = vld [vmem:[%s13 + $0x40] sm:$0xff]
    %v309 = vld [vmem:[%s13 + $0x48] sm:$0xff]
    %v310 = vld [vmem:[%s13 + $0x50] sm:$0xff]
    %v311 = vld [vmem:[%s13 + $0x58] sm:$0xff]
    %v312 = vld [vmem:[%s13 + $0x60] sm:$0xff]
    %v313 = vld [vmem:[%s13 + $0x68] sm:$0xff]
    %v314 = vld [vmem:[%s13 + $0x70] sm:$0xff]
    %v315 = vld [vmem:[%s13 + $0x78] sm:$0xff]
    %v316 = vld [vmem:[%s15] sm:$0xff]
    %v317 = vld [vmem:[%s15 + $0x8] sm:$0xff]
    %v318 = vld [vmem:[%s15 + $0x10] sm:$0xff]
    %v319 = vld [vmem:[%s15 + $0x18] sm:$0xff]
    %v320 = vld [vmem:[%s15 + $0x20] sm:$0xff]
    %v321 = vld [vmem:[%s15 + $0x28] sm:$0xff]
    %v322 = vld [vmem:[%s15 + $0x30] sm:$0xff]
    %v323 = vld [vmem:[%s15 + $0x38] sm:$0xff]
    %v324 = vld [vmem:[%s15 + $0x40] sm:$0xff]
    %v325 = vld [vmem:[%s15 + $0x48] sm:$0xff]
    %v326 = vld [vmem:[%s15 + $0x50] sm:$0xff]
    %v327 = vld [vmem:[%s15 + $0x58] sm:$0xff]
    %v328 = vld [vmem:[%s15 + $0x60] sm:$0xff]
    %v329 = vld [vmem:[%s15 + $0x68] sm:$0xff]
    %v330 = vld [vmem:[%s15 + $0x70] sm:$0xff]
    %v331 = vld [vmem:[%s15 + $0x78] sm:$0xff]
    %v332 = vld [vmem:[%s17] sm:$0xff]
    %v333 = vld [vmem:[%s17 + $0x8] sm:$0xff]
    %v334 = vld [vmem:[%s17 + $0x10] sm:$0xff]
    %v335 = vld [vmem:[%s17 + $0x18] sm:$0xff]
    %v336 = vld [vmem:[%s17 + $0x20] sm:$0xff]
    %v337 = vld [vmem:[%s17 + $0x28] sm:$0xff]
    %v338 = vld [vmem:[%s17 + $0x30] sm:$0xff]
    %v339 = vld [vmem:[%s17 + $0x38] sm:$0xff]
    %v340 = vld [vmem:[%s17 + $0x40] sm:$0xff]
    %v341 = vld [vmem:[%s17 + $0x48] sm:$0xff]
    %v342 = vld [vmem:[%s17 + $0x50] sm:$0xff]
    %v343 = vld [vmem:[%s17 + $0x58] sm:$0xff]
    %v344 = vld [vmem:[%s17 + $0x60] sm:$0xff]
    %v345 = vld [vmem:[%s17 + $0x68] sm:$0xff]
    %v346 = vld [vmem:[%s17 + $0x70] sm:$0xff]
    %v347 = vld [vmem:[%s17 + $0x78] sm:$0xff]
    %v348 = vld [vmem:[%s19] sm:$0xff]
    %v349 = vld [vmem:[%s19 + $0x8] sm:$0xff]
    %v350 = vld [vmem:[%s19 + $0x10] sm:$0xff]
    %v351 = vld [vmem:[%s19 + $0x18] sm:$0xff]
    %v352 = vld [vmem:[%s21] sm:$0x1]
    %v354 = vsel %vm237, %v284, 0
    %v357 = vsel %vm237, %v299, 0
    %359 = vmatpush.msra.mxu0 0.0
    %360 = vmatpush.msra.mxu0 0.0
    %361 = vmatpush.msra.mxu0 0.0
    %362 = vmatpush.msra.mxu0 0.0
    %363 = vmatpush.msra.mxu0 0.0
    %364 = vmatpush.msra.mxu0 0.0
    %365 = vmatpush.msra.mxu0 0.0
    %366 = vmatpush.msra.mxu0 0.0
    %367 = vmatpush.msra.mxu0 0.0
    %368 = vmatpush.msra.mxu0 0.0
    %369 = vmatpush.msra.mxu0 0.0
    %370 = vmatpush.msra.mxu0 0.0
    %371 = vmatpush.msra.mxu0 %v303
    %372 = vmatpush.msra.mxu0 %v302
    %373 = vmatpush.msra.mxu0 %v301
    %374 = vmatpush.msra.mxu0 %v300
    %375 = vmatmul.f32.gmra.mxu0 %v354
    %v376 = vpop.f32.mrf.mxu0
    %v377 = vadd.f32 0.0, %v376
    %378 = vmatmul.f32.gmra.mxu0 %v357
    %v379 = vpop.f32.mrf.mxu0
    %v380 = vadd.f32 0.0, %v379
    %381 = vdwg.mxu0
    %382 = vmatpush.msra.mxu0 0.0
    %383 = vmatpush.msra.mxu0 0.0
    %384 = vmatpush.msra.mxu0 0.0
    %385 = vmatpush.msra.mxu0 0.0
    %386 = vmatpush.msra.mxu0 0.0
    %387 = vmatpush.msra.mxu0 0.0
    %388 = vmatpush.msra.mxu0 0.0
    %389 = vmatpush.msra.mxu0 0.0
    %390 = vmatpush.msra.mxu0 0.0
    %391 = vmatpush.msra.mxu0 0.0
    %392 = vmatpush.msra.mxu0 0.0
    %393 = vmatpush.msra.mxu0 0.0
    %394 = vmatpush.msra.mxu0 %v307
    %395 = vmatpush.msra.mxu0 %v306
    %396 = vmatpush.msra.mxu0 %v305
    %397 = vmatpush.msra.mxu0 %v304
    %398 = vmatmul.f32.gmra.mxu0 %v354
    %v399 = vpop.f32.mrf.mxu0
    %v400 = vadd.f32 0.0, %v399
    %401 = vmatmul.f32.gmra.mxu0 %v357
    %v402 = vpop.f32.mrf.mxu0
    %v403 = vadd.f32 0.0, %v402
    %404 = vdwg.mxu0
    %405 = vmatpush.msra.mxu0 0.0
    %406 = vmatpush.msra.mxu0 0.0
    %407 = vmatpush.msra.mxu0 0.0
    %408 = vmatpush.msra.mxu0 0.0
    %409 = vmatpush.msra.mxu0 0.0
    %410 = vmatpush.msra.mxu0 0.0
    %411 = vmatpush.msra.mxu0 0.0
    %412 = vmatpush.msra.mxu0 0.0
    %413 = vmatpush.msra.mxu0 0.0
    %414 = vmatpush.msra.mxu0 0.0
    %415 = vmatpush.msra.mxu0 0.0
    %416 = vmatpush.msra.mxu0 0.0
    %417 = vmatpush.msra.mxu0 %v311
    %418 = vmatpush.msra.mxu0 %v310
    %419 = vmatpush.msra.mxu0 %v309
    %420 = vmatpush.msra.mxu0 %v308
    %421 = vmatmul.f32.gmra.mxu0 %v354
    %v422 = vpop.f32.mrf.mxu0
    %v423 = vadd.f32 0.0, %v422
    %424 = vmatmul.f32.gmra.mxu0 %v357
    %v425 = vpop.f32.mrf.mxu0
    %v426 = vadd.f32 0.0, %v425
    %427 = vdwg.mxu0
    %428 = vmatpush.msra.mxu0 0.0
    %429 = vmatpush.msra.mxu0 0.0
    %430 = vmatpush.msra.mxu0 0.0
    %431 = vmatpush.msra.mxu0 0.0
    %432 = vmatpush.msra.mxu0 0.0
    %433 = vmatpush.msra.mxu0 0.0
    %434 = vmatpush.msra.mxu0 0.0
    %435 = vmatpush.msra.mxu0 0.0
    %436 = vmatpush.msra.mxu0 0.0
    %437 = vmatpush.msra.mxu0 0.0
    %438 = vmatpush.msra.mxu0 0.0
    %439 = vmatpush.msra.mxu0 0.0
    %440 = vmatpush.msra.mxu0 %v315
    %441 = vmatpush.msra.mxu0 %v314
    %442 = vmatpush.msra.mxu0 %v313
    %443 = vmatpush.msra.mxu0 %v312
    %444 = vmatmul.f32.gmra.mxu0 %v354
    %v445 = vpop.f32.mrf.mxu0
    %v446 = vadd.f32 0.0, %v445
    %447 = vmatmul.f32.gmra.mxu0 %v357
    %v448 = vpop.f32.mrf.mxu0
    %v449 = vadd.f32 0.0, %v448
    %450 = vdwg.mxu0
    %451 = vmatpush.msra.mxu0 0.0
    %452 = vmatpush.msra.mxu0 0.0
    %453 = vmatpush.msra.mxu0 0.0
    %454 = vmatpush.msra.mxu0 0.0
    %455 = vmatpush.msra.mxu0 0.0
    %456 = vmatpush.msra.mxu0 0.0
    %457 = vmatpush.msra.mxu0 0.0
    %458 = vmatpush.msra.mxu0 0.0
    %459 = vmatpush.msra.mxu0 0.0
    %460 = vmatpush.msra.mxu0 0.0
    %461 = vmatpush.msra.mxu0 0.0
    %462 = vmatpush.msra.mxu0 0.0
    %463 = vmatpush.msra.mxu0 %v319
    %464 = vmatpush.msra.mxu0 %v318
    %465 = vmatpush.msra.mxu0 %v317
    %466 = vmatpush.msra.mxu0 %v316
    %467 = vmatmul.f32.gmra.mxu0 %v354
    %v468 = vpop.f32.mrf.mxu0
    %v469 = vadd.f32 0.0, %v468
    %470 = vmatmul.f32.gmra.mxu0 %v357
    %v471 = vpop.f32.mrf.mxu0
    %v472 = vadd.f32 0.0, %v471
    %473 = vdwg.mxu0
    %474 = vmatpush.msra.mxu0 0.0
    %475 = vmatpush.msra.mxu0 0.0
    %476 = vmatpush.msra.mxu0 0.0
    %477 = vmatpush.msra.mxu0 0.0
    %478 = vmatpush.msra.mxu0 0.0
    %479 = vmatpush.msra.mxu0 0.0
    %480 = vmatpush.msra.mxu0 0.0
    %481 = vmatpush.msra.mxu0 0.0
    %482 = vmatpush.msra.mxu0 0.0
    %483 = vmatpush.msra.mxu0 0.0
    %484 = vmatpush.msra.mxu0 0.0
    %485 = vmatpush.msra.mxu0 0.0
    %486 = vmatpush.msra.mxu0 %v323
    %487 = vmatpush.msra.mxu0 %v322
    %488 = vmatpush.msra.mxu0 %v321
    %489 = vmatpush.msra.mxu0 %v320
    %490 = vmatmul.f32.gmra.mxu0 %v354
    %v491 = vpop.f32.mrf.mxu0
    %v492 = vadd.f32 0.0, %v491
    %493 = vmatmul.f32.gmra.mxu0 %v357
    %v494 = vpop.f32.mrf.mxu0
    %v495 = vadd.f32 0.0, %v494
    %496 = vdwg.mxu0
    %497 = vmatpush.msra.mxu0 0.0
    %498 = vmatpush.msra.mxu0 0.0
    %499 = vmatpush.msra.mxu0 0.0
    %500 = vmatpush.msra.mxu0 0.0
    %501 = vmatpush.msra.mxu0 0.0
    %502 = vmatpush.msra.mxu0 0.0
    %503 = vmatpush.msra.mxu0 0.0
    %504 = vmatpush.msra.mxu0 0.0
    %505 = vmatpush.msra.mxu0 0.0
    %506 = vmatpush.msra.mxu0 0.0
    %507 = vmatpush.msra.mxu0 0.0
    %508 = vmatpush.msra.mxu0 0.0
    %509 = vmatpush.msra.mxu0 %v327
    %510 = vmatpush.msra.mxu0 %v326
    %511 = vmatpush.msra.mxu0 %v325
    %512 = vmatpush.msra.mxu0 %v324
    %513 = vmatmul.f32.gmra.mxu0 %v354
    %v514 = vpop.f32.mrf.mxu0
    %v515 = vadd.f32 0.0, %v514
    %516 = vmatmul.f32.gmra.mxu0 %v357
    %v517 = vpop.f32.mrf.mxu0
    %v518 = vadd.f32 0.0, %v517
    %519 = vdwg.mxu0
    %520 = vmatpush.msra.mxu0 0.0
    %521 = vmatpush.msra.mxu0 0.0
    %522 = vmatpush.msra.mxu0 0.0
    %523 = vmatpush.msra.mxu0 0.0
    %524 = vmatpush.msra.mxu0 0.0
    %525 = vmatpush.msra.mxu0 0.0
    %526 = vmatpush.msra.mxu0 0.0
    %527 = vmatpush.msra.mxu0 0.0
    %528 = vmatpush.msra.mxu0 0.0
    %529 = vmatpush.msra.mxu0 0.0
    %530 = vmatpush.msra.mxu0 0.0
    %531 = vmatpush.msra.mxu0 0.0
    %532 = vmatpush.msra.mxu0 %v331
    %533 = vmatpush.msra.mxu0 %v330
    %534 = vmatpush.msra.mxu0 %v329
    %535 = vmatpush.msra.mxu0 %v328
    %536 = vmatmul.f32.gmra.mxu0 %v354
    %v537 = vpop.f32.mrf.mxu0
    %v538 = vadd.f32 0.0, %v537
    %539 = vmatmul.f32.gmra.mxu0 %v357
    %v540 = vpop.f32.mrf.mxu0
    %v541 = vadd.f32 0.0, %v540
    %542 = vdwg.mxu0
    %543 = vmatpush.msra.mxu0 0.0
    %544 = vmatpush.msra.mxu0 0.0
    %545 = vmatpush.msra.mxu0 0.0
    %546 = vmatpush.msra.mxu0 0.0
    %547 = vmatpush.msra.mxu0 0.0
    %548 = vmatpush.msra.mxu0 0.0
    %549 = vmatpush.msra.mxu0 0.0
    %550 = vmatpush.msra.mxu0 0.0
    %551 = vmatpush.msra.mxu0 0.0
    %552 = vmatpush.msra.mxu0 0.0
    %553 = vmatpush.msra.mxu0 0.0
    %554 = vmatpush.msra.mxu0 0.0
    %555 = vmatpush.msra.mxu0 %v335
    %556 = vmatpush.msra.mxu0 %v334
    %557 = vmatpush.msra.mxu0 %v333
    %558 = vmatpush.msra.mxu0 %v332
    %559 = vmatmul.f32.gmra.mxu0 %v354
    %v560 = vpop.f32.mrf.mxu0
    %v561 = vadd.f32 0.0, %v560
    %562 = vmatmul.f32.gmra.mxu0 %v357
    %v563 = vpop.f32.mrf.mxu0
    %v564 = vadd.f32 0.0, %v563
    %565 = vdwg.mxu0
    %566 = vmatpush.msra.mxu0 0.0
    %567 = vmatpush.msra.mxu0 0.0
    %568 = vmatpush.msra.mxu0 0.0
    %569 = vmatpush.msra.mxu0 0.0
    %570 = vmatpush.msra.mxu0 0.0
    %571 = vmatpush.msra.mxu0 0.0
    %572 = vmatpush.msra.mxu0 0.0
    %573 = vmatpush.msra.mxu0 0.0
    %574 = vmatpush.msra.mxu0 0.0
    %575 = vmatpush.msra.mxu0 0.0
    %576 = vmatpush.msra.mxu0 0.0
    %577 = vmatpush.msra.mxu0 0.0
    %578 = vmatpush.msra.mxu0 %v339
    %579 = vmatpush.msra.mxu0 %v338
    %580 = vmatpush.msra.mxu0 %v337
    %581 = vmatpush.msra.mxu0 %v336
    %582 = vmatmul.f32.gmra.mxu0 %v354
    %v583 = vpop.f32.mrf.mxu0
    %v584 = vadd.f32 0.0, %v583
    %585 = vmatmul.f32.gmra.mxu0 %v357
    %v586 = vpop.f32.mrf.mxu0
    %v587 = vadd.f32 0.0, %v586
    %588 = vdwg.mxu0
    %589 = vmatpush.msra.mxu0 0.0
    %590 = vmatpush.msra.mxu0 0.0
    %591 = vmatpush.msra.mxu0 0.0
    %592 = vmatpush.msra.mxu0 0.0
    %593 = vmatpush.msra.mxu0 0.0
    %594 = vmatpush.msra.mxu0 0.0
    %595 = vmatpush.msra.mxu0 0.0
    %596 = vmatpush.msra.mxu0 0.0
    %597 = vmatpush.msra.mxu0 0.0
    %598 = vmatpush.msra.mxu0 0.0
    %599 = vmatpush.msra.mxu0 0.0
    %600 = vmatpush.msra.mxu0 0.0
    %601 = vmatpush.msra.mxu0 %v343
    %602 = vmatpush.msra.mxu0 %v342
    %603 = vmatpush.msra.mxu0 %v341
    %604 = vmatpush.msra.mxu0 %v340
    %605 = vmatmul.f32.gmra.mxu0 %v354
    %v606 = vpop.f32.mrf.mxu0
    %v607 = vadd.f32 0.0, %v606
    %608 = vmatmul.f32.gmra.mxu0 %v357
    %v609 = vpop.f32.mrf.mxu0
    %v610 = vadd.f32 0.0, %v609
    %611 = vdwg.mxu0
    %612 = vmatpush.msra.mxu0 0.0
    %613 = vmatpush.msra.mxu0 0.0
    %614 = vmatpush.msra.mxu0 0.0
    %615 = vmatpush.msra.mxu0 0.0
    %616 = vmatpush.msra.mxu0 0.0
    %617 = vmatpush.msra.mxu0 0.0
    %618 = vmatpush.msra.mxu0 0.0
    %619 = vmatpush.msra.mxu0 0.0
    %620 = vmatpush.msra.mxu0 0.0
    %621 = vmatpush.msra.mxu0 0.0
    %622 = vmatpush.msra.mxu0 0.0
    %623 = vmatpush.msra.mxu0 0.0
    %624 = vmatpush.msra.mxu0 %v347
    %625 = vmatpush.msra.mxu0 %v346
    %626 = vmatpush.msra.mxu0 %v345
    %627 = vmatpush.msra.mxu0 %v344
    %628 = vmatmul.f32.gmra.mxu0 %v354
    %v629 = vpop.f32.mrf.mxu0
    %v630 = vadd.f32 0.0, %v629
    %631 = vmatmul.f32.gmra.mxu0 %v357
    %v632 = vpop.f32.mrf.mxu0
    %v633 = vadd.f32 0.0, %v632
    %634 = vdwg.mxu0
    %vm635 = vcmask 64512
    %v637 = vsel %vm635, %v377, 0
    %v640 = vsel %vm635, %v380, 0
    %v643 = vsel %vm635, %v400, 0
    %v646 = vsel %vm635, %v403, 0
    %v649 = vsel %vm635, %v423, 0
    %v652 = vsel %vm635, %v426, 0
    %v655 = vsel %vm635, %v446, 0
    %v658 = vsel %vm635, %v449, 0
    %v661 = vsel %vm635, %v469, 0
    %v664 = vsel %vm635, %v472, 0
    %v667 = vsel %vm635, %v492, 0
    %v670 = vsel %vm635, %v495, 0
    %v673 = vsel %vm635, %v515, 0
    %v676 = vsel %vm635, %v518, 0
    %v679 = vsel %vm635, %v538, 0
    %v682 = vsel %vm635, %v541, 0
    %684 = vmatpush.xpose.msra.mxu0 0.0
    %685 = vmatpush.xpose.msra.mxu0 0.0
    %686 = vmatpush.xpose.msra.mxu0 0.0
    %687 = vmatpush.xpose.msra.mxu0 0.0
    %688 = vmatpush.xpose.msra.mxu0 0.0
    %689 = vmatpush.xpose.msra.mxu0 0.0
    %690 = vmatpush.xpose.msra.mxu0 0.0
    %691 = vmatpush.xpose.msra.mxu0 0.0
    %692 = vmatpush.xpose.msra.mxu0 %v682
    %693 = vmatpush.xpose.msra.mxu0 %v679
    %694 = vmatpush.xpose.msra.mxu0 %v676
    %695 = vmatpush.xpose.msra.mxu0 %v673
    %696 = vmatpush.xpose.msra.mxu0 %v670
    %697 = vmatpush.xpose.msra.mxu0 %v667
    %698 = vmatpush.xpose.msra.mxu0 %v664
    %699 = vmatpush.xpose.msra.mxu0 %v661
    %700 = vmatmul.f32.gmra.mxu0 %v637
    %v701 = vpop.f32.mrf.mxu0
    %v702 = vadd.f32 %v131, %v701
    %703 = vmatmul.f32.gmra.mxu0 %v640
    %v704 = vpop.f32.mrf.mxu0
    %v705 = vadd.f32 %v132, %v704
    %706 = vmatmul.f32.gmra.mxu0 %v643
    %v707 = vpop.f32.mrf.mxu0
    %v708 = vadd.f32 %v133, %v707
    %709 = vmatmul.f32.gmra.mxu0 %v646
    %v710 = vpop.f32.mrf.mxu0
    %v711 = vadd.f32 %v134, %v710
    %712 = vmatmul.f32.gmra.mxu0 %v649
    %v713 = vpop.f32.mrf.mxu0
    %v714 = vadd.f32 %v135, %v713
    %715 = vmatmul.f32.gmra.mxu0 %v652
    %v716 = vpop.f32.mrf.mxu0
    %v717 = vadd.f32 %v136, %v716
    %718 = vmatmul.f32.gmra.mxu0 %v655
    %v719 = vpop.f32.mrf.mxu0
    %v720 = vadd.f32 %v137, %v719
    %721 = vmatmul.f32.gmra.mxu0 %v658
    %v722 = vpop.f32.mrf.mxu0
    %v723 = vadd.f32 %v138, %v722
    %724 = vdwg.mxu0
    %vm725 = vcmask 523264
    %v726 = vsel %vm725, %v702, -inf
    %727 = vmax.xlane.f32.xlu0 %v726
    %v728 = vpop.xlane.xlu0 %727
    %v729 = vsel %vm725, %v705, -inf
    %730 = vmax.xlane.f32.xlu0 %v729
    %v731 = vpop.xlane.xlu0 %730
    %v732 = vsel %vm725, %v708, -inf
    %733 = vmax.xlane.f32.xlu0 %v732
    %v734 = vpop.xlane.xlu0 %733
    %v735 = vsel %vm725, %v711, -inf
    %736 = vmax.xlane.f32.xlu0 %v735
    %v737 = vpop.xlane.xlu0 %736
    %v738 = vsel %vm725, %v714, -inf
    %739 = vmax.xlane.f32.xlu0 %v738
    %v740 = vpop.xlane.xlu0 %739
    %v741 = vsel %vm725, %v717, -inf
    %742 = vmax.xlane.f32.xlu0 %v741
    %v743 = vpop.xlane.xlu0 %742
    %v744 = vsel %vm725, %v720, -inf
    %745 = vmax.xlane.f32.xlu0 %v744
    %v746 = vpop.xlane.xlu0 %745
    %v747 = vsel %vm725, %v723, -inf
    %748 = vmax.xlane.f32.xlu0 %v747
    %v749 = vpop.xlane.xlu0 %748
    %v750 = vsub.f32 %v702, %v728
    %v751 = vsub.f32 %v705, %v731
    %v752 = vsub.f32 %v708, %v734
    %v753 = vsub.f32 %v711, %v737
    %v754 = vsub.f32 %v714, %v740
    %v755 = vsub.f32 %v717, %v743
    %v756 = vsub.f32 %v720, %v746
    %v757 = vsub.f32 %v723, %v749
    %v758 = vmul.f32 %v750, 1.442695
    %v759 = vpow.pop %v758
    %v760 = vmul.f32 %v751, 1.442695
    %v761 = vpow.pop %v760
    %v762 = vmul.f32 %v752, 1.442695
    %v763 = vpow.pop %v762
    %v764 = vmul.f32 %v753, 1.442695
    %v765 = vpow.pop %v764
    %v766 = vmul.f32 %v754, 1.442695
    %v767 = vpow.pop %v766
    %v768 = vmul.f32 %v755, 1.442695
    %v769 = vpow.pop %v768
    %v770 = vmul.f32 %v756, 1.442695
    %v771 = vpow.pop %v770
    %v772 = vmul.f32 %v757, 1.442695
    %v773 = vpow.pop %v772
    %v774 = vsel %vm725, %v759, 0.0
    %775 = vadd.xlane.f32.xlu0 %v774
    %v776 = vpop.xlane.xlu0 %775
    %v777 = vsel %vm725, %v761, 0.0
    %778 = vadd.xlane.f32.xlu0 %v777
    %v779 = vpop.xlane.xlu0 %778
    %v780 = vsel %vm725, %v763, 0.0
    %781 = vadd.xlane.f32.xlu0 %v780
    %v782 = vpop.xlane.xlu0 %781
    %v783 = vsel %vm725, %v765, 0.0
    %784 = vadd.xlane.f32.xlu0 %v783
    %v785 = vpop.xlane.xlu0 %784
    %v786 = vsel %vm725, %v767, 0.0
    %787 = vadd.xlane.f32.xlu0 %v786
    %v788 = vpop.xlane.xlu0 %787
    %v789 = vsel %vm725, %v769, 0.0
    %790 = vadd.xlane.f32.xlu0 %v789
    %v791 = vpop.xlane.xlu0 %790
    %v792 = vsel %vm725, %v771, 0.0
    %793 = vadd.xlane.f32.xlu0 %v792
    %v794 = vpop.xlane.xlu0 %793
    %v795 = vsel %vm725, %v773, 0.0
    %796 = vadd.xlane.f32.xlu0 %v795
    %v797 = vpop.xlane.xlu0 %796
    %v798 = vrcp.pop %v776
    %v799 = vrcp.pop %v779
    %v800 = vrcp.pop %v782
    %v801 = vrcp.pop %v785
    %v802 = vrcp.pop %v788
    %v803 = vrcp.pop %v791
    %v804 = vrcp.pop %v794
    %v805 = vrcp.pop %v797
    %v806 = vmul.f32 %v759, %v798
    %v807 = vmul.f32 %v761, %v799
    %v808 = vmul.f32 %v763, %v800
    %v809 = vmul.f32 %v765, %v801
    %v810 = vmul.f32 %v767, %v802
    %v811 = vmul.f32 %v769, %v803
    %v812 = vmul.f32 %v771, %v804
    %v813 = vmul.f32 %v773, %v805
    %v815 = vsel %vm725, %v806, 0
    %v818 = vsel %vm725, %v807, 0
    %v821 = vsel %vm725, %v808, 0
    %v824 = vsel %vm725, %v809, 0
    %v827 = vsel %vm725, %v810, 0
    %v830 = vsel %vm725, %v811, 0
    %v833 = vsel %vm725, %v812, 0
    %v836 = vsel %vm725, %v813, 0
    %838 = vmatpush.msra.mxu0 0.0
    %839 = vmatpush.msra.mxu0 0.0
    %840 = vmatpush.msra.mxu0 0.0
    %841 = vmatpush.msra.mxu0 0.0
    %842 = vmatpush.msra.mxu0 0.0
    %843 = vmatpush.msra.mxu0 0.0
    %844 = vmatpush.msra.mxu0 0.0
    %845 = vmatpush.msra.mxu0 0.0
    %846 = vmatpush.msra.mxu0 %v633
    %847 = vmatpush.msra.mxu0 %v630
    %848 = vmatpush.msra.mxu0 %v610
    %849 = vmatpush.msra.mxu0 %v607
    %850 = vmatpush.msra.mxu0 %v587
    %851 = vmatpush.msra.mxu0 %v584
    %852 = vmatpush.msra.mxu0 %v564
    %853 = vmatpush.msra.mxu0 %v561
    %854 = vmatmul.f32.gmra.mxu0 %v815
    %v855 = vpop.f32.mrf.mxu0
    %v856 = vadd.f32 0.0, %v855
    %857 = vmatmul.f32.gmra.mxu0 %v818
    %v858 = vpop.f32.mrf.mxu0
    %v859 = vadd.f32 0.0, %v858
    %860 = vmatmul.f32.gmra.mxu0 %v821
    %v861 = vpop.f32.mrf.mxu0
    %v862 = vadd.f32 0.0, %v861
    %863 = vmatmul.f32.gmra.mxu0 %v824
    %v864 = vpop.f32.mrf.mxu0
    %v865 = vadd.f32 0.0, %v864
    %866 = vmatmul.f32.gmra.mxu0 %v827
    %v867 = vpop.f32.mrf.mxu0
    %v868 = vadd.f32 0.0, %v867
    %869 = vmatmul.f32.gmra.mxu0 %v830
    %v870 = vpop.f32.mrf.mxu0
    %v871 = vadd.f32 0.0, %v870
    %872 = vmatmul.f32.gmra.mxu0 %v833
    %v873 = vpop.f32.mrf.mxu0
    %v874 = vadd.f32 0.0, %v873
    %875 = vmatmul.f32.gmra.mxu0 %v836
    %v876 = vpop.f32.mrf.mxu0
    %v877 = vadd.f32 0.0, %v876
    %878 = vdwg.mxu0
    %v880 = vsel %vm635, %v862, 0
    %v883 = vsel %vm635, %v865, 0
    %885 = vmatpush.msra.mxu0 0.0
    %886 = vmatpush.msra.mxu0 0.0
    %887 = vmatpush.msra.mxu0 0.0
    %888 = vmatpush.msra.mxu0 0.0
    %889 = vmatpush.msra.mxu0 0.0
    %890 = vmatpush.msra.mxu0 0.0
    %891 = vmatpush.msra.mxu0 0.0
    %892 = vmatpush.msra.mxu0 0.0
    %893 = vmatpush.msra.mxu0 0.0
    %894 = vmatpush.msra.mxu0 0.0
    %895 = vmatpush.msra.mxu0 0.0
    %896 = vmatpush.msra.mxu0 0.0
    %897 = vmatpush.msra.mxu0 0.0
    %898 = vmatpush.msra.mxu0 0.0
    %899 = vmatpush.msra.mxu0 0.0
    %900 = vmatpush.msra.mxu0 %v349
    %901 = vmatmul.f32.gmra.mxu0 %v880
    %v902 = vpop.f32.mrf.mxu0
    %v903 = vadd.f32 0.0, %v902
    %904 = vmatmul.f32.gmra.mxu0 %v883
    %v905 = vpop.f32.mrf.mxu0
    %v906 = vadd.f32 0.0, %v905
    %907 = vdwg.mxu0
    %v909 = vsel %vm635, %v856, 0
    %v912 = vsel %vm635, %v859, 0
    %914 = vmatpush.msra.mxu0 0.0
    %915 = vmatpush.msra.mxu0 0.0
    %916 = vmatpush.msra.mxu0 0.0
    %917 = vmatpush.msra.mxu0 0.0
    %918 = vmatpush.msra.mxu0 0.0
    %919 = vmatpush.msra.mxu0 0.0
    %920 = vmatpush.msra.mxu0 0.0
    %921 = vmatpush.msra.mxu0 0.0
    %922 = vmatpush.msra.mxu0 0.0
    %923 = vmatpush.msra.mxu0 0.0
    %924 = vmatpush.msra.mxu0 0.0
    %925 = vmatpush.msra.mxu0 0.0
    %926 = vmatpush.msra.mxu0 0.0
    %927 = vmatpush.msra.mxu0 0.0
    %928 = vmatpush.msra.mxu0 0.0
    %929 = vmatpush.msra.mxu0 %v348
    %930 = vmatmul.f32.gmra.mxu0 %v909
    %v931 = vpop.f32.mrf.mxu0
    %v932 = vadd.f32 %v903, %v931
    %933 = vmatmul.f32.gmra.mxu0 %v912
    %v934 = vpop.f32.mrf.mxu0
    %v935 = vadd.f32 %v906, %v934
    %936 = vdwg.mxu0
    %v938 = vsel %vm635, %v868, 0
    %v941 = vsel %vm635, %v871, 0
    %943 = vmatpush.msra.mxu0 0.0
    %944 = vmatpush.msra.mxu0 0.0
    %945 = vmatpush.msra.mxu0 0.0
    %946 = vmatpush.msra.mxu0 0.0
    %947 = vmatpush.msra.mxu0 0.0
    %948 = vmatpush.msra.mxu0 0.0
    %949 = vmatpush.msra.mxu0 0.0
    %950 = vmatpush.msra.mxu0 0.0
    %951 = vmatpush.msra.mxu0 0.0
    %952 = vmatpush.msra.mxu0 0.0
    %953 = vmatpush.msra.mxu0 0.0
    %954 = vmatpush.msra.mxu0 0.0
    %955 = vmatpush.msra.mxu0 0.0
    %956 = vmatpush.msra.mxu0 0.0
    %957 = vmatpush.msra.mxu0 0.0
    %958 = vmatpush.msra.mxu0 %v350
    %959 = vmatmul.f32.gmra.mxu0 %v938
    %v960 = vpop.f32.mrf.mxu0
    %v961 = vadd.f32 0.0, %v960
    %962 = vmatmul.f32.gmra.mxu0 %v941
    %v963 = vpop.f32.mrf.mxu0
    %v964 = vadd.f32 0.0, %v963
    %965 = vdwg.mxu0
    %v966 = vadd.f32 %v932, %v961
    %v967 = vadd.f32 %v935, %v964
    %v969 = vsel %vm635, %v874, 0
    %v972 = vsel %vm635, %v877, 0
    %974 = vmatpush.msra.mxu0 0.0
    %975 = vmatpush.msra.mxu0 0.0
    %976 = vmatpush.msra.mxu0 0.0
    %977 = vmatpush.msra.mxu0 0.0
    %978 = vmatpush.msra.mxu0 0.0
    %979 = vmatpush.msra.mxu0 0.0
    %980 = vmatpush.msra.mxu0 0.0
    %981 = vmatpush.msra.mxu0 0.0
    %982 = vmatpush.msra.mxu0 0.0
    %983 = vmatpush.msra.mxu0 0.0
    %984 = vmatpush.msra.mxu0 0.0
    %985 = vmatpush.msra.mxu0 0.0
    %986 = vmatpush.msra.mxu0 0.0
    %987 = vmatpush.msra.mxu0 0.0
    %988 = vmatpush.msra.mxu0 0.0
    %989 = vmatpush.msra.mxu0 %v351
    %990 = vmatmul.f32.gmra.mxu0 %v969
    %v991 = vpop.f32.mrf.mxu0
    %v992 = vadd.f32 0.0, %v991
    %993 = vmatmul.f32.gmra.mxu0 %v972
    %v994 = vpop.f32.mrf.mxu0
    %v995 = vadd.f32 0.0, %v994
    %996 = vdwg.mxu0
    %v997 = vadd.f32 %v966, %v992
    %v998 = vadd.f32 %v967, %v995
    %v1000 = vperm.slane %v352, 0
    %v1002 = vadd.f32 %v997, %v1000
    %v1003 = vadd.f32 %v998, %v1000
    %v1004 = vadd.f32 %v1002, %v191
    %v1005 = vadd.f32 %v1003, %v194
    %v1006 = vld [vmem:[%s23] sm:$0xff]
    %v1007 = vld [vmem:[%s23 + $0x8] sm:$0xff]
    %v1008 = vld [vmem:[%s23 + $0x10] sm:$0xff]
    %v1009 = vld [vmem:[%s23 + $0x18] sm:$0xff]
    %v1010 = vld [vmem:[%s25] sm:$0x1]
    %v1011 = vld [vmem:[%s27] sm:$0xff]
    %v1012 = vld [vmem:[%s27 + $0x8] sm:$0xff]
    %v1013 = vld [vmem:[%s27 + $0x10] sm:$0xff]
    %v1014 = vld [vmem:[%s27 + $0x18] sm:$0xff]
    %v1015 = vld [vmem:[%s27 + $0x20] sm:$0xff]
    %v1016 = vld [vmem:[%s27 + $0x28] sm:$0xff]
    %v1017 = vld [vmem:[%s27 + $0x30] sm:$0xff]
    %v1018 = vld [vmem:[%s27 + $0x38] sm:$0xff]
    %v1019 = vld [vmem:[%s29] sm:$0x1]
    %v1020 = vmul.f32 %v1004, %v1004
    %v1021 = vmul.f32 %v1005, %v1005
    %v1022 = vsel %vm237, %v1020, 0.0
    %1023 = vadd.xlane.f32.xlu0 %v1022
    %v1024 = vpop.xlane.xlu0 %1023
    %v1025 = vsel %vm237, %v1021, 0.0
    %1026 = vadd.xlane.f32.xlu0 %v1025
    %v1027 = vpop.xlane.xlu0 %1026
    %v1028 = vrsqrt.pop %v1024
    %v1029 = vmul.f32 %v1028, %v1024
    %v1030 = vmul.f32 %v1029, %v1028
    %v1031 = vmul.f32 0.5, %v1030
    %v1032 = vsub.f32 1.5, %v1031
    %v1033 = vmul.f32 %v1028, %v1032
    %v1034 = vmul.f32 %v1024, %v1033
    %vm1035 = vcmp.eq.f32.partialorder %v1024, inf
    %v1036 = vsel %vm1035, %v1024, %v1034
    %vm1037 = vcmp.eq.f32.partialorder %v1024, 0.0
    %v1038 = vand.u32 %v1024, 2147483648
    %v1039 = vsel %vm1037, %v1038, %v1036
    %v1040 = vrsqrt.pop %v1027
    %v1041 = vmul.f32 %v1040, %v1027
    %v1042 = vmul.f32 %v1041, %v1040
    %v1043 = vmul.f32 0.5, %v1042
    %v1044 = vsub.f32 1.5, %v1043
    %v1045 = vmul.f32 %v1040, %v1044
    %v1046 = vmul.f32 %v1027, %v1045
    %vm1047 = vcmp.eq.f32.partialorder %v1027, inf
    %v1048 = vsel %vm1047, %v1027, %v1046
    %vm1049 = vcmp.eq.f32.partialorder %v1027, 0.0
    %v1050 = vand.u32 %v1027, 2147483648
    %v1051 = vsel %vm1049, %v1050, %v1048
    %v1052 = vmax.f32 %v1039, 1e-05
    %v1053 = vmax.f32 %v1051, 1e-05
    %v1054 = vrcp.pop %v1052
    %v1055 = vmul.f32 %v1052, %v1054
    %v1056 = vsub.f32 1.0, %v1055
    %v1057 = vmul.f32 %v1054, %v1056
    %v1058 = vadd.f32 %v1054, %v1057
    %vm1059 = vweird.f32 %v1052
    %vm1060 = vweird.f32 %v1054
    %vm1061 = vmor %vm1059, %vm1060
    %v1062 = vsel %vm1061, %v1054, %v1058
    %v1063 = vand.u32 2147483647, %v1052
    %vm1064 = vcmp.eq.f32.partialorder %v1063, 8.507059e+37
    %v1065 = vand.u32 %v1052, 2147483648
    %v1066 = vor.u32 1.1754944e-38, %v1065
    %v1067 = vsel %vm1064, %v1066, %v1062
    %v1068 = vmul.f32 %v1004, %v1067
    %v1069 = vrcp.pop %v1053
    %v1070 = vmul.f32 %v1053, %v1069
    %v1071 = vsub.f32 1.0, %v1070
    %v1072 = vmul.f32 %v1069, %v1071
    %v1073 = vadd.f32 %v1069, %v1072
    %vm1074 = vweird.f32 %v1053
    %vm1075 = vweird.f32 %v1069
    %vm1076 = vmor %vm1074, %vm1075
    %v1077 = vsel %vm1076, %v1069, %v1073
    %v1078 = vand.u32 2147483647, %v1053
    %vm1079 = vcmp.eq.f32.partialorder %v1078, 8.507059e+37
    %v1080 = vand.u32 %v1053, 2147483648
    %v1081 = vor.u32 1.1754944e-38, %v1080
    %v1082 = vsel %vm1079, %v1081, %v1077
    %v1083 = vmul.f32 %v1005, %v1082
    %v1085 = vperm.slane %v1010, 0
    %v1088 = vsel %vm237, %v1068, 0
    %v1091 = vsel %vm237, %v1083, 0
    %1093 = vmatpush.msra.mxu0 0.0
    %1094 = vmatpush.msra.mxu0 0.0
    %1095 = vmatpush.msra.mxu0 0.0
    %1096 = vmatpush.msra.mxu0 0.0
    %1097 = vmatpush.msra.mxu0 0.0
    %1098 = vmatpush.msra.mxu0 0.0
    %1099 = vmatpush.msra.mxu0 0.0
    %1100 = vmatpush.msra.mxu0 0.0
    %1101 = vmatpush.msra.mxu0 0.0
    %1102 = vmatpush.msra.mxu0 0.0
    %1103 = vmatpush.msra.mxu0 0.0
    %1104 = vmatpush.msra.mxu0 0.0
    %1105 = vmatpush.msra.mxu0 %v1009
    %1106 = vmatpush.msra.mxu0 %v1008
    %1107 = vmatpush.msra.mxu0 %v1007
    %1108 = vmatpush.msra.mxu0 %v1006
    %1109 = vmatmul.f32.gmra.mxu0 %v1088
    %v1110 = vpop.f32.mrf.mxu0
    %v1111 = vadd.f32 %v1085, %v1110
    %1112 = vmatmul.f32.gmra.mxu0 %v1091
    %v1113 = vpop.f32.mrf.mxu0
    %v1114 = vadd.f32 %v1085, %v1113
    %1115 = vdwg.mxu0
    %v1116 = vmax.f32 %v1111, 0.0
    %v1117 = vmax.f32 %v1114, 0.0
    %v1119 = vperm.slane %v1019, 0
    %v1122 = vsel %vm725, %v1116, 0
    %v1125 = vsel %vm725, %v1117, 0
    %1127 = vmatpush.msra.mxu0 0.0
    %1128 = vmatpush.msra.mxu0 0.0
    %1129 = vmatpush.msra.mxu0 0.0
    %1130 = vmatpush.msra.mxu0 0.0
    %1131 = vmatpush.msra.mxu0 0.0
    %1132 = vmatpush.msra.mxu0 0.0
    %1133 = vmatpush.msra.mxu0 0.0
    %1134 = vmatpush.msra.mxu0 0.0
    %1135 = vmatpush.msra.mxu0 %v1018
    %1136 = vmatpush.msra.mxu0 %v1017
    %1137 = vmatpush.msra.mxu0 %v1016
    %1138 = vmatpush.msra.mxu0 %v1015
    %1139 = vmatpush.msra.mxu0 %v1014
    %1140 = vmatpush.msra.mxu0 %v1013
    %1141 = vmatpush.msra.mxu0 %v1012
    %1142 = vmatpush.msra.mxu0 %v1011
    %1143 = vmatmul.f32.gmra.mxu0 %v1122
    %v1144 = vpop.f32.mrf.mxu0
    %v1145 = vadd.f32 %v1119, %v1144
    %1146 = vmatmul.f32.gmra.mxu0 %v1125
    %v1147 = vpop.f32.mrf.mxu0
    %v1148 = vadd.f32 %v1119, %v1147
    %1149 = vdwg.mxu0
    %v1150 = vadd.f32 %v1145, %v1004
    %v1151 = vadd.f32 %v1148, %v1005
    %v1152 = vmul.f32 %v1150, %v1150
    %v1153 = vmul.f32 %v1151, %v1151
    %v1154 = vsel %vm237, %v1152, 0.0
    %1155 = vadd.xlane.f32.xlu0 %v1154
    %v1156 = vpop.xlane.xlu0 %1155
    %v1157 = vsel %vm237, %v1153, 0.0
    %1158 = vadd.xlane.f32.xlu0 %v1157
    %v1159 = vpop.xlane.xlu0 %1158
    %v1160 = vrsqrt.pop %v1156
    %v1161 = vmul.f32 %v1160, %v1156
    %v1162 = vmul.f32 %v1161, %v1160
    %v1163 = vmul.f32 0.5, %v1162
    %v1164 = vsub.f32 1.5, %v1163
    %v1165 = vmul.f32 %v1160, %v1164
    %v1166 = vmul.f32 %v1156, %v1165
    %vm1167 = vcmp.eq.f32.partialorder %v1156, inf
    %v1168 = vsel %vm1167, %v1156, %v1166
    %vm1169 = vcmp.eq.f32.partialorder %v1156, 0.0
    %v1170 = vand.u32 %v1156, 2147483648
    %v1171 = vsel %vm1169, %v1170, %v1168
    %v1172 = vrsqrt.pop %v1159
    %v1173 = vmul.f32 %v1172, %v1159
    %v1174 = vmul.f32 %v1173, %v1172
    %v1175 = vmul.f32 0.5, %v1174
    %v1176 = vsub.f32 1.5, %v1175
    %v1177 = vmul.f32 %v1172, %v1176
    %v1178 = vmul.f32 %v1159, %v1177
    %vm1179 = vcmp.eq.f32.partialorder %v1159, inf
    %v1180 = vsel %vm1179, %v1159, %v1178
    %vm1181 = vcmp.eq.f32.partialorder %v1159, 0.0
    %v1182 = vand.u32 %v1159, 2147483648
    %v1183 = vsel %vm1181, %v1182, %v1180
    %v1184 = vmax.f32 %v1171, 1e-05
    %v1185 = vmax.f32 %v1183, 1e-05
    %v1186 = vrcp.pop %v1184
    %v1187 = vmul.f32 %v1184, %v1186
    %v1188 = vsub.f32 1.0, %v1187
    %v1189 = vmul.f32 %v1186, %v1188
    %v1190 = vadd.f32 %v1186, %v1189
    %vm1191 = vweird.f32 %v1184
    %vm1192 = vweird.f32 %v1186
    %vm1193 = vmor %vm1191, %vm1192
    %v1194 = vsel %vm1193, %v1186, %v1190
    %v1195 = vand.u32 2147483647, %v1184
    %vm1196 = vcmp.eq.f32.partialorder %v1195, 8.507059e+37
    %v1197 = vand.u32 %v1184, 2147483648
    %v1198 = vor.u32 1.1754944e-38, %v1197
    %v1199 = vsel %vm1196, %v1198, %v1194
    %v1200 = vmul.f32 %v1150, %v1199
    %v1201 = vrcp.pop %v1185
    %v1202 = vmul.f32 %v1185, %v1201
    %v1203 = vsub.f32 1.0, %v1202
    %v1204 = vmul.f32 %v1201, %v1203
    %v1205 = vadd.f32 %v1201, %v1204
    %vm1206 = vweird.f32 %v1185
    %vm1207 = vweird.f32 %v1201
    %vm1208 = vmor %vm1206, %vm1207
    %v1209 = vsel %vm1208, %v1201, %v1205
    %v1210 = vand.u32 2147483647, %v1185
    %vm1211 = vcmp.eq.f32.partialorder %v1210, 8.507059e+37
    %v1212 = vand.u32 %v1185, 2147483648
    %v1213 = vor.u32 1.1754944e-38, %v1212
    %v1214 = vsel %vm1211, %v1213, %v1209
    %v1215 = vmul.f32 %v1151, %v1214
    %s1216 = scalar_lea.vmem %s13, 128
    %v1217 = vld [vmem:[%s1216] sm:$0xff]
    %v1218 = vld [vmem:[%s1216 + $0x8] sm:$0xff]
    %v1219 = vld [vmem:[%s1216 + $0x10] sm:$0xff]
    %v1220 = vld [vmem:[%s1216 + $0x18] sm:$0xff]
    %v1221 = vld [vmem:[%s1216 + $0x20] sm:$0xff]
    %v1222 = vld [vmem:[%s1216 + $0x28] sm:$0xff]
    %v1223 = vld [vmem:[%s1216 + $0x30] sm:$0xff]
    %v1224 = vld [vmem:[%s1216 + $0x38] sm:$0xff]
    %v1225 = vld [vmem:[%s1216 + $0x40] sm:$0xff]
    %v1226 = vld [vmem:[%s1216 + $0x48] sm:$0xff]
    %v1227 = vld [vmem:[%s1216 + $0x50] sm:$0xff]
    %v1228 = vld [vmem:[%s1216 + $0x58] sm:$0xff]
    %v1229 = vld [vmem:[%s1216 + $0x60] sm:$0xff]
    %v1230 = vld [vmem:[%s1216 + $0x68] sm:$0xff]
    %v1231 = vld [vmem:[%s1216 + $0x70] sm:$0xff]
    %v1232 = vld [vmem:[%s1216 + $0x78] sm:$0xff]
    %s1233 = scalar_lea.vmem %s15, 128
    %v1234 = vld [vmem:[%s1233] sm:$0xff]
    %v1235 = vld [vmem:[%s1233 + $0x8] sm:$0xff]
    %v1236 = vld [vmem:[%s1233 + $0x10] sm:$0xff]
    %v1237 = vld [vmem:[%s1233 + $0x18] sm:$0xff]
    %v1238 = vld [vmem:[%s1233 + $0x20] sm:$0xff]
    %v1239 = vld [vmem:[%s1233 + $0x28] sm:$0xff]
    %v1240 = vld [vmem:[%s1233 + $0x30] sm:$0xff]
    %v1241 = vld [vmem:[%s1233 + $0x38] sm:$0xff]
    %v1242 = vld [vmem:[%s1233 + $0x40] sm:$0xff]
    %v1243 = vld [vmem:[%s1233 + $0x48] sm:$0xff]
    %v1244 = vld [vmem:[%s1233 + $0x50] sm:$0xff]
    %v1245 = vld [vmem:[%s1233 + $0x58] sm:$0xff]
    %v1246 = vld [vmem:[%s1233 + $0x60] sm:$0xff]
    %v1247 = vld [vmem:[%s1233 + $0x68] sm:$0xff]
    %v1248 = vld [vmem:[%s1233 + $0x70] sm:$0xff]
    %v1249 = vld [vmem:[%s1233 + $0x78] sm:$0xff]
    %s1250 = scalar_lea.vmem %s17, 128
    %v1251 = vld [vmem:[%s1250] sm:$0xff]
    %v1252 = vld [vmem:[%s1250 + $0x8] sm:$0xff]
    %v1253 = vld [vmem:[%s1250 + $0x10] sm:$0xff]
    %v1254 = vld [vmem:[%s1250 + $0x18] sm:$0xff]
    %v1255 = vld [vmem:[%s1250 + $0x20] sm:$0xff]
    %v1256 = vld [vmem:[%s1250 + $0x28] sm:$0xff]
    %v1257 = vld [vmem:[%s1250 + $0x30] sm:$0xff]
    %v1258 = vld [vmem:[%s1250 + $0x38] sm:$0xff]
    %v1259 = vld [vmem:[%s1250 + $0x40] sm:$0xff]
    %v1260 = vld [vmem:[%s1250 + $0x48] sm:$0xff]
    %v1261 = vld [vmem:[%s1250 + $0x50] sm:$0xff]
    %v1262 = vld [vmem:[%s1250 + $0x58] sm:$0xff]
    %v1263 = vld [vmem:[%s1250 + $0x60] sm:$0xff]
    %v1264 = vld [vmem:[%s1250 + $0x68] sm:$0xff]
    %v1265 = vld [vmem:[%s1250 + $0x70] sm:$0xff]
    %v1266 = vld [vmem:[%s1250 + $0x78] sm:$0xff]
    %s1267 = scalar_lea.vmem %s19, 32
    %v1268 = vld [vmem:[%s1267] sm:$0xff]
    %v1269 = vld [vmem:[%s1267 + $0x8] sm:$0xff]
    %v1270 = vld [vmem:[%s1267 + $0x10] sm:$0xff]
    %v1271 = vld [vmem:[%s1267 + $0x18] sm:$0xff]
    %s1272 = scalar_lea.vmem %s21, 1
    %v1273 = vld [vmem:[%s1272] sm:$0x1]
    %v1275 = vsel %vm237, %v1200, 0
    %v1278 = vsel %vm237, %v1215, 0
    %1280 = vmatpush.msra.mxu0 0.0
    %1281 = vmatpush.msra.mxu0 0.0
    %1282 = vmatpush.msra.mxu0 0.0
    %1283 = vmatpush.msra.mxu0 0.0
    %1284 = vmatpush.msra.mxu0 0.0
    %1285 = vmatpush.msra.mxu0 0.0
    %1286 = vmatpush.msra.mxu0 0.0
    %1287 = vmatpush.msra.mxu0 0.0
    %1288 = vmatpush.msra.mxu0 0.0
    %1289 = vmatpush.msra.mxu0 0.0
    %1290 = vmatpush.msra.mxu0 0.0
    %1291 = vmatpush.msra.mxu0 0.0
    %1292 = vmatpush.msra.mxu0 %v1220
    %1293 = vmatpush.msra.mxu0 %v1219
    %1294 = vmatpush.msra.mxu0 %v1218
    %1295 = vmatpush.msra.mxu0 %v1217
    %1296 = vmatmul.f32.gmra.mxu0 %v1275
    %v1297 = vpop.f32.mrf.mxu0
    %v1298 = vadd.f32 0.0, %v1297
    %1299 = vmatmul.f32.gmra.mxu0 %v1278
    %v1300 = vpop.f32.mrf.mxu0
    %v1301 = vadd.f32 0.0, %v1300
    %1302 = vdwg.mxu0
    %1303 = vmatpush.msra.mxu0 0.0
    %1304 = vmatpush.msra.mxu0 0.0
    %1305 = vmatpush.msra.mxu0 0.0
    %1306 = vmatpush.msra.mxu0 0.0
    %1307 = vmatpush.msra.mxu0 0.0
    %1308 = vmatpush.msra.mxu0 0.0
    %1309 = vmatpush.msra.mxu0 0.0
    %1310 = vmatpush.msra.mxu0 0.0
    %1311 = vmatpush.msra.mxu0 0.0
    %1312 = vmatpush.msra.mxu0 0.0
    %1313 = vmatpush.msra.mxu0 0.0
    %1314 = vmatpush.msra.mxu0 0.0
    %1315 = vmatpush.msra.mxu0 %v1224
    %1316 = vmatpush.msra.mxu0 %v1223
    %1317 = vmatpush.msra.mxu0 %v1222
    %1318 = vmatpush.msra.mxu0 %v1221
    %1319 = vmatmul.f32.gmra.mxu0 %v1275
    %v1320 = vpop.f32.mrf.mxu0
    %v1321 = vadd.f32 0.0, %v1320
    %1322 = vmatmul.f32.gmra.mxu0 %v1278
    %v1323 = vpop.f32.mrf.mxu0
    %v1324 = vadd.f32 0.0, %v1323
    %1325 = vdwg.mxu0
    %1326 = vmatpush.msra.mxu0 0.0
    %1327 = vmatpush.msra.mxu0 0.0
    %1328 = vmatpush.msra.mxu0 0.0
    %1329 = vmatpush.msra.mxu0 0.0
    %1330 = vmatpush.msra.mxu0 0.0
    %1331 = vmatpush.msra.mxu0 0.0
    %1332 = vmatpush.msra.mxu0 0.0
    %1333 = vmatpush.msra.mxu0 0.0
    %1334 = vmatpush.msra.mxu0 0.0
    %1335 = vmatpush.msra.mxu0 0.0
    %1336 = vmatpush.msra.mxu0 0.0
    %1337 = vmatpush.msra.mxu0 0.0
    %1338 = vmatpush.msra.mxu0 %v1228
    %1339 = vmatpush.msra.mxu0 %v1227
    %1340 = vmatpush.msra.mxu0 %v1226
    %1341 = vmatpush.msra.mxu0 %v1225
    %1342 = vmatmul.f32.gmra.mxu0 %v1275
    %v1343 = vpop.f32.mrf.mxu0
    %v1344 = vadd.f32 0.0, %v1343
    %1345 = vmatmul.f32.gmra.mxu0 %v1278
    %v1346 = vpop.f32.mrf.mxu0
    %v1347 = vadd.f32 0.0, %v1346
    %1348 = vdwg.mxu0
    %1349 = vmatpush.msra.mxu0 0.0
    %1350 = vmatpush.msra.mxu0 0.0
    %1351 = vmatpush.msra.mxu0 0.0
    %1352 = vmatpush.msra.mxu0 0.0
    %1353 = vmatpush.msra.mxu0 0.0
    %1354 = vmatpush.msra.mxu0 0.0
    %1355 = vmatpush.msra.mxu0 0.0
    %1356 = vmatpush.msra.mxu0 0.0
    %1357 = vmatpush.msra.mxu0 0.0
    %1358 = vmatpush.msra.mxu0 0.0
    %1359 = vmatpush.msra.mxu0 0.0
    %1360 = vmatpush.msra.mxu0 0.0
    %1361 = vmatpush.msra.mxu0 %v1232
    %1362 = vmatpush.msra.mxu0 %v1231
    %1363 = vmatpush.msra.mxu0 %v1230
    %1364 = vmatpush.msra.mxu0 %v1229
    %1365 = vmatmul.f32.gmra.mxu0 %v1275
    %v1366 = vpop.f32.mrf.mxu0
    %v1367 = vadd.f32 0.0, %v1366
    %1368 = vmatmul.f32.gmra.mxu0 %v1278
    %v1369 = vpop.f32.mrf.mxu0
    %v1370 = vadd.f32 0.0, %v1369
    %1371 = vdwg.mxu0
    %1372 = vmatpush.msra.mxu0 0.0
    %1373 = vmatpush.msra.mxu0 0.0
    %1374 = vmatpush.msra.mxu0 0.0
    %1375 = vmatpush.msra.mxu0 0.0
    %1376 = vmatpush.msra.mxu0 0.0
    %1377 = vmatpush.msra.mxu0 0.0
    %1378 = vmatpush.msra.mxu0 0.0
    %1379 = vmatpush.msra.mxu0 0.0
    %1380 = vmatpush.msra.mxu0 0.0
    %1381 = vmatpush.msra.mxu0 0.0
    %1382 = vmatpush.msra.mxu0 0.0
    %1383 = vmatpush.msra.mxu0 0.0
    %1384 = vmatpush.msra.mxu0 %v1237
    %1385 = vmatpush.msra.mxu0 %v1236
    %1386 = vmatpush.msra.mxu0 %v1235
    %1387 = vmatpush.msra.mxu0 %v1234
    %1388 = vmatmul.f32.gmra.mxu0 %v1275
    %v1389 = vpop.f32.mrf.mxu0
    %v1390 = vadd.f32 0.0, %v1389
    %1391 = vmatmul.f32.gmra.mxu0 %v1278
    %v1392 = vpop.f32.mrf.mxu0
    %v1393 = vadd.f32 0.0, %v1392
    %1394 = vdwg.mxu0
    %1395 = vmatpush.msra.mxu0 0.0
    %1396 = vmatpush.msra.mxu0 0.0
    %1397 = vmatpush.msra.mxu0 0.0
    %1398 = vmatpush.msra.mxu0 0.0
    %1399 = vmatpush.msra.mxu0 0.0
    %1400 = vmatpush.msra.mxu0 0.0
    %1401 = vmatpush.msra.mxu0 0.0
    %1402 = vmatpush.msra.mxu0 0.0
    %1403 = vmatpush.msra.mxu0 0.0
    %1404 = vmatpush.msra.mxu0 0.0
    %1405 = vmatpush.msra.mxu0 0.0
    %1406 = vmatpush.msra.mxu0 0.0
    %1407 = vmatpush.msra.mxu0 %v1241
    %1408 = vmatpush.msra.mxu0 %v1240
    %1409 = vmatpush.msra.mxu0 %v1239
    %1410 = vmatpush.msra.mxu0 %v1238
    %1411 = vmatmul.f32.gmra.mxu0 %v1275
    %v1412 = vpop.f32.mrf.mxu0
    %v1413 = vadd.f32 0.0, %v1412
    %1414 = vmatmul.f32.gmra.mxu0 %v1278
    %v1415 = vpop.f32.mrf.mxu0
    %v1416 = vadd.f32 0.0, %v1415
    %1417 = vdwg.mxu0
    %1418 = vmatpush.msra.mxu0 0.0
    %1419 = vmatpush.msra.mxu0 0.0
    %1420 = vmatpush.msra.mxu0 0.0
    %1421 = vmatpush.msra.mxu0 0.0
    %1422 = vmatpush.msra.mxu0 0.0
    %1423 = vmatpush.msra.mxu0 0.0
    %1424 = vmatpush.msra.mxu0 0.0
    %1425 = vmatpush.msra.mxu0 0.0
    %1426 = vmatpush.msra.mxu0 0.0
    %1427 = vmatpush.msra.mxu0 0.0
    %1428 = vmatpush.msra.mxu0 0.0
    %1429 = vmatpush.msra.mxu0 0.0
    %1430 = vmatpush.msra.mxu0 %v1245
    %1431 = vmatpush.msra.mxu0 %v1244
    %1432 = vmatpush.msra.mxu0 %v1243
    %1433 = vmatpush.msra.mxu0 %v1242
    %1434 = vmatmul.f32.gmra.mxu0 %v1275
    %v1435 = vpop.f32.mrf.mxu0
    %v1436 = vadd.f32 0.0, %v1435
    %1437 = vmatmul.f32.gmra.mxu0 %v1278
    %v1438 = vpop.f32.mrf.mxu0
    %v1439 = vadd.f32 0.0, %v1438
    %1440 = vdwg.mxu0
    %1441 = vmatpush.msra.mxu0 0.0
    %1442 = vmatpush.msra.mxu0 0.0
    %1443 = vmatpush.msra.mxu0 0.0
    %1444 = vmatpush.msra.mxu0 0.0
    %1445 = vmatpush.msra.mxu0 0.0
    %1446 = vmatpush.msra.mxu0 0.0
    %1447 = vmatpush.msra.mxu0 0.0
    %1448 = vmatpush.msra.mxu0 0.0
    %1449 = vmatpush.msra.mxu0 0.0
    %1450 = vmatpush.msra.mxu0 0.0
    %1451 = vmatpush.msra.mxu0 0.0
    %1452 = vmatpush.msra.mxu0 0.0
    %1453 = vmatpush.msra.mxu0 %v1249
    %1454 = vmatpush.msra.mxu0 %v1248
    %1455 = vmatpush.msra.mxu0 %v1247
    %1456 = vmatpush.msra.mxu0 %v1246
    %1457 = vmatmul.f32.gmra.mxu0 %v1275
    %v1458 = vpop.f32.mrf.mxu0
    %v1459 = vadd.f32 0.0, %v1458
    %1460 = vmatmul.f32.gmra.mxu0 %v1278
    %v1461 = vpop.f32.mrf.mxu0
    %v1462 = vadd.f32 0.0, %v1461
    %1463 = vdwg.mxu0
    %1464 = vmatpush.msra.mxu0 0.0
    %1465 = vmatpush.msra.mxu0 0.0
    %1466 = vmatpush.msra.mxu0 0.0
    %1467 = vmatpush.msra.mxu0 0.0
    %1468 = vmatpush.msra.mxu0 0.0
    %1469 = vmatpush.msra.mxu0 0.0
    %1470 = vmatpush.msra.mxu0 0.0
    %1471 = vmatpush.msra.mxu0 0.0
    %1472 = vmatpush.msra.mxu0 0.0
    %1473 = vmatpush.msra.mxu0 0.0
    %1474 = vmatpush.msra.mxu0 0.0
    %1475 = vmatpush.msra.mxu0 0.0
    %1476 = vmatpush.msra.mxu0 %v1254
    %1477 = vmatpush.msra.mxu0 %v1253
    %1478 = vmatpush.msra.mxu0 %v1252
    %1479 = vmatpush.msra.mxu0 %v1251
    %1480 = vmatmul.f32.gmra.mxu0 %v1275
    %v1481 = vpop.f32.mrf.mxu0
    %v1482 = vadd.f32 0.0, %v1481
    %1483 = vmatmul.f32.gmra.mxu0 %v1278
    %v1484 = vpop.f32.mrf.mxu0
    %v1485 = vadd.f32 0.0, %v1484
    %1486 = vdwg.mxu0
    %1487 = vmatpush.msra.mxu0 0.0
    %1488 = vmatpush.msra.mxu0 0.0
    %1489 = vmatpush.msra.mxu0 0.0
    %1490 = vmatpush.msra.mxu0 0.0
    %1491 = vmatpush.msra.mxu0 0.0
    %1492 = vmatpush.msra.mxu0 0.0
    %1493 = vmatpush.msra.mxu0 0.0
    %1494 = vmatpush.msra.mxu0 0.0
    %1495 = vmatpush.msra.mxu0 0.0
    %1496 = vmatpush.msra.mxu0 0.0
    %1497 = vmatpush.msra.mxu0 0.0
    %1498 = vmatpush.msra.mxu0 0.0
    %1499 = vmatpush.msra.mxu0 %v1258
    %1500 = vmatpush.msra.mxu0 %v1257
    %1501 = vmatpush.msra.mxu0 %v1256
    %1502 = vmatpush.msra.mxu0 %v1255
    %1503 = vmatmul.f32.gmra.mxu0 %v1275
    %v1504 = vpop.f32.mrf.mxu0
    %v1505 = vadd.f32 0.0, %v1504
    %1506 = vmatmul.f32.gmra.mxu0 %v1278
    %v1507 = vpop.f32.mrf.mxu0
    %v1508 = vadd.f32 0.0, %v1507
    %1509 = vdwg.mxu0
    %1510 = vmatpush.msra.mxu0 0.0
    %1511 = vmatpush.msra.mxu0 0.0
    %1512 = vmatpush.msra.mxu0 0.0
    %1513 = vmatpush.msra.mxu0 0.0
    %1514 = vmatpush.msra.mxu0 0.0
    %1515 = vmatpush.msra.mxu0 0.0
    %1516 = vmatpush.msra.mxu0 0.0
    %1517 = vmatpush.msra.mxu0 0.0
    %1518 = vmatpush.msra.mxu0 0.0
    %1519 = vmatpush.msra.mxu0 0.0
    %1520 = vmatpush.msra.mxu0 0.0
    %1521 = vmatpush.msra.mxu0 0.0
    %1522 = vmatpush.msra.mxu0 %v1262
    %1523 = vmatpush.msra.mxu0 %v1261
    %1524 = vmatpush.msra.mxu0 %v1260
    %1525 = vmatpush.msra.mxu0 %v1259
    %1526 = vmatmul.f32.gmra.mxu0 %v1275
    %v1527 = vpop.f32.mrf.mxu0
    %v1528 = vadd.f32 0.0, %v1527
    %1529 = vmatmul.f32.gmra.mxu0 %v1278
    %v1530 = vpop.f32.mrf.mxu0
    %v1531 = vadd.f32 0.0, %v1530
    %1532 = vdwg.mxu0
    %1533 = vmatpush.msra.mxu0 0.0
    %1534 = vmatpush.msra.mxu0 0.0
    %1535 = vmatpush.msra.mxu0 0.0
    %1536 = vmatpush.msra.mxu0 0.0
    %1537 = vmatpush.msra.mxu0 0.0
    %1538 = vmatpush.msra.mxu0 0.0
    %1539 = vmatpush.msra.mxu0 0.0
    %1540 = vmatpush.msra.mxu0 0.0
    %1541 = vmatpush.msra.mxu0 0.0
    %1542 = vmatpush.msra.mxu0 0.0
    %1543 = vmatpush.msra.mxu0 0.0
    %1544 = vmatpush.msra.mxu0 0.0
    %1545 = vmatpush.msra.mxu0 %v1266
    %1546 = vmatpush.msra.mxu0 %v1265
    %1547 = vmatpush.msra.mxu0 %v1264
    %1548 = vmatpush.msra.mxu0 %v1263
    %1549 = vmatmul.f32.gmra.mxu0 %v1275
    %v1550 = vpop.f32.mrf.mxu0
    %v1551 = vadd.f32 0.0, %v1550
    %1552 = vmatmul.f32.gmra.mxu0 %v1278
    %v1553 = vpop.f32.mrf.mxu0
    %v1554 = vadd.f32 0.0, %v1553
    %1555 = vdwg.mxu0
    %v1557 = vsel %vm635, %v1298, 0
    %v1560 = vsel %vm635, %v1301, 0
    %v1563 = vsel %vm635, %v1321, 0
    %v1566 = vsel %vm635, %v1324, 0
    %v1569 = vsel %vm635, %v1344, 0
    %v1572 = vsel %vm635, %v1347, 0
    %v1575 = vsel %vm635, %v1367, 0
    %v1578 = vsel %vm635, %v1370, 0
    %v1581 = vsel %vm635, %v1390, 0
    %v1584 = vsel %vm635, %v1393, 0
    %v1587 = vsel %vm635, %v1413, 0
    %v1590 = vsel %vm635, %v1416, 0
    %v1593 = vsel %vm635, %v1436, 0
    %v1596 = vsel %vm635, %v1439, 0
    %v1599 = vsel %vm635, %v1459, 0
    %v1602 = vsel %vm635, %v1462, 0
    %1604 = vmatpush.xpose.msra.mxu0 0.0
    %1605 = vmatpush.xpose.msra.mxu0 0.0
    %1606 = vmatpush.xpose.msra.mxu0 0.0
    %1607 = vmatpush.xpose.msra.mxu0 0.0
    %1608 = vmatpush.xpose.msra.mxu0 0.0
    %1609 = vmatpush.xpose.msra.mxu0 0.0
    %1610 = vmatpush.xpose.msra.mxu0 0.0
    %1611 = vmatpush.xpose.msra.mxu0 0.0
    %1612 = vmatpush.xpose.msra.mxu0 %v1602
    %1613 = vmatpush.xpose.msra.mxu0 %v1599
    %1614 = vmatpush.xpose.msra.mxu0 %v1596
    %1615 = vmatpush.xpose.msra.mxu0 %v1593
    %1616 = vmatpush.xpose.msra.mxu0 %v1590
    %1617 = vmatpush.xpose.msra.mxu0 %v1587
    %1618 = vmatpush.xpose.msra.mxu0 %v1584
    %1619 = vmatpush.xpose.msra.mxu0 %v1581
    %1620 = vmatmul.f32.gmra.mxu0 %v1557
    %v1621 = vpop.f32.mrf.mxu0
    %v1622 = vadd.f32 %v131, %v1621
    %1623 = vmatmul.f32.gmra.mxu0 %v1560
    %v1624 = vpop.f32.mrf.mxu0
    %v1625 = vadd.f32 %v132, %v1624
    %1626 = vmatmul.f32.gmra.mxu0 %v1563
    %v1627 = vpop.f32.mrf.mxu0
    %v1628 = vadd.f32 %v133, %v1627
    %1629 = vmatmul.f32.gmra.mxu0 %v1566
    %v1630 = vpop.f32.mrf.mxu0
    %v1631 = vadd.f32 %v134, %v1630
    %1632 = vmatmul.f32.gmra.mxu0 %v1569
    %v1633 = vpop.f32.mrf.mxu0
    %v1634 = vadd.f32 %v135, %v1633
    %1635 = vmatmul.f32.gmra.mxu0 %v1572
    %v1636 = vpop.f32.mrf.mxu0
    %v1637 = vadd.f32 %v136, %v1636
    %1638 = vmatmul.f32.gmra.mxu0 %v1575
    %v1639 = vpop.f32.mrf.mxu0
    %v1640 = vadd.f32 %v137, %v1639
    %1641 = vmatmul.f32.gmra.mxu0 %v1578
    %v1642 = vpop.f32.mrf.mxu0
    %v1643 = vadd.f32 %v138, %v1642
    %1644 = vdwg.mxu0
    %v1645 = vsel %vm725, %v1622, -inf
    %1646 = vmax.xlane.f32.xlu0 %v1645
    %v1647 = vpop.xlane.xlu0 %1646
    %v1648 = vsel %vm725, %v1625, -inf
    %1649 = vmax.xlane.f32.xlu0 %v1648
    %v1650 = vpop.xlane.xlu0 %1649
    %v1651 = vsel %vm725, %v1628, -inf
    %1652 = vmax.xlane.f32.xlu0 %v1651
    %v1653 = vpop.xlane.xlu0 %1652
    %v1654 = vsel %vm725, %v1631, -inf
    %1655 = vmax.xlane.f32.xlu0 %v1654
    %v1656 = vpop.xlane.xlu0 %1655
    %v1657 = vsel %vm725, %v1634, -inf
    %1658 = vmax.xlane.f32.xlu0 %v1657
    %v1659 = vpop.xlane.xlu0 %1658
    %v1660 = vsel %vm725, %v1637, -inf
    %1661 = vmax.xlane.f32.xlu0 %v1660
    %v1662 = vpop.xlane.xlu0 %1661
    %v1663 = vsel %vm725, %v1640, -inf
    %1664 = vmax.xlane.f32.xlu0 %v1663
    %v1665 = vpop.xlane.xlu0 %1664
    %v1666 = vsel %vm725, %v1643, -inf
    %1667 = vmax.xlane.f32.xlu0 %v1666
    %v1668 = vpop.xlane.xlu0 %1667
    %v1669 = vsub.f32 %v1622, %v1647
    %v1670 = vsub.f32 %v1625, %v1650
    %v1671 = vsub.f32 %v1628, %v1653
    %v1672 = vsub.f32 %v1631, %v1656
    %v1673 = vsub.f32 %v1634, %v1659
    %v1674 = vsub.f32 %v1637, %v1662
    %v1675 = vsub.f32 %v1640, %v1665
    %v1676 = vsub.f32 %v1643, %v1668
    %v1677 = vmul.f32 %v1669, 1.442695
    %v1678 = vpow.pop %v1677
    %v1679 = vmul.f32 %v1670, 1.442695
    %v1680 = vpow.pop %v1679
    %v1681 = vmul.f32 %v1671, 1.442695
    %v1682 = vpow.pop %v1681
    %v1683 = vmul.f32 %v1672, 1.442695
    %v1684 = vpow.pop %v1683
    %v1685 = vmul.f32 %v1673, 1.442695
    %v1686 = vpow.pop %v1685
    %v1687 = vmul.f32 %v1674, 1.442695
    %v1688 = vpow.pop %v1687
    %v1689 = vmul.f32 %v1675, 1.442695
    %v1690 = vpow.pop %v1689
    %v1691 = vmul.f32 %v1676, 1.442695
    %v1692 = vpow.pop %v1691
    %v1693 = vsel %vm725, %v1678, 0.0
    %1694 = vadd.xlane.f32.xlu0 %v1693
    %v1695 = vpop.xlane.xlu0 %1694
    %v1696 = vsel %vm725, %v1680, 0.0
    %1697 = vadd.xlane.f32.xlu0 %v1696
    %v1698 = vpop.xlane.xlu0 %1697
    %v1699 = vsel %vm725, %v1682, 0.0
    %1700 = vadd.xlane.f32.xlu0 %v1699
    %v1701 = vpop.xlane.xlu0 %1700
    %v1702 = vsel %vm725, %v1684, 0.0
    %1703 = vadd.xlane.f32.xlu0 %v1702
    %v1704 = vpop.xlane.xlu0 %1703
    %v1705 = vsel %vm725, %v1686, 0.0
    %1706 = vadd.xlane.f32.xlu0 %v1705
    %v1707 = vpop.xlane.xlu0 %1706
    %v1708 = vsel %vm725, %v1688, 0.0
    %1709 = vadd.xlane.f32.xlu0 %v1708
    %v1710 = vpop.xlane.xlu0 %1709
    %v1711 = vsel %vm725, %v1690, 0.0
    %1712 = vadd.xlane.f32.xlu0 %v1711
    %v1713 = vpop.xlane.xlu0 %1712
    %v1714 = vsel %vm725, %v1692, 0.0
    %1715 = vadd.xlane.f32.xlu0 %v1714
    %v1716 = vpop.xlane.xlu0 %1715
    %v1717 = vrcp.pop %v1695
    %v1718 = vrcp.pop %v1698
    %v1719 = vrcp.pop %v1701
    %v1720 = vrcp.pop %v1704
    %v1721 = vrcp.pop %v1707
    %v1722 = vrcp.pop %v1710
    %v1723 = vrcp.pop %v1713
    %v1724 = vrcp.pop %v1716
    %v1725 = vmul.f32 %v1678, %v1717
    %v1726 = vmul.f32 %v1680, %v1718
    %v1727 = vmul.f32 %v1682, %v1719
    %v1728 = vmul.f32 %v1684, %v1720
    %v1729 = vmul.f32 %v1686, %v1721
    %v1730 = vmul.f32 %v1688, %v1722
    %v1731 = vmul.f32 %v1690, %v1723
    %v1732 = vmul.f32 %v1692, %v1724
    %v1734 = vsel %vm725, %v1725, 0
    %v1737 = vsel %vm725, %v1726, 0
    %v1740 = vsel %vm725, %v1727, 0
    %v1743 = vsel %vm725, %v1728, 0
    %v1746 = vsel %vm725, %v1729, 0
    %v1749 = vsel %vm725, %v1730, 0
    %v1752 = vsel %vm725, %v1731, 0
    %v1755 = vsel %vm725, %v1732, 0
    %1757 = vmatpush.msra.mxu0 0.0
    %1758 = vmatpush.msra.mxu0 0.0
    %1759 = vmatpush.msra.mxu0 0.0
    %1760 = vmatpush.msra.mxu0 0.0
    %1761 = vmatpush.msra.mxu0 0.0
    %1762 = vmatpush.msra.mxu0 0.0
    %1763 = vmatpush.msra.mxu0 0.0
    %1764 = vmatpush.msra.mxu0 0.0
    %1765 = vmatpush.msra.mxu0 %v1554
    %1766 = vmatpush.msra.mxu0 %v1551
    %1767 = vmatpush.msra.mxu0 %v1531
    %1768 = vmatpush.msra.mxu0 %v1528
    %1769 = vmatpush.msra.mxu0 %v1508
    %1770 = vmatpush.msra.mxu0 %v1505
    %1771 = vmatpush.msra.mxu0 %v1485
    %1772 = vmatpush.msra.mxu0 %v1482
    %1773 = vmatmul.f32.gmra.mxu0 %v1734
    %v1774 = vpop.f32.mrf.mxu0
    %v1775 = vadd.f32 0.0, %v1774
    %1776 = vmatmul.f32.gmra.mxu0 %v1737
    %v1777 = vpop.f32.mrf.mxu0
    %v1778 = vadd.f32 0.0, %v1777
    %1779 = vmatmul.f32.gmra.mxu0 %v1740
    %v1780 = vpop.f32.mrf.mxu0
    %v1781 = vadd.f32 0.0, %v1780
    %1782 = vmatmul.f32.gmra.mxu0 %v1743
    %v1783 = vpop.f32.mrf.mxu0
    %v1784 = vadd.f32 0.0, %v1783
    %1785 = vmatmul.f32.gmra.mxu0 %v1746
    %v1786 = vpop.f32.mrf.mxu0
    %v1787 = vadd.f32 0.0, %v1786
    %1788 = vmatmul.f32.gmra.mxu0 %v1749
    %v1789 = vpop.f32.mrf.mxu0
    %v1790 = vadd.f32 0.0, %v1789
    %1791 = vmatmul.f32.gmra.mxu0 %v1752
    %v1792 = vpop.f32.mrf.mxu0
    %v1793 = vadd.f32 0.0, %v1792
    %1794 = vmatmul.f32.gmra.mxu0 %v1755
    %v1795 = vpop.f32.mrf.mxu0
    %v1796 = vadd.f32 0.0, %v1795
    %1797 = vdwg.mxu0
    %v1799 = vsel %vm635, %v1781, 0
    %v1802 = vsel %vm635, %v1784, 0
    %1804 = vmatpush.msra.mxu0 0.0
    %1805 = vmatpush.msra.mxu0 0.0
    %1806 = vmatpush.msra.mxu0 0.0
    %1807 = vmatpush.msra.mxu0 0.0
    %1808 = vmatpush.msra.mxu0 0.0
    %1809 = vmatpush.msra.mxu0 0.0
    %1810 = vmatpush.msra.mxu0 0.0
    %1811 = vmatpush.msra.mxu0 0.0
    %1812 = vmatpush.msra.mxu0 0.0
    %1813 = vmatpush.msra.mxu0 0.0
    %1814 = vmatpush.msra.mxu0 0.0
    %1815 = vmatpush.msra.mxu0 0.0
    %1816 = vmatpush.msra.mxu0 0.0
    %1817 = vmatpush.msra.mxu0 0.0
    %1818 = vmatpush.msra.mxu0 0.0
    %1819 = vmatpush.msra.mxu0 %v1269
    %1820 = vmatmul.f32.gmra.mxu0 %v1799
    %v1821 = vpop.f32.mrf.mxu0
    %v1822 = vadd.f32 0.0, %v1821
    %1823 = vmatmul.f32.gmra.mxu0 %v1802
    %v1824 = vpop.f32.mrf.mxu0
    %v1825 = vadd.f32 0.0, %v1824
    %1826 = vdwg.mxu0
    %v1828 = vsel %vm635, %v1775, 0
    %v1831 = vsel %vm635, %v1778, 0
    %1833 = vmatpush.msra.mxu0 0.0
    %1834 = vmatpush.msra.mxu0 0.0
    %1835 = vmatpush.msra.mxu0 0.0
    %1836 = vmatpush.msra.mxu0 0.0
    %1837 = vmatpush.msra.mxu0 0.0
    %1838 = vmatpush.msra.mxu0 0.0
    %1839 = vmatpush.msra.mxu0 0.0
    %1840 = vmatpush.msra.mxu0 0.0
    %1841 = vmatpush.msra.mxu0 0.0
    %1842 = vmatpush.msra.mxu0 0.0
    %1843 = vmatpush.msra.mxu0 0.0
    %1844 = vmatpush.msra.mxu0 0.0
    %1845 = vmatpush.msra.mxu0 0.0
    %1846 = vmatpush.msra.mxu0 0.0
    %1847 = vmatpush.msra.mxu0 0.0
    %1848 = vmatpush.msra.mxu0 %v1268
    %1849 = vmatmul.f32.gmra.mxu0 %v1828
    %v1850 = vpop.f32.mrf.mxu0
    %v1851 = vadd.f32 %v1822, %v1850
    %1852 = vmatmul.f32.gmra.mxu0 %v1831
    %v1853 = vpop.f32.mrf.mxu0
    %v1854 = vadd.f32 %v1825, %v1853
    %1855 = vdwg.mxu0
    %v1857 = vsel %vm635, %v1787, 0
    %v1860 = vsel %vm635, %v1790, 0
    %1862 = vmatpush.msra.mxu0 0.0
    %1863 = vmatpush.msra.mxu0 0.0
    %1864 = vmatpush.msra.mxu0 0.0
    %1865 = vmatpush.msra.mxu0 0.0
    %1866 = vmatpush.msra.mxu0 0.0
    %1867 = vmatpush.msra.mxu0 0.0
    %1868 = vmatpush.msra.mxu0 0.0
    %1869 = vmatpush.msra.mxu0 0.0
    %1870 = vmatpush.msra.mxu0 0.0
    %1871 = vmatpush.msra.mxu0 0.0
    %1872 = vmatpush.msra.mxu0 0.0
    %1873 = vmatpush.msra.mxu0 0.0
    %1874 = vmatpush.msra.mxu0 0.0
    %1875 = vmatpush.msra.mxu0 0.0
    %1876 = vmatpush.msra.mxu0 0.0
    %1877 = vmatpush.msra.mxu0 %v1270
    %1878 = vmatmul.f32.gmra.mxu0 %v1857
    %v1879 = vpop.f32.mrf.mxu0
    %v1880 = vadd.f32 0.0, %v1879
    %1881 = vmatmul.f32.gmra.mxu0 %v1860
    %v1882 = vpop.f32.mrf.mxu0
    %v1883 = vadd.f32 0.0, %v1882
    %1884 = vdwg.mxu0
    %v1885 = vadd.f32 %v1851, %v1880
    %v1886 = vadd.f32 %v1854, %v1883
    %v1888 = vsel %vm635, %v1793, 0
    %v1891 = vsel %vm635, %v1796, 0
    %1893 = vmatpush.msra.mxu0 0.0
    %1894 = vmatpush.msra.mxu0 0.0
    %1895 = vmatpush.msra.mxu0 0.0
    %1896 = vmatpush.msra.mxu0 0.0
    %1897 = vmatpush.msra.mxu0 0.0
    %1898 = vmatpush.msra.mxu0 0.0
    %1899 = vmatpush.msra.mxu0 0.0
    %1900 = vmatpush.msra.mxu0 0.0
    %1901 = vmatpush.msra.mxu0 0.0
    %1902 = vmatpush.msra.mxu0 0.0
    %1903 = vmatpush.msra.mxu0 0.0
    %1904 = vmatpush.msra.mxu0 0.0
    %1905 = vmatpush.msra.mxu0 0.0
    %1906 = vmatpush.msra.mxu0 0.0
    %1907 = vmatpush.msra.mxu0 0.0
    %1908 = vmatpush.msra.mxu0 %v1271
    %1909 = vmatmul.f32.gmra.mxu0 %v1888
    %v1910 = vpop.f32.mrf.mxu0
    %v1911 = vadd.f32 0.0, %v1910
    %1912 = vmatmul.f32.gmra.mxu0 %v1891
    %v1913 = vpop.f32.mrf.mxu0
    %v1914 = vadd.f32 0.0, %v1913
    %1915 = vdwg.mxu0
    %v1916 = vadd.f32 %v1885, %v1911
    %v1917 = vadd.f32 %v1886, %v1914
    %v1919 = vperm.slane %v1273, 0
    %v1921 = vadd.f32 %v1916, %v1919
    %v1922 = vadd.f32 %v1917, %v1919
    %v1923 = vadd.f32 %v1921, %v1150
    %v1924 = vadd.f32 %v1922, %v1151
    %s1925 = scalar_lea.vmem %s23, 32
    %v1926 = vld [vmem:[%s1925] sm:$0xff]
    %v1927 = vld [vmem:[%s1925 + $0x8] sm:$0xff]
    %v1928 = vld [vmem:[%s1925 + $0x10] sm:$0xff]
    %v1929 = vld [vmem:[%s1925 + $0x18] sm:$0xff]
    %s1930 = scalar_lea.vmem %s25, 1
    %v1931 = vld [vmem:[%s1930] sm:$0x1]
    %s1932 = scalar_lea.vmem %s27, 64
    %v1933 = vld [vmem:[%s1932] sm:$0xff]
    %v1934 = vld [vmem:[%s1932 + $0x8] sm:$0xff]
    %v1935 = vld [vmem:[%s1932 + $0x10] sm:$0xff]
    %v1936 = vld [vmem:[%s1932 + $0x18] sm:$0xff]
    %v1937 = vld [vmem:[%s1932 + $0x20] sm:$0xff]
    %v1938 = vld [vmem:[%s1932 + $0x28] sm:$0xff]
    %v1939 = vld [vmem:[%s1932 + $0x30] sm:$0xff]
    %v1940 = vld [vmem:[%s1932 + $0x38] sm:$0xff]
    %s1941 = scalar_lea.vmem %s29, 1
    %v1942 = vld [vmem:[%s1941] sm:$0x1]
    %v1943 = vmul.f32 %v1923, %v1923
    %v1944 = vmul.f32 %v1924, %v1924
    %v1945 = vsel %vm237, %v1943, 0.0
    %1946 = vadd.xlane.f32.xlu0 %v1945
    %v1947 = vpop.xlane.xlu0 %1946
    %v1948 = vsel %vm237, %v1944, 0.0
    %1949 = vadd.xlane.f32.xlu0 %v1948
    %v1950 = vpop.xlane.xlu0 %1949
    %v1951 = vrsqrt.pop %v1947
    %v1952 = vmul.f32 %v1951, %v1947
    %v1953 = vmul.f32 %v1952, %v1951
    %v1954 = vmul.f32 0.5, %v1953
    %v1955 = vsub.f32 1.5, %v1954
    %v1956 = vmul.f32 %v1951, %v1955
    %v1957 = vmul.f32 %v1947, %v1956
    %vm1958 = vcmp.eq.f32.partialorder %v1947, inf
    %v1959 = vsel %vm1958, %v1947, %v1957
    %vm1960 = vcmp.eq.f32.partialorder %v1947, 0.0
    %v1961 = vand.u32 %v1947, 2147483648
    %v1962 = vsel %vm1960, %v1961, %v1959
    %v1963 = vrsqrt.pop %v1950
    %v1964 = vmul.f32 %v1963, %v1950
    %v1965 = vmul.f32 %v1964, %v1963
    %v1966 = vmul.f32 0.5, %v1965
    %v1967 = vsub.f32 1.5, %v1966
    %v1968 = vmul.f32 %v1963, %v1967
    %v1969 = vmul.f32 %v1950, %v1968
    %vm1970 = vcmp.eq.f32.partialorder %v1950, inf
    %v1971 = vsel %vm1970, %v1950, %v1969
    %vm1972 = vcmp.eq.f32.partialorder %v1950, 0.0
    %v1973 = vand.u32 %v1950, 2147483648
    %v1974 = vsel %vm1972, %v1973, %v1971
    %v1975 = vmax.f32 %v1962, 1e-05
    %v1976 = vmax.f32 %v1974, 1e-05
    %v1977 = vrcp.pop %v1975
    %v1978 = vmul.f32 %v1975, %v1977
    %v1979 = vsub.f32 1.0, %v1978
    %v1980 = vmul.f32 %v1977, %v1979
    %v1981 = vadd.f32 %v1977, %v1980
    %vm1982 = vweird.f32 %v1975
    %vm1983 = vweird.f32 %v1977
    %vm1984 = vmor %vm1982, %vm1983
    %v1985 = vsel %vm1984, %v1977, %v1981
    %v1986 = vand.u32 2147483647, %v1975
    %vm1987 = vcmp.eq.f32.partialorder %v1986, 8.507059e+37
    %v1988 = vand.u32 %v1975, 2147483648
    %v1989 = vor.u32 1.1754944e-38, %v1988
    %v1990 = vsel %vm1987, %v1989, %v1985
    %v1991 = vmul.f32 %v1923, %v1990
    %v1992 = vrcp.pop %v1976
    %v1993 = vmul.f32 %v1976, %v1992
    %v1994 = vsub.f32 1.0, %v1993
    %v1995 = vmul.f32 %v1992, %v1994
    %v1996 = vadd.f32 %v1992, %v1995
    %vm1997 = vweird.f32 %v1976
    %vm1998 = vweird.f32 %v1992
    %vm1999 = vmor %vm1997, %vm1998
    %v2000 = vsel %vm1999, %v1992, %v1996
    %v2001 = vand.u32 2147483647, %v1976
    %vm2002 = vcmp.eq.f32.partialorder %v2001, 8.507059e+37
    %v2003 = vand.u32 %v1976, 2147483648
    %v2004 = vor.u32 1.1754944e-38, %v2003
    %v2005 = vsel %vm2002, %v2004, %v2000
    %v2006 = vmul.f32 %v1924, %v2005
    %v2008 = vperm.slane %v1931, 0
    %v2011 = vsel %vm237, %v1991, 0
    %v2014 = vsel %vm237, %v2006, 0
    %2016 = vmatpush.msra.mxu0 0.0
    %2017 = vmatpush.msra.mxu0 0.0
    %2018 = vmatpush.msra.mxu0 0.0
    %2019 = vmatpush.msra.mxu0 0.0
    %2020 = vmatpush.msra.mxu0 0.0
    %2021 = vmatpush.msra.mxu0 0.0
    %2022 = vmatpush.msra.mxu0 0.0
    %2023 = vmatpush.msra.mxu0 0.0
    %2024 = vmatpush.msra.mxu0 0.0
    %2025 = vmatpush.msra.mxu0 0.0
    %2026 = vmatpush.msra.mxu0 0.0
    %2027 = vmatpush.msra.mxu0 0.0
    %2028 = vmatpush.msra.mxu0 %v1929
    %2029 = vmatpush.msra.mxu0 %v1928
    %2030 = vmatpush.msra.mxu0 %v1927
    %2031 = vmatpush.msra.mxu0 %v1926
    %2032 = vmatmul.f32.gmra.mxu0 %v2011
    %v2033 = vpop.f32.mrf.mxu0
    %v2034 = vadd.f32 %v2008, %v2033
    %2035 = vmatmul.f32.gmra.mxu0 %v2014
    %v2036 = vpop.f32.mrf.mxu0
    %v2037 = vadd.f32 %v2008, %v2036
    %2038 = vdwg.mxu0
    %v2039 = vmax.f32 %v2034, 0.0
    %v2040 = vmax.f32 %v2037, 0.0
    %v2042 = vperm.slane %v1942, 0
    %v2045 = vsel %vm725, %v2039, 0
    %v2048 = vsel %vm725, %v2040, 0
    %2050 = vmatpush.msra.mxu0 0.0
    %2051 = vmatpush.msra.mxu0 0.0
    %2052 = vmatpush.msra.mxu0 0.0
    %2053 = vmatpush.msra.mxu0 0.0
    %2054 = vmatpush.msra.mxu0 0.0
    %2055 = vmatpush.msra.mxu0 0.0
    %2056 = vmatpush.msra.mxu0 0.0
    %2057 = vmatpush.msra.mxu0 0.0
    %2058 = vmatpush.msra.mxu0 %v1940
    %2059 = vmatpush.msra.mxu0 %v1939
    %2060 = vmatpush.msra.mxu0 %v1938
    %2061 = vmatpush.msra.mxu0 %v1937
    %2062 = vmatpush.msra.mxu0 %v1936
    %2063 = vmatpush.msra.mxu0 %v1935
    %2064 = vmatpush.msra.mxu0 %v1934
    %2065 = vmatpush.msra.mxu0 %v1933
    %2066 = vmatmul.f32.gmra.mxu0 %v2045
    %v2067 = vpop.f32.mrf.mxu0
    %v2068 = vadd.f32 %v2042, %v2067
    %2069 = vmatmul.f32.gmra.mxu0 %v2048
    %v2070 = vpop.f32.mrf.mxu0
    %v2071 = vadd.f32 %v2042, %v2070
    %2072 = vdwg.mxu0
    %v2073 = vadd.f32 %v2068, %v1923
    %v2074 = vadd.f32 %v2071, %v1924
    %v2075 = vmul.f32 %v2073, %v2073
    %v2076 = vmul.f32 %v2074, %v2074
    %v2077 = vsel %vm237, %v2075, 0.0
    %2078 = vadd.xlane.f32.xlu0 %v2077
    %v2079 = vpop.xlane.xlu0 %2078
    %v2080 = vsel %vm237, %v2076, 0.0
    %2081 = vadd.xlane.f32.xlu0 %v2080
    %v2082 = vpop.xlane.xlu0 %2081
    %v2083 = vrsqrt.pop %v2079
    %v2084 = vmul.f32 %v2083, %v2079
    %v2085 = vmul.f32 %v2084, %v2083
    %v2086 = vmul.f32 0.5, %v2085
    %v2087 = vsub.f32 1.5, %v2086
    %v2088 = vmul.f32 %v2083, %v2087
    %v2089 = vmul.f32 %v2079, %v2088
    %vm2090 = vcmp.eq.f32.partialorder %v2079, inf
    %v2091 = vsel %vm2090, %v2079, %v2089
    %vm2092 = vcmp.eq.f32.partialorder %v2079, 0.0
    %v2093 = vand.u32 %v2079, 2147483648
    %v2094 = vsel %vm2092, %v2093, %v2091
    %v2095 = vrsqrt.pop %v2082
    %v2096 = vmul.f32 %v2095, %v2082
    %v2097 = vmul.f32 %v2096, %v2095
    %v2098 = vmul.f32 0.5, %v2097
    %v2099 = vsub.f32 1.5, %v2098
    %v2100 = vmul.f32 %v2095, %v2099
    %v2101 = vmul.f32 %v2082, %v2100
    %vm2102 = vcmp.eq.f32.partialorder %v2082, inf
    %v2103 = vsel %vm2102, %v2082, %v2101
    %vm2104 = vcmp.eq.f32.partialorder %v2082, 0.0
    %v2105 = vand.u32 %v2082, 2147483648
    %v2106 = vsel %vm2104, %v2105, %v2103
    %v2107 = vmax.f32 %v2094, 1e-05
    %v2108 = vmax.f32 %v2106, 1e-05
    %v2109 = vrcp.pop %v2107
    %v2110 = vmul.f32 %v2107, %v2109
    %v2111 = vsub.f32 1.0, %v2110
    %v2112 = vmul.f32 %v2109, %v2111
    %v2113 = vadd.f32 %v2109, %v2112
    %vm2114 = vweird.f32 %v2107
    %vm2115 = vweird.f32 %v2109
    %vm2116 = vmor %vm2114, %vm2115
    %v2117 = vsel %vm2116, %v2109, %v2113
    %v2118 = vand.u32 2147483647, %v2107
    %vm2119 = vcmp.eq.f32.partialorder %v2118, 8.507059e+37
    %v2120 = vand.u32 %v2107, 2147483648
    %v2121 = vor.u32 1.1754944e-38, %v2120
    %v2122 = vsel %vm2119, %v2121, %v2117
    %v2123 = vmul.f32 %v2073, %v2122
    %v2124 = vrcp.pop %v2108
    %v2125 = vmul.f32 %v2108, %v2124
    %v2126 = vsub.f32 1.0, %v2125
    %v2127 = vmul.f32 %v2124, %v2126
    %v2128 = vadd.f32 %v2124, %v2127
    %vm2129 = vweird.f32 %v2108
    %vm2130 = vweird.f32 %v2124
    %vm2131 = vmor %vm2129, %vm2130
    %v2132 = vsel %vm2131, %v2124, %v2128
    %v2133 = vand.u32 2147483647, %v2108
    %vm2134 = vcmp.eq.f32.partialorder %v2133, 8.507059e+37
    %v2135 = vand.u32 %v2108, 2147483648
    %v2136 = vor.u32 1.1754944e-38, %v2135
    %v2137 = vsel %vm2134, %v2136, %v2132
    %v2138 = vmul.f32 %v2074, %v2137
    %v2139 = vmul.f32 %v230, %v230
    %v2140 = vmul.f32 %v233, %v233
    %v2141 = vsel %vm237, %v2139, 0.0
    %2142 = vadd.xlane.f32.xlu0 %v2141
    %v2143 = vpop.xlane.xlu0 %2142
    %v2144 = vsel %vm237, %v2140, 0.0
    %2145 = vadd.xlane.f32.xlu0 %v2144
    %v2146 = vpop.xlane.xlu0 %2145
    %v2147 = vrsqrt.pop %v2143
    %v2148 = vmul.f32 %v2147, %v2143
    %v2149 = vmul.f32 %v2148, %v2147
    %v2150 = vmul.f32 0.5, %v2149
    %v2151 = vsub.f32 1.5, %v2150
    %v2152 = vmul.f32 %v2147, %v2151
    %v2153 = vmul.f32 %v2143, %v2152
    %vm2154 = vcmp.eq.f32.partialorder %v2143, inf
    %v2155 = vsel %vm2154, %v2143, %v2153
    %vm2156 = vcmp.eq.f32.partialorder %v2143, 0.0
    %v2157 = vand.u32 %v2143, 2147483648
    %v2158 = vsel %vm2156, %v2157, %v2155
    %v2159 = vrsqrt.pop %v2146
    %v2160 = vmul.f32 %v2159, %v2146
    %v2161 = vmul.f32 %v2160, %v2159
    %v2162 = vmul.f32 0.5, %v2161
    %v2163 = vsub.f32 1.5, %v2162
    %v2164 = vmul.f32 %v2159, %v2163
    %v2165 = vmul.f32 %v2146, %v2164
    %vm2166 = vcmp.eq.f32.partialorder %v2146, inf
    %v2167 = vsel %vm2166, %v2146, %v2165
    %vm2168 = vcmp.eq.f32.partialorder %v2146, 0.0
    %v2169 = vand.u32 %v2146, 2147483648
    %v2170 = vsel %vm2168, %v2169, %v2167
    %v2171 = vmax.f32 %v2158, 1e-05
    %v2172 = vmax.f32 %v2170, 1e-05
    %v2173 = vrcp.pop %v2171
    %v2174 = vmul.f32 %v2171, %v2173
    %v2175 = vsub.f32 1.0, %v2174
    %v2176 = vmul.f32 %v2173, %v2175
    %v2177 = vadd.f32 %v2173, %v2176
    %vm2178 = vweird.f32 %v2171
    %vm2179 = vweird.f32 %v2173
    %vm2180 = vmor %vm2178, %vm2179
    %v2181 = vsel %vm2180, %v2173, %v2177
    %v2182 = vand.u32 2147483647, %v2171
    %vm2183 = vcmp.eq.f32.partialorder %v2182, 8.507059e+37
    %v2184 = vand.u32 %v2171, 2147483648
    %v2185 = vor.u32 1.1754944e-38, %v2184
    %v2186 = vsel %vm2183, %v2185, %v2181
    %v2187 = vmul.f32 %v230, %v2186
    %v2188 = vrcp.pop %v2172
    %v2189 = vmul.f32 %v2172, %v2188
    %v2190 = vsub.f32 1.0, %v2189
    %v2191 = vmul.f32 %v2188, %v2190
    %v2192 = vadd.f32 %v2188, %v2191
    %vm2193 = vweird.f32 %v2172
    %vm2194 = vweird.f32 %v2188
    %vm2195 = vmor %vm2193, %vm2194
    %v2196 = vsel %vm2195, %v2188, %v2192
    %v2197 = vand.u32 2147483647, %v2172
    %vm2198 = vcmp.eq.f32.partialorder %v2197, 8.507059e+37
    %v2199 = vand.u32 %v2172, 2147483648
    %v2200 = vor.u32 1.1754944e-38, %v2199
    %v2201 = vsel %vm2198, %v2200, %v2196
    %v2202 = vmul.f32 %v233, %v2201
    %v2203 = vld [vmem:[%s31] sm:$0xff]
    %v2204 = vld [vmem:[%s31 + $0x8] sm:$0xff]
    %v2205 = vld [vmem:[%s31 + $0x10] sm:$0xff]
    %v2206 = vld [vmem:[%s31 + $0x18] sm:$0xff]
    %v2207 = vld [vmem:[%s31 + $0x20] sm:$0xff]
    %v2208 = vld [vmem:[%s31 + $0x28] sm:$0xff]
    %v2209 = vld [vmem:[%s31 + $0x30] sm:$0xff]
    %v2210 = vld [vmem:[%s31 + $0x38] sm:$0xff]
    %v2211 = vld [vmem:[%s31 + $0x40] sm:$0xff]
    %v2212 = vld [vmem:[%s31 + $0x48] sm:$0xff]
    %v2213 = vld [vmem:[%s31 + $0x50] sm:$0xff]
    %v2214 = vld [vmem:[%s31 + $0x58] sm:$0xff]
    %v2215 = vld [vmem:[%s31 + $0x60] sm:$0xff]
    %v2216 = vld [vmem:[%s31 + $0x68] sm:$0xff]
    %v2217 = vld [vmem:[%s31 + $0x70] sm:$0xff]
    %v2218 = vld [vmem:[%s31 + $0x78] sm:$0xff]
    %v2219 = vld [vmem:[%s33] sm:$0xff]
    %v2220 = vld [vmem:[%s33 + $0x8] sm:$0xff]
    %v2221 = vld [vmem:[%s33 + $0x10] sm:$0xff]
    %v2222 = vld [vmem:[%s33 + $0x18] sm:$0xff]
    %v2223 = vld [vmem:[%s33 + $0x20] sm:$0xff]
    %v2224 = vld [vmem:[%s33 + $0x28] sm:$0xff]
    %v2225 = vld [vmem:[%s33 + $0x30] sm:$0xff]
    %v2226 = vld [vmem:[%s33 + $0x38] sm:$0xff]
    %v2227 = vld [vmem:[%s33 + $0x40] sm:$0xff]
    %v2228 = vld [vmem:[%s33 + $0x48] sm:$0xff]
    %v2229 = vld [vmem:[%s33 + $0x50] sm:$0xff]
    %v2230 = vld [vmem:[%s33 + $0x58] sm:$0xff]
    %v2231 = vld [vmem:[%s33 + $0x60] sm:$0xff]
    %v2232 = vld [vmem:[%s33 + $0x68] sm:$0xff]
    %v2233 = vld [vmem:[%s33 + $0x70] sm:$0xff]
    %v2234 = vld [vmem:[%s33 + $0x78] sm:$0xff]
    %v2235 = vld [vmem:[%s35] sm:$0xff]
    %v2236 = vld [vmem:[%s35 + $0x8] sm:$0xff]
    %v2237 = vld [vmem:[%s35 + $0x10] sm:$0xff]
    %v2238 = vld [vmem:[%s35 + $0x18] sm:$0xff]
    %v2239 = vld [vmem:[%s35 + $0x20] sm:$0xff]
    %v2240 = vld [vmem:[%s35 + $0x28] sm:$0xff]
    %v2241 = vld [vmem:[%s35 + $0x30] sm:$0xff]
    %v2242 = vld [vmem:[%s35 + $0x38] sm:$0xff]
    %v2243 = vld [vmem:[%s35 + $0x40] sm:$0xff]
    %v2244 = vld [vmem:[%s35 + $0x48] sm:$0xff]
    %v2245 = vld [vmem:[%s35 + $0x50] sm:$0xff]
    %v2246 = vld [vmem:[%s35 + $0x58] sm:$0xff]
    %v2247 = vld [vmem:[%s35 + $0x60] sm:$0xff]
    %v2248 = vld [vmem:[%s35 + $0x68] sm:$0xff]
    %v2249 = vld [vmem:[%s35 + $0x70] sm:$0xff]
    %v2250 = vld [vmem:[%s35 + $0x78] sm:$0xff]
    %v2251 = vld [vmem:[%s37] sm:$0xff]
    %v2252 = vld [vmem:[%s37 + $0x8] sm:$0xff]
    %v2253 = vld [vmem:[%s37 + $0x10] sm:$0xff]
    %v2254 = vld [vmem:[%s37 + $0x18] sm:$0xff]
    %v2255 = vld [vmem:[%s39] sm:$0x1]
    %v2257 = vsel %vm237, %v2187, 0
    %v2260 = vsel %vm237, %v2202, 0
    %2262 = vmatpush.msra.mxu0 0.0
    %2263 = vmatpush.msra.mxu0 0.0
    %2264 = vmatpush.msra.mxu0 0.0
    %2265 = vmatpush.msra.mxu0 0.0
    %2266 = vmatpush.msra.mxu0 0.0
    %2267 = vmatpush.msra.mxu0 0.0
    %2268 = vmatpush.msra.mxu0 0.0
    %2269 = vmatpush.msra.mxu0 0.0
    %2270 = vmatpush.msra.mxu0 0.0
    %2271 = vmatpush.msra.mxu0 0.0
    %2272 = vmatpush.msra.mxu0 0.0
    %2273 = vmatpush.msra.mxu0 0.0
    %2274 = vmatpush.msra.mxu0 %v2206
    %2275 = vmatpush.msra.mxu0 %v2205
    %2276 = vmatpush.msra.mxu0 %v2204
    %2277 = vmatpush.msra.mxu0 %v2203
    %2278 = vmatmul.f32.gmra.mxu0 %v2257
    %v2279 = vpop.f32.mrf.mxu0
    %v2280 = vadd.f32 0.0, %v2279
    %2281 = vmatmul.f32.gmra.mxu0 %v2260
    %v2282 = vpop.f32.mrf.mxu0
    %v2283 = vadd.f32 0.0, %v2282
    %2284 = vdwg.mxu0
    %2285 = vmatpush.msra.mxu0 0.0
    %2286 = vmatpush.msra.mxu0 0.0
    %2287 = vmatpush.msra.mxu0 0.0
    %2288 = vmatpush.msra.mxu0 0.0
    %2289 = vmatpush.msra.mxu0 0.0
    %2290 = vmatpush.msra.mxu0 0.0
    %2291 = vmatpush.msra.mxu0 0.0
    %2292 = vmatpush.msra.mxu0 0.0
    %2293 = vmatpush.msra.mxu0 0.0
    %2294 = vmatpush.msra.mxu0 0.0
    %2295 = vmatpush.msra.mxu0 0.0
    %2296 = vmatpush.msra.mxu0 0.0
    %2297 = vmatpush.msra.mxu0 %v2210
    %2298 = vmatpush.msra.mxu0 %v2209
    %2299 = vmatpush.msra.mxu0 %v2208
    %2300 = vmatpush.msra.mxu0 %v2207
    %2301 = vmatmul.f32.gmra.mxu0 %v2257
    %v2302 = vpop.f32.mrf.mxu0
    %v2303 = vadd.f32 0.0, %v2302
    %2304 = vmatmul.f32.gmra.mxu0 %v2260
    %v2305 = vpop.f32.mrf.mxu0
    %v2306 = vadd.f32 0.0, %v2305
    %2307 = vdwg.mxu0
    %2308 = vmatpush.msra.mxu0 0.0
    %2309 = vmatpush.msra.mxu0 0.0
    %2310 = vmatpush.msra.mxu0 0.0
    %2311 = vmatpush.msra.mxu0 0.0
    %2312 = vmatpush.msra.mxu0 0.0
    %2313 = vmatpush.msra.mxu0 0.0
    %2314 = vmatpush.msra.mxu0 0.0
    %2315 = vmatpush.msra.mxu0 0.0
    %2316 = vmatpush.msra.mxu0 0.0
    %2317 = vmatpush.msra.mxu0 0.0
    %2318 = vmatpush.msra.mxu0 0.0
    %2319 = vmatpush.msra.mxu0 0.0
    %2320 = vmatpush.msra.mxu0 %v2214
    %2321 = vmatpush.msra.mxu0 %v2213
    %2322 = vmatpush.msra.mxu0 %v2212
    %2323 = vmatpush.msra.mxu0 %v2211
    %2324 = vmatmul.f32.gmra.mxu0 %v2257
    %v2325 = vpop.f32.mrf.mxu0
    %v2326 = vadd.f32 0.0, %v2325
    %2327 = vmatmul.f32.gmra.mxu0 %v2260
    %v2328 = vpop.f32.mrf.mxu0
    %v2329 = vadd.f32 0.0, %v2328
    %2330 = vdwg.mxu0
    %2331 = vmatpush.msra.mxu0 0.0
    %2332 = vmatpush.msra.mxu0 0.0
    %2333 = vmatpush.msra.mxu0 0.0
    %2334 = vmatpush.msra.mxu0 0.0
    %2335 = vmatpush.msra.mxu0 0.0
    %2336 = vmatpush.msra.mxu0 0.0
    %2337 = vmatpush.msra.mxu0 0.0
    %2338 = vmatpush.msra.mxu0 0.0
    %2339 = vmatpush.msra.mxu0 0.0
    %2340 = vmatpush.msra.mxu0 0.0
    %2341 = vmatpush.msra.mxu0 0.0
    %2342 = vmatpush.msra.mxu0 0.0
    %2343 = vmatpush.msra.mxu0 %v2218
    %2344 = vmatpush.msra.mxu0 %v2217
    %2345 = vmatpush.msra.mxu0 %v2216
    %2346 = vmatpush.msra.mxu0 %v2215
    %2347 = vmatmul.f32.gmra.mxu0 %v2257
    %v2348 = vpop.f32.mrf.mxu0
    %v2349 = vadd.f32 0.0, %v2348
    %2350 = vmatmul.f32.gmra.mxu0 %v2260
    %v2351 = vpop.f32.mrf.mxu0
    %v2352 = vadd.f32 0.0, %v2351
    %2353 = vdwg.mxu0
    %2354 = vmatpush.msra.mxu0 0.0
    %2355 = vmatpush.msra.mxu0 0.0
    %2356 = vmatpush.msra.mxu0 0.0
    %2357 = vmatpush.msra.mxu0 0.0
    %2358 = vmatpush.msra.mxu0 0.0
    %2359 = vmatpush.msra.mxu0 0.0
    %2360 = vmatpush.msra.mxu0 0.0
    %2361 = vmatpush.msra.mxu0 0.0
    %2362 = vmatpush.msra.mxu0 0.0
    %2363 = vmatpush.msra.mxu0 0.0
    %2364 = vmatpush.msra.mxu0 0.0
    %2365 = vmatpush.msra.mxu0 0.0
    %2366 = vmatpush.msra.mxu0 %v2222
    %2367 = vmatpush.msra.mxu0 %v2221
    %2368 = vmatpush.msra.mxu0 %v2220
    %2369 = vmatpush.msra.mxu0 %v2219
    %2370 = vmatmul.f32.gmra.mxu0 %v2257
    %v2371 = vpop.f32.mrf.mxu0
    %v2372 = vadd.f32 0.0, %v2371
    %2373 = vmatmul.f32.gmra.mxu0 %v2260
    %v2374 = vpop.f32.mrf.mxu0
    %v2375 = vadd.f32 0.0, %v2374
    %2376 = vdwg.mxu0
    %2377 = vmatpush.msra.mxu0 0.0
    %2378 = vmatpush.msra.mxu0 0.0
    %2379 = vmatpush.msra.mxu0 0.0
    %2380 = vmatpush.msra.mxu0 0.0
    %2381 = vmatpush.msra.mxu0 0.0
    %2382 = vmatpush.msra.mxu0 0.0
    %2383 = vmatpush.msra.mxu0 0.0
    %2384 = vmatpush.msra.mxu0 0.0
    %2385 = vmatpush.msra.mxu0 0.0
    %2386 = vmatpush.msra.mxu0 0.0
    %2387 = vmatpush.msra.mxu0 0.0
    %2388 = vmatpush.msra.mxu0 0.0
    %2389 = vmatpush.msra.mxu0 %v2226
    %2390 = vmatpush.msra.mxu0 %v2225
    %2391 = vmatpush.msra.mxu0 %v2224
    %2392 = vmatpush.msra.mxu0 %v2223
    %2393 = vmatmul.f32.gmra.mxu0 %v2257
    %v2394 = vpop.f32.mrf.mxu0
    %v2395 = vadd.f32 0.0, %v2394
    %2396 = vmatmul.f32.gmra.mxu0 %v2260
    %v2397 = vpop.f32.mrf.mxu0
    %v2398 = vadd.f32 0.0, %v2397
    %2399 = vdwg.mxu0
    %2400 = vmatpush.msra.mxu0 0.0
    %2401 = vmatpush.msra.mxu0 0.0
    %2402 = vmatpush.msra.mxu0 0.0
    %2403 = vmatpush.msra.mxu0 0.0
    %2404 = vmatpush.msra.mxu0 0.0
    %2405 = vmatpush.msra.mxu0 0.0
    %2406 = vmatpush.msra.mxu0 0.0
    %2407 = vmatpush.msra.mxu0 0.0
    %2408 = vmatpush.msra.mxu0 0.0
    %2409 = vmatpush.msra.mxu0 0.0
    %2410 = vmatpush.msra.mxu0 0.0
    %2411 = vmatpush.msra.mxu0 0.0
    %2412 = vmatpush.msra.mxu0 %v2230
    %2413 = vmatpush.msra.mxu0 %v2229
    %2414 = vmatpush.msra.mxu0 %v2228
    %2415 = vmatpush.msra.mxu0 %v2227
    %2416 = vmatmul.f32.gmra.mxu0 %v2257
    %v2417 = vpop.f32.mrf.mxu0
    %v2418 = vadd.f32 0.0, %v2417
    %2419 = vmatmul.f32.gmra.mxu0 %v2260
    %v2420 = vpop.f32.mrf.mxu0
    %v2421 = vadd.f32 0.0, %v2420
    %2422 = vdwg.mxu0
    %2423 = vmatpush.msra.mxu0 0.0
    %2424 = vmatpush.msra.mxu0 0.0
    %2425 = vmatpush.msra.mxu0 0.0
    %2426 = vmatpush.msra.mxu0 0.0
    %2427 = vmatpush.msra.mxu0 0.0
    %2428 = vmatpush.msra.mxu0 0.0
    %2429 = vmatpush.msra.mxu0 0.0
    %2430 = vmatpush.msra.mxu0 0.0
    %2431 = vmatpush.msra.mxu0 0.0
    %2432 = vmatpush.msra.mxu0 0.0
    %2433 = vmatpush.msra.mxu0 0.0
    %2434 = vmatpush.msra.mxu0 0.0
    %2435 = vmatpush.msra.mxu0 %v2234
    %2436 = vmatpush.msra.mxu0 %v2233
    %2437 = vmatpush.msra.mxu0 %v2232
    %2438 = vmatpush.msra.mxu0 %v2231
    %2439 = vmatmul.f32.gmra.mxu0 %v2257
    %v2440 = vpop.f32.mrf.mxu0
    %v2441 = vadd.f32 0.0, %v2440
    %2442 = vmatmul.f32.gmra.mxu0 %v2260
    %v2443 = vpop.f32.mrf.mxu0
    %v2444 = vadd.f32 0.0, %v2443
    %2445 = vdwg.mxu0
    %2446 = vmatpush.msra.mxu0 0.0
    %2447 = vmatpush.msra.mxu0 0.0
    %2448 = vmatpush.msra.mxu0 0.0
    %2449 = vmatpush.msra.mxu0 0.0
    %2450 = vmatpush.msra.mxu0 0.0
    %2451 = vmatpush.msra.mxu0 0.0
    %2452 = vmatpush.msra.mxu0 0.0
    %2453 = vmatpush.msra.mxu0 0.0
    %2454 = vmatpush.msra.mxu0 0.0
    %2455 = vmatpush.msra.mxu0 0.0
    %2456 = vmatpush.msra.mxu0 0.0
    %2457 = vmatpush.msra.mxu0 0.0
    %2458 = vmatpush.msra.mxu0 %v2238
    %2459 = vmatpush.msra.mxu0 %v2237
    %2460 = vmatpush.msra.mxu0 %v2236
    %2461 = vmatpush.msra.mxu0 %v2235
    %2462 = vmatmul.f32.gmra.mxu0 %v2257
    %v2463 = vpop.f32.mrf.mxu0
    %v2464 = vadd.f32 0.0, %v2463
    %2465 = vmatmul.f32.gmra.mxu0 %v2260
    %v2466 = vpop.f32.mrf.mxu0
    %v2467 = vadd.f32 0.0, %v2466
    %2468 = vdwg.mxu0
    %2469 = vmatpush.msra.mxu0 0.0
    %2470 = vmatpush.msra.mxu0 0.0
    %2471 = vmatpush.msra.mxu0 0.0
    %2472 = vmatpush.msra.mxu0 0.0
    %2473 = vmatpush.msra.mxu0 0.0
    %2474 = vmatpush.msra.mxu0 0.0
    %2475 = vmatpush.msra.mxu0 0.0
    %2476 = vmatpush.msra.mxu0 0.0
    %2477 = vmatpush.msra.mxu0 0.0
    %2478 = vmatpush.msra.mxu0 0.0
    %2479 = vmatpush.msra.mxu0 0.0
    %2480 = vmatpush.msra.mxu0 0.0
    %2481 = vmatpush.msra.mxu0 %v2242
    %2482 = vmatpush.msra.mxu0 %v2241
    %2483 = vmatpush.msra.mxu0 %v2240
    %2484 = vmatpush.msra.mxu0 %v2239
    %2485 = vmatmul.f32.gmra.mxu0 %v2257
    %v2486 = vpop.f32.mrf.mxu0
    %v2487 = vadd.f32 0.0, %v2486
    %2488 = vmatmul.f32.gmra.mxu0 %v2260
    %v2489 = vpop.f32.mrf.mxu0
    %v2490 = vadd.f32 0.0, %v2489
    %2491 = vdwg.mxu0
    %2492 = vmatpush.msra.mxu0 0.0
    %2493 = vmatpush.msra.mxu0 0.0
    %2494 = vmatpush.msra.mxu0 0.0
    %2495 = vmatpush.msra.mxu0 0.0
    %2496 = vmatpush.msra.mxu0 0.0
    %2497 = vmatpush.msra.mxu0 0.0
    %2498 = vmatpush.msra.mxu0 0.0
    %2499 = vmatpush.msra.mxu0 0.0
    %2500 = vmatpush.msra.mxu0 0.0
    %2501 = vmatpush.msra.mxu0 0.0
    %2502 = vmatpush.msra.mxu0 0.0
    %2503 = vmatpush.msra.mxu0 0.0
    %2504 = vmatpush.msra.mxu0 %v2246
    %2505 = vmatpush.msra.mxu0 %v2245
    %2506 = vmatpush.msra.mxu0 %v2244
    %2507 = vmatpush.msra.mxu0 %v2243
    %2508 = vmatmul.f32.gmra.mxu0 %v2257
    %v2509 = vpop.f32.mrf.mxu0
    %v2510 = vadd.f32 0.0, %v2509
    %2511 = vmatmul.f32.gmra.mxu0 %v2260
    %v2512 = vpop.f32.mrf.mxu0
    %v2513 = vadd.f32 0.0, %v2512
    %2514 = vdwg.mxu0
    %2515 = vmatpush.msra.mxu0 0.0
    %2516 = vmatpush.msra.mxu0 0.0
    %2517 = vmatpush.msra.mxu0 0.0
    %2518 = vmatpush.msra.mxu0 0.0
    %2519 = vmatpush.msra.mxu0 0.0
    %2520 = vmatpush.msra.mxu0 0.0
    %2521 = vmatpush.msra.mxu0 0.0
    %2522 = vmatpush.msra.mxu0 0.0
    %2523 = vmatpush.msra.mxu0 0.0
    %2524 = vmatpush.msra.mxu0 0.0
    %2525 = vmatpush.msra.mxu0 0.0
    %2526 = vmatpush.msra.mxu0 0.0
    %2527 = vmatpush.msra.mxu0 %v2250
    %2528 = vmatpush.msra.mxu0 %v2249
    %2529 = vmatpush.msra.mxu0 %v2248
    %2530 = vmatpush.msra.mxu0 %v2247
    %2531 = vmatmul.f32.gmra.mxu0 %v2257
    %v2532 = vpop.f32.mrf.mxu0
    %v2533 = vadd.f32 0.0, %v2532
    %2534 = vmatmul.f32.gmra.mxu0 %v2260
    %v2535 = vpop.f32.mrf.mxu0
    %v2536 = vadd.f32 0.0, %v2535
    %2537 = vdwg.mxu0
    %v2539 = vsel %vm635, %v2280, 0
    %v2542 = vsel %vm635, %v2283, 0
    %v2545 = vsel %vm635, %v2303, 0
    %v2548 = vsel %vm635, %v2306, 0
    %v2551 = vsel %vm635, %v2326, 0
    %v2554 = vsel %vm635, %v2329, 0
    %v2557 = vsel %vm635, %v2349, 0
    %v2560 = vsel %vm635, %v2352, 0
    %v2563 = vsel %vm635, %v2372, 0
    %v2566 = vsel %vm635, %v2375, 0
    %v2569 = vsel %vm635, %v2395, 0
    %v2572 = vsel %vm635, %v2398, 0
    %v2575 = vsel %vm635, %v2418, 0
    %v2578 = vsel %vm635, %v2421, 0
    %v2581 = vsel %vm635, %v2441, 0
    %v2584 = vsel %vm635, %v2444, 0
    %2586 = vmatpush.xpose.msra.mxu0 0.0
    %2587 = vmatpush.xpose.msra.mxu0 0.0
    %2588 = vmatpush.xpose.msra.mxu0 0.0
    %2589 = vmatpush.xpose.msra.mxu0 0.0
    %2590 = vmatpush.xpose.msra.mxu0 0.0
    %2591 = vmatpush.xpose.msra.mxu0 0.0
    %2592 = vmatpush.xpose.msra.mxu0 0.0
    %2593 = vmatpush.xpose.msra.mxu0 0.0
    %2594 = vmatpush.xpose.msra.mxu0 %v2584
    %2595 = vmatpush.xpose.msra.mxu0 %v2581
    %2596 = vmatpush.xpose.msra.mxu0 %v2578
    %2597 = vmatpush.xpose.msra.mxu0 %v2575
    %2598 = vmatpush.xpose.msra.mxu0 %v2572
    %2599 = vmatpush.xpose.msra.mxu0 %v2569
    %2600 = vmatpush.xpose.msra.mxu0 %v2566
    %2601 = vmatpush.xpose.msra.mxu0 %v2563
    %2602 = vmatmul.f32.gmra.mxu0 %v2539
    %v2603 = vpop.f32.mrf.mxu0
    %v2604 = vadd.f32 %v131, %v2603
    %2605 = vmatmul.f32.gmra.mxu0 %v2542
    %v2606 = vpop.f32.mrf.mxu0
    %v2607 = vadd.f32 %v132, %v2606
    %2608 = vmatmul.f32.gmra.mxu0 %v2545
    %v2609 = vpop.f32.mrf.mxu0
    %v2610 = vadd.f32 %v133, %v2609
    %2611 = vmatmul.f32.gmra.mxu0 %v2548
    %v2612 = vpop.f32.mrf.mxu0
    %v2613 = vadd.f32 %v134, %v2612
    %2614 = vmatmul.f32.gmra.mxu0 %v2551
    %v2615 = vpop.f32.mrf.mxu0
    %v2616 = vadd.f32 %v135, %v2615
    %2617 = vmatmul.f32.gmra.mxu0 %v2554
    %v2618 = vpop.f32.mrf.mxu0
    %v2619 = vadd.f32 %v136, %v2618
    %2620 = vmatmul.f32.gmra.mxu0 %v2557
    %v2621 = vpop.f32.mrf.mxu0
    %v2622 = vadd.f32 %v137, %v2621
    %2623 = vmatmul.f32.gmra.mxu0 %v2560
    %v2624 = vpop.f32.mrf.mxu0
    %v2625 = vadd.f32 %v138, %v2624
    %2626 = vdwg.mxu0
    %v2627 = vsel %vm725, %v2604, -inf
    %2628 = vmax.xlane.f32.xlu0 %v2627
    %v2629 = vpop.xlane.xlu0 %2628
    %v2630 = vsel %vm725, %v2607, -inf
    %2631 = vmax.xlane.f32.xlu0 %v2630
    %v2632 = vpop.xlane.xlu0 %2631
    %v2633 = vsel %vm725, %v2610, -inf
    %2634 = vmax.xlane.f32.xlu0 %v2633
    %v2635 = vpop.xlane.xlu0 %2634
    %v2636 = vsel %vm725, %v2613, -inf
    %2637 = vmax.xlane.f32.xlu0 %v2636
    %v2638 = vpop.xlane.xlu0 %2637
    %v2639 = vsel %vm725, %v2616, -inf
    %2640 = vmax.xlane.f32.xlu0 %v2639
    %v2641 = vpop.xlane.xlu0 %2640
    %v2642 = vsel %vm725, %v2619, -inf
    %2643 = vmax.xlane.f32.xlu0 %v2642
    %v2644 = vpop.xlane.xlu0 %2643
    %v2645 = vsel %vm725, %v2622, -inf
    %2646 = vmax.xlane.f32.xlu0 %v2645
    %v2647 = vpop.xlane.xlu0 %2646
    %v2648 = vsel %vm725, %v2625, -inf
    %2649 = vmax.xlane.f32.xlu0 %v2648
    %v2650 = vpop.xlane.xlu0 %2649
    %v2651 = vsub.f32 %v2604, %v2629
    %v2652 = vsub.f32 %v2607, %v2632
    %v2653 = vsub.f32 %v2610, %v2635
    %v2654 = vsub.f32 %v2613, %v2638
    %v2655 = vsub.f32 %v2616, %v2641
    %v2656 = vsub.f32 %v2619, %v2644
    %v2657 = vsub.f32 %v2622, %v2647
    %v2658 = vsub.f32 %v2625, %v2650
    %v2659 = vmul.f32 %v2651, 1.442695
    %v2660 = vpow.pop %v2659
    %v2661 = vmul.f32 %v2652, 1.442695
    %v2662 = vpow.pop %v2661
    %v2663 = vmul.f32 %v2653, 1.442695
    %v2664 = vpow.pop %v2663
    %v2665 = vmul.f32 %v2654, 1.442695
    %v2666 = vpow.pop %v2665
    %v2667 = vmul.f32 %v2655, 1.442695
    %v2668 = vpow.pop %v2667
    %v2669 = vmul.f32 %v2656, 1.442695
    %v2670 = vpow.pop %v2669
    %v2671 = vmul.f32 %v2657, 1.442695
    %v2672 = vpow.pop %v2671
    %v2673 = vmul.f32 %v2658, 1.442695
    %v2674 = vpow.pop %v2673
    %v2675 = vsel %vm725, %v2660, 0.0
    %2676 = vadd.xlane.f32.xlu0 %v2675
    %v2677 = vpop.xlane.xlu0 %2676
    %v2678 = vsel %vm725, %v2662, 0.0
    %2679 = vadd.xlane.f32.xlu0 %v2678
    %v2680 = vpop.xlane.xlu0 %2679
    %v2681 = vsel %vm725, %v2664, 0.0
    %2682 = vadd.xlane.f32.xlu0 %v2681
    %v2683 = vpop.xlane.xlu0 %2682
    %v2684 = vsel %vm725, %v2666, 0.0
    %2685 = vadd.xlane.f32.xlu0 %v2684
    %v2686 = vpop.xlane.xlu0 %2685
    %v2687 = vsel %vm725, %v2668, 0.0
    %2688 = vadd.xlane.f32.xlu0 %v2687
    %v2689 = vpop.xlane.xlu0 %2688
    %v2690 = vsel %vm725, %v2670, 0.0
    %2691 = vadd.xlane.f32.xlu0 %v2690
    %v2692 = vpop.xlane.xlu0 %2691
    %v2693 = vsel %vm725, %v2672, 0.0
    %2694 = vadd.xlane.f32.xlu0 %v2693
    %v2695 = vpop.xlane.xlu0 %2694
    %v2696 = vsel %vm725, %v2674, 0.0
    %2697 = vadd.xlane.f32.xlu0 %v2696
    %v2698 = vpop.xlane.xlu0 %2697
    %v2699 = vrcp.pop %v2677
    %v2700 = vrcp.pop %v2680
    %v2701 = vrcp.pop %v2683
    %v2702 = vrcp.pop %v2686
    %v2703 = vrcp.pop %v2689
    %v2704 = vrcp.pop %v2692
    %v2705 = vrcp.pop %v2695
    %v2706 = vrcp.pop %v2698
    %v2707 = vmul.f32 %v2660, %v2699
    %v2708 = vmul.f32 %v2662, %v2700
    %v2709 = vmul.f32 %v2664, %v2701
    %v2710 = vmul.f32 %v2666, %v2702
    %v2711 = vmul.f32 %v2668, %v2703
    %v2712 = vmul.f32 %v2670, %v2704
    %v2713 = vmul.f32 %v2672, %v2705
    %v2714 = vmul.f32 %v2674, %v2706
    %v2716 = vsel %vm725, %v2707, 0
    %v2719 = vsel %vm725, %v2708, 0
    %v2722 = vsel %vm725, %v2709, 0
    %v2725 = vsel %vm725, %v2710, 0
    %v2728 = vsel %vm725, %v2711, 0
    %v2731 = vsel %vm725, %v2712, 0
    %v2734 = vsel %vm725, %v2713, 0
    %v2737 = vsel %vm725, %v2714, 0
    %2739 = vmatpush.msra.mxu0 0.0
    %2740 = vmatpush.msra.mxu0 0.0
    %2741 = vmatpush.msra.mxu0 0.0
    %2742 = vmatpush.msra.mxu0 0.0
    %2743 = vmatpush.msra.mxu0 0.0
    %2744 = vmatpush.msra.mxu0 0.0
    %2745 = vmatpush.msra.mxu0 0.0
    %2746 = vmatpush.msra.mxu0 0.0
    %2747 = vmatpush.msra.mxu0 %v2536
    %2748 = vmatpush.msra.mxu0 %v2533
    %2749 = vmatpush.msra.mxu0 %v2513
    %2750 = vmatpush.msra.mxu0 %v2510
    %2751 = vmatpush.msra.mxu0 %v2490
    %2752 = vmatpush.msra.mxu0 %v2487
    %2753 = vmatpush.msra.mxu0 %v2467
    %2754 = vmatpush.msra.mxu0 %v2464
    %2755 = vmatmul.f32.gmra.mxu0 %v2716
    %v2756 = vpop.f32.mrf.mxu0
    %v2757 = vadd.f32 0.0, %v2756
    %2758 = vmatmul.f32.gmra.mxu0 %v2719
    %v2759 = vpop.f32.mrf.mxu0
    %v2760 = vadd.f32 0.0, %v2759
    %2761 = vmatmul.f32.gmra.mxu0 %v2722
    %v2762 = vpop.f32.mrf.mxu0
    %v2763 = vadd.f32 0.0, %v2762
    %2764 = vmatmul.f32.gmra.mxu0 %v2725
    %v2765 = vpop.f32.mrf.mxu0
    %v2766 = vadd.f32 0.0, %v2765
    %2767 = vmatmul.f32.gmra.mxu0 %v2728
    %v2768 = vpop.f32.mrf.mxu0
    %v2769 = vadd.f32 0.0, %v2768
    %2770 = vmatmul.f32.gmra.mxu0 %v2731
    %v2771 = vpop.f32.mrf.mxu0
    %v2772 = vadd.f32 0.0, %v2771
    %2773 = vmatmul.f32.gmra.mxu0 %v2734
    %v2774 = vpop.f32.mrf.mxu0
    %v2775 = vadd.f32 0.0, %v2774
    %2776 = vmatmul.f32.gmra.mxu0 %v2737
    %v2777 = vpop.f32.mrf.mxu0
    %v2778 = vadd.f32 0.0, %v2777
    %2779 = vdwg.mxu0
    %v2781 = vsel %vm635, %v2763, 0
    %v2784 = vsel %vm635, %v2766, 0
    %2786 = vmatpush.msra.mxu0 0.0
    %2787 = vmatpush.msra.mxu0 0.0
    %2788 = vmatpush.msra.mxu0 0.0
    %2789 = vmatpush.msra.mxu0 0.0
    %2790 = vmatpush.msra.mxu0 0.0
    %2791 = vmatpush.msra.mxu0 0.0
    %2792 = vmatpush.msra.mxu0 0.0
    %2793 = vmatpush.msra.mxu0 0.0
    %2794 = vmatpush.msra.mxu0 0.0
    %2795 = vmatpush.msra.mxu0 0.0
    %2796 = vmatpush.msra.mxu0 0.0
    %2797 = vmatpush.msra.mxu0 0.0
    %2798 = vmatpush.msra.mxu0 0.0
    %2799 = vmatpush.msra.mxu0 0.0
    %2800 = vmatpush.msra.mxu0 0.0
    %2801 = vmatpush.msra.mxu0 %v2252
    %2802 = vmatmul.f32.gmra.mxu0 %v2781
    %v2803 = vpop.f32.mrf.mxu0
    %v2804 = vadd.f32 0.0, %v2803
    %2805 = vmatmul.f32.gmra.mxu0 %v2784
    %v2806 = vpop.f32.mrf.mxu0
    %v2807 = vadd.f32 0.0, %v2806
    %2808 = vdwg.mxu0
    %v2810 = vsel %vm635, %v2757, 0
    %v2813 = vsel %vm635, %v2760, 0
    %2815 = vmatpush.msra.mxu0 0.0
    %2816 = vmatpush.msra.mxu0 0.0
    %2817 = vmatpush.msra.mxu0 0.0
    %2818 = vmatpush.msra.mxu0 0.0
    %2819 = vmatpush.msra.mxu0 0.0
    %2820 = vmatpush.msra.mxu0 0.0
    %2821 = vmatpush.msra.mxu0 0.0
    %2822 = vmatpush.msra.mxu0 0.0
    %2823 = vmatpush.msra.mxu0 0.0
    %2824 = vmatpush.msra.mxu0 0.0
    %2825 = vmatpush.msra.mxu0 0.0
    %2826 = vmatpush.msra.mxu0 0.0
    %2827 = vmatpush.msra.mxu0 0.0
    %2828 = vmatpush.msra.mxu0 0.0
    %2829 = vmatpush.msra.mxu0 0.0
    %2830 = vmatpush.msra.mxu0 %v2251
    %2831 = vmatmul.f32.gmra.mxu0 %v2810
    %v2832 = vpop.f32.mrf.mxu0
    %v2833 = vadd.f32 %v2804, %v2832
    %2834 = vmatmul.f32.gmra.mxu0 %v2813
    %v2835 = vpop.f32.mrf.mxu0
    %v2836 = vadd.f32 %v2807, %v2835
    %2837 = vdwg.mxu0
    %v2839 = vsel %vm635, %v2769, 0
    %v2842 = vsel %vm635, %v2772, 0
    %2844 = vmatpush.msra.mxu0 0.0
    %2845 = vmatpush.msra.mxu0 0.0
    %2846 = vmatpush.msra.mxu0 0.0
    %2847 = vmatpush.msra.mxu0 0.0
    %2848 = vmatpush.msra.mxu0 0.0
    %2849 = vmatpush.msra.mxu0 0.0
    %2850 = vmatpush.msra.mxu0 0.0
    %2851 = vmatpush.msra.mxu0 0.0
    %2852 = vmatpush.msra.mxu0 0.0
    %2853 = vmatpush.msra.mxu0 0.0
    %2854 = vmatpush.msra.mxu0 0.0
    %2855 = vmatpush.msra.mxu0 0.0
    %2856 = vmatpush.msra.mxu0 0.0
    %2857 = vmatpush.msra.mxu0 0.0
    %2858 = vmatpush.msra.mxu0 0.0
    %2859 = vmatpush.msra.mxu0 %v2253
    %2860 = vmatmul.f32.gmra.mxu0 %v2839
    %v2861 = vpop.f32.mrf.mxu0
    %v2862 = vadd.f32 0.0, %v2861
    %2863 = vmatmul.f32.gmra.mxu0 %v2842
    %v2864 = vpop.f32.mrf.mxu0
    %v2865 = vadd.f32 0.0, %v2864
    %2866 = vdwg.mxu0
    %v2867 = vadd.f32 %v2833, %v2862
    %v2868 = vadd.f32 %v2836, %v2865
    %v2870 = vsel %vm635, %v2775, 0
    %v2873 = vsel %vm635, %v2778, 0
    %2875 = vmatpush.msra.mxu0 0.0
    %2876 = vmatpush.msra.mxu0 0.0
    %2877 = vmatpush.msra.mxu0 0.0
    %2878 = vmatpush.msra.mxu0 0.0
    %2879 = vmatpush.msra.mxu0 0.0
    %2880 = vmatpush.msra.mxu0 0.0
    %2881 = vmatpush.msra.mxu0 0.0
    %2882 = vmatpush.msra.mxu0 0.0
    %2883 = vmatpush.msra.mxu0 0.0
    %2884 = vmatpush.msra.mxu0 0.0
    %2885 = vmatpush.msra.mxu0 0.0
    %2886 = vmatpush.msra.mxu0 0.0
    %2887 = vmatpush.msra.mxu0 0.0
    %2888 = vmatpush.msra.mxu0 0.0
    %2889 = vmatpush.msra.mxu0 0.0
    %2890 = vmatpush.msra.mxu0 %v2254
    %2891 = vmatmul.f32.gmra.mxu0 %v2870
    %v2892 = vpop.f32.mrf.mxu0
    %v2893 = vadd.f32 0.0, %v2892
    %2894 = vmatmul.f32.gmra.mxu0 %v2873
    %v2895 = vpop.f32.mrf.mxu0
    %v2896 = vadd.f32 0.0, %v2895
    %2897 = vdwg.mxu0
    %v2898 = vadd.f32 %v2867, %v2893
    %v2899 = vadd.f32 %v2868, %v2896
    %v2901 = vperm.slane %v2255, 0
    %v2903 = vadd.f32 %v2898, %v2901
    %v2904 = vadd.f32 %v2899, %v2901
    %v2905 = vadd.f32 %v2903, %v230
    %v2906 = vadd.f32 %v2904, %v233
    %v2907 = vmul.f32 %v2905, %v2905
    %v2908 = vmul.f32 %v2906, %v2906
    %v2909 = vsel %vm237, %v2907, 0.0
    %2910 = vadd.xlane.f32.xlu0 %v2909
    %v2911 = vpop.xlane.xlu0 %2910
    %v2912 = vsel %vm237, %v2908, 0.0
    %2913 = vadd.xlane.f32.xlu0 %v2912
    %v2914 = vpop.xlane.xlu0 %2913
    %v2915 = vrsqrt.pop %v2911
    %v2916 = vmul.f32 %v2915, %v2911
    %v2917 = vmul.f32 %v2916, %v2915
    %v2918 = vmul.f32 0.5, %v2917
    %v2919 = vsub.f32 1.5, %v2918
    %v2920 = vmul.f32 %v2915, %v2919
    %v2921 = vmul.f32 %v2911, %v2920
    %vm2922 = vcmp.eq.f32.partialorder %v2911, inf
    %v2923 = vsel %vm2922, %v2911, %v2921
    %vm2924 = vcmp.eq.f32.partialorder %v2911, 0.0
    %v2925 = vand.u32 %v2911, 2147483648
    %v2926 = vsel %vm2924, %v2925, %v2923
    %v2927 = vrsqrt.pop %v2914
    %v2928 = vmul.f32 %v2927, %v2914
    %v2929 = vmul.f32 %v2928, %v2927
    %v2930 = vmul.f32 0.5, %v2929
    %v2931 = vsub.f32 1.5, %v2930
    %v2932 = vmul.f32 %v2927, %v2931
    %v2933 = vmul.f32 %v2914, %v2932
    %vm2934 = vcmp.eq.f32.partialorder %v2914, inf
    %v2935 = vsel %vm2934, %v2914, %v2933
    %vm2936 = vcmp.eq.f32.partialorder %v2914, 0.0
    %v2937 = vand.u32 %v2914, 2147483648
    %v2938 = vsel %vm2936, %v2937, %v2935
    %v2939 = vmax.f32 %v2926, 1e-05
    %v2940 = vmax.f32 %v2938, 1e-05
    %v2941 = vrcp.pop %v2939
    %v2942 = vmul.f32 %v2939, %v2941
    %v2943 = vsub.f32 1.0, %v2942
    %v2944 = vmul.f32 %v2941, %v2943
    %v2945 = vadd.f32 %v2941, %v2944
    %vm2946 = vweird.f32 %v2939
    %vm2947 = vweird.f32 %v2941
    %vm2948 = vmor %vm2946, %vm2947
    %v2949 = vsel %vm2948, %v2941, %v2945
    %v2950 = vand.u32 2147483647, %v2939
    %vm2951 = vcmp.eq.f32.partialorder %v2950, 8.507059e+37
    %v2952 = vand.u32 %v2939, 2147483648
    %v2953 = vor.u32 1.1754944e-38, %v2952
    %v2954 = vsel %vm2951, %v2953, %v2949
    %v2955 = vmul.f32 %v2905, %v2954
    %v2956 = vrcp.pop %v2940
    %v2957 = vmul.f32 %v2940, %v2956
    %v2958 = vsub.f32 1.0, %v2957
    %v2959 = vmul.f32 %v2956, %v2958
    %v2960 = vadd.f32 %v2956, %v2959
    %vm2961 = vweird.f32 %v2940
    %vm2962 = vweird.f32 %v2956
    %vm2963 = vmor %vm2961, %vm2962
    %v2964 = vsel %vm2963, %v2956, %v2960
    %v2965 = vand.u32 2147483647, %v2940
    %vm2966 = vcmp.eq.f32.partialorder %v2965, 8.507059e+37
    %v2967 = vand.u32 %v2940, 2147483648
    %v2968 = vor.u32 1.1754944e-38, %v2967
    %v2969 = vsel %vm2966, %v2968, %v2964
    %v2970 = vmul.f32 %v2906, %v2969
    %v2971 = vld [vmem:[%s41] sm:$0xff]
    %v2972 = vld [vmem:[%s41 + $0x8] sm:$0xff]
    %v2973 = vld [vmem:[%s41 + $0x10] sm:$0xff]
    %v2974 = vld [vmem:[%s41 + $0x18] sm:$0xff]
    %v2975 = vld [vmem:[%s41 + $0x20] sm:$0xff]
    %v2976 = vld [vmem:[%s41 + $0x28] sm:$0xff]
    %v2977 = vld [vmem:[%s41 + $0x30] sm:$0xff]
    %v2978 = vld [vmem:[%s41 + $0x38] sm:$0xff]
    %v2979 = vld [vmem:[%s41 + $0x40] sm:$0xff]
    %v2980 = vld [vmem:[%s41 + $0x48] sm:$0xff]
    %v2981 = vld [vmem:[%s41 + $0x50] sm:$0xff]
    %v2982 = vld [vmem:[%s41 + $0x58] sm:$0xff]
    %v2983 = vld [vmem:[%s41 + $0x60] sm:$0xff]
    %v2984 = vld [vmem:[%s41 + $0x68] sm:$0xff]
    %v2985 = vld [vmem:[%s41 + $0x70] sm:$0xff]
    %v2986 = vld [vmem:[%s41 + $0x78] sm:$0xff]
    %v2987 = vld [vmem:[%s43] sm:$0xff]
    %v2988 = vld [vmem:[%s43 + $0x8] sm:$0xff]
    %v2989 = vld [vmem:[%s43 + $0x10] sm:$0xff]
    %v2990 = vld [vmem:[%s43 + $0x18] sm:$0xff]
    %v2991 = vld [vmem:[%s43 + $0x20] sm:$0xff]
    %v2992 = vld [vmem:[%s43 + $0x28] sm:$0xff]
    %v2993 = vld [vmem:[%s43 + $0x30] sm:$0xff]
    %v2994 = vld [vmem:[%s43 + $0x38] sm:$0xff]
    %v2995 = vld [vmem:[%s43 + $0x40] sm:$0xff]
    %v2996 = vld [vmem:[%s43 + $0x48] sm:$0xff]
    %v2997 = vld [vmem:[%s43 + $0x50] sm:$0xff]
    %v2998 = vld [vmem:[%s43 + $0x58] sm:$0xff]
    %v2999 = vld [vmem:[%s43 + $0x60] sm:$0xff]
    %v3000 = vld [vmem:[%s43 + $0x68] sm:$0xff]
    %v3001 = vld [vmem:[%s43 + $0x70] sm:$0xff]
    %v3002 = vld [vmem:[%s43 + $0x78] sm:$0xff]
    %v3003 = vld [vmem:[%s45] sm:$0xff]
    %v3004 = vld [vmem:[%s45 + $0x8] sm:$0xff]
    %v3005 = vld [vmem:[%s45 + $0x10] sm:$0xff]
    %v3006 = vld [vmem:[%s45 + $0x18] sm:$0xff]
    %v3007 = vld [vmem:[%s45 + $0x20] sm:$0xff]
    %v3008 = vld [vmem:[%s45 + $0x28] sm:$0xff]
    %v3009 = vld [vmem:[%s45 + $0x30] sm:$0xff]
    %v3010 = vld [vmem:[%s45 + $0x38] sm:$0xff]
    %v3011 = vld [vmem:[%s45 + $0x40] sm:$0xff]
    %v3012 = vld [vmem:[%s45 + $0x48] sm:$0xff]
    %v3013 = vld [vmem:[%s45 + $0x50] sm:$0xff]
    %v3014 = vld [vmem:[%s45 + $0x58] sm:$0xff]
    %v3015 = vld [vmem:[%s45 + $0x60] sm:$0xff]
    %v3016 = vld [vmem:[%s45 + $0x68] sm:$0xff]
    %v3017 = vld [vmem:[%s45 + $0x70] sm:$0xff]
    %v3018 = vld [vmem:[%s45 + $0x78] sm:$0xff]
    %v3019 = vld [vmem:[%s47] sm:$0xff]
    %v3020 = vld [vmem:[%s47 + $0x8] sm:$0xff]
    %v3021 = vld [vmem:[%s47 + $0x10] sm:$0xff]
    %v3022 = vld [vmem:[%s47 + $0x18] sm:$0xff]
    %v3023 = vld [vmem:[%s49] sm:$0x1]
    %v3025 = vsel %vm237, %v2955, 0
    %v3028 = vsel %vm237, %v2970, 0
    %3030 = vmatpush.msra.mxu0 0.0
    %3031 = vmatpush.msra.mxu0 0.0
    %3032 = vmatpush.msra.mxu0 0.0
    %3033 = vmatpush.msra.mxu0 0.0
    %3034 = vmatpush.msra.mxu0 0.0
    %3035 = vmatpush.msra.mxu0 0.0
    %3036 = vmatpush.msra.mxu0 0.0
    %3037 = vmatpush.msra.mxu0 0.0
    %3038 = vmatpush.msra.mxu0 0.0
    %3039 = vmatpush.msra.mxu0 0.0
    %3040 = vmatpush.msra.mxu0 0.0
    %3041 = vmatpush.msra.mxu0 0.0
    %3042 = vmatpush.msra.mxu0 %v2974
    %3043 = vmatpush.msra.mxu0 %v2973
    %3044 = vmatpush.msra.mxu0 %v2972
    %3045 = vmatpush.msra.mxu0 %v2971
    %3046 = vmatmul.f32.gmra.mxu0 %v3025
    %v3047 = vpop.f32.mrf.mxu0
    %v3048 = vadd.f32 0.0, %v3047
    %3049 = vmatmul.f32.gmra.mxu0 %v3028
    %v3050 = vpop.f32.mrf.mxu0
    %v3051 = vadd.f32 0.0, %v3050
    %3052 = vdwg.mxu0
    %3053 = vmatpush.msra.mxu0 0.0
    %3054 = vmatpush.msra.mxu0 0.0
    %3055 = vmatpush.msra.mxu0 0.0
    %3056 = vmatpush.msra.mxu0 0.0
    %3057 = vmatpush.msra.mxu0 0.0
    %3058 = vmatpush.msra.mxu0 0.0
    %3059 = vmatpush.msra.mxu0 0.0
    %3060 = vmatpush.msra.mxu0 0.0
    %3061 = vmatpush.msra.mxu0 0.0
    %3062 = vmatpush.msra.mxu0 0.0
    %3063 = vmatpush.msra.mxu0 0.0
    %3064 = vmatpush.msra.mxu0 0.0
    %3065 = vmatpush.msra.mxu0 %v2978
    %3066 = vmatpush.msra.mxu0 %v2977
    %3067 = vmatpush.msra.mxu0 %v2976
    %3068 = vmatpush.msra.mxu0 %v2975
    %3069 = vmatmul.f32.gmra.mxu0 %v3025
    %v3070 = vpop.f32.mrf.mxu0
    %v3071 = vadd.f32 0.0, %v3070
    %3072 = vmatmul.f32.gmra.mxu0 %v3028
    %v3073 = vpop.f32.mrf.mxu0
    %v3074 = vadd.f32 0.0, %v3073
    %3075 = vdwg.mxu0
    %3076 = vmatpush.msra.mxu0 0.0
    %3077 = vmatpush.msra.mxu0 0.0
    %3078 = vmatpush.msra.mxu0 0.0
    %3079 = vmatpush.msra.mxu0 0.0
    %3080 = vmatpush.msra.mxu0 0.0
    %3081 = vmatpush.msra.mxu0 0.0
    %3082 = vmatpush.msra.mxu0 0.0
    %3083 = vmatpush.msra.mxu0 0.0
    %3084 = vmatpush.msra.mxu0 0.0
    %3085 = vmatpush.msra.mxu0 0.0
    %3086 = vmatpush.msra.mxu0 0.0
    %3087 = vmatpush.msra.mxu0 0.0
    %3088 = vmatpush.msra.mxu0 %v2982
    %3089 = vmatpush.msra.mxu0 %v2981
    %3090 = vmatpush.msra.mxu0 %v2980
    %3091 = vmatpush.msra.mxu0 %v2979
    %3092 = vmatmul.f32.gmra.mxu0 %v3025
    %v3093 = vpop.f32.mrf.mxu0
    %v3094 = vadd.f32 0.0, %v3093
    %3095 = vmatmul.f32.gmra.mxu0 %v3028
    %v3096 = vpop.f32.mrf.mxu0
    %v3097 = vadd.f32 0.0, %v3096
    %3098 = vdwg.mxu0
    %3099 = vmatpush.msra.mxu0 0.0
    %3100 = vmatpush.msra.mxu0 0.0
    %3101 = vmatpush.msra.mxu0 0.0
    %3102 = vmatpush.msra.mxu0 0.0
    %3103 = vmatpush.msra.mxu0 0.0
    %3104 = vmatpush.msra.mxu0 0.0
    %3105 = vmatpush.msra.mxu0 0.0
    %3106 = vmatpush.msra.mxu0 0.0
    %3107 = vmatpush.msra.mxu0 0.0
    %3108 = vmatpush.msra.mxu0 0.0
    %3109 = vmatpush.msra.mxu0 0.0
    %3110 = vmatpush.msra.mxu0 0.0
    %3111 = vmatpush.msra.mxu0 %v2986
    %3112 = vmatpush.msra.mxu0 %v2985
    %3113 = vmatpush.msra.mxu0 %v2984
    %3114 = vmatpush.msra.mxu0 %v2983
    %3115 = vmatmul.f32.gmra.mxu0 %v3025
    %v3116 = vpop.f32.mrf.mxu0
    %v3117 = vadd.f32 0.0, %v3116
    %3118 = vmatmul.f32.gmra.mxu0 %v3028
    %v3119 = vpop.f32.mrf.mxu0
    %v3120 = vadd.f32 0.0, %v3119
    %3121 = vdwg.mxu0
    %v3123 = vsel %vm237, %v2123, 0
    %v3126 = vsel %vm237, %v2138, 0
    %3128 = vmatpush.msra.mxu0 0.0
    %3129 = vmatpush.msra.mxu0 0.0
    %3130 = vmatpush.msra.mxu0 0.0
    %3131 = vmatpush.msra.mxu0 0.0
    %3132 = vmatpush.msra.mxu0 0.0
    %3133 = vmatpush.msra.mxu0 0.0
    %3134 = vmatpush.msra.mxu0 0.0
    %3135 = vmatpush.msra.mxu0 0.0
    %3136 = vmatpush.msra.mxu0 0.0
    %3137 = vmatpush.msra.mxu0 0.0
    %3138 = vmatpush.msra.mxu0 0.0
    %3139 = vmatpush.msra.mxu0 0.0
    %3140 = vmatpush.msra.mxu0 %v2990
    %3141 = vmatpush.msra.mxu0 %v2989
    %3142 = vmatpush.msra.mxu0 %v2988
    %3143 = vmatpush.msra.mxu0 %v2987
    %3144 = vmatmul.f32.gmra.mxu0 %v3123
    %v3145 = vpop.f32.mrf.mxu0
    %v3146 = vadd.f32 0.0, %v3145
    %3147 = vmatmul.f32.gmra.mxu0 %v3126
    %v3148 = vpop.f32.mrf.mxu0
    %v3149 = vadd.f32 0.0, %v3148
    %3150 = vdwg.mxu0
    %3151 = vmatpush.msra.mxu0 0.0
    %3152 = vmatpush.msra.mxu0 0.0
    %3153 = vmatpush.msra.mxu0 0.0
    %3154 = vmatpush.msra.mxu0 0.0
    %3155 = vmatpush.msra.mxu0 0.0
    %3156 = vmatpush.msra.mxu0 0.0
    %3157 = vmatpush.msra.mxu0 0.0
    %3158 = vmatpush.msra.mxu0 0.0
    %3159 = vmatpush.msra.mxu0 0.0
    %3160 = vmatpush.msra.mxu0 0.0
    %3161 = vmatpush.msra.mxu0 0.0
    %3162 = vmatpush.msra.mxu0 0.0
    %3163 = vmatpush.msra.mxu0 %v2994
    %3164 = vmatpush.msra.mxu0 %v2993
    %3165 = vmatpush.msra.mxu0 %v2992
    %3166 = vmatpush.msra.mxu0 %v2991
    %3167 = vmatmul.f32.gmra.mxu0 %v3123
    %v3168 = vpop.f32.mrf.mxu0
    %v3169 = vadd.f32 0.0, %v3168
    %3170 = vmatmul.f32.gmra.mxu0 %v3126
    %v3171 = vpop.f32.mrf.mxu0
    %v3172 = vadd.f32 0.0, %v3171
    %3173 = vdwg.mxu0
    %3174 = vmatpush.msra.mxu0 0.0
    %3175 = vmatpush.msra.mxu0 0.0
    %3176 = vmatpush.msra.mxu0 0.0
    %3177 = vmatpush.msra.mxu0 0.0
    %3178 = vmatpush.msra.mxu0 0.0
    %3179 = vmatpush.msra.mxu0 0.0
    %3180 = vmatpush.msra.mxu0 0.0
    %3181 = vmatpush.msra.mxu0 0.0
    %3182 = vmatpush.msra.mxu0 0.0
    %3183 = vmatpush.msra.mxu0 0.0
    %3184 = vmatpush.msra.mxu0 0.0
    %3185 = vmatpush.msra.mxu0 0.0
    %3186 = vmatpush.msra.mxu0 %v2998
    %3187 = vmatpush.msra.mxu0 %v2997
    %3188 = vmatpush.msra.mxu0 %v2996
    %3189 = vmatpush.msra.mxu0 %v2995
    %3190 = vmatmul.f32.gmra.mxu0 %v3123
    %v3191 = vpop.f32.mrf.mxu0
    %v3192 = vadd.f32 0.0, %v3191
    %3193 = vmatmul.f32.gmra.mxu0 %v3126
    %v3194 = vpop.f32.mrf.mxu0
    %v3195 = vadd.f32 0.0, %v3194
    %3196 = vdwg.mxu0
    %3197 = vmatpush.msra.mxu0 0.0
    %3198 = vmatpush.msra.mxu0 0.0
    %3199 = vmatpush.msra.mxu0 0.0
    %3200 = vmatpush.msra.mxu0 0.0
    %3201 = vmatpush.msra.mxu0 0.0
    %3202 = vmatpush.msra.mxu0 0.0
    %3203 = vmatpush.msra.mxu0 0.0
    %3204 = vmatpush.msra.mxu0 0.0
    %3205 = vmatpush.msra.mxu0 0.0
    %3206 = vmatpush.msra.mxu0 0.0
    %3207 = vmatpush.msra.mxu0 0.0
    %3208 = vmatpush.msra.mxu0 0.0
    %3209 = vmatpush.msra.mxu0 %v3002
    %3210 = vmatpush.msra.mxu0 %v3001
    %3211 = vmatpush.msra.mxu0 %v3000
    %3212 = vmatpush.msra.mxu0 %v2999
    %3213 = vmatmul.f32.gmra.mxu0 %v3123
    %v3214 = vpop.f32.mrf.mxu0
    %v3215 = vadd.f32 0.0, %v3214
    %3216 = vmatmul.f32.gmra.mxu0 %v3126
    %v3217 = vpop.f32.mrf.mxu0
    %v3218 = vadd.f32 0.0, %v3217
    %3219 = vdwg.mxu0
    %3220 = vmatpush.msra.mxu0 0.0
    %3221 = vmatpush.msra.mxu0 0.0
    %3222 = vmatpush.msra.mxu0 0.0
    %3223 = vmatpush.msra.mxu0 0.0
    %3224 = vmatpush.msra.mxu0 0.0
    %3225 = vmatpush.msra.mxu0 0.0
    %3226 = vmatpush.msra.mxu0 0.0
    %3227 = vmatpush.msra.mxu0 0.0
    %3228 = vmatpush.msra.mxu0 0.0
    %3229 = vmatpush.msra.mxu0 0.0
    %3230 = vmatpush.msra.mxu0 0.0
    %3231 = vmatpush.msra.mxu0 0.0
    %3232 = vmatpush.msra.mxu0 %v3006
    %3233 = vmatpush.msra.mxu0 %v3005
    %3234 = vmatpush.msra.mxu0 %v3004
    %3235 = vmatpush.msra.mxu0 %v3003
    %3236 = vmatmul.f32.gmra.mxu0 %v3123
    %v3237 = vpop.f32.mrf.mxu0
    %v3238 = vadd.f32 0.0, %v3237
    %3239 = vmatmul.f32.gmra.mxu0 %v3126
    %v3240 = vpop.f32.mrf.mxu0
    %v3241 = vadd.f32 0.0, %v3240
    %3242 = vdwg.mxu0
    %3243 = vmatpush.msra.mxu0 0.0
    %3244 = vmatpush.msra.mxu0 0.0
    %3245 = vmatpush.msra.mxu0 0.0
    %3246 = vmatpush.msra.mxu0 0.0
    %3247 = vmatpush.msra.mxu0 0.0
    %3248 = vmatpush.msra.mxu0 0.0
    %3249 = vmatpush.msra.mxu0 0.0
    %3250 = vmatpush.msra.mxu0 0.0
    %3251 = vmatpush.msra.mxu0 0.0
    %3252 = vmatpush.msra.mxu0 0.0
    %3253 = vmatpush.msra.mxu0 0.0
    %3254 = vmatpush.msra.mxu0 0.0
    %3255 = vmatpush.msra.mxu0 %v3010
    %3256 = vmatpush.msra.mxu0 %v3009
    %3257 = vmatpush.msra.mxu0 %v3008
    %3258 = vmatpush.msra.mxu0 %v3007
    %3259 = vmatmul.f32.gmra.mxu0 %v3123
    %v3260 = vpop.f32.mrf.mxu0
    %v3261 = vadd.f32 0.0, %v3260
    %3262 = vmatmul.f32.gmra.mxu0 %v3126
    %v3263 = vpop.f32.mrf.mxu0
    %v3264 = vadd.f32 0.0, %v3263
    %3265 = vdwg.mxu0
    %3266 = vmatpush.msra.mxu0 0.0
    %3267 = vmatpush.msra.mxu0 0.0
    %3268 = vmatpush.msra.mxu0 0.0
    %3269 = vmatpush.msra.mxu0 0.0
    %3270 = vmatpush.msra.mxu0 0.0
    %3271 = vmatpush.msra.mxu0 0.0
    %3272 = vmatpush.msra.mxu0 0.0
    %3273 = vmatpush.msra.mxu0 0.0
    %3274 = vmatpush.msra.mxu0 0.0
    %3275 = vmatpush.msra.mxu0 0.0
    %3276 = vmatpush.msra.mxu0 0.0
    %3277 = vmatpush.msra.mxu0 0.0
    %3278 = vmatpush.msra.mxu0 %v3014
    %3279 = vmatpush.msra.mxu0 %v3013
    %3280 = vmatpush.msra.mxu0 %v3012
    %3281 = vmatpush.msra.mxu0 %v3011
    %3282 = vmatmul.f32.gmra.mxu0 %v3123
    %v3283 = vpop.f32.mrf.mxu0
    %v3284 = vadd.f32 0.0, %v3283
    %3285 = vmatmul.f32.gmra.mxu0 %v3126
    %v3286 = vpop.f32.mrf.mxu0
    %v3287 = vadd.f32 0.0, %v3286
    %3288 = vdwg.mxu0
    %3289 = vmatpush.msra.mxu0 0.0
    %3290 = vmatpush.msra.mxu0 0.0
    %3291 = vmatpush.msra.mxu0 0.0
    %3292 = vmatpush.msra.mxu0 0.0
    %3293 = vmatpush.msra.mxu0 0.0
    %3294 = vmatpush.msra.mxu0 0.0
    %3295 = vmatpush.msra.mxu0 0.0
    %3296 = vmatpush.msra.mxu0 0.0
    %3297 = vmatpush.msra.mxu0 0.0
    %3298 = vmatpush.msra.mxu0 0.0
    %3299 = vmatpush.msra.mxu0 0.0
    %3300 = vmatpush.msra.mxu0 0.0
    %3301 = vmatpush.msra.mxu0 %v3018
    %3302 = vmatpush.msra.mxu0 %v3017
    %3303 = vmatpush.msra.mxu0 %v3016
    %3304 = vmatpush.msra.mxu0 %v3015
    %3305 = vmatmul.f32.gmra.mxu0 %v3123
    %v3306 = vpop.f32.mrf.mxu0
    %v3307 = vadd.f32 0.0, %v3306
    %3308 = vmatmul.f32.gmra.mxu0 %v3126
    %v3309 = vpop.f32.mrf.mxu0
    %v3310 = vadd.f32 0.0, %v3309
    %3311 = vdwg.mxu0
    %v3313 = vsel %vm635, %v3048, 0
    %v3316 = vsel %vm635, %v3051, 0
    %v3319 = vsel %vm635, %v3071, 0
    %v3322 = vsel %vm635, %v3074, 0
    %v3325 = vsel %vm635, %v3094, 0
    %v3328 = vsel %vm635, %v3097, 0
    %v3331 = vsel %vm635, %v3117, 0
    %v3334 = vsel %vm635, %v3120, 0
    %v3337 = vsel %vm635, %v3146, 0
    %v3340 = vsel %vm635, %v3149, 0
    %v3343 = vsel %vm635, %v3169, 0
    %v3346 = vsel %vm635, %v3172, 0
    %v3349 = vsel %vm635, %v3192, 0
    %v3352 = vsel %vm635, %v3195, 0
    %v3355 = vsel %vm635, %v3215, 0
    %v3358 = vsel %vm635, %v3218, 0
    %3360 = vmatpush.xpose.msra.mxu0 0.0
    %3361 = vmatpush.xpose.msra.mxu0 0.0
    %3362 = vmatpush.xpose.msra.mxu0 0.0
    %3363 = vmatpush.xpose.msra.mxu0 0.0
    %3364 = vmatpush.xpose.msra.mxu0 0.0
    %3365 = vmatpush.xpose.msra.mxu0 0.0
    %3366 = vmatpush.xpose.msra.mxu0 0.0
    %3367 = vmatpush.xpose.msra.mxu0 0.0
    %3368 = vmatpush.xpose.msra.mxu0 %v3358
    %3369 = vmatpush.xpose.msra.mxu0 %v3355
    %3370 = vmatpush.xpose.msra.mxu0 %v3352
    %3371 = vmatpush.xpose.msra.mxu0 %v3349
    %3372 = vmatpush.xpose.msra.mxu0 %v3346
    %3373 = vmatpush.xpose.msra.mxu0 %v3343
    %3374 = vmatpush.xpose.msra.mxu0 %v3340
    %3375 = vmatpush.xpose.msra.mxu0 %v3337
    %3376 = vmatmul.f32.gmra.mxu0 %v3313
    %v3377 = vpop.f32.mrf.mxu0
    %v3378 = vadd.f32 %v131, %v3377
    %3379 = vmatmul.f32.gmra.mxu0 %v3316
    %v3380 = vpop.f32.mrf.mxu0
    %v3381 = vadd.f32 %v132, %v3380
    %3382 = vmatmul.f32.gmra.mxu0 %v3319
    %v3383 = vpop.f32.mrf.mxu0
    %v3384 = vadd.f32 %v133, %v3383
    %3385 = vmatmul.f32.gmra.mxu0 %v3322
    %v3386 = vpop.f32.mrf.mxu0
    %v3387 = vadd.f32 %v134, %v3386
    %3388 = vmatmul.f32.gmra.mxu0 %v3325
    %v3389 = vpop.f32.mrf.mxu0
    %v3390 = vadd.f32 %v135, %v3389
    %3391 = vmatmul.f32.gmra.mxu0 %v3328
    %v3392 = vpop.f32.mrf.mxu0
    %v3393 = vadd.f32 %v136, %v3392
    %3394 = vmatmul.f32.gmra.mxu0 %v3331
    %v3395 = vpop.f32.mrf.mxu0
    %v3396 = vadd.f32 %v137, %v3395
    %3397 = vmatmul.f32.gmra.mxu0 %v3334
    %v3398 = vpop.f32.mrf.mxu0
    %v3399 = vadd.f32 %v138, %v3398
    %3400 = vdwg.mxu0
    %v3401 = vsel %vm725, %v3378, -inf
    %3402 = vmax.xlane.f32.xlu0 %v3401
    %v3403 = vpop.xlane.xlu0 %3402
    %v3404 = vsel %vm725, %v3381, -inf
    %3405 = vmax.xlane.f32.xlu0 %v3404
    %v3406 = vpop.xlane.xlu0 %3405
    %v3407 = vsel %vm725, %v3384, -inf
    %3408 = vmax.xlane.f32.xlu0 %v3407
    %v3409 = vpop.xlane.xlu0 %3408
    %v3410 = vsel %vm725, %v3387, -inf
    %3411 = vmax.xlane.f32.xlu0 %v3410
    %v3412 = vpop.xlane.xlu0 %3411
    %v3413 = vsel %vm725, %v3390, -inf
    %3414 = vmax.xlane.f32.xlu0 %v3413
    %v3415 = vpop.xlane.xlu0 %3414
    %v3416 = vsel %vm725, %v3393, -inf
    %3417 = vmax.xlane.f32.xlu0 %v3416
    %v3418 = vpop.xlane.xlu0 %3417
    %v3419 = vsel %vm725, %v3396, -inf
    %3420 = vmax.xlane.f32.xlu0 %v3419
    %v3421 = vpop.xlane.xlu0 %3420
    %v3422 = vsel %vm725, %v3399, -inf
    %3423 = vmax.xlane.f32.xlu0 %v3422
    %v3424 = vpop.xlane.xlu0 %3423
    %v3425 = vsub.f32 %v3378, %v3403
    %v3426 = vsub.f32 %v3381, %v3406
    %v3427 = vsub.f32 %v3384, %v3409
    %v3428 = vsub.f32 %v3387, %v3412
    %v3429 = vsub.f32 %v3390, %v3415
    %v3430 = vsub.f32 %v3393, %v3418
    %v3431 = vsub.f32 %v3396, %v3421
    %v3432 = vsub.f32 %v3399, %v3424
    %v3433 = vmul.f32 %v3425, 1.442695
    %v3434 = vpow.pop %v3433
    %v3435 = vmul.f32 %v3426, 1.442695
    %v3436 = vpow.pop %v3435
    %v3437 = vmul.f32 %v3427, 1.442695
    %v3438 = vpow.pop %v3437
    %v3439 = vmul.f32 %v3428, 1.442695
    %v3440 = vpow.pop %v3439
    %v3441 = vmul.f32 %v3429, 1.442695
    %v3442 = vpow.pop %v3441
    %v3443 = vmul.f32 %v3430, 1.442695
    %v3444 = vpow.pop %v3443
    %v3445 = vmul.f32 %v3431, 1.442695
    %v3446 = vpow.pop %v3445
    %v3447 = vmul.f32 %v3432, 1.442695
    %v3448 = vpow.pop %v3447
    %v3449 = vsel %vm725, %v3434, 0.0
    %3450 = vadd.xlane.f32.xlu0 %v3449
    %v3451 = vpop.xlane.xlu0 %3450
    %v3452 = vsel %vm725, %v3436, 0.0
    %3453 = vadd.xlane.f32.xlu0 %v3452
    %v3454 = vpop.xlane.xlu0 %3453
    %v3455 = vsel %vm725, %v3438, 0.0
    %3456 = vadd.xlane.f32.xlu0 %v3455
    %v3457 = vpop.xlane.xlu0 %3456
    %v3458 = vsel %vm725, %v3440, 0.0
    %3459 = vadd.xlane.f32.xlu0 %v3458
    %v3460 = vpop.xlane.xlu0 %3459
    %v3461 = vsel %vm725, %v3442, 0.0
    %3462 = vadd.xlane.f32.xlu0 %v3461
    %v3463 = vpop.xlane.xlu0 %3462
    %v3464 = vsel %vm725, %v3444, 0.0
    %3465 = vadd.xlane.f32.xlu0 %v3464
    %v3466 = vpop.xlane.xlu0 %3465
    %v3467 = vsel %vm725, %v3446, 0.0
    %3468 = vadd.xlane.f32.xlu0 %v3467
    %v3469 = vpop.xlane.xlu0 %3468
    %v3470 = vsel %vm725, %v3448, 0.0
    %3471 = vadd.xlane.f32.xlu0 %v3470
    %v3472 = vpop.xlane.xlu0 %3471
    %v3473 = vrcp.pop %v3451
    %v3474 = vrcp.pop %v3454
    %v3475 = vrcp.pop %v3457
    %v3476 = vrcp.pop %v3460
    %v3477 = vrcp.pop %v3463
    %v3478 = vrcp.pop %v3466
    %v3479 = vrcp.pop %v3469
    %v3480 = vrcp.pop %v3472
    %v3481 = vmul.f32 %v3434, %v3473
    %v3482 = vmul.f32 %v3436, %v3474
    %v3483 = vmul.f32 %v3438, %v3475
    %v3484 = vmul.f32 %v3440, %v3476
    %v3485 = vmul.f32 %v3442, %v3477
    %v3486 = vmul.f32 %v3444, %v3478
    %v3487 = vmul.f32 %v3446, %v3479
    %v3488 = vmul.f32 %v3448, %v3480
    %v3490 = vsel %vm725, %v3481, 0
    %v3493 = vsel %vm725, %v3482, 0
    %v3496 = vsel %vm725, %v3483, 0
    %v3499 = vsel %vm725, %v3484, 0
    %v3502 = vsel %vm725, %v3485, 0
    %v3505 = vsel %vm725, %v3486, 0
    %v3508 = vsel %vm725, %v3487, 0
    %v3511 = vsel %vm725, %v3488, 0
    %3513 = vmatpush.msra.mxu0 0.0
    %3514 = vmatpush.msra.mxu0 0.0
    %3515 = vmatpush.msra.mxu0 0.0
    %3516 = vmatpush.msra.mxu0 0.0
    %3517 = vmatpush.msra.mxu0 0.0
    %3518 = vmatpush.msra.mxu0 0.0
    %3519 = vmatpush.msra.mxu0 0.0
    %3520 = vmatpush.msra.mxu0 0.0
    %3521 = vmatpush.msra.mxu0 %v3310
    %3522 = vmatpush.msra.mxu0 %v3307
    %3523 = vmatpush.msra.mxu0 %v3287
    %3524 = vmatpush.msra.mxu0 %v3284
    %3525 = vmatpush.msra.mxu0 %v3264
    %3526 = vmatpush.msra.mxu0 %v3261
    %3527 = vmatpush.msra.mxu0 %v3241
    %3528 = vmatpush.msra.mxu0 %v3238
    %3529 = vmatmul.f32.gmra.mxu0 %v3490
    %v3530 = vpop.f32.mrf.mxu0
    %v3531 = vadd.f32 0.0, %v3530
    %3532 = vmatmul.f32.gmra.mxu0 %v3493
    %v3533 = vpop.f32.mrf.mxu0
    %v3534 = vadd.f32 0.0, %v3533
    %3535 = vmatmul.f32.gmra.mxu0 %v3496
    %v3536 = vpop.f32.mrf.mxu0
    %v3537 = vadd.f32 0.0, %v3536
    %3538 = vmatmul.f32.gmra.mxu0 %v3499
    %v3539 = vpop.f32.mrf.mxu0
    %v3540 = vadd.f32 0.0, %v3539
    %3541 = vmatmul.f32.gmra.mxu0 %v3502
    %v3542 = vpop.f32.mrf.mxu0
    %v3543 = vadd.f32 0.0, %v3542
    %3544 = vmatmul.f32.gmra.mxu0 %v3505
    %v3545 = vpop.f32.mrf.mxu0
    %v3546 = vadd.f32 0.0, %v3545
    %3547 = vmatmul.f32.gmra.mxu0 %v3508
    %v3548 = vpop.f32.mrf.mxu0
    %v3549 = vadd.f32 0.0, %v3548
    %3550 = vmatmul.f32.gmra.mxu0 %v3511
    %v3551 = vpop.f32.mrf.mxu0
    %v3552 = vadd.f32 0.0, %v3551
    %3553 = vdwg.mxu0
    %v3555 = vsel %vm635, %v3537, 0
    %v3558 = vsel %vm635, %v3540, 0
    %3560 = vmatpush.msra.mxu0 0.0
    %3561 = vmatpush.msra.mxu0 0.0
    %3562 = vmatpush.msra.mxu0 0.0
    %3563 = vmatpush.msra.mxu0 0.0
    %3564 = vmatpush.msra.mxu0 0.0
    %3565 = vmatpush.msra.mxu0 0.0
    %3566 = vmatpush.msra.mxu0 0.0
    %3567 = vmatpush.msra.mxu0 0.0
    %3568 = vmatpush.msra.mxu0 0.0
    %3569 = vmatpush.msra.mxu0 0.0
    %3570 = vmatpush.msra.mxu0 0.0
    %3571 = vmatpush.msra.mxu0 0.0
    %3572 = vmatpush.msra.mxu0 0.0
    %3573 = vmatpush.msra.mxu0 0.0
    %3574 = vmatpush.msra.mxu0 0.0
    %3575 = vmatpush.msra.mxu0 %v3020
    %3576 = vmatmul.f32.gmra.mxu0 %v3555
    %v3577 = vpop.f32.mrf.mxu0
    %v3578 = vadd.f32 0.0, %v3577
    %3579 = vmatmul.f32.gmra.mxu0 %v3558
    %v3580 = vpop.f32.mrf.mxu0
    %v3581 = vadd.f32 0.0, %v3580
    %3582 = vdwg.mxu0
    %v3584 = vsel %vm635, %v3531, 0
    %v3587 = vsel %vm635, %v3534, 0
    %3589 = vmatpush.msra.mxu0 0.0
    %3590 = vmatpush.msra.mxu0 0.0
    %3591 = vmatpush.msra.mxu0 0.0
    %3592 = vmatpush.msra.mxu0 0.0
    %3593 = vmatpush.msra.mxu0 0.0
    %3594 = vmatpush.msra.mxu0 0.0
    %3595 = vmatpush.msra.mxu0 0.0
    %3596 = vmatpush.msra.mxu0 0.0
    %3597 = vmatpush.msra.mxu0 0.0
    %3598 = vmatpush.msra.mxu0 0.0
    %3599 = vmatpush.msra.mxu0 0.0
    %3600 = vmatpush.msra.mxu0 0.0
    %3601 = vmatpush.msra.mxu0 0.0
    %3602 = vmatpush.msra.mxu0 0.0
    %3603 = vmatpush.msra.mxu0 0.0
    %3604 = vmatpush.msra.mxu0 %v3019
    %3605 = vmatmul.f32.gmra.mxu0 %v3584
    %v3606 = vpop.f32.mrf.mxu0
    %v3607 = vadd.f32 %v3578, %v3606
    %3608 = vmatmul.f32.gmra.mxu0 %v3587
    %v3609 = vpop.f32.mrf.mxu0
    %v3610 = vadd.f32 %v3581, %v3609
    %3611 = vdwg.mxu0
    %v3613 = vsel %vm635, %v3543, 0
    %v3616 = vsel %vm635, %v3546, 0
    %3618 = vmatpush.msra.mxu0 0.0
    %3619 = vmatpush.msra.mxu0 0.0
    %3620 = vmatpush.msra.mxu0 0.0
    %3621 = vmatpush.msra.mxu0 0.0
    %3622 = vmatpush.msra.mxu0 0.0
    %3623 = vmatpush.msra.mxu0 0.0
    %3624 = vmatpush.msra.mxu0 0.0
    %3625 = vmatpush.msra.mxu0 0.0
    %3626 = vmatpush.msra.mxu0 0.0
    %3627 = vmatpush.msra.mxu0 0.0
    %3628 = vmatpush.msra.mxu0 0.0
    %3629 = vmatpush.msra.mxu0 0.0
    %3630 = vmatpush.msra.mxu0 0.0
    %3631 = vmatpush.msra.mxu0 0.0
    %3632 = vmatpush.msra.mxu0 0.0
    %3633 = vmatpush.msra.mxu0 %v3021
    %3634 = vmatmul.f32.gmra.mxu0 %v3613
    %v3635 = vpop.f32.mrf.mxu0
    %v3636 = vadd.f32 0.0, %v3635
    %3637 = vmatmul.f32.gmra.mxu0 %v3616
    %v3638 = vpop.f32.mrf.mxu0
    %v3639 = vadd.f32 0.0, %v3638
    %3640 = vdwg.mxu0
    %v3641 = vadd.f32 %v3607, %v3636
    %v3642 = vadd.f32 %v3610, %v3639
    %v3644 = vsel %vm635, %v3549, 0
    %v3647 = vsel %vm635, %v3552, 0
    %3649 = vmatpush.msra.mxu0 0.0
    %3650 = vmatpush.msra.mxu0 0.0
    %3651 = vmatpush.msra.mxu0 0.0
    %3652 = vmatpush.msra.mxu0 0.0
    %3653 = vmatpush.msra.mxu0 0.0
    %3654 = vmatpush.msra.mxu0 0.0
    %3655 = vmatpush.msra.mxu0 0.0
    %3656 = vmatpush.msra.mxu0 0.0
    %3657 = vmatpush.msra.mxu0 0.0
    %3658 = vmatpush.msra.mxu0 0.0
    %3659 = vmatpush.msra.mxu0 0.0
    %3660 = vmatpush.msra.mxu0 0.0
    %3661 = vmatpush.msra.mxu0 0.0
    %3662 = vmatpush.msra.mxu0 0.0
    %3663 = vmatpush.msra.mxu0 0.0
    %3664 = vmatpush.msra.mxu0 %v3022
    %3665 = vmatmul.f32.gmra.mxu0 %v3644
    %v3666 = vpop.f32.mrf.mxu0
    %v3667 = vadd.f32 0.0, %v3666
    %3668 = vmatmul.f32.gmra.mxu0 %v3647
    %v3669 = vpop.f32.mrf.mxu0
    %v3670 = vadd.f32 0.0, %v3669
    %3671 = vdwg.mxu0
    %v3672 = vadd.f32 %v3641, %v3667
    %v3673 = vadd.f32 %v3642, %v3670
    %v3675 = vperm.slane %v3023, 0
    %v3677 = vadd.f32 %v3672, %v3675
    %v3678 = vadd.f32 %v3673, %v3675
    %v3679 = vadd.f32 %v3677, %v2905
    %v3680 = vadd.f32 %v3678, %v2906
    %v3681 = vld [vmem:[%s51] sm:$0xff]
    %v3682 = vld [vmem:[%s51 + $0x8] sm:$0xff]
    %v3683 = vld [vmem:[%s51 + $0x10] sm:$0xff]
    %v3684 = vld [vmem:[%s51 + $0x18] sm:$0xff]
    %v3685 = vld [vmem:[%s53] sm:$0x1]
    %v3686 = vld [vmem:[%s55] sm:$0xff]
    %v3687 = vld [vmem:[%s55 + $0x8] sm:$0xff]
    %v3688 = vld [vmem:[%s55 + $0x10] sm:$0xff]
    %v3689 = vld [vmem:[%s55 + $0x18] sm:$0xff]
    %v3690 = vld [vmem:[%s55 + $0x20] sm:$0xff]
    %v3691 = vld [vmem:[%s55 + $0x28] sm:$0xff]
    %v3692 = vld [vmem:[%s55 + $0x30] sm:$0xff]
    %v3693 = vld [vmem:[%s55 + $0x38] sm:$0xff]
    %v3694 = vld [vmem:[%s57] sm:$0x1]
    %v3695 = vmul.f32 %v3679, %v3679
    %v3696 = vmul.f32 %v3680, %v3680
    %v3697 = vsel %vm237, %v3695, 0.0
    %3698 = vadd.xlane.f32.xlu0 %v3697
    %v3699 = vpop.xlane.xlu0 %3698
    %v3700 = vsel %vm237, %v3696, 0.0
    %3701 = vadd.xlane.f32.xlu0 %v3700
    %v3702 = vpop.xlane.xlu0 %3701
    %v3703 = vrsqrt.pop %v3699
    %v3704 = vmul.f32 %v3703, %v3699
    %v3705 = vmul.f32 %v3704, %v3703
    %v3706 = vmul.f32 0.5, %v3705
    %v3707 = vsub.f32 1.5, %v3706
    %v3708 = vmul.f32 %v3703, %v3707
    %v3709 = vmul.f32 %v3699, %v3708
    %vm3710 = vcmp.eq.f32.partialorder %v3699, inf
    %v3711 = vsel %vm3710, %v3699, %v3709
    %vm3712 = vcmp.eq.f32.partialorder %v3699, 0.0
    %v3713 = vand.u32 %v3699, 2147483648
    %v3714 = vsel %vm3712, %v3713, %v3711
    %v3715 = vrsqrt.pop %v3702
    %v3716 = vmul.f32 %v3715, %v3702
    %v3717 = vmul.f32 %v3716, %v3715
    %v3718 = vmul.f32 0.5, %v3717
    %v3719 = vsub.f32 1.5, %v3718
    %v3720 = vmul.f32 %v3715, %v3719
    %v3721 = vmul.f32 %v3702, %v3720
    %vm3722 = vcmp.eq.f32.partialorder %v3702, inf
    %v3723 = vsel %vm3722, %v3702, %v3721
    %vm3724 = vcmp.eq.f32.partialorder %v3702, 0.0
    %v3725 = vand.u32 %v3702, 2147483648
    %v3726 = vsel %vm3724, %v3725, %v3723
    %v3727 = vmax.f32 %v3714, 1e-05
    %v3728 = vmax.f32 %v3726, 1e-05
    %v3729 = vrcp.pop %v3727
    %v3730 = vmul.f32 %v3727, %v3729
    %v3731 = vsub.f32 1.0, %v3730
    %v3732 = vmul.f32 %v3729, %v3731
    %v3733 = vadd.f32 %v3729, %v3732
    %vm3734 = vweird.f32 %v3727
    %vm3735 = vweird.f32 %v3729
    %vm3736 = vmor %vm3734, %vm3735
    %v3737 = vsel %vm3736, %v3729, %v3733
    %v3738 = vand.u32 2147483647, %v3727
    %vm3739 = vcmp.eq.f32.partialorder %v3738, 8.507059e+37
    %v3740 = vand.u32 %v3727, 2147483648
    %v3741 = vor.u32 1.1754944e-38, %v3740
    %v3742 = vsel %vm3739, %v3741, %v3737
    %v3743 = vmul.f32 %v3679, %v3742
    %v3744 = vrcp.pop %v3728
    %v3745 = vmul.f32 %v3728, %v3744
    %v3746 = vsub.f32 1.0, %v3745
    %v3747 = vmul.f32 %v3744, %v3746
    %v3748 = vadd.f32 %v3744, %v3747
    %vm3749 = vweird.f32 %v3728
    %vm3750 = vweird.f32 %v3744
    %vm3751 = vmor %vm3749, %vm3750
    %v3752 = vsel %vm3751, %v3744, %v3748
    %v3753 = vand.u32 2147483647, %v3728
    %vm3754 = vcmp.eq.f32.partialorder %v3753, 8.507059e+37
    %v3755 = vand.u32 %v3728, 2147483648
    %v3756 = vor.u32 1.1754944e-38, %v3755
    %v3757 = vsel %vm3754, %v3756, %v3752
    %v3758 = vmul.f32 %v3680, %v3757
    %v3760 = vperm.slane %v3685, 0
    %v3763 = vsel %vm237, %v3743, 0
    %v3766 = vsel %vm237, %v3758, 0
    %3768 = vmatpush.msra.mxu0 0.0
    %3769 = vmatpush.msra.mxu0 0.0
    %3770 = vmatpush.msra.mxu0 0.0
    %3771 = vmatpush.msra.mxu0 0.0
    %3772 = vmatpush.msra.mxu0 0.0
    %3773 = vmatpush.msra.mxu0 0.0
    %3774 = vmatpush.msra.mxu0 0.0
    %3775 = vmatpush.msra.mxu0 0.0
    %3776 = vmatpush.msra.mxu0 0.0
    %3777 = vmatpush.msra.mxu0 0.0
    %3778 = vmatpush.msra.mxu0 0.0
    %3779 = vmatpush.msra.mxu0 0.0
    %3780 = vmatpush.msra.mxu0 %v3684
    %3781 = vmatpush.msra.mxu0 %v3683
    %3782 = vmatpush.msra.mxu0 %v3682
    %3783 = vmatpush.msra.mxu0 %v3681
    %3784 = vmatmul.f32.gmra.mxu0 %v3763
    %v3785 = vpop.f32.mrf.mxu0
    %v3786 = vadd.f32 %v3760, %v3785
    %3787 = vmatmul.f32.gmra.mxu0 %v3766
    %v3788 = vpop.f32.mrf.mxu0
    %v3789 = vadd.f32 %v3760, %v3788
    %3790 = vdwg.mxu0
    %v3791 = vmax.f32 %v3786, 0.0
    %v3792 = vmax.f32 %v3789, 0.0
    %v3794 = vperm.slane %v3694, 0
    %v3797 = vsel %vm725, %v3791, 0
    %v3800 = vsel %vm725, %v3792, 0
    %3802 = vmatpush.msra.mxu0 0.0
    %3803 = vmatpush.msra.mxu0 0.0
    %3804 = vmatpush.msra.mxu0 0.0
    %3805 = vmatpush.msra.mxu0 0.0
    %3806 = vmatpush.msra.mxu0 0.0
    %3807 = vmatpush.msra.mxu0 0.0
    %3808 = vmatpush.msra.mxu0 0.0
    %3809 = vmatpush.msra.mxu0 0.0
    %3810 = vmatpush.msra.mxu0 %v3693
    %3811 = vmatpush.msra.mxu0 %v3692
    %3812 = vmatpush.msra.mxu0 %v3691
    %3813 = vmatpush.msra.mxu0 %v3690
    %3814 = vmatpush.msra.mxu0 %v3689
    %3815 = vmatpush.msra.mxu0 %v3688
    %3816 = vmatpush.msra.mxu0 %v3687
    %3817 = vmatpush.msra.mxu0 %v3686
    %3818 = vmatmul.f32.gmra.mxu0 %v3797
    %v3819 = vpop.f32.mrf.mxu0
    %v3820 = vadd.f32 %v3794, %v3819
    %3821 = vmatmul.f32.gmra.mxu0 %v3800
    %v3822 = vpop.f32.mrf.mxu0
    %v3823 = vadd.f32 %v3794, %v3822
    %3824 = vdwg.mxu0
    %v3825 = vadd.f32 %v3820, %v3679
    %v3826 = vadd.f32 %v3823, %v3680
    %v3827 = vmul.f32 %v3825, %v3825
    %v3828 = vmul.f32 %v3826, %v3826
    %v3829 = vsel %vm237, %v3827, 0.0
    %3830 = vadd.xlane.f32.xlu0 %v3829
    %v3831 = vpop.xlane.xlu0 %3830
    %v3832 = vsel %vm237, %v3828, 0.0
    %3833 = vadd.xlane.f32.xlu0 %v3832
    %v3834 = vpop.xlane.xlu0 %3833
    %v3835 = vrsqrt.pop %v3831
    %v3836 = vmul.f32 %v3835, %v3831
    %v3837 = vmul.f32 %v3836, %v3835
    %v3838 = vmul.f32 0.5, %v3837
    %v3839 = vsub.f32 1.5, %v3838
    %v3840 = vmul.f32 %v3835, %v3839
    %v3841 = vmul.f32 %v3831, %v3840
    %vm3842 = vcmp.eq.f32.partialorder %v3831, inf
    %v3843 = vsel %vm3842, %v3831, %v3841
    %vm3844 = vcmp.eq.f32.partialorder %v3831, 0.0
    %v3845 = vand.u32 %v3831, 2147483648
    %v3846 = vsel %vm3844, %v3845, %v3843
    %v3847 = vrsqrt.pop %v3834
    %v3848 = vmul.f32 %v3847, %v3834
    %v3849 = vmul.f32 %v3848, %v3847
    %v3850 = vmul.f32 0.5, %v3849
    %v3851 = vsub.f32 1.5, %v3850
    %v3852 = vmul.f32 %v3847, %v3851
    %v3853 = vmul.f32 %v3834, %v3852
    %vm3854 = vcmp.eq.f32.partialorder %v3834, inf
    %v3855 = vsel %vm3854, %v3834, %v3853
    %vm3856 = vcmp.eq.f32.partialorder %v3834, 0.0
    %v3857 = vand.u32 %v3834, 2147483648
    %v3858 = vsel %vm3856, %v3857, %v3855
    %v3859 = vmax.f32 %v3846, 1e-05
    %v3860 = vmax.f32 %v3858, 1e-05
    %v3861 = vrcp.pop %v3859
    %v3862 = vmul.f32 %v3859, %v3861
    %v3863 = vsub.f32 1.0, %v3862
    %v3864 = vmul.f32 %v3861, %v3863
    %v3865 = vadd.f32 %v3861, %v3864
    %vm3866 = vweird.f32 %v3859
    %vm3867 = vweird.f32 %v3861
    %vm3868 = vmor %vm3866, %vm3867
    %v3869 = vsel %vm3868, %v3861, %v3865
    %v3870 = vand.u32 2147483647, %v3859
    %vm3871 = vcmp.eq.f32.partialorder %v3870, 8.507059e+37
    %v3872 = vand.u32 %v3859, 2147483648
    %v3873 = vor.u32 1.1754944e-38, %v3872
    %v3874 = vsel %vm3871, %v3873, %v3869
    %v3875 = vmul.f32 %v3825, %v3874
    %v3876 = vrcp.pop %v3860
    %v3877 = vmul.f32 %v3860, %v3876
    %v3878 = vsub.f32 1.0, %v3877
    %v3879 = vmul.f32 %v3876, %v3878
    %v3880 = vadd.f32 %v3876, %v3879
    %vm3881 = vweird.f32 %v3860
    %vm3882 = vweird.f32 %v3876
    %vm3883 = vmor %vm3881, %vm3882
    %v3884 = vsel %vm3883, %v3876, %v3880
    %v3885 = vand.u32 2147483647, %v3860
    %vm3886 = vcmp.eq.f32.partialorder %v3885, 8.507059e+37
    %v3887 = vand.u32 %v3860, 2147483648
    %v3888 = vor.u32 1.1754944e-38, %v3887
    %v3889 = vsel %vm3886, %v3888, %v3884
    %v3890 = vmul.f32 %v3826, %v3889
    %s3891 = scalar_lea.vmem %s31, 128
    %v3892 = vld [vmem:[%s3891] sm:$0xff]
    %v3893 = vld [vmem:[%s3891 + $0x8] sm:$0xff]
    %v3894 = vld [vmem:[%s3891 + $0x10] sm:$0xff]
    %v3895 = vld [vmem:[%s3891 + $0x18] sm:$0xff]
    %v3896 = vld [vmem:[%s3891 + $0x20] sm:$0xff]
    %v3897 = vld [vmem:[%s3891 + $0x28] sm:$0xff]
    %v3898 = vld [vmem:[%s3891 + $0x30] sm:$0xff]
    %v3899 = vld [vmem:[%s3891 + $0x38] sm:$0xff]
    %v3900 = vld [vmem:[%s3891 + $0x40] sm:$0xff]
    %v3901 = vld [vmem:[%s3891 + $0x48] sm:$0xff]
    %v3902 = vld [vmem:[%s3891 + $0x50] sm:$0xff]
    %v3903 = vld [vmem:[%s3891 + $0x58] sm:$0xff]
    %v3904 = vld [vmem:[%s3891 + $0x60] sm:$0xff]
    %v3905 = vld [vmem:[%s3891 + $0x68] sm:$0xff]
    %v3906 = vld [vmem:[%s3891 + $0x70] sm:$0xff]
    %v3907 = vld [vmem:[%s3891 + $0x78] sm:$0xff]
    %s3908 = scalar_lea.vmem %s33, 128
    %v3909 = vld [vmem:[%s3908] sm:$0xff]
    %v3910 = vld [vmem:[%s3908 + $0x8] sm:$0xff]
    %v3911 = vld [vmem:[%s3908 + $0x10] sm:$0xff]
    %v3912 = vld [vmem:[%s3908 + $0x18] sm:$0xff]
    %v3913 = vld [vmem:[%s3908 + $0x20] sm:$0xff]
    %v3914 = vld [vmem:[%s3908 + $0x28] sm:$0xff]
    %v3915 = vld [vmem:[%s3908 + $0x30] sm:$0xff]
    %v3916 = vld [vmem:[%s3908 + $0x38] sm:$0xff]
    %v3917 = vld [vmem:[%s3908 + $0x40] sm:$0xff]
    %v3918 = vld [vmem:[%s3908 + $0x48] sm:$0xff]
    %v3919 = vld [vmem:[%s3908 + $0x50] sm:$0xff]
    %v3920 = vld [vmem:[%s3908 + $0x58] sm:$0xff]
    %v3921 = vld [vmem:[%s3908 + $0x60] sm:$0xff]
    %v3922 = vld [vmem:[%s3908 + $0x68] sm:$0xff]
    %v3923 = vld [vmem:[%s3908 + $0x70] sm:$0xff]
    %v3924 = vld [vmem:[%s3908 + $0x78] sm:$0xff]
    %s3925 = scalar_lea.vmem %s35, 128
    %v3926 = vld [vmem:[%s3925] sm:$0xff]
    %v3927 = vld [vmem:[%s3925 + $0x8] sm:$0xff]
    %v3928 = vld [vmem:[%s3925 + $0x10] sm:$0xff]
    %v3929 = vld [vmem:[%s3925 + $0x18] sm:$0xff]
    %v3930 = vld [vmem:[%s3925 + $0x20] sm:$0xff]
    %v3931 = vld [vmem:[%s3925 + $0x28] sm:$0xff]
    %v3932 = vld [vmem:[%s3925 + $0x30] sm:$0xff]
    %v3933 = vld [vmem:[%s3925 + $0x38] sm:$0xff]
    %v3934 = vld [vmem:[%s3925 + $0x40] sm:$0xff]
    %v3935 = vld [vmem:[%s3925 + $0x48] sm:$0xff]
    %v3936 = vld [vmem:[%s3925 + $0x50] sm:$0xff]
    %v3937 = vld [vmem:[%s3925 + $0x58] sm:$0xff]
    %v3938 = vld [vmem:[%s3925 + $0x60] sm:$0xff]
    %v3939 = vld [vmem:[%s3925 + $0x68] sm:$0xff]
    %v3940 = vld [vmem:[%s3925 + $0x70] sm:$0xff]
    %v3941 = vld [vmem:[%s3925 + $0x78] sm:$0xff]
    %s3942 = scalar_lea.vmem %s37, 32
    %v3943 = vld [vmem:[%s3942] sm:$0xff]
    %v3944 = vld [vmem:[%s3942 + $0x8] sm:$0xff]
    %v3945 = vld [vmem:[%s3942 + $0x10] sm:$0xff]
    %v3946 = vld [vmem:[%s3942 + $0x18] sm:$0xff]
    %s3947 = scalar_lea.vmem %s39, 1
    %v3948 = vld [vmem:[%s3947] sm:$0x1]
    %v3950 = vsel %vm237, %v3875, 0
    %v3953 = vsel %vm237, %v3890, 0
    %3955 = vmatpush.msra.mxu0 0.0
    %3956 = vmatpush.msra.mxu0 0.0
    %3957 = vmatpush.msra.mxu0 0.0
    %3958 = vmatpush.msra.mxu0 0.0
    %3959 = vmatpush.msra.mxu0 0.0
    %3960 = vmatpush.msra.mxu0 0.0
    %3961 = vmatpush.msra.mxu0 0.0
    %3962 = vmatpush.msra.mxu0 0.0
    %3963 = vmatpush.msra.mxu0 0.0
    %3964 = vmatpush.msra.mxu0 0.0
    %3965 = vmatpush.msra.mxu0 0.0
    %3966 = vmatpush.msra.mxu0 0.0
    %3967 = vmatpush.msra.mxu0 %v3895
    %3968 = vmatpush.msra.mxu0 %v3894
    %3969 = vmatpush.msra.mxu0 %v3893
    %3970 = vmatpush.msra.mxu0 %v3892
    %3971 = vmatmul.f32.gmra.mxu0 %v3950
    %v3972 = vpop.f32.mrf.mxu0
    %v3973 = vadd.f32 0.0, %v3972
    %3974 = vmatmul.f32.gmra.mxu0 %v3953
    %v3975 = vpop.f32.mrf.mxu0
    %v3976 = vadd.f32 0.0, %v3975
    %3977 = vdwg.mxu0
    %3978 = vmatpush.msra.mxu0 0.0
    %3979 = vmatpush.msra.mxu0 0.0
    %3980 = vmatpush.msra.mxu0 0.0
    %3981 = vmatpush.msra.mxu0 0.0
    %3982 = vmatpush.msra.mxu0 0.0
    %3983 = vmatpush.msra.mxu0 0.0
    %3984 = vmatpush.msra.mxu0 0.0
    %3985 = vmatpush.msra.mxu0 0.0
    %3986 = vmatpush.msra.mxu0 0.0
    %3987 = vmatpush.msra.mxu0 0.0
    %3988 = vmatpush.msra.mxu0 0.0
    %3989 = vmatpush.msra.mxu0 0.0
    %3990 = vmatpush.msra.mxu0 %v3899
    %3991 = vmatpush.msra.mxu0 %v3898
    %3992 = vmatpush.msra.mxu0 %v3897
    %3993 = vmatpush.msra.mxu0 %v3896
    %3994 = vmatmul.f32.gmra.mxu0 %v3950
    %v3995 = vpop.f32.mrf.mxu0
    %v3996 = vadd.f32 0.0, %v3995
    %3997 = vmatmul.f32.gmra.mxu0 %v3953
    %v3998 = vpop.f32.mrf.mxu0
    %v3999 = vadd.f32 0.0, %v3998
    %4000 = vdwg.mxu0
    %4001 = vmatpush.msra.mxu0 0.0
    %4002 = vmatpush.msra.mxu0 0.0
    %4003 = vmatpush.msra.mxu0 0.0
    %4004 = vmatpush.msra.mxu0 0.0
    %4005 = vmatpush.msra.mxu0 0.0
    %4006 = vmatpush.msra.mxu0 0.0
    %4007 = vmatpush.msra.mxu0 0.0
    %4008 = vmatpush.msra.mxu0 0.0
    %4009 = vmatpush.msra.mxu0 0.0
    %4010 = vmatpush.msra.mxu0 0.0
    %4011 = vmatpush.msra.mxu0 0.0
    %4012 = vmatpush.msra.mxu0 0.0
    %4013 = vmatpush.msra.mxu0 %v3903
    %4014 = vmatpush.msra.mxu0 %v3902
    %4015 = vmatpush.msra.mxu0 %v3901
    %4016 = vmatpush.msra.mxu0 %v3900
    %4017 = vmatmul.f32.gmra.mxu0 %v3950
    %v4018 = vpop.f32.mrf.mxu0
    %v4019 = vadd.f32 0.0, %v4018
    %4020 = vmatmul.f32.gmra.mxu0 %v3953
    %v4021 = vpop.f32.mrf.mxu0
    %v4022 = vadd.f32 0.0, %v4021
    %4023 = vdwg.mxu0
    %4024 = vmatpush.msra.mxu0 0.0
    %4025 = vmatpush.msra.mxu0 0.0
    %4026 = vmatpush.msra.mxu0 0.0
    %4027 = vmatpush.msra.mxu0 0.0
    %4028 = vmatpush.msra.mxu0 0.0
    %4029 = vmatpush.msra.mxu0 0.0
    %4030 = vmatpush.msra.mxu0 0.0
    %4031 = vmatpush.msra.mxu0 0.0
    %4032 = vmatpush.msra.mxu0 0.0
    %4033 = vmatpush.msra.mxu0 0.0
    %4034 = vmatpush.msra.mxu0 0.0
    %4035 = vmatpush.msra.mxu0 0.0
    %4036 = vmatpush.msra.mxu0 %v3907
    %4037 = vmatpush.msra.mxu0 %v3906
    %4038 = vmatpush.msra.mxu0 %v3905
    %4039 = vmatpush.msra.mxu0 %v3904
    %4040 = vmatmul.f32.gmra.mxu0 %v3950
    %v4041 = vpop.f32.mrf.mxu0
    %v4042 = vadd.f32 0.0, %v4041
    %4043 = vmatmul.f32.gmra.mxu0 %v3953
    %v4044 = vpop.f32.mrf.mxu0
    %v4045 = vadd.f32 0.0, %v4044
    %4046 = vdwg.mxu0
    %4047 = vmatpush.msra.mxu0 0.0
    %4048 = vmatpush.msra.mxu0 0.0
    %4049 = vmatpush.msra.mxu0 0.0
    %4050 = vmatpush.msra.mxu0 0.0
    %4051 = vmatpush.msra.mxu0 0.0
    %4052 = vmatpush.msra.mxu0 0.0
    %4053 = vmatpush.msra.mxu0 0.0
    %4054 = vmatpush.msra.mxu0 0.0
    %4055 = vmatpush.msra.mxu0 0.0
    %4056 = vmatpush.msra.mxu0 0.0
    %4057 = vmatpush.msra.mxu0 0.0
    %4058 = vmatpush.msra.mxu0 0.0
    %4059 = vmatpush.msra.mxu0 %v3912
    %4060 = vmatpush.msra.mxu0 %v3911
    %4061 = vmatpush.msra.mxu0 %v3910
    %4062 = vmatpush.msra.mxu0 %v3909
    %4063 = vmatmul.f32.gmra.mxu0 %v3950
    %v4064 = vpop.f32.mrf.mxu0
    %v4065 = vadd.f32 0.0, %v4064
    %4066 = vmatmul.f32.gmra.mxu0 %v3953
    %v4067 = vpop.f32.mrf.mxu0
    %v4068 = vadd.f32 0.0, %v4067
    %4069 = vdwg.mxu0
    %4070 = vmatpush.msra.mxu0 0.0
    %4071 = vmatpush.msra.mxu0 0.0
    %4072 = vmatpush.msra.mxu0 0.0
    %4073 = vmatpush.msra.mxu0 0.0
    %4074 = vmatpush.msra.mxu0 0.0
    %4075 = vmatpush.msra.mxu0 0.0
    %4076 = vmatpush.msra.mxu0 0.0
    %4077 = vmatpush.msra.mxu0 0.0
    %4078 = vmatpush.msra.mxu0 0.0
    %4079 = vmatpush.msra.mxu0 0.0
    %4080 = vmatpush.msra.mxu0 0.0
    %4081 = vmatpush.msra.mxu0 0.0
    %4082 = vmatpush.msra.mxu0 %v3916
    %4083 = vmatpush.msra.mxu0 %v3915
    %4084 = vmatpush.msra.mxu0 %v3914
    %4085 = vmatpush.msra.mxu0 %v3913
    %4086 = vmatmul.f32.gmra.mxu0 %v3950
    %v4087 = vpop.f32.mrf.mxu0
    %v4088 = vadd.f32 0.0, %v4087
    %4089 = vmatmul.f32.gmra.mxu0 %v3953
    %v4090 = vpop.f32.mrf.mxu0
    %v4091 = vadd.f32 0.0, %v4090
    %4092 = vdwg.mxu0
    %4093 = vmatpush.msra.mxu0 0.0
    %4094 = vmatpush.msra.mxu0 0.0
    %4095 = vmatpush.msra.mxu0 0.0
    %4096 = vmatpush.msra.mxu0 0.0
    %4097 = vmatpush.msra.mxu0 0.0
    %4098 = vmatpush.msra.mxu0 0.0
    %4099 = vmatpush.msra.mxu0 0.0
    %4100 = vmatpush.msra.mxu0 0.0
    %4101 = vmatpush.msra.mxu0 0.0
    %4102 = vmatpush.msra.mxu0 0.0
    %4103 = vmatpush.msra.mxu0 0.0
    %4104 = vmatpush.msra.mxu0 0.0
    %4105 = vmatpush.msra.mxu0 %v3920
    %4106 = vmatpush.msra.mxu0 %v3919
    %4107 = vmatpush.msra.mxu0 %v3918
    %4108 = vmatpush.msra.mxu0 %v3917
    %4109 = vmatmul.f32.gmra.mxu0 %v3950
    %v4110 = vpop.f32.mrf.mxu0
    %v4111 = vadd.f32 0.0, %v4110
    %4112 = vmatmul.f32.gmra.mxu0 %v3953
    %v4113 = vpop.f32.mrf.mxu0
    %v4114 = vadd.f32 0.0, %v4113
    %4115 = vdwg.mxu0
    %4116 = vmatpush.msra.mxu0 0.0
    %4117 = vmatpush.msra.mxu0 0.0
    %4118 = vmatpush.msra.mxu0 0.0
    %4119 = vmatpush.msra.mxu0 0.0
    %4120 = vmatpush.msra.mxu0 0.0
    %4121 = vmatpush.msra.mxu0 0.0
    %4122 = vmatpush.msra.mxu0 0.0
    %4123 = vmatpush.msra.mxu0 0.0
    %4124 = vmatpush.msra.mxu0 0.0
    %4125 = vmatpush.msra.mxu0 0.0
    %4126 = vmatpush.msra.mxu0 0.0
    %4127 = vmatpush.msra.mxu0 0.0
    %4128 = vmatpush.msra.mxu0 %v3924
    %4129 = vmatpush.msra.mxu0 %v3923
    %4130 = vmatpush.msra.mxu0 %v3922
    %4131 = vmatpush.msra.mxu0 %v3921
    %4132 = vmatmul.f32.gmra.mxu0 %v3950
    %v4133 = vpop.f32.mrf.mxu0
    %v4134 = vadd.f32 0.0, %v4133
    %4135 = vmatmul.f32.gmra.mxu0 %v3953
    %v4136 = vpop.f32.mrf.mxu0
    %v4137 = vadd.f32 0.0, %v4136
    %4138 = vdwg.mxu0
    %4139 = vmatpush.msra.mxu0 0.0
    %4140 = vmatpush.msra.mxu0 0.0
    %4141 = vmatpush.msra.mxu0 0.0
    %4142 = vmatpush.msra.mxu0 0.0
    %4143 = vmatpush.msra.mxu0 0.0
    %4144 = vmatpush.msra.mxu0 0.0
    %4145 = vmatpush.msra.mxu0 0.0
    %4146 = vmatpush.msra.mxu0 0.0
    %4147 = vmatpush.msra.mxu0 0.0
    %4148 = vmatpush.msra.mxu0 0.0
    %4149 = vmatpush.msra.mxu0 0.0
    %4150 = vmatpush.msra.mxu0 0.0
    %4151 = vmatpush.msra.mxu0 %v3929
    %4152 = vmatpush.msra.mxu0 %v3928
    %4153 = vmatpush.msra.mxu0 %v3927
    %4154 = vmatpush.msra.mxu0 %v3926
    %4155 = vmatmul.f32.gmra.mxu0 %v3950
    %v4156 = vpop.f32.mrf.mxu0
    %v4157 = vadd.f32 0.0, %v4156
    %4158 = vmatmul.f32.gmra.mxu0 %v3953
    %v4159 = vpop.f32.mrf.mxu0
    %v4160 = vadd.f32 0.0, %v4159
    %4161 = vdwg.mxu0
    %4162 = vmatpush.msra.mxu0 0.0
    %4163 = vmatpush.msra.mxu0 0.0
    %4164 = vmatpush.msra.mxu0 0.0
    %4165 = vmatpush.msra.mxu0 0.0
    %4166 = vmatpush.msra.mxu0 0.0
    %4167 = vmatpush.msra.mxu0 0.0
    %4168 = vmatpush.msra.mxu0 0.0
    %4169 = vmatpush.msra.mxu0 0.0
    %4170 = vmatpush.msra.mxu0 0.0
    %4171 = vmatpush.msra.mxu0 0.0
    %4172 = vmatpush.msra.mxu0 0.0
    %4173 = vmatpush.msra.mxu0 0.0
    %4174 = vmatpush.msra.mxu0 %v3933
    %4175 = vmatpush.msra.mxu0 %v3932
    %4176 = vmatpush.msra.mxu0 %v3931
    %4177 = vmatpush.msra.mxu0 %v3930
    %4178 = vmatmul.f32.gmra.mxu0 %v3950
    %v4179 = vpop.f32.mrf.mxu0
    %v4180 = vadd.f32 0.0, %v4179
    %4181 = vmatmul.f32.gmra.mxu0 %v3953
    %v4182 = vpop.f32.mrf.mxu0
    %v4183 = vadd.f32 0.0, %v4182
    %4184 = vdwg.mxu0
    %4185 = vmatpush.msra.mxu0 0.0
    %4186 = vmatpush.msra.mxu0 0.0
    %4187 = vmatpush.msra.mxu0 0.0
    %4188 = vmatpush.msra.mxu0 0.0
    %4189 = vmatpush.msra.mxu0 0.0
    %4190 = vmatpush.msra.mxu0 0.0
    %4191 = vmatpush.msra.mxu0 0.0
    %4192 = vmatpush.msra.mxu0 0.0
    %4193 = vmatpush.msra.mxu0 0.0
    %4194 = vmatpush.msra.mxu0 0.0
    %4195 = vmatpush.msra.mxu0 0.0
    %4196 = vmatpush.msra.mxu0 0.0
    %4197 = vmatpush.msra.mxu0 %v3937
    %4198 = vmatpush.msra.mxu0 %v3936
    %4199 = vmatpush.msra.mxu0 %v3935
    %4200 = vmatpush.msra.mxu0 %v3934
    %4201 = vmatmul.f32.gmra.mxu0 %v3950
    %v4202 = vpop.f32.mrf.mxu0
    %v4203 = vadd.f32 0.0, %v4202
    %4204 = vmatmul.f32.gmra.mxu0 %v3953
    %v4205 = vpop.f32.mrf.mxu0
    %v4206 = vadd.f32 0.0, %v4205
    %4207 = vdwg.mxu0
    %4208 = vmatpush.msra.mxu0 0.0
    %4209 = vmatpush.msra.mxu0 0.0
    %4210 = vmatpush.msra.mxu0 0.0
    %4211 = vmatpush.msra.mxu0 0.0
    %4212 = vmatpush.msra.mxu0 0.0
    %4213 = vmatpush.msra.mxu0 0.0
    %4214 = vmatpush.msra.mxu0 0.0
    %4215 = vmatpush.msra.mxu0 0.0
    %4216 = vmatpush.msra.mxu0 0.0
    %4217 = vmatpush.msra.mxu0 0.0
    %4218 = vmatpush.msra.mxu0 0.0
    %4219 = vmatpush.msra.mxu0 0.0
    %4220 = vmatpush.msra.mxu0 %v3941
    %4221 = vmatpush.msra.mxu0 %v3940
    %4222 = vmatpush.msra.mxu0 %v3939
    %4223 = vmatpush.msra.mxu0 %v3938
    %4224 = vmatmul.f32.gmra.mxu0 %v3950
    %v4225 = vpop.f32.mrf.mxu0
    %v4226 = vadd.f32 0.0, %v4225
    %4227 = vmatmul.f32.gmra.mxu0 %v3953
    %v4228 = vpop.f32.mrf.mxu0
    %v4229 = vadd.f32 0.0, %v4228
    %4230 = vdwg.mxu0
    %v4232 = vsel %vm635, %v3973, 0
    %v4235 = vsel %vm635, %v3976, 0
    %v4238 = vsel %vm635, %v3996, 0
    %v4241 = vsel %vm635, %v3999, 0
    %v4244 = vsel %vm635, %v4019, 0
    %v4247 = vsel %vm635, %v4022, 0
    %v4250 = vsel %vm635, %v4042, 0
    %v4253 = vsel %vm635, %v4045, 0
    %v4256 = vsel %vm635, %v4065, 0
    %v4259 = vsel %vm635, %v4068, 0
    %v4262 = vsel %vm635, %v4088, 0
    %v4265 = vsel %vm635, %v4091, 0
    %v4268 = vsel %vm635, %v4111, 0
    %v4271 = vsel %vm635, %v4114, 0
    %v4274 = vsel %vm635, %v4134, 0
    %v4277 = vsel %vm635, %v4137, 0
    %4279 = vmatpush.xpose.msra.mxu0 0.0
    %4280 = vmatpush.xpose.msra.mxu0 0.0
    %4281 = vmatpush.xpose.msra.mxu0 0.0
    %4282 = vmatpush.xpose.msra.mxu0 0.0
    %4283 = vmatpush.xpose.msra.mxu0 0.0
    %4284 = vmatpush.xpose.msra.mxu0 0.0
    %4285 = vmatpush.xpose.msra.mxu0 0.0
    %4286 = vmatpush.xpose.msra.mxu0 0.0
    %4287 = vmatpush.xpose.msra.mxu0 %v4277
    %4288 = vmatpush.xpose.msra.mxu0 %v4274
    %4289 = vmatpush.xpose.msra.mxu0 %v4271
    %4290 = vmatpush.xpose.msra.mxu0 %v4268
    %4291 = vmatpush.xpose.msra.mxu0 %v4265
    %4292 = vmatpush.xpose.msra.mxu0 %v4262
    %4293 = vmatpush.xpose.msra.mxu0 %v4259
    %4294 = vmatpush.xpose.msra.mxu0 %v4256
    %4295 = vmatmul.f32.gmra.mxu0 %v4232
    %v4296 = vpop.f32.mrf.mxu0
    %v4297 = vadd.f32 %v131, %v4296
    %4298 = vmatmul.f32.gmra.mxu0 %v4235
    %v4299 = vpop.f32.mrf.mxu0
    %v4300 = vadd.f32 %v132, %v4299
    %4301 = vmatmul.f32.gmra.mxu0 %v4238
    %v4302 = vpop.f32.mrf.mxu0
    %v4303 = vadd.f32 %v133, %v4302
    %4304 = vmatmul.f32.gmra.mxu0 %v4241
    %v4305 = vpop.f32.mrf.mxu0
    %v4306 = vadd.f32 %v134, %v4305
    %4307 = vmatmul.f32.gmra.mxu0 %v4244
    %v4308 = vpop.f32.mrf.mxu0
    %v4309 = vadd.f32 %v135, %v4308
    %4310 = vmatmul.f32.gmra.mxu0 %v4247
    %v4311 = vpop.f32.mrf.mxu0
    %v4312 = vadd.f32 %v136, %v4311
    %4313 = vmatmul.f32.gmra.mxu0 %v4250
    %v4314 = vpop.f32.mrf.mxu0
    %v4315 = vadd.f32 %v137, %v4314
    %4316 = vmatmul.f32.gmra.mxu0 %v4253
    %v4317 = vpop.f32.mrf.mxu0
    %v4318 = vadd.f32 %v138, %v4317
    %4319 = vdwg.mxu0
    %v4320 = vsel %vm725, %v4297, -inf
    %4321 = vmax.xlane.f32.xlu0 %v4320
    %v4322 = vpop.xlane.xlu0 %4321
    %v4323 = vsel %vm725, %v4300, -inf
    %4324 = vmax.xlane.f32.xlu0 %v4323
    %v4325 = vpop.xlane.xlu0 %4324
    %v4326 = vsel %vm725, %v4303, -inf
    %4327 = vmax.xlane.f32.xlu0 %v4326
    %v4328 = vpop.xlane.xlu0 %4327
    %v4329 = vsel %vm725, %v4306, -inf
    %4330 = vmax.xlane.f32.xlu0 %v4329
    %v4331 = vpop.xlane.xlu0 %4330
    %v4332 = vsel %vm725, %v4309, -inf
    %4333 = vmax.xlane.f32.xlu0 %v4332
    %v4334 = vpop.xlane.xlu0 %4333
    %v4335 = vsel %vm725, %v4312, -inf
    %4336 = vmax.xlane.f32.xlu0 %v4335
    %v4337 = vpop.xlane.xlu0 %4336
    %v4338 = vsel %vm725, %v4315, -inf
    %4339 = vmax.xlane.f32.xlu0 %v4338
    %v4340 = vpop.xlane.xlu0 %4339
    %v4341 = vsel %vm725, %v4318, -inf
    %4342 = vmax.xlane.f32.xlu0 %v4341
    %v4343 = vpop.xlane.xlu0 %4342
    %v4344 = vsub.f32 %v4297, %v4322
    %v4345 = vsub.f32 %v4300, %v4325
    %v4346 = vsub.f32 %v4303, %v4328
    %v4347 = vsub.f32 %v4306, %v4331
    %v4348 = vsub.f32 %v4309, %v4334
    %v4349 = vsub.f32 %v4312, %v4337
    %v4350 = vsub.f32 %v4315, %v4340
    %v4351 = vsub.f32 %v4318, %v4343
    %v4352 = vmul.f32 %v4344, 1.442695
    %v4353 = vpow.pop %v4352
    %v4354 = vmul.f32 %v4345, 1.442695
    %v4355 = vpow.pop %v4354
    %v4356 = vmul.f32 %v4346, 1.442695
    %v4357 = vpow.pop %v4356
    %v4358 = vmul.f32 %v4347, 1.442695
    %v4359 = vpow.pop %v4358
    %v4360 = vmul.f32 %v4348, 1.442695
    %v4361 = vpow.pop %v4360
    %v4362 = vmul.f32 %v4349, 1.442695
    %v4363 = vpow.pop %v4362
    %v4364 = vmul.f32 %v4350, 1.442695
    %v4365 = vpow.pop %v4364
    %v4366 = vmul.f32 %v4351, 1.442695
    %v4367 = vpow.pop %v4366
    %v4368 = vsel %vm725, %v4353, 0.0
    %4369 = vadd.xlane.f32.xlu0 %v4368
    %v4370 = vpop.xlane.xlu0 %4369
    %v4371 = vsel %vm725, %v4355, 0.0
    %4372 = vadd.xlane.f32.xlu0 %v4371
    %v4373 = vpop.xlane.xlu0 %4372
    %v4374 = vsel %vm725, %v4357, 0.0
    %4375 = vadd.xlane.f32.xlu0 %v4374
    %v4376 = vpop.xlane.xlu0 %4375
    %v4377 = vsel %vm725, %v4359, 0.0
    %4378 = vadd.xlane.f32.xlu0 %v4377
    %v4379 = vpop.xlane.xlu0 %4378
    %v4380 = vsel %vm725, %v4361, 0.0
    %4381 = vadd.xlane.f32.xlu0 %v4380
    %v4382 = vpop.xlane.xlu0 %4381
    %v4383 = vsel %vm725, %v4363, 0.0
    %4384 = vadd.xlane.f32.xlu0 %v4383
    %v4385 = vpop.xlane.xlu0 %4384
    %v4386 = vsel %vm725, %v4365, 0.0
    %4387 = vadd.xlane.f32.xlu0 %v4386
    %v4388 = vpop.xlane.xlu0 %4387
    %v4389 = vsel %vm725, %v4367, 0.0
    %4390 = vadd.xlane.f32.xlu0 %v4389
    %v4391 = vpop.xlane.xlu0 %4390
    %v4392 = vrcp.pop %v4370
    %v4393 = vrcp.pop %v4373
    %v4394 = vrcp.pop %v4376
    %v4395 = vrcp.pop %v4379
    %v4396 = vrcp.pop %v4382
    %v4397 = vrcp.pop %v4385
    %v4398 = vrcp.pop %v4388
    %v4399 = vrcp.pop %v4391
    %v4400 = vmul.f32 %v4353, %v4392
    %v4401 = vmul.f32 %v4355, %v4393
    %v4402 = vmul.f32 %v4357, %v4394
    %v4403 = vmul.f32 %v4359, %v4395
    %v4404 = vmul.f32 %v4361, %v4396
    %v4405 = vmul.f32 %v4363, %v4397
    %v4406 = vmul.f32 %v4365, %v4398
    %v4407 = vmul.f32 %v4367, %v4399
    %v4409 = vsel %vm725, %v4400, 0
    %v4412 = vsel %vm725, %v4401, 0
    %v4415 = vsel %vm725, %v4402, 0
    %v4418 = vsel %vm725, %v4403, 0
    %v4421 = vsel %vm725, %v4404, 0
    %v4424 = vsel %vm725, %v4405, 0
    %v4427 = vsel %vm725, %v4406, 0
    %v4430 = vsel %vm725, %v4407, 0
    %4432 = vmatpush.msra.mxu0 0.0
    %4433 = vmatpush.msra.mxu0 0.0
    %4434 = vmatpush.msra.mxu0 0.0
    %4435 = vmatpush.msra.mxu0 0.0
    %4436 = vmatpush.msra.mxu0 0.0
    %4437 = vmatpush.msra.mxu0 0.0
    %4438 = vmatpush.msra.mxu0 0.0
    %4439 = vmatpush.msra.mxu0 0.0
    %4440 = vmatpush.msra.mxu0 %v4229
    %4441 = vmatpush.msra.mxu0 %v4226
    %4442 = vmatpush.msra.mxu0 %v4206
    %4443 = vmatpush.msra.mxu0 %v4203
    %4444 = vmatpush.msra.mxu0 %v4183
    %4445 = vmatpush.msra.mxu0 %v4180
    %4446 = vmatpush.msra.mxu0 %v4160
    %4447 = vmatpush.msra.mxu0 %v4157
    %4448 = vmatmul.f32.gmra.mxu0 %v4409
    %v4449 = vpop.f32.mrf.mxu0
    %v4450 = vadd.f32 0.0, %v4449
    %4451 = vmatmul.f32.gmra.mxu0 %v4412
    %v4452 = vpop.f32.mrf.mxu0
    %v4453 = vadd.f32 0.0, %v4452
    %4454 = vmatmul.f32.gmra.mxu0 %v4415
    %v4455 = vpop.f32.mrf.mxu0
    %v4456 = vadd.f32 0.0, %v4455
    %4457 = vmatmul.f32.gmra.mxu0 %v4418
    %v4458 = vpop.f32.mrf.mxu0
    %v4459 = vadd.f32 0.0, %v4458
    %4460 = vmatmul.f32.gmra.mxu0 %v4421
    %v4461 = vpop.f32.mrf.mxu0
    %v4462 = vadd.f32 0.0, %v4461
    %4463 = vmatmul.f32.gmra.mxu0 %v4424
    %v4464 = vpop.f32.mrf.mxu0
    %v4465 = vadd.f32 0.0, %v4464
    %4466 = vmatmul.f32.gmra.mxu0 %v4427
    %v4467 = vpop.f32.mrf.mxu0
    %v4468 = vadd.f32 0.0, %v4467
    %4469 = vmatmul.f32.gmra.mxu0 %v4430
    %v4470 = vpop.f32.mrf.mxu0
    %v4471 = vadd.f32 0.0, %v4470
    %4472 = vdwg.mxu0
    %v4474 = vsel %vm635, %v4456, 0
    %v4477 = vsel %vm635, %v4459, 0
    %4479 = vmatpush.msra.mxu0 0.0
    %4480 = vmatpush.msra.mxu0 0.0
    %4481 = vmatpush.msra.mxu0 0.0
    %4482 = vmatpush.msra.mxu0 0.0
    %4483 = vmatpush.msra.mxu0 0.0
    %4484 = vmatpush.msra.mxu0 0.0
    %4485 = vmatpush.msra.mxu0 0.0
    %4486 = vmatpush.msra.mxu0 0.0
    %4487 = vmatpush.msra.mxu0 0.0
    %4488 = vmatpush.msra.mxu0 0.0
    %4489 = vmatpush.msra.mxu0 0.0
    %4490 = vmatpush.msra.mxu0 0.0
    %4491 = vmatpush.msra.mxu0 0.0
    %4492 = vmatpush.msra.mxu0 0.0
    %4493 = vmatpush.msra.mxu0 0.0
    %4494 = vmatpush.msra.mxu0 %v3944
    %4495 = vmatmul.f32.gmra.mxu0 %v4474
    %v4496 = vpop.f32.mrf.mxu0
    %v4497 = vadd.f32 0.0, %v4496
    %4498 = vmatmul.f32.gmra.mxu0 %v4477
    %v4499 = vpop.f32.mrf.mxu0
    %v4500 = vadd.f32 0.0, %v4499
    %4501 = vdwg.mxu0
    %v4503 = vsel %vm635, %v4450, 0
    %v4506 = vsel %vm635, %v4453, 0
    %4508 = vmatpush.msra.mxu0 0.0
    %4509 = vmatpush.msra.mxu0 0.0
    %4510 = vmatpush.msra.mxu0 0.0
    %4511 = vmatpush.msra.mxu0 0.0
    %4512 = vmatpush.msra.mxu0 0.0
    %4513 = vmatpush.msra.mxu0 0.0
    %4514 = vmatpush.msra.mxu0 0.0
    %4515 = vmatpush.msra.mxu0 0.0
    %4516 = vmatpush.msra.mxu0 0.0
    %4517 = vmatpush.msra.mxu0 0.0
    %4518 = vmatpush.msra.mxu0 0.0
    %4519 = vmatpush.msra.mxu0 0.0
    %4520 = vmatpush.msra.mxu0 0.0
    %4521 = vmatpush.msra.mxu0 0.0
    %4522 = vmatpush.msra.mxu0 0.0
    %4523 = vmatpush.msra.mxu0 %v3943
    %4524 = vmatmul.f32.gmra.mxu0 %v4503
    %v4525 = vpop.f32.mrf.mxu0
    %v4526 = vadd.f32 %v4497, %v4525
    %4527 = vmatmul.f32.gmra.mxu0 %v4506
    %v4528 = vpop.f32.mrf.mxu0
    %v4529 = vadd.f32 %v4500, %v4528
    %4530 = vdwg.mxu0
    %v4532 = vsel %vm635, %v4462, 0
    %v4535 = vsel %vm635, %v4465, 0
    %4537 = vmatpush.msra.mxu0 0.0
    %4538 = vmatpush.msra.mxu0 0.0
    %4539 = vmatpush.msra.mxu0 0.0
    %4540 = vmatpush.msra.mxu0 0.0
    %4541 = vmatpush.msra.mxu0 0.0
    %4542 = vmatpush.msra.mxu0 0.0
    %4543 = vmatpush.msra.mxu0 0.0
    %4544 = vmatpush.msra.mxu0 0.0
    %4545 = vmatpush.msra.mxu0 0.0
    %4546 = vmatpush.msra.mxu0 0.0
    %4547 = vmatpush.msra.mxu0 0.0
    %4548 = vmatpush.msra.mxu0 0.0
    %4549 = vmatpush.msra.mxu0 0.0
    %4550 = vmatpush.msra.mxu0 0.0
    %4551 = vmatpush.msra.mxu0 0.0
    %4552 = vmatpush.msra.mxu0 %v3945
    %4553 = vmatmul.f32.gmra.mxu0 %v4532
    %v4554 = vpop.f32.mrf.mxu0
    %v4555 = vadd.f32 0.0, %v4554
    %4556 = vmatmul.f32.gmra.mxu0 %v4535
    %v4557 = vpop.f32.mrf.mxu0
    %v4558 = vadd.f32 0.0, %v4557
    %4559 = vdwg.mxu0
    %v4560 = vadd.f32 %v4526, %v4555
    %v4561 = vadd.f32 %v4529, %v4558
    %v4563 = vsel %vm635, %v4468, 0
    %v4566 = vsel %vm635, %v4471, 0
    %4568 = vmatpush.msra.mxu0 0.0
    %4569 = vmatpush.msra.mxu0 0.0
    %4570 = vmatpush.msra.mxu0 0.0
    %4571 = vmatpush.msra.mxu0 0.0
    %4572 = vmatpush.msra.mxu0 0.0
    %4573 = vmatpush.msra.mxu0 0.0
    %4574 = vmatpush.msra.mxu0 0.0
    %4575 = vmatpush.msra.mxu0 0.0
    %4576 = vmatpush.msra.mxu0 0.0
    %4577 = vmatpush.msra.mxu0 0.0
    %4578 = vmatpush.msra.mxu0 0.0
    %4579 = vmatpush.msra.mxu0 0.0
    %4580 = vmatpush.msra.mxu0 0.0
    %4581 = vmatpush.msra.mxu0 0.0
    %4582 = vmatpush.msra.mxu0 0.0
    %4583 = vmatpush.msra.mxu0 %v3946
    %4584 = vmatmul.f32.gmra.mxu0 %v4563
    %v4585 = vpop.f32.mrf.mxu0
    %v4586 = vadd.f32 0.0, %v4585
    %4587 = vmatmul.f32.gmra.mxu0 %v4566
    %v4588 = vpop.f32.mrf.mxu0
    %v4589 = vadd.f32 0.0, %v4588
    %4590 = vdwg.mxu0
    %v4591 = vadd.f32 %v4560, %v4586
    %v4592 = vadd.f32 %v4561, %v4589
    %v4594 = vperm.slane %v3948, 0
    %v4596 = vadd.f32 %v4591, %v4594
    %v4597 = vadd.f32 %v4592, %v4594
    %v4598 = vadd.f32 %v4596, %v3825
    %v4599 = vadd.f32 %v4597, %v3826
    %v4600 = vmul.f32 %v4598, %v4598
    %v4601 = vmul.f32 %v4599, %v4599
    %v4602 = vsel %vm237, %v4600, 0.0
    %4603 = vadd.xlane.f32.xlu0 %v4602
    %v4604 = vpop.xlane.xlu0 %4603
    %v4605 = vsel %vm237, %v4601, 0.0
    %4606 = vadd.xlane.f32.xlu0 %v4605
    %v4607 = vpop.xlane.xlu0 %4606
    %v4608 = vrsqrt.pop %v4604
    %v4609 = vmul.f32 %v4608, %v4604
    %v4610 = vmul.f32 %v4609, %v4608
    %v4611 = vmul.f32 0.5, %v4610
    %v4612 = vsub.f32 1.5, %v4611
    %v4613 = vmul.f32 %v4608, %v4612
    %v4614 = vmul.f32 %v4604, %v4613
    %vm4615 = vcmp.eq.f32.partialorder %v4604, inf
    %v4616 = vsel %vm4615, %v4604, %v4614
    %vm4617 = vcmp.eq.f32.partialorder %v4604, 0.0
    %v4618 = vand.u32 %v4604, 2147483648
    %v4619 = vsel %vm4617, %v4618, %v4616
    %v4620 = vrsqrt.pop %v4607
    %v4621 = vmul.f32 %v4620, %v4607
    %v4622 = vmul.f32 %v4621, %v4620
    %v4623 = vmul.f32 0.5, %v4622
    %v4624 = vsub.f32 1.5, %v4623
    %v4625 = vmul.f32 %v4620, %v4624
    %v4626 = vmul.f32 %v4607, %v4625
    %vm4627 = vcmp.eq.f32.partialorder %v4607, inf
    %v4628 = vsel %vm4627, %v4607, %v4626
    %vm4629 = vcmp.eq.f32.partialorder %v4607, 0.0
    %v4630 = vand.u32 %v4607, 2147483648
    %v4631 = vsel %vm4629, %v4630, %v4628
    %v4632 = vmax.f32 %v4619, 1e-05
    %v4633 = vmax.f32 %v4631, 1e-05
    %v4634 = vrcp.pop %v4632
    %v4635 = vmul.f32 %v4632, %v4634
    %v4636 = vsub.f32 1.0, %v4635
    %v4637 = vmul.f32 %v4634, %v4636
    %v4638 = vadd.f32 %v4634, %v4637
    %vm4639 = vweird.f32 %v4632
    %vm4640 = vweird.f32 %v4634
    %vm4641 = vmor %vm4639, %vm4640
    %v4642 = vsel %vm4641, %v4634, %v4638
    %v4643 = vand.u32 2147483647, %v4632
    %vm4644 = vcmp.eq.f32.partialorder %v4643, 8.507059e+37
    %v4645 = vand.u32 %v4632, 2147483648
    %v4646 = vor.u32 1.1754944e-38, %v4645
    %v4647 = vsel %vm4644, %v4646, %v4642
    %v4648 = vmul.f32 %v4598, %v4647
    %v4649 = vrcp.pop %v4633
    %v4650 = vmul.f32 %v4633, %v4649
    %v4651 = vsub.f32 1.0, %v4650
    %v4652 = vmul.f32 %v4649, %v4651
    %v4653 = vadd.f32 %v4649, %v4652
    %vm4654 = vweird.f32 %v4633
    %vm4655 = vweird.f32 %v4649
    %vm4656 = vmor %vm4654, %vm4655
    %v4657 = vsel %vm4656, %v4649, %v4653
    %v4658 = vand.u32 2147483647, %v4633
    %vm4659 = vcmp.eq.f32.partialorder %v4658, 8.507059e+37
    %v4660 = vand.u32 %v4633, 2147483648
    %v4661 = vor.u32 1.1754944e-38, %v4660
    %v4662 = vsel %vm4659, %v4661, %v4657
    %v4663 = vmul.f32 %v4599, %v4662
    %s4664 = scalar_lea.vmem %s41, 128
    %v4665 = vld [vmem:[%s4664] sm:$0xff]
    %v4666 = vld [vmem:[%s4664 + $0x8] sm:$0xff]
    %v4667 = vld [vmem:[%s4664 + $0x10] sm:$0xff]
    %v4668 = vld [vmem:[%s4664 + $0x18] sm:$0xff]
    %v4669 = vld [vmem:[%s4664 + $0x20] sm:$0xff]
    %v4670 = vld [vmem:[%s4664 + $0x28] sm:$0xff]
    %v4671 = vld [vmem:[%s4664 + $0x30] sm:$0xff]
    %v4672 = vld [vmem:[%s4664 + $0x38] sm:$0xff]
    %v4673 = vld [vmem:[%s4664 + $0x40] sm:$0xff]
    %v4674 = vld [vmem:[%s4664 + $0x48] sm:$0xff]
    %v4675 = vld [vmem:[%s4664 + $0x50] sm:$0xff]
    %v4676 = vld [vmem:[%s4664 + $0x58] sm:$0xff]
    %v4677 = vld [vmem:[%s4664 + $0x60] sm:$0xff]
    %v4678 = vld [vmem:[%s4664 + $0x68] sm:$0xff]
    %v4679 = vld [vmem:[%s4664 + $0x70] sm:$0xff]
    %v4680 = vld [vmem:[%s4664 + $0x78] sm:$0xff]
    %s4681 = scalar_lea.vmem %s43, 128
    %v4682 = vld [vmem:[%s4681] sm:$0xff]
    %v4683 = vld [vmem:[%s4681 + $0x8] sm:$0xff]
    %v4684 = vld [vmem:[%s4681 + $0x10] sm:$0xff]
    %v4685 = vld [vmem:[%s4681 + $0x18] sm:$0xff]
    %v4686 = vld [vmem:[%s4681 + $0x20] sm:$0xff]
    %v4687 = vld [vmem:[%s4681 + $0x28] sm:$0xff]
    %v4688 = vld [vmem:[%s4681 + $0x30] sm:$0xff]
    %v4689 = vld [vmem:[%s4681 + $0x38] sm:$0xff]
    %v4690 = vld [vmem:[%s4681 + $0x40] sm:$0xff]
    %v4691 = vld [vmem:[%s4681 + $0x48] sm:$0xff]
    %v4692 = vld [vmem:[%s4681 + $0x50] sm:$0xff]
    %v4693 = vld [vmem:[%s4681 + $0x58] sm:$0xff]
    %v4694 = vld [vmem:[%s4681 + $0x60] sm:$0xff]
    %v4695 = vld [vmem:[%s4681 + $0x68] sm:$0xff]
    %v4696 = vld [vmem:[%s4681 + $0x70] sm:$0xff]
    %v4697 = vld [vmem:[%s4681 + $0x78] sm:$0xff]
    %s4698 = scalar_lea.vmem %s45, 128
    %v4699 = vld [vmem:[%s4698] sm:$0xff]
    %v4700 = vld [vmem:[%s4698 + $0x8] sm:$0xff]
    %v4701 = vld [vmem:[%s4698 + $0x10] sm:$0xff]
    %v4702 = vld [vmem:[%s4698 + $0x18] sm:$0xff]
    %v4703 = vld [vmem:[%s4698 + $0x20] sm:$0xff]
    %v4704 = vld [vmem:[%s4698 + $0x28] sm:$0xff]
    %v4705 = vld [vmem:[%s4698 + $0x30] sm:$0xff]
    %v4706 = vld [vmem:[%s4698 + $0x38] sm:$0xff]
    %v4707 = vld [vmem:[%s4698 + $0x40] sm:$0xff]
    %v4708 = vld [vmem:[%s4698 + $0x48] sm:$0xff]
    %v4709 = vld [vmem:[%s4698 + $0x50] sm:$0xff]
    %v4710 = vld [vmem:[%s4698 + $0x58] sm:$0xff]
    %v4711 = vld [vmem:[%s4698 + $0x60] sm:$0xff]
    %v4712 = vld [vmem:[%s4698 + $0x68] sm:$0xff]
    %v4713 = vld [vmem:[%s4698 + $0x70] sm:$0xff]
    %v4714 = vld [vmem:[%s4698 + $0x78] sm:$0xff]
    %s4715 = scalar_lea.vmem %s47, 32
    %v4716 = vld [vmem:[%s4715] sm:$0xff]
    %v4717 = vld [vmem:[%s4715 + $0x8] sm:$0xff]
    %v4718 = vld [vmem:[%s4715 + $0x10] sm:$0xff]
    %v4719 = vld [vmem:[%s4715 + $0x18] sm:$0xff]
    %s4720 = scalar_lea.vmem %s49, 1
    %v4721 = vld [vmem:[%s4720] sm:$0x1]
    %v4723 = vsel %vm237, %v4648, 0
    %v4726 = vsel %vm237, %v4663, 0
    %4728 = vmatpush.msra.mxu0 0.0
    %4729 = vmatpush.msra.mxu0 0.0
    %4730 = vmatpush.msra.mxu0 0.0
    %4731 = vmatpush.msra.mxu0 0.0
    %4732 = vmatpush.msra.mxu0 0.0
    %4733 = vmatpush.msra.mxu0 0.0
    %4734 = vmatpush.msra.mxu0 0.0
    %4735 = vmatpush.msra.mxu0 0.0
    %4736 = vmatpush.msra.mxu0 0.0
    %4737 = vmatpush.msra.mxu0 0.0
    %4738 = vmatpush.msra.mxu0 0.0
    %4739 = vmatpush.msra.mxu0 0.0
    %4740 = vmatpush.msra.mxu0 %v4668
    %4741 = vmatpush.msra.mxu0 %v4667
    %4742 = vmatpush.msra.mxu0 %v4666
    %4743 = vmatpush.msra.mxu0 %v4665
    %4744 = vmatmul.f32.gmra.mxu0 %v4723
    %v4745 = vpop.f32.mrf.mxu0
    %v4746 = vadd.f32 0.0, %v4745
    %4747 = vmatmul.f32.gmra.mxu0 %v4726
    %v4748 = vpop.f32.mrf.mxu0
    %v4749 = vadd.f32 0.0, %v4748
    %4750 = vdwg.mxu0
    %4751 = vmatpush.msra.mxu0 0.0
    %4752 = vmatpush.msra.mxu0 0.0
    %4753 = vmatpush.msra.mxu0 0.0
    %4754 = vmatpush.msra.mxu0 0.0
    %4755 = vmatpush.msra.mxu0 0.0
    %4756 = vmatpush.msra.mxu0 0.0
    %4757 = vmatpush.msra.mxu0 0.0
    %4758 = vmatpush.msra.mxu0 0.0
    %4759 = vmatpush.msra.mxu0 0.0
    %4760 = vmatpush.msra.mxu0 0.0
    %4761 = vmatpush.msra.mxu0 0.0
    %4762 = vmatpush.msra.mxu0 0.0
    %4763 = vmatpush.msra.mxu0 %v4672
    %4764 = vmatpush.msra.mxu0 %v4671
    %4765 = vmatpush.msra.mxu0 %v4670
    %4766 = vmatpush.msra.mxu0 %v4669
    %4767 = vmatmul.f32.gmra.mxu0 %v4723
    %v4768 = vpop.f32.mrf.mxu0
    %v4769 = vadd.f32 0.0, %v4768
    %4770 = vmatmul.f32.gmra.mxu0 %v4726
    %v4771 = vpop.f32.mrf.mxu0
    %v4772 = vadd.f32 0.0, %v4771
    %4773 = vdwg.mxu0
    %4774 = vmatpush.msra.mxu0 0.0
    %4775 = vmatpush.msra.mxu0 0.0
    %4776 = vmatpush.msra.mxu0 0.0
    %4777 = vmatpush.msra.mxu0 0.0
    %4778 = vmatpush.msra.mxu0 0.0
    %4779 = vmatpush.msra.mxu0 0.0
    %4780 = vmatpush.msra.mxu0 0.0
    %4781 = vmatpush.msra.mxu0 0.0
    %4782 = vmatpush.msra.mxu0 0.0
    %4783 = vmatpush.msra.mxu0 0.0
    %4784 = vmatpush.msra.mxu0 0.0
    %4785 = vmatpush.msra.mxu0 0.0
    %4786 = vmatpush.msra.mxu0 %v4676
    %4787 = vmatpush.msra.mxu0 %v4675
    %4788 = vmatpush.msra.mxu0 %v4674
    %4789 = vmatpush.msra.mxu0 %v4673
    %4790 = vmatmul.f32.gmra.mxu0 %v4723
    %v4791 = vpop.f32.mrf.mxu0
    %v4792 = vadd.f32 0.0, %v4791
    %4793 = vmatmul.f32.gmra.mxu0 %v4726
    %v4794 = vpop.f32.mrf.mxu0
    %v4795 = vadd.f32 0.0, %v4794
    %4796 = vdwg.mxu0
    %4797 = vmatpush.msra.mxu0 0.0
    %4798 = vmatpush.msra.mxu0 0.0
    %4799 = vmatpush.msra.mxu0 0.0
    %4800 = vmatpush.msra.mxu0 0.0
    %4801 = vmatpush.msra.mxu0 0.0
    %4802 = vmatpush.msra.mxu0 0.0
    %4803 = vmatpush.msra.mxu0 0.0
    %4804 = vmatpush.msra.mxu0 0.0
    %4805 = vmatpush.msra.mxu0 0.0
    %4806 = vmatpush.msra.mxu0 0.0
    %4807 = vmatpush.msra.mxu0 0.0
    %4808 = vmatpush.msra.mxu0 0.0
    %4809 = vmatpush.msra.mxu0 %v4680
    %4810 = vmatpush.msra.mxu0 %v4679
    %4811 = vmatpush.msra.mxu0 %v4678
    %4812 = vmatpush.msra.mxu0 %v4677
    %4813 = vmatmul.f32.gmra.mxu0 %v4723
    %v4814 = vpop.f32.mrf.mxu0
    %v4815 = vadd.f32 0.0, %v4814
    %4816 = vmatmul.f32.gmra.mxu0 %v4726
    %v4817 = vpop.f32.mrf.mxu0
    %v4818 = vadd.f32 0.0, %v4817
    %4819 = vdwg.mxu0
    %4820 = vmatpush.msra.mxu0 0.0
    %4821 = vmatpush.msra.mxu0 0.0
    %4822 = vmatpush.msra.mxu0 0.0
    %4823 = vmatpush.msra.mxu0 0.0
    %4824 = vmatpush.msra.mxu0 0.0
    %4825 = vmatpush.msra.mxu0 0.0
    %4826 = vmatpush.msra.mxu0 0.0
    %4827 = vmatpush.msra.mxu0 0.0
    %4828 = vmatpush.msra.mxu0 0.0
    %4829 = vmatpush.msra.mxu0 0.0
    %4830 = vmatpush.msra.mxu0 0.0
    %4831 = vmatpush.msra.mxu0 0.0
    %4832 = vmatpush.msra.mxu0 %v4685
    %4833 = vmatpush.msra.mxu0 %v4684
    %4834 = vmatpush.msra.mxu0 %v4683
    %4835 = vmatpush.msra.mxu0 %v4682
    %4836 = vmatmul.f32.gmra.mxu0 %v3123
    %v4837 = vpop.f32.mrf.mxu0
    %v4838 = vadd.f32 0.0, %v4837
    %4839 = vmatmul.f32.gmra.mxu0 %v3126
    %v4840 = vpop.f32.mrf.mxu0
    %v4841 = vadd.f32 0.0, %v4840
    %4842 = vdwg.mxu0
    %4843 = vmatpush.msra.mxu0 0.0
    %4844 = vmatpush.msra.mxu0 0.0
    %4845 = vmatpush.msra.mxu0 0.0
    %4846 = vmatpush.msra.mxu0 0.0
    %4847 = vmatpush.msra.mxu0 0.0
    %4848 = vmatpush.msra.mxu0 0.0
    %4849 = vmatpush.msra.mxu0 0.0
    %4850 = vmatpush.msra.mxu0 0.0
    %4851 = vmatpush.msra.mxu0 0.0
    %4852 = vmatpush.msra.mxu0 0.0
    %4853 = vmatpush.msra.mxu0 0.0
    %4854 = vmatpush.msra.mxu0 0.0
    %4855 = vmatpush.msra.mxu0 %v4689
    %4856 = vmatpush.msra.mxu0 %v4688
    %4857 = vmatpush.msra.mxu0 %v4687
    %4858 = vmatpush.msra.mxu0 %v4686
    %4859 = vmatmul.f32.gmra.mxu0 %v3123
    %v4860 = vpop.f32.mrf.mxu0
    %v4861 = vadd.f32 0.0, %v4860
    %4862 = vmatmul.f32.gmra.mxu0 %v3126
    %v4863 = vpop.f32.mrf.mxu0
    %v4864 = vadd.f32 0.0, %v4863
    %4865 = vdwg.mxu0
    %4866 = vmatpush.msra.mxu0 0.0
    %4867 = vmatpush.msra.mxu0 0.0
    %4868 = vmatpush.msra.mxu0 0.0
    %4869 = vmatpush.msra.mxu0 0.0
    %4870 = vmatpush.msra.mxu0 0.0
    %4871 = vmatpush.msra.mxu0 0.0
    %4872 = vmatpush.msra.mxu0 0.0
    %4873 = vmatpush.msra.mxu0 0.0
    %4874 = vmatpush.msra.mxu0 0.0
    %4875 = vmatpush.msra.mxu0 0.0
    %4876 = vmatpush.msra.mxu0 0.0
    %4877 = vmatpush.msra.mxu0 0.0
    %4878 = vmatpush.msra.mxu0 %v4693
    %4879 = vmatpush.msra.mxu0 %v4692
    %4880 = vmatpush.msra.mxu0 %v4691
    %4881 = vmatpush.msra.mxu0 %v4690
    %4882 = vmatmul.f32.gmra.mxu0 %v3123
    %v4883 = vpop.f32.mrf.mxu0
    %v4884 = vadd.f32 0.0, %v4883
    %4885 = vmatmul.f32.gmra.mxu0 %v3126
    %v4886 = vpop.f32.mrf.mxu0
    %v4887 = vadd.f32 0.0, %v4886
    %4888 = vdwg.mxu0
    %4889 = vmatpush.msra.mxu0 0.0
    %4890 = vmatpush.msra.mxu0 0.0
    %4891 = vmatpush.msra.mxu0 0.0
    %4892 = vmatpush.msra.mxu0 0.0
    %4893 = vmatpush.msra.mxu0 0.0
    %4894 = vmatpush.msra.mxu0 0.0
    %4895 = vmatpush.msra.mxu0 0.0
    %4896 = vmatpush.msra.mxu0 0.0
    %4897 = vmatpush.msra.mxu0 0.0
    %4898 = vmatpush.msra.mxu0 0.0
    %4899 = vmatpush.msra.mxu0 0.0
    %4900 = vmatpush.msra.mxu0 0.0
    %4901 = vmatpush.msra.mxu0 %v4697
    %4902 = vmatpush.msra.mxu0 %v4696
    %4903 = vmatpush.msra.mxu0 %v4695
    %4904 = vmatpush.msra.mxu0 %v4694
    %4905 = vmatmul.f32.gmra.mxu0 %v3123
    %v4906 = vpop.f32.mrf.mxu0
    %v4907 = vadd.f32 0.0, %v4906
    %4908 = vmatmul.f32.gmra.mxu0 %v3126
    %v4909 = vpop.f32.mrf.mxu0
    %v4910 = vadd.f32 0.0, %v4909
    %4911 = vdwg.mxu0
    %4912 = vmatpush.msra.mxu0 0.0
    %4913 = vmatpush.msra.mxu0 0.0
    %4914 = vmatpush.msra.mxu0 0.0
    %4915 = vmatpush.msra.mxu0 0.0
    %4916 = vmatpush.msra.mxu0 0.0
    %4917 = vmatpush.msra.mxu0 0.0
    %4918 = vmatpush.msra.mxu0 0.0
    %4919 = vmatpush.msra.mxu0 0.0
    %4920 = vmatpush.msra.mxu0 0.0
    %4921 = vmatpush.msra.mxu0 0.0
    %4922 = vmatpush.msra.mxu0 0.0
    %4923 = vmatpush.msra.mxu0 0.0
    %4924 = vmatpush.msra.mxu0 %v4702
    %4925 = vmatpush.msra.mxu0 %v4701
    %4926 = vmatpush.msra.mxu0 %v4700
    %4927 = vmatpush.msra.mxu0 %v4699
    %4928 = vmatmul.f32.gmra.mxu0 %v3123
    %v4929 = vpop.f32.mrf.mxu0
    %v4930 = vadd.f32 0.0, %v4929
    %4931 = vmatmul.f32.gmra.mxu0 %v3126
    %v4932 = vpop.f32.mrf.mxu0
    %v4933 = vadd.f32 0.0, %v4932
    %4934 = vdwg.mxu0
    %4935 = vmatpush.msra.mxu0 0.0
    %4936 = vmatpush.msra.mxu0 0.0
    %4937 = vmatpush.msra.mxu0 0.0
    %4938 = vmatpush.msra.mxu0 0.0
    %4939 = vmatpush.msra.mxu0 0.0
    %4940 = vmatpush.msra.mxu0 0.0
    %4941 = vmatpush.msra.mxu0 0.0
    %4942 = vmatpush.msra.mxu0 0.0
    %4943 = vmatpush.msra.mxu0 0.0
    %4944 = vmatpush.msra.mxu0 0.0
    %4945 = vmatpush.msra.mxu0 0.0
    %4946 = vmatpush.msra.mxu0 0.0
    %4947 = vmatpush.msra.mxu0 %v4706
    %4948 = vmatpush.msra.mxu0 %v4705
    %4949 = vmatpush.msra.mxu0 %v4704
    %4950 = vmatpush.msra.mxu0 %v4703
    %4951 = vmatmul.f32.gmra.mxu0 %v3123
    %v4952 = vpop.f32.mrf.mxu0
    %v4953 = vadd.f32 0.0, %v4952
    %4954 = vmatmul.f32.gmra.mxu0 %v3126
    %v4955 = vpop.f32.mrf.mxu0
    %v4956 = vadd.f32 0.0, %v4955
    %4957 = vdwg.mxu0
    %4958 = vmatpush.msra.mxu0 0.0
    %4959 = vmatpush.msra.mxu0 0.0
    %4960 = vmatpush.msra.mxu0 0.0
    %4961 = vmatpush.msra.mxu0 0.0
    %4962 = vmatpush.msra.mxu0 0.0
    %4963 = vmatpush.msra.mxu0 0.0
    %4964 = vmatpush.msra.mxu0 0.0
    %4965 = vmatpush.msra.mxu0 0.0
    %4966 = vmatpush.msra.mxu0 0.0
    %4967 = vmatpush.msra.mxu0 0.0
    %4968 = vmatpush.msra.mxu0 0.0
    %4969 = vmatpush.msra.mxu0 0.0
    %4970 = vmatpush.msra.mxu0 %v4710
    %4971 = vmatpush.msra.mxu0 %v4709
    %4972 = vmatpush.msra.mxu0 %v4708
    %4973 = vmatpush.msra.mxu0 %v4707
    %4974 = vmatmul.f32.gmra.mxu0 %v3123
    %v4975 = vpop.f32.mrf.mxu0
    %v4976 = vadd.f32 0.0, %v4975
    %4977 = vmatmul.f32.gmra.mxu0 %v3126
    %v4978 = vpop.f32.mrf.mxu0
    %v4979 = vadd.f32 0.0, %v4978
    %4980 = vdwg.mxu0
    %4981 = vmatpush.msra.mxu0 0.0
    %4982 = vmatpush.msra.mxu0 0.0
    %4983 = vmatpush.msra.mxu0 0.0
    %4984 = vmatpush.msra.mxu0 0.0
    %4985 = vmatpush.msra.mxu0 0.0
    %4986 = vmatpush.msra.mxu0 0.0
    %4987 = vmatpush.msra.mxu0 0.0
    %4988 = vmatpush.msra.mxu0 0.0
    %4989 = vmatpush.msra.mxu0 0.0
    %4990 = vmatpush.msra.mxu0 0.0
    %4991 = vmatpush.msra.mxu0 0.0
    %4992 = vmatpush.msra.mxu0 0.0
    %4993 = vmatpush.msra.mxu0 %v4714
    %4994 = vmatpush.msra.mxu0 %v4713
    %4995 = vmatpush.msra.mxu0 %v4712
    %4996 = vmatpush.msra.mxu0 %v4711
    %4997 = vmatmul.f32.gmra.mxu0 %v3123
    %v4998 = vpop.f32.mrf.mxu0
    %v4999 = vadd.f32 0.0, %v4998
    %5000 = vmatmul.f32.gmra.mxu0 %v3126
    %v5001 = vpop.f32.mrf.mxu0
    %v5002 = vadd.f32 0.0, %v5001
    %5003 = vdwg.mxu0
    %v5005 = vsel %vm635, %v4746, 0
    %v5008 = vsel %vm635, %v4749, 0
    %v5011 = vsel %vm635, %v4769, 0
    %v5014 = vsel %vm635, %v4772, 0
    %v5017 = vsel %vm635, %v4792, 0
    %v5020 = vsel %vm635, %v4795, 0
    %v5023 = vsel %vm635, %v4815, 0
    %v5026 = vsel %vm635, %v4818, 0
    %v5029 = vsel %vm635, %v4838, 0
    %v5032 = vsel %vm635, %v4841, 0
    %v5035 = vsel %vm635, %v4861, 0
    %v5038 = vsel %vm635, %v4864, 0
    %v5041 = vsel %vm635, %v4884, 0
    %v5044 = vsel %vm635, %v4887, 0
    %v5047 = vsel %vm635, %v4907, 0
    %v5050 = vsel %vm635, %v4910, 0
    %5052 = vmatpush.xpose.msra.mxu0 0.0
    %5053 = vmatpush.xpose.msra.mxu0 0.0
    %5054 = vmatpush.xpose.msra.mxu0 0.0
    %5055 = vmatpush.xpose.msra.mxu0 0.0
    %5056 = vmatpush.xpose.msra.mxu0 0.0
    %5057 = vmatpush.xpose.msra.mxu0 0.0
    %5058 = vmatpush.xpose.msra.mxu0 0.0
    %5059 = vmatpush.xpose.msra.mxu0 0.0
    %5060 = vmatpush.xpose.msra.mxu0 %v5050
    %5061 = vmatpush.xpose.msra.mxu0 %v5047
    %5062 = vmatpush.xpose.msra.mxu0 %v5044
    %5063 = vmatpush.xpose.msra.mxu0 %v5041
    %5064 = vmatpush.xpose.msra.mxu0 %v5038
    %5065 = vmatpush.xpose.msra.mxu0 %v5035
    %5066 = vmatpush.xpose.msra.mxu0 %v5032
    %5067 = vmatpush.xpose.msra.mxu0 %v5029
    %5068 = vmatmul.f32.gmra.mxu0 %v5005
    %v5069 = vpop.f32.mrf.mxu0
    %v5070 = vadd.f32 %v131, %v5069
    %5071 = vmatmul.f32.gmra.mxu0 %v5008
    %v5072 = vpop.f32.mrf.mxu0
    %v5073 = vadd.f32 %v132, %v5072
    %5074 = vmatmul.f32.gmra.mxu0 %v5011
    %v5075 = vpop.f32.mrf.mxu0
    %v5076 = vadd.f32 %v133, %v5075
    %5077 = vmatmul.f32.gmra.mxu0 %v5014
    %v5078 = vpop.f32.mrf.mxu0
    %v5079 = vadd.f32 %v134, %v5078
    %5080 = vmatmul.f32.gmra.mxu0 %v5017
    %v5081 = vpop.f32.mrf.mxu0
    %v5082 = vadd.f32 %v135, %v5081
    %5083 = vmatmul.f32.gmra.mxu0 %v5020
    %v5084 = vpop.f32.mrf.mxu0
    %v5085 = vadd.f32 %v136, %v5084
    %5086 = vmatmul.f32.gmra.mxu0 %v5023
    %v5087 = vpop.f32.mrf.mxu0
    %v5088 = vadd.f32 %v137, %v5087
    %5089 = vmatmul.f32.gmra.mxu0 %v5026
    %v5090 = vpop.f32.mrf.mxu0
    %v5091 = vadd.f32 %v138, %v5090
    %5092 = vdwg.mxu0
    %v5093 = vsel %vm725, %v5070, -inf
    %5094 = vmax.xlane.f32.xlu0 %v5093
    %v5095 = vpop.xlane.xlu0 %5094
    %v5096 = vsel %vm725, %v5073, -inf
    %5097 = vmax.xlane.f32.xlu0 %v5096
    %v5098 = vpop.xlane.xlu0 %5097
    %v5099 = vsel %vm725, %v5076, -inf
    %5100 = vmax.xlane.f32.xlu0 %v5099
    %v5101 = vpop.xlane.xlu0 %5100
    %v5102 = vsel %vm725, %v5079, -inf
    %5103 = vmax.xlane.f32.xlu0 %v5102
    %v5104 = vpop.xlane.xlu0 %5103
    %v5105 = vsel %vm725, %v5082, -inf
    %5106 = vmax.xlane.f32.xlu0 %v5105
    %v5107 = vpop.xlane.xlu0 %5106
    %v5108 = vsel %vm725, %v5085, -inf
    %5109 = vmax.xlane.f32.xlu0 %v5108
    %v5110 = vpop.xlane.xlu0 %5109
    %v5111 = vsel %vm725, %v5088, -inf
    %5112 = vmax.xlane.f32.xlu0 %v5111
    %v5113 = vpop.xlane.xlu0 %5112
    %v5114 = vsel %vm725, %v5091, -inf
    %5115 = vmax.xlane.f32.xlu0 %v5114
    %v5116 = vpop.xlane.xlu0 %5115
    %v5117 = vsub.f32 %v5070, %v5095
    %v5118 = vsub.f32 %v5073, %v5098
    %v5119 = vsub.f32 %v5076, %v5101
    %v5120 = vsub.f32 %v5079, %v5104
    %v5121 = vsub.f32 %v5082, %v5107
    %v5122 = vsub.f32 %v5085, %v5110
    %v5123 = vsub.f32 %v5088, %v5113
    %v5124 = vsub.f32 %v5091, %v5116
    %v5125 = vmul.f32 %v5117, 1.442695
    %v5126 = vpow.pop %v5125
    %v5127 = vmul.f32 %v5118, 1.442695
    %v5128 = vpow.pop %v5127
    %v5129 = vmul.f32 %v5119, 1.442695
    %v5130 = vpow.pop %v5129
    %v5131 = vmul.f32 %v5120, 1.442695
    %v5132 = vpow.pop %v5131
    %v5133 = vmul.f32 %v5121, 1.442695
    %v5134 = vpow.pop %v5133
    %v5135 = vmul.f32 %v5122, 1.442695
    %v5136 = vpow.pop %v5135
    %v5137 = vmul.f32 %v5123, 1.442695
    %v5138 = vpow.pop %v5137
    %v5139 = vmul.f32 %v5124, 1.442695
    %v5140 = vpow.pop %v5139
    %v5141 = vsel %vm725, %v5126, 0.0
    %5142 = vadd.xlane.f32.xlu0 %v5141
    %v5143 = vpop.xlane.xlu0 %5142
    %v5144 = vsel %vm725, %v5128, 0.0
    %5145 = vadd.xlane.f32.xlu0 %v5144
    %v5146 = vpop.xlane.xlu0 %5145
    %v5147 = vsel %vm725, %v5130, 0.0
    %5148 = vadd.xlane.f32.xlu0 %v5147
    %v5149 = vpop.xlane.xlu0 %5148
    %v5150 = vsel %vm725, %v5132, 0.0
    %5151 = vadd.xlane.f32.xlu0 %v5150
    %v5152 = vpop.xlane.xlu0 %5151
    %v5153 = vsel %vm725, %v5134, 0.0
    %5154 = vadd.xlane.f32.xlu0 %v5153
    %v5155 = vpop.xlane.xlu0 %5154
    %v5156 = vsel %vm725, %v5136, 0.0
    %5157 = vadd.xlane.f32.xlu0 %v5156
    %v5158 = vpop.xlane.xlu0 %5157
    %v5159 = vsel %vm725, %v5138, 0.0
    %5160 = vadd.xlane.f32.xlu0 %v5159
    %v5161 = vpop.xlane.xlu0 %5160
    %v5162 = vsel %vm725, %v5140, 0.0
    %5163 = vadd.xlane.f32.xlu0 %v5162
    %v5164 = vpop.xlane.xlu0 %5163
    %v5165 = vrcp.pop %v5143
    %v5166 = vrcp.pop %v5146
    %v5167 = vrcp.pop %v5149
    %v5168 = vrcp.pop %v5152
    %v5169 = vrcp.pop %v5155
    %v5170 = vrcp.pop %v5158
    %v5171 = vrcp.pop %v5161
    %v5172 = vrcp.pop %v5164
    %v5173 = vmul.f32 %v5126, %v5165
    %v5174 = vmul.f32 %v5128, %v5166
    %v5175 = vmul.f32 %v5130, %v5167
    %v5176 = vmul.f32 %v5132, %v5168
    %v5177 = vmul.f32 %v5134, %v5169
    %v5178 = vmul.f32 %v5136, %v5170
    %v5179 = vmul.f32 %v5138, %v5171
    %v5180 = vmul.f32 %v5140, %v5172
    %v5182 = vsel %vm725, %v5173, 0
    %v5185 = vsel %vm725, %v5174, 0
    %v5188 = vsel %vm725, %v5175, 0
    %v5191 = vsel %vm725, %v5176, 0
    %v5194 = vsel %vm725, %v5177, 0
    %v5197 = vsel %vm725, %v5178, 0
    %v5200 = vsel %vm725, %v5179, 0
    %v5203 = vsel %vm725, %v5180, 0
    %5205 = vmatpush.msra.mxu0 0.0
    %5206 = vmatpush.msra.mxu0 0.0
    %5207 = vmatpush.msra.mxu0 0.0
    %5208 = vmatpush.msra.mxu0 0.0
    %5209 = vmatpush.msra.mxu0 0.0
    %5210 = vmatpush.msra.mxu0 0.0
    %5211 = vmatpush.msra.mxu0 0.0
    %5212 = vmatpush.msra.mxu0 0.0
    %5213 = vmatpush.msra.mxu0 %v5002
    %5214 = vmatpush.msra.mxu0 %v4999
    %5215 = vmatpush.msra.mxu0 %v4979
    %5216 = vmatpush.msra.mxu0 %v4976
    %5217 = vmatpush.msra.mxu0 %v4956
    %5218 = vmatpush.msra.mxu0 %v4953
    %5219 = vmatpush.msra.mxu0 %v4933
    %5220 = vmatpush.msra.mxu0 %v4930
    %5221 = vmatmul.f32.gmra.mxu0 %v5182
    %v5222 = vpop.f32.mrf.mxu0
    %v5223 = vadd.f32 0.0, %v5222
    %5224 = vmatmul.f32.gmra.mxu0 %v5185
    %v5225 = vpop.f32.mrf.mxu0
    %v5226 = vadd.f32 0.0, %v5225
    %5227 = vmatmul.f32.gmra.mxu0 %v5188
    %v5228 = vpop.f32.mrf.mxu0
    %v5229 = vadd.f32 0.0, %v5228
    %5230 = vmatmul.f32.gmra.mxu0 %v5191
    %v5231 = vpop.f32.mrf.mxu0
    %v5232 = vadd.f32 0.0, %v5231
    %5233 = vmatmul.f32.gmra.mxu0 %v5194
    %v5234 = vpop.f32.mrf.mxu0
    %v5235 = vadd.f32 0.0, %v5234
    %5236 = vmatmul.f32.gmra.mxu0 %v5197
    %v5237 = vpop.f32.mrf.mxu0
    %v5238 = vadd.f32 0.0, %v5237
    %5239 = vmatmul.f32.gmra.mxu0 %v5200
    %v5240 = vpop.f32.mrf.mxu0
    %v5241 = vadd.f32 0.0, %v5240
    %5242 = vmatmul.f32.gmra.mxu0 %v5203
    %v5243 = vpop.f32.mrf.mxu0
    %v5244 = vadd.f32 0.0, %v5243
    %5245 = vdwg.mxu0
    %v5247 = vsel %vm635, %v5229, 0
    %v5250 = vsel %vm635, %v5232, 0
    %5252 = vmatpush.msra.mxu0 0.0
    %5253 = vmatpush.msra.mxu0 0.0
    %5254 = vmatpush.msra.mxu0 0.0
    %5255 = vmatpush.msra.mxu0 0.0
    %5256 = vmatpush.msra.mxu0 0.0
    %5257 = vmatpush.msra.mxu0 0.0
    %5258 = vmatpush.msra.mxu0 0.0
    %5259 = vmatpush.msra.mxu0 0.0
    %5260 = vmatpush.msra.mxu0 0.0
    %5261 = vmatpush.msra.mxu0 0.0
    %5262 = vmatpush.msra.mxu0 0.0
    %5263 = vmatpush.msra.mxu0 0.0
    %5264 = vmatpush.msra.mxu0 0.0
    %5265 = vmatpush.msra.mxu0 0.0
    %5266 = vmatpush.msra.mxu0 0.0
    %5267 = vmatpush.msra.mxu0 %v4717
    %5268 = vmatmul.f32.gmra.mxu0 %v5247
    %v5269 = vpop.f32.mrf.mxu0
    %v5270 = vadd.f32 0.0, %v5269
    %5271 = vmatmul.f32.gmra.mxu0 %v5250
    %v5272 = vpop.f32.mrf.mxu0
    %v5273 = vadd.f32 0.0, %v5272
    %5274 = vdwg.mxu0
    %v5276 = vsel %vm635, %v5223, 0
    %v5279 = vsel %vm635, %v5226, 0
    %5281 = vmatpush.msra.mxu0 0.0
    %5282 = vmatpush.msra.mxu0 0.0
    %5283 = vmatpush.msra.mxu0 0.0
    %5284 = vmatpush.msra.mxu0 0.0
    %5285 = vmatpush.msra.mxu0 0.0
    %5286 = vmatpush.msra.mxu0 0.0
    %5287 = vmatpush.msra.mxu0 0.0
    %5288 = vmatpush.msra.mxu0 0.0
    %5289 = vmatpush.msra.mxu0 0.0
    %5290 = vmatpush.msra.mxu0 0.0
    %5291 = vmatpush.msra.mxu0 0.0
    %5292 = vmatpush.msra.mxu0 0.0
    %5293 = vmatpush.msra.mxu0 0.0
    %5294 = vmatpush.msra.mxu0 0.0
    %5295 = vmatpush.msra.mxu0 0.0
    %5296 = vmatpush.msra.mxu0 %v4716
    %5297 = vmatmul.f32.gmra.mxu0 %v5276
    %v5298 = vpop.f32.mrf.mxu0
    %v5299 = vadd.f32 %v5270, %v5298
    %5300 = vmatmul.f32.gmra.mxu0 %v5279
    %v5301 = vpop.f32.mrf.mxu0
    %v5302 = vadd.f32 %v5273, %v5301
    %5303 = vdwg.mxu0
    %v5305 = vsel %vm635, %v5235, 0
    %v5308 = vsel %vm635, %v5238, 0
    %5310 = vmatpush.msra.mxu0 0.0
    %5311 = vmatpush.msra.mxu0 0.0
    %5312 = vmatpush.msra.mxu0 0.0
    %5313 = vmatpush.msra.mxu0 0.0
    %5314 = vmatpush.msra.mxu0 0.0
    %5315 = vmatpush.msra.mxu0 0.0
    %5316 = vmatpush.msra.mxu0 0.0
    %5317 = vmatpush.msra.mxu0 0.0
    %5318 = vmatpush.msra.mxu0 0.0
    %5319 = vmatpush.msra.mxu0 0.0
    %5320 = vmatpush.msra.mxu0 0.0
    %5321 = vmatpush.msra.mxu0 0.0
    %5322 = vmatpush.msra.mxu0 0.0
    %5323 = vmatpush.msra.mxu0 0.0
    %5324 = vmatpush.msra.mxu0 0.0
    %5325 = vmatpush.msra.mxu0 %v4718
    %5326 = vmatmul.f32.gmra.mxu0 %v5305
    %v5327 = vpop.f32.mrf.mxu0
    %v5328 = vadd.f32 0.0, %v5327
    %5329 = vmatmul.f32.gmra.mxu0 %v5308
    %v5330 = vpop.f32.mrf.mxu0
    %v5331 = vadd.f32 0.0, %v5330
    %5332 = vdwg.mxu0
    %v5333 = vadd.f32 %v5299, %v5328
    %v5334 = vadd.f32 %v5302, %v5331
    %v5336 = vsel %vm635, %v5241, 0
    %v5339 = vsel %vm635, %v5244, 0
    %5341 = vmatpush.msra.mxu0 0.0
    %5342 = vmatpush.msra.mxu0 0.0
    %5343 = vmatpush.msra.mxu0 0.0
    %5344 = vmatpush.msra.mxu0 0.0
    %5345 = vmatpush.msra.mxu0 0.0
    %5346 = vmatpush.msra.mxu0 0.0
    %5347 = vmatpush.msra.mxu0 0.0
    %5348 = vmatpush.msra.mxu0 0.0
    %5349 = vmatpush.msra.mxu0 0.0
    %5350 = vmatpush.msra.mxu0 0.0
    %5351 = vmatpush.msra.mxu0 0.0
    %5352 = vmatpush.msra.mxu0 0.0
    %5353 = vmatpush.msra.mxu0 0.0
    %5354 = vmatpush.msra.mxu0 0.0
    %5355 = vmatpush.msra.mxu0 0.0
    %5356 = vmatpush.msra.mxu0 %v4719
    %5357 = vmatmul.f32.gmra.mxu0 %v5336
    %v5358 = vpop.f32.mrf.mxu0
    %v5359 = vadd.f32 0.0, %v5358
    %5360 = vmatmul.f32.gmra.mxu0 %v5339
    %v5361 = vpop.f32.mrf.mxu0
    %v5362 = vadd.f32 0.0, %v5361
    %5363 = vdwg.mxu0
    %v5364 = vadd.f32 %v5333, %v5359
    %v5365 = vadd.f32 %v5334, %v5362
    %v5367 = vperm.slane %v4721, 0
    %v5369 = vadd.f32 %v5364, %v5367
    %v5370 = vadd.f32 %v5365, %v5367
    %v5371 = vadd.f32 %v5369, %v4598
    %v5372 = vadd.f32 %v5370, %v4599
    %s5373 = scalar_lea.vmem %s51, 32
    %v5374 = vld [vmem:[%s5373] sm:$0xff]
    %v5375 = vld [vmem:[%s5373 + $0x8] sm:$0xff]
    %v5376 = vld [vmem:[%s5373 + $0x10] sm:$0xff]
    %v5377 = vld [vmem:[%s5373 + $0x18] sm:$0xff]
    %s5378 = scalar_lea.vmem %s53, 1
    %v5379 = vld [vmem:[%s5378] sm:$0x1]
    %s5380 = scalar_lea.vmem %s55, 64
    %v5381 = vld [vmem:[%s5380] sm:$0xff]
    %v5382 = vld [vmem:[%s5380 + $0x8] sm:$0xff]
    %v5383 = vld [vmem:[%s5380 + $0x10] sm:$0xff]
    %v5384 = vld [vmem:[%s5380 + $0x18] sm:$0xff]
    %v5385 = vld [vmem:[%s5380 + $0x20] sm:$0xff]
    %v5386 = vld [vmem:[%s5380 + $0x28] sm:$0xff]
    %v5387 = vld [vmem:[%s5380 + $0x30] sm:$0xff]
    %v5388 = vld [vmem:[%s5380 + $0x38] sm:$0xff]
    %s5389 = scalar_lea.vmem %s57, 1
    %v5390 = vld [vmem:[%s5389] sm:$0x1]
    %v5391 = vmul.f32 %v5371, %v5371
    %v5392 = vmul.f32 %v5372, %v5372
    %v5393 = vsel %vm237, %v5391, 0.0
    %5394 = vadd.xlane.f32.xlu0 %v5393
    %v5395 = vpop.xlane.xlu0 %5394
    %v5396 = vsel %vm237, %v5392, 0.0
    %5397 = vadd.xlane.f32.xlu0 %v5396
    %v5398 = vpop.xlane.xlu0 %5397
    %v5399 = vrsqrt.pop %v5395
    %v5400 = vmul.f32 %v5399, %v5395
    %v5401 = vmul.f32 %v5400, %v5399
    %v5402 = vmul.f32 0.5, %v5401
    %v5403 = vsub.f32 1.5, %v5402
    %v5404 = vmul.f32 %v5399, %v5403
    %v5405 = vmul.f32 %v5395, %v5404
    %vm5406 = vcmp.eq.f32.partialorder %v5395, inf
    %v5407 = vsel %vm5406, %v5395, %v5405
    %vm5408 = vcmp.eq.f32.partialorder %v5395, 0.0
    %v5409 = vand.u32 %v5395, 2147483648
    %v5410 = vsel %vm5408, %v5409, %v5407
    %v5411 = vrsqrt.pop %v5398
    %v5412 = vmul.f32 %v5411, %v5398
    %v5413 = vmul.f32 %v5412, %v5411
    %v5414 = vmul.f32 0.5, %v5413
    %v5415 = vsub.f32 1.5, %v5414
    %v5416 = vmul.f32 %v5411, %v5415
    %v5417 = vmul.f32 %v5398, %v5416
    %vm5418 = vcmp.eq.f32.partialorder %v5398, inf
    %v5419 = vsel %vm5418, %v5398, %v5417
    %vm5420 = vcmp.eq.f32.partialorder %v5398, 0.0
    %v5421 = vand.u32 %v5398, 2147483648
    %v5422 = vsel %vm5420, %v5421, %v5419
    %v5423 = vmax.f32 %v5410, 1e-05
    %v5424 = vmax.f32 %v5422, 1e-05
    %v5425 = vrcp.pop %v5423
    %v5426 = vmul.f32 %v5423, %v5425
    %v5427 = vsub.f32 1.0, %v5426
    %v5428 = vmul.f32 %v5425, %v5427
    %v5429 = vadd.f32 %v5425, %v5428
    %vm5430 = vweird.f32 %v5423
    %vm5431 = vweird.f32 %v5425
    %vm5432 = vmor %vm5430, %vm5431
    %v5433 = vsel %vm5432, %v5425, %v5429
    %v5434 = vand.u32 2147483647, %v5423
    %vm5435 = vcmp.eq.f32.partialorder %v5434, 8.507059e+37
    %v5436 = vand.u32 %v5423, 2147483648
    %v5437 = vor.u32 1.1754944e-38, %v5436
    %v5438 = vsel %vm5435, %v5437, %v5433
    %v5439 = vmul.f32 %v5371, %v5438
    %v5440 = vrcp.pop %v5424
    %v5441 = vmul.f32 %v5424, %v5440
    %v5442 = vsub.f32 1.0, %v5441
    %v5443 = vmul.f32 %v5440, %v5442
    %v5444 = vadd.f32 %v5440, %v5443
    %vm5445 = vweird.f32 %v5424
    %vm5446 = vweird.f32 %v5440
    %vm5447 = vmor %vm5445, %vm5446
    %v5448 = vsel %vm5447, %v5440, %v5444
    %v5449 = vand.u32 2147483647, %v5424
    %vm5450 = vcmp.eq.f32.partialorder %v5449, 8.507059e+37
    %v5451 = vand.u32 %v5424, 2147483648
    %v5452 = vor.u32 1.1754944e-38, %v5451
    %v5453 = vsel %vm5450, %v5452, %v5448
    %v5454 = vmul.f32 %v5372, %v5453
    %v5456 = vperm.slane %v5379, 0
    %v5459 = vsel %vm237, %v5439, 0
    %v5462 = vsel %vm237, %v5454, 0
    %5464 = vmatpush.msra.mxu0 0.0
    %5465 = vmatpush.msra.mxu0 0.0
    %5466 = vmatpush.msra.mxu0 0.0
    %5467 = vmatpush.msra.mxu0 0.0
    %5468 = vmatpush.msra.mxu0 0.0
    %5469 = vmatpush.msra.mxu0 0.0
    %5470 = vmatpush.msra.mxu0 0.0
    %5471 = vmatpush.msra.mxu0 0.0
    %5472 = vmatpush.msra.mxu0 0.0
    %5473 = vmatpush.msra.mxu0 0.0
    %5474 = vmatpush.msra.mxu0 0.0
    %5475 = vmatpush.msra.mxu0 0.0
    %5476 = vmatpush.msra.mxu0 %v5377
    %5477 = vmatpush.msra.mxu0 %v5376
    %5478 = vmatpush.msra.mxu0 %v5375
    %5479 = vmatpush.msra.mxu0 %v5374
    %5480 = vmatmul.f32.gmra.mxu0 %v5459
    %v5481 = vpop.f32.mrf.mxu0
    %v5482 = vadd.f32 %v5456, %v5481
    %5483 = vmatmul.f32.gmra.mxu0 %v5462
    %v5484 = vpop.f32.mrf.mxu0
    %v5485 = vadd.f32 %v5456, %v5484
    %5486 = vdwg.mxu0
    %v5487 = vmax.f32 %v5482, 0.0
    %v5488 = vmax.f32 %v5485, 0.0
    %v5490 = vperm.slane %v5390, 0
    %v5493 = vsel %vm725, %v5487, 0
    %v5496 = vsel %vm725, %v5488, 0
    %5498 = vmatpush.msra.mxu0 0.0
    %5499 = vmatpush.msra.mxu0 0.0
    %5500 = vmatpush.msra.mxu0 0.0
    %5501 = vmatpush.msra.mxu0 0.0
    %5502 = vmatpush.msra.mxu0 0.0
    %5503 = vmatpush.msra.mxu0 0.0
    %5504 = vmatpush.msra.mxu0 0.0
    %5505 = vmatpush.msra.mxu0 0.0
    %5506 = vmatpush.msra.mxu0 %v5388
    %5507 = vmatpush.msra.mxu0 %v5387
    %5508 = vmatpush.msra.mxu0 %v5386
    %5509 = vmatpush.msra.mxu0 %v5385
    %5510 = vmatpush.msra.mxu0 %v5384
    %5511 = vmatpush.msra.mxu0 %v5383
    %5512 = vmatpush.msra.mxu0 %v5382
    %5513 = vmatpush.msra.mxu0 %v5381
    %5514 = vmatmul.f32.gmra.mxu0 %v5493
    %v5515 = vpop.f32.mrf.mxu0
    %v5516 = vadd.f32 %v5490, %v5515
    %5517 = vmatmul.f32.gmra.mxu0 %v5496
    %v5518 = vpop.f32.mrf.mxu0
    %v5519 = vadd.f32 %v5490, %v5518
    %5520 = vdwg.mxu0
    %v5521 = vadd.f32 %v5516, %v5371
    %v5522 = vadd.f32 %v5519, %v5372
    %v5523 = vld [vmem:[%s59] sm:$0xff]
    %v5524 = vld [vmem:[%s59 + $0x8] sm:$0xff]
    %v5525 = vld [vmem:[%s59 + $0x10] sm:$0xff]
    %v5526 = vld [vmem:[%s59 + $0x18] sm:$0xff]
    %v5527 = vld [vmem:[%s61] sm:$0x1]
    %v5529 = vperm.slane %v5527, 0
    %v5532 = vsel %vm237, %v5521, 0
    %v5535 = vsel %vm237, %v5522, 0
    %5537 = vmatpush.msra.mxu0 0.0
    %5538 = vmatpush.msra.mxu0 0.0
    %5539 = vmatpush.msra.mxu0 0.0
    %5540 = vmatpush.msra.mxu0 0.0
    %5541 = vmatpush.msra.mxu0 0.0
    %5542 = vmatpush.msra.mxu0 0.0
    %5543 = vmatpush.msra.mxu0 0.0
    %5544 = vmatpush.msra.mxu0 0.0
    %5545 = vmatpush.msra.mxu0 0.0
    %5546 = vmatpush.msra.mxu0 0.0
    %5547 = vmatpush.msra.mxu0 0.0
    %5548 = vmatpush.msra.mxu0 0.0
    %5549 = vmatpush.msra.mxu0 %v5526
    %5550 = vmatpush.msra.mxu0 %v5525
    %5551 = vmatpush.msra.mxu0 %v5524
    %5552 = vmatpush.msra.mxu0 %v5523
    %5553 = vmatmul.f32.gmra.mxu0 %v5532
    %v5554 = vpop.f32.mrf.mxu0
    %v5555 = vadd.f32 %v5529, %v5554
    %5556 = vmatmul.f32.gmra.mxu0 %v5535
    %v5557 = vpop.f32.mrf.mxu0
    %v5558 = vadd.f32 %v5529, %v5557
    %5559 = vdwg.mxu0
    %5560 = vst [vmem:[#allocation2] sm:$0xff] %v5555
    %5561 = vst [vmem:[#allocation2 + $0x8] sm:$0xff] %v5558
    // Predicated region
    $region126: #{transformer_forward.1} parent=1 // pred_check
      _
    $region127: #{transformer_forward.1} parent=1 // pred_check_branch
      %5563 = sbr.rel (0) target = $region129
    $region128: #{transformer_forward.1} parent=1 // pred_region
      %5565 = vsyncadd [#allocation3], 0
      %s5566 = sshll.u32 [#allocation2], 4
      %s5567 = int_to_ptr.vmem [resolvable:$true] %s5566
      %s5568 = sshll.u32 %s63, 4
      %s5569 = int_to_ptr.hbm [resolvable:$true] %s5568
      %5574 = dma.vmem_to_hbm [thread:$0]  %s5567, 256, %s5569, [#allocation3], 128, 128, 8
    $region129: #{transformer_forward.1} parent=1 // pred_fallthru
      _
    // Predicated region
    $region130: #{transformer_forward.1} parent=1 // pred_check
      _
    $region131: #{transformer_forward.1} parent=1 // pred_check_branch
      %5576 = sbr.rel (0) target = $region133
    $region132: #{transformer_forward.1} parent=1 // pred_region
      %5578 = dma.done [#allocation3], 256
    $region133: #{transformer_forward.1} parent=1 // pred_fallthru
      _
    %5579 = vsyncpa [#allocation3], 1

</llo_original>
